<compile_context>
chip_gen: v7x
topology: tpu7x:2x2x1
jax: 0.10.0
libtpu: 0.0.40
codegen_flags: <defaults>
</compile_context>

<pallas_src>
import functools
import math

import jax
import jax.numpy as jnp
from jax.experimental import pallas as pl
from jax.experimental.pallas import tpu as pltpu


LN_EPS = 1e-5

# Fixed operand order of the stacked per-stage weights passed to the kernels.
_W_NAMES = ("pos", "pe_w", "pe_b", "qkv_w", "qkv_b", "out_w", "out_b",
            "ff1_w", "ff1_b", "ff2_w", "ff2_b",
            "ln1_g", "ln1_b", "ln2_g", "ln2_b", "pu_w", "pu_b")


# ---------------------------------------------------------------------------
# Per-stage ViT compute (runs inside the Pallas kernels, everything in VMEM)
# ---------------------------------------------------------------------------

def _vit_stage(patches, w, *, num_layers, nhead, ln_eps):
    """One VisionTransformerForRegression forward in patch space.

    patches: [bt, S, PD] float32 (also the residual base).
    w: per-stage weight values (matmul weights bf16, everything else f32);
       the 1/sqrt(head_dim) scale is pre-folded into the Q columns of qkv_w/b.
    Returns clamped output patches [bt, S, PD] float32.
    """
    f32, bf16 = jnp.float32, jnp.bfloat16
    bt, S, PD = patches.shape
    E = w["pos"].shape[-1]
    Dh = E // nhead
    R = bt * S

    def mm(a, wm):
        # bf16 MXU matmul with f32 accumulation (weights already bf16).
        return jnp.dot(a.astype(bf16), wm, preferred_element_type=f32)

    def layernorm(x, g, b):
        mu = jnp.mean(x, axis=-1, keepdims=True)
        xc = x - mu
        var = jnp.mean(xc * xc, axis=-1, keepdims=True)
        return xc * jax.lax.rsqrt(var + ln_eps) * g + b

    # [bt,S,PD] -> [bt*S,PD]: merges the batch tile into the sublane axis.
    # S % 8 == 0, last dim unchanged -> layout preserving (no data movement).
    x_p = patches.reshape(R, PD)

    pos = w["pos"]
    if bt > 1:
        pos = jnp.concatenate([pos] * bt, axis=0)                    # [R, E]
    tok = mm(x_p, w["pe_w"]) + w["pe_b"] + pos                       # [R, E]

    for l in range(num_layers):                                      # static unroll
        # ---------- multi-head self-attention (batched over (head, batch)) --
        qkv = mm(tok, w["qkv_w"][l]) + w["qkv_b"][l]                 # [R, 3E]

        def split_heads(off):
            # lane slices -> [nhead*bt, S, Dh] with g = h*bt + b ordering
            parts = [qkv[:, off + h * Dh: off + (h + 1) * Dh].reshape(bt, S, Dh)
                     for h in range(nhead)]
            return jnp.concatenate(parts, axis=0) if len(parts) > 1 else parts[0]

        q_h = split_heads(0)
        k_h = split_heads(E)
        v_h = split_heads(2 * E)

        # scale already folded into the Q columns of qkv_w -> no '* scale'
        scores = jnp.einsum('gqd,gkd->gqk',
                            q_h.astype(bf16), k_h.astype(bf16),
                            preferred_element_type=f32)              # [G, S, S]
        m = jnp.max(scores, axis=-1, keepdims=True)
        p = jnp.exp(scores - m)
        p = p * pl.reciprocal(jnp.sum(p, axis=-1, keepdims=True), approx=True)
        ctx = jnp.einsum('gqk,gkd->gqd',
                         p.astype(bf16), v_h.astype(bf16),
                         preferred_element_type=f32)                 # [G, S, Dh]

        # merge heads by accumulating against row-slices of out_w
        # (no concatenate of head outputs).
        attn_out = w["out_b"][l]                                     # [1, E]
        for h in range(nhead):
            ctx_h = ctx[h * bt:(h + 1) * bt].reshape(R, Dh)
            attn_out = attn_out + mm(ctx_h, w["out_w"][l, h * Dh:(h + 1) * Dh, :])

        x = layernorm(tok + attn_out, w["ln1_g"][l], w["ln1_b"][l])

        # ---------- feed forward --------------------------------------------
        h1 = jnp.maximum(mm(x, w["ff1_w"][l]) + w["ff1_b"][l], 0.0)
        h2 = mm(h1, w["ff2_w"][l]) + w["ff2_b"][l]
        tok = layernorm(x + h2, w["ln2_g"][l], w["ln2_b"][l])

    # patch unembed + residual add + clamp (fused)
    res = mm(tok, w["pu_w"]) + w["pu_b"]                             # [R, PD]
    out = jnp.clip(x_p + res, 0.0, 1.0)
    return out.reshape(bt, S, PD)


# ---------------------------------------------------------------------------
# Kernels
# ---------------------------------------------------------------------------

def _vit_tf_kernel(patches_ref, *rest, num_layers, nhead, ln_eps):
    """Teacher-forcing kernel: grid=(stage, batch_tile), one stage per step."""
    w_refs, o_ref = rest[:-1], rest[-1]
    w = {name: r[...] for name, r in zip(_W_NAMES, w_refs)}
    o_ref[...] = _vit_stage(patches_ref[...], w, num_layers=num_layers,
                            nhead=nhead, ln_eps=ln_eps)


def _vit_chain_kernel(ext_ref, *rest, num_layers, nhead, ln_eps, ext_for_stage):
    """Chained kernel: all stages computed inside one grid step (per batch tile).

    ext_for_stage[s] >= 0 selects an externally supplied input (slot in
    ext_ref); -1 means 'use the previous stage's prediction' (stays in VMEM).
    """
    w_refs, o_ref = rest[:-1], rest[-1]
    x = None
    for s, e in enumerate(ext_for_stage):
        if e >= 0:
            x = ext_ref[e]                                           # [bt, S, PD]
        w = {name: r[s] for name, r in zip(_W_NAMES, w_refs)}
        x = _vit_stage(x, w, num_layers=num_layers, nhead=nhead, ln_eps=ln_eps)
        o_ref[s] = x


# ---------------------------------------------------------------------------
# Wrappers: ONE pallas_call for all 5 stages
# ---------------------------------------------------------------------------

def _fused_vit_stages_tf(stage_in, stacked, cfg):
    """Teacher forcing: stage_in[s] is the (patchified) input of stage s."""
    NS, B, S, PD = stage_in.shape
    weights = tuple(stacked[k] for k in _W_NAMES)
    kernel = functools.partial(_vit_tf_kernel, num_layers=cfg["num_layers"],
                               nhead=cfg["nhead"], ln_eps=LN_EPS)

    def wspec(x):
        nd = x.ndim - 1
        return pl.BlockSpec((pl.Squeezed(),) + x.shape[1:],
                            lambda s, b, _nd=nd: (s,) + (0,) * _nd)

    # Whole batch folded into the matmul rows; the stage axis already provides
    # >= 2 parallel grid steps so both v7x TensorCores stay busy.
    bt = B
    io_spec = pl.BlockSpec((pl.Squeezed(), bt, S, PD), lambda s, b: (s, b, 0, 0))

    return pl.pallas_call(
        kernel,
        out_shape=jax.ShapeDtypeStruct((NS, B, S, PD), jnp.float32),
        grid=(NS, B // bt),
        in_specs=[io_spec] + [wspec(x) for x in weights],
        out_specs=io_spec,
        compiler_params=pltpu.CompilerParams(
            dimension_semantics=("parallel", "parallel")),
    )(stage_in, *weights)


def _fused_vit_stages_chained(ext, stacked, cfg, ext_for_stage):
    """No (full) teacher forcing: stages chained inside one grid step."""
    NE, B, S, PD = ext.shape
    NS = len(ext_for_stage)
    weights = tuple(stacked[k] for k in _W_NAMES)
    kernel = functools.partial(_vit_chain_kernel, num_layers=cfg["num_layers"],
                               nhead=cfg["nhead"], ln_eps=LN_EPS,
                               ext_for_stage=ext_for_stage)

    def wspec(x):
        nd = x.ndim
        return pl.BlockSpec(x.shape, lambda b, _nd=nd: (0,) * _nd)

    # Keep >= 2 parallel grid steps when possible (2 TCs on v7x) while folding
    # as many batch rows as possible into each matmul.
    bt = B // 2 if (B % 2 == 0 and B >= 2) else B

    return pl.pallas_call(
        kernel,
        out_shape=jax.ShapeDtypeStruct((NS, B, S, PD), jnp.float32),
        grid=(B // bt,),
        in_specs=[pl.BlockSpec((NE, bt, S, PD), lambda b: (0, b, 0, 0))]
                 + [wspec(x) for x in weights],
        out_specs=pl.BlockSpec((NS, bt, S, PD), lambda b: (0, b, 0, 0)),
        compiler_params=pltpu.CompilerParams(
            dimension_semantics=("parallel",)),
    )(ext, *weights)


# ---------------------------------------------------------------------------
# Patchify / unpatchify glue (pure layout permutations, kept in JAX)
# ---------------------------------------------------------------------------

def patchify(imgs, p):
    b, c, h, w = imgs.shape
    x = imgs.reshape(b, c, h // p, p, w // p, p)
    x = jnp.transpose(x, (0, 2, 4, 3, 5, 1))
    return x.reshape(b, (h // p) * (w // p), p * p * c)


def unpatchify(patches, p, c, h, w):
    b = patches.shape[0]
    x = patches.reshape(b, h // p, w // p, p, p, c)
    x = jnp.transpose(x, (0, 5, 1, 3, 2, 4))
    return x.reshape(b, c, h, w)


# ---------------------------------------------------------------------------
# MultiLayerPredictor.forward
# ---------------------------------------------------------------------------

def multilayer_forward(layer1, all_params, cfg,
                       gt_layer2=None, gt_layer3=None, gt_layer4=None,
                       gt_layer5=None, teacher_forcing=True):
    """5 predictors chained; teacher forcing optional.  ONE pallas_call total."""
    P = cfg["patch_size"]
    B, C, H, W = layer1.shape
    NS = len(all_params)
    gts = (gt_layer2, gt_layer3, gt_layer4, gt_layer5)
    assert NS == len(gts) + 1
    stacked = {k: jnp.stack([p[k] for p in all_params]) for k in _W_NAMES}
    use_gt = tuple(teacher_forcing and g is not None for g in gts)

    if all(use_gt):
        # Every stage input is known up-front -> stages are independent:
        # grid=(stage, batch_tile), both parallel.
        stage_in = jnp.stack([patchify(x, P) for x in (layer1,) + gts])
        out_patches = _fused_vit_stages_tf(stage_in, stacked, cfg)
    else:
        # At least one stage consumes the previous prediction -> chain all
        # stages inside one grid step, activations stay in VMEM (patch space).
        ext = [patchify(layer1, P)]
        ext_for_stage = [0]
        for i, g in enumerate(gts):
            if use_gt[i]:
                ext_for_stage.append(len(ext))
                ext.append(patchify(g, P))
            else:
                ext_for_stage.append(-1)
        out_patches = _fused_vit_stages_chained(
            jnp.stack(ext), stacked, cfg, tuple(ext_for_stage))

    return tuple(unpatchify(out_patches[s], P, C, H, W) for s in range(NS))


# ---------------------------------------------------------------------------
# Deterministic parameter construction
# ---------------------------------------------------------------------------

def make_vit_params(key, cfg):
    C, P, E = cfg["in_channels"], cfg["patch_size"], cfg["embed_dim"]
    nhead = cfg["nhead"]
    assert E % nhead == 0
    S = (cfg["image_size"] // P) ** 2
    PD = C * P * P
    FF = 4 * E
    L = cfg["num_layers"]
    Dh = E // nhead
    keys = jax.random.split(key, 3 + L)

    def w(k, shape, std=0.02):
        return (std * jax.random.normal(k, shape)).astype(jnp.float32)

    wdt = jnp.bfloat16  # matmul weights stored bf16 (f32 accumulation in-kernel)

    # Fold the 1/sqrt(head_dim) attention scale into the Q columns of the QKV
    # projection so the kernel never multiplies the [S,S] score matrix.
    q_col_scale = jnp.concatenate(
        [jnp.full((E,), 1.0 / math.sqrt(Dh), jnp.float32),
         jnp.ones((2 * E,), jnp.float32)])

    qkv_w, out_w, ff1_w, ff2_w = [], [], [], []
    for li in range(L):
        lk = jax.random.split(keys[3 + li], 4)
        qkv_w.append(w(lk[0], (E, 3 * E)) * q_col_scale)
        out_w.append(w(lk[1], (E, E)))
        ff1_w.append(w(lk[2], (E, FF)))
        ff2_w.append(w(lk[3], (FF, E)))

    return {
        "pos": w(keys[0], (S, E)),                       # nn.init.normal_(std=0.02)
        "pe_w": w(keys[1], (PD, E)).astype(wdt),
        "pe_b": jnp.zeros((1, E), jnp.float32),
        # NOTE: PyTorch zero-inits patch_unembed; small random values are used
        # here so the transformer compute is actually exercised end-to-end.
        "pu_w": w(keys[2], (E, PD)).astype(wdt),
        "pu_b": jnp.zeros((1, PD), jnp.float32),
        "qkv_w": jnp.stack(qkv_w).astype(wdt),           # [L, E, 3E]
        "qkv_b": jnp.zeros((L, 1, 3 * E), jnp.float32) * q_col_scale,
        "out_w": jnp.stack(out_w).astype(wdt),           # [L, E, E]
        "out_b": jnp.zeros((L, 1, E), jnp.float32),
        "ff1_w": jnp.stack(ff1_w).astype(wdt),           # [L, E, 4E]
        "ff1_b": jnp.zeros((L, 1, FF), jnp.float32),
        "ff2_w": jnp.stack(ff2_w).astype(wdt),           # [L, 4E, E]
        "ff2_b": jnp.zeros((L, 1, E), jnp.float32),
        "ln1_g": jnp.ones((L, 1, E), jnp.float32),
        "ln1_b": jnp.zeros((L, 1, E), jnp.float32),
        "ln2_g": jnp.ones((L, 1, E), jnp.float32),
        "ln2_b": jnp.zeros((L, 1, E), jnp.float32),
    }


# ---------------------------------------------------------------------------
# Pure-JAX reference (same bf16-at-dot / f32-accumulate numerics)
# ---------------------------------------------------------------------------

def _vit_reference_patches(patches, params, cfg):
    B, S, PD = patches.shape
    E, nhead, L = cfg["embed_dim"], cfg["nhead"], cfg["num_layers"]
    Dh = E // nhead
    f32, bf16 = jnp.float32, jnp.bfloat16

    def mm(a, wm):
        return jnp.dot(a.astype(bf16), wm, preferred_element_type=f32)

    def ln(x, g, b):
        mu = jnp.mean(x, -1, keepdims=True)
        xc = x - mu
        var = jnp.mean(xc * xc, -1, keepdims=True)
        return xc * jax.lax.rsqrt(var + LN_EPS) * g + b

    outs = []
    for b in range(B):
        x_p = patches[b]
        tok = mm(x_p, params["pe_w"]) + params["pe_b"] + params["pos"]
        for l in range(L):
            qkv = mm(tok, params["qkv_w"][l]) + params["qkv_b"][l]
            heads = []
            for h in range(nhead):
                q = qkv[:, h * Dh:(h + 1) * Dh]
                k = qkv[:, E + h * Dh:E + (h + 1) * Dh]
                v = qkv[:, 2 * E + h * Dh:2 * E + (h + 1) * Dh]
                s = jnp.dot(q.astype(bf16), k.astype(bf16).T,
                            preferred_element_type=f32)
                p = jax.nn.softmax(s, axis=-1)
                heads.append(jnp.dot(p.astype(bf16), v.astype(bf16),
                                     preferred_element_type=f32))
            a = jnp.concatenate(heads, -1)
            x = ln(tok + mm(a, params["out_w"][l]) + params["out_b"][l],
                   params["ln1_g"][l], params["ln1_b"][l])
            h1 = jnp.maximum(mm(x, params["ff1_w"][l]) + params["ff1_b"][l], 0.0)
            tok = ln(x + mm(h1, params["ff2_w"][l]) + params["ff2_b"][l],
                     params["ln2_g"][l], params["ln2_b"][l])
        res = mm(tok, params["pu_w"]) + params["pu_b"]
        outs.append(jnp.clip(x_p + res, 0.0, 1.0))
    return jnp.stack(outs)


def multilayer_reference(layer1, all_params, cfg, gts=None, teacher_forcing=True):
    P = cfg["patch_size"]
    B, C, H, W = layer1.shape
    gts = gts if gts is not None else (None,) * (len(all_params) - 1)
    preds = []
    x_patches = patchify(layer1, P)
    for i, params in enumerate(all_params):
        out_p = _vit_reference_patches(x_patches, params, cfg)
        preds.append(unpatchify(out_p, P, C, H, W))
        if i < len(all_params) - 1:
            g = gts[i]
            x_patches = patchify(g, P) if (teacher_forcing and g is not None) else out_p
    return tuple(preds)


# ---------------------------------------------------------------------------
# Main
# ---------------------------------------------------------------------------

if __name__ == "__main__":
    # patch_dim = in_channels * patch_size^2 = 256 (multiple of 128) so the
    # kernel's patch I/O is lane-dense (unmasked vld/vst); S = 16 tokens.
    cfg = dict(image_size=32, patch_size=8, in_channels=4,
               embed_dim=32, nhead=4, num_layers=2)
    B, NS = 2, 5

    root = jax.random.PRNGKey(0)
    k_in, k_gt, k_params = jax.random.split(root, 3)
    img_shape = (B, cfg["in_channels"], cfg["image_size"], cfg["image_size"])
    layer1 = jax.random.uniform(k_in, img_shape, dtype=jnp.float32)
    gts = tuple(jax.random.uniform(k, img_shape, dtype=jnp.float32)
                for k in jax.random.split(k_gt, NS - 1))

    pkeys = jax.random.split(k_params, NS)
    all_params = [make_vit_params(pkeys[i], cfg) for i in range(NS)]

    # Mode 1: teacher forcing -> one pallas_call, grid=(stage, batch_tile).
    fwd_tf = jax.jit(lambda x, g, p: multilayer_forward(
        x, p, cfg, *g, teacher_forcing=True))
    preds_tf = jax.block_until_ready(fwd_tf(layer1, gts, all_params))

    # Mode 2: no teacher forcing -> one pallas_call, 5 stages chained in VMEM.
    fwd_chain = jax.jit(lambda x, p: multilayer_forward(
        x, p, cfg, teacher_forcing=False))
    preds_chain = jax.block_until_ready(fwd_chain(layer1, all_params))

    # Pure-JAX references (same bf16/f32 dot numerics).
    ref_tf = jax.jit(lambda x, g, p: multilayer_reference(
        x, p, cfg, g, True))(layer1, gts, all_params)
    ref_chain = jax.jit(lambda x, p: multilayer_reference(
        x, p, cfg, None, False))(layer1, all_params)

    for preds, refs in ((preds_tf, ref_tf), (preds_chain, ref_chain)):
        assert len(preds) == NS
        for p_, r_ in zip(preds, refs):
            assert p_.shape == img_shape
            assert bool(jnp.all(jnp.isfinite(p_)))
            assert bool(jnp.all((p_ >= 0.0) & (p_ <= 1.0)))
            assert float(jnp.max(jnp.abs(p_ - r_))) < 1e-2

    print("KERNEL_OK")
</pallas_src>

<mosaic_0001>
module attributes {stable_mosaic.version = 11 : i64} {
  func.func @_vit_tf_kernel(%arg0: i32, %arg1: i32, %arg2: memref<1x2x16x256xf32, #tpu.memory_space<vmem>>, %arg3: memref<1x16x32xf32, #tpu.memory_space<vmem>>, %arg4: memref<1x256x32xbf16, #tpu.memory_space<vmem>>, %arg5: memref<1x1x32xf32, #tpu.memory_space<vmem>>, %arg6: memref<1x2x32x96xbf16, #tpu.memory_space<vmem>>, %arg7: memref<1x2x1x96xf32, #tpu.memory_space<vmem>>, %arg8: memref<1x2x32x32xbf16, #tpu.memory_space<vmem>>, %arg9: memref<1x2x1x32xf32, #tpu.memory_space<vmem>>, %arg10: memref<1x2x32x128xbf16, #tpu.memory_space<vmem>>, %arg11: memref<1x2x1x128xf32, #tpu.memory_space<vmem>>, %arg12: memref<1x2x128x32xbf16, #tpu.memory_space<vmem>>, %arg13: memref<1x2x1x32xf32, #tpu.memory_space<vmem>>, %arg14: memref<1x2x1x32xf32, #tpu.memory_space<vmem>>, %arg15: memref<1x2x1x32xf32, #tpu.memory_space<vmem>>, %arg16: memref<1x2x1x32xf32, #tpu.memory_space<vmem>>, %arg17: memref<1x2x1x32xf32, #tpu.memory_space<vmem>>, %arg18: memref<1x32x256xbf16, #tpu.memory_space<vmem>>, %arg19: memref<1x1x256xf32, #tpu.memory_space<vmem>>, %arg20: memref<1x2x16x256xf32, #tpu.memory_space<vmem>>) attributes {dimension_semantics = [#tpu.dimension_semantics<parallel>, #tpu.dimension_semantics<parallel>], iteration_bounds = array<i64: 5, 1>, scalar_prefetch = 0 : i64, scratch_operands = 0 : i64, tpu.core_type = #tpu.core_type<tc>, window_params = [{transform_indices = @transform_0, window_bounds = array<i64: 1, 2, 16, 256>}, {transform_indices = @transform_1, window_bounds = array<i64: 1, 16, 32>}, {transform_indices = @transform_2, window_bounds = array<i64: 1, 256, 32>}, {transform_indices = @transform_3, window_bounds = array<i64: 1, 1, 32>}, {transform_indices = @transform_4, window_bounds = array<i64: 1, 2, 32, 96>}, {transform_indices = @transform_5, window_bounds = array<i64: 1, 2, 1, 96>}, {transform_indices = @transform_6, window_bounds = array<i64: 1, 2, 32, 32>}, {transform_indices = @transform_7, window_bounds = array<i64: 1, 2, 1, 32>}, {transform_indices = @transform_8, window_bounds = array<i64: 1, 2, 32, 128>}, {transform_indices = @transform_9, window_bounds = array<i64: 1, 2, 1, 128>}, {transform_indices = @transform_10, window_bounds = array<i64: 1, 2, 128, 32>}, {transform_indices = @transform_11, window_bounds = array<i64: 1, 2, 1, 32>}, {transform_indices = @transform_12, window_bounds = array<i64: 1, 2, 1, 32>}, {transform_indices = @transform_13, window_bounds = array<i64: 1, 2, 1, 32>}, {transform_indices = @transform_14, window_bounds = array<i64: 1, 2, 1, 32>}, {transform_indices = @transform_15, window_bounds = array<i64: 1, 2, 1, 32>}, {transform_indices = @transform_16, window_bounds = array<i64: 1, 32, 256>}, {transform_indices = @transform_17, window_bounds = array<i64: 1, 1, 256>}, {transform_indices = @transform_18, window_bounds = array<i64: 1, 2, 16, 256>}]} {
    %c0 = arith.constant 0 : index
    %c0_0 = arith.constant 0 : index
    %c0_1 = arith.constant 0 : index
    %0 = vector.load %arg3[%c0, %c0_0, %c0_1] : memref<1x16x32xf32, #tpu.memory_space<vmem>>, vector<1x16x32xf32>
    %1 = vector.shape_cast %0 : vector<1x16x32xf32> to vector<16x32xf32>
    %c0_2 = arith.constant 0 : index
    %c0_3 = arith.constant 0 : index
    %c0_4 = arith.constant 0 : index
    %2 = vector.load %arg4[%c0_2, %c0_3, %c0_4] : memref<1x256x32xbf16, #tpu.memory_space<vmem>>, vector<1x256x32xbf16>
    %3 = vector.shape_cast %2 : vector<1x256x32xbf16> to vector<256x32xbf16>
    %c0_5 = arith.constant 0 : index
    %c0_6 = arith.constant 0 : index
    %c0_7 = arith.constant 0 : index
    %4 = vector.load %arg5[%c0_5, %c0_6, %c0_7] : memref<1x1x32xf32, #tpu.memory_space<vmem>>, vector<1x1x32xf32>
    %5 = vector.shape_cast %4 : vector<1x1x32xf32> to vector<1x32xf32>
    %c0_8 = arith.constant 0 : index
    %c0_9 = arith.constant 0 : index
    %c0_10 = arith.constant 0 : index
    %c0_11 = arith.constant 0 : index
    %6 = vector.load %arg6[%c0_8, %c0_9, %c0_10, %c0_11] : memref<1x2x32x96xbf16, #tpu.memory_space<vmem>>, vector<1x2x32x96xbf16>
    %7 = vector.shape_cast %6 : vector<1x2x32x96xbf16> to vector<2x32x96xbf16>
    %c0_12 = arith.constant 0 : index
    %c0_13 = arith.constant 0 : index
    %c0_14 = arith.constant 0 : index
    %c0_15 = arith.constant 0 : index
    %8 = vector.load %arg7[%c0_12, %c0_13, %c0_14, %c0_15] : memref<1x2x1x96xf32, #tpu.memory_space<vmem>>, vector<1x2x1x96xf32>
    %9 = vector.shape_cast %8 : vector<1x2x1x96xf32> to vector<2x1x96xf32>
    %c0_16 = arith.constant 0 : index
    %c0_17 = arith.constant 0 : index
    %c0_18 = arith.constant 0 : index
    %c0_19 = arith.constant 0 : index
    %10 = vector.load %arg8[%c0_16, %c0_17, %c0_18, %c0_19] : memref<1x2x32x32xbf16, #tpu.memory_space<vmem>>, vector<1x2x32x32xbf16>
    %11 = vector.shape_cast %10 : vector<1x2x32x32xbf16> to vector<2x32x32xbf16>
    %c0_20 = arith.constant 0 : index
    %c0_21 = arith.constant 0 : index
    %c0_22 = arith.constant 0 : index
    %c0_23 = arith.constant 0 : index
    %12 = vector.load %arg9[%c0_20, %c0_21, %c0_22, %c0_23] : memref<1x2x1x32xf32, #tpu.memory_space<vmem>>, vector<1x2x1x32xf32>
    %13 = vector.shape_cast %12 : vector<1x2x1x32xf32> to vector<2x1x32xf32>
    %c0_24 = arith.constant 0 : index
    %c0_25 = arith.constant 0 : index
    %c0_26 = arith.constant 0 : index
    %c0_27 = arith.constant 0 : index
    %14 = vector.load %arg10[%c0_24, %c0_25, %c0_26, %c0_27] : memref<1x2x32x128xbf16, #tpu.memory_space<vmem>>, vector<1x2x32x128xbf16>
    %15 = vector.shape_cast %14 : vector<1x2x32x128xbf16> to vector<2x32x128xbf16>
    %c0_28 = arith.constant 0 : index
    %c0_29 = arith.constant 0 : index
    %c0_30 = arith.constant 0 : index
    %c0_31 = arith.constant 0 : index
    %16 = vector.load %arg11[%c0_28, %c0_29, %c0_30, %c0_31] : memref<1x2x1x128xf32, #tpu.memory_space<vmem>>, vector<1x2x1x128xf32>
    %17 = vector.shape_cast %16 : vector<1x2x1x128xf32> to vector<2x1x128xf32>
    %c0_32 = arith.constant 0 : index
    %c0_33 = arith.constant 0 : index
    %c0_34 = arith.constant 0 : index
    %c0_35 = arith.constant 0 : index
    %18 = vector.load %arg12[%c0_32, %c0_33, %c0_34, %c0_35] : memref<1x2x128x32xbf16, #tpu.memory_space<vmem>>, vector<1x2x128x32xbf16>
    %19 = vector.shape_cast %18 : vector<1x2x128x32xbf16> to vector<2x128x32xbf16>
    %c0_36 = arith.constant 0 : index
    %c0_37 = arith.constant 0 : index
    %c0_38 = arith.constant 0 : index
    %c0_39 = arith.constant 0 : index
    %20 = vector.load %arg13[%c0_36, %c0_37, %c0_38, %c0_39] : memref<1x2x1x32xf32, #tpu.memory_space<vmem>>, vector<1x2x1x32xf32>
    %21 = vector.shape_cast %20 : vector<1x2x1x32xf32> to vector<2x1x32xf32>
    %c0_40 = arith.constant 0 : index
    %c0_41 = arith.constant 0 : index
    %c0_42 = arith.constant 0 : index
    %c0_43 = arith.constant 0 : index
    %22 = vector.load %arg14[%c0_40, %c0_41, %c0_42, %c0_43] : memref<1x2x1x32xf32, #tpu.memory_space<vmem>>, vector<1x2x1x32xf32>
    %23 = vector.shape_cast %22 : vector<1x2x1x32xf32> to vector<2x1x32xf32>
    %c0_44 = arith.constant 0 : index
    %c0_45 = arith.constant 0 : index
    %c0_46 = arith.constant 0 : index
    %c0_47 = arith.constant 0 : index
    %24 = vector.load %arg15[%c0_44, %c0_45, %c0_46, %c0_47] : memref<1x2x1x32xf32, #tpu.memory_space<vmem>>, vector<1x2x1x32xf32>
    %25 = vector.shape_cast %24 : vector<1x2x1x32xf32> to vector<2x1x32xf32>
    %c0_48 = arith.constant 0 : index
    %c0_49 = arith.constant 0 : index
    %c0_50 = arith.constant 0 : index
    %c0_51 = arith.constant 0 : index
    %26 = vector.load %arg16[%c0_48, %c0_49, %c0_50, %c0_51] : memref<1x2x1x32xf32, #tpu.memory_space<vmem>>, vector<1x2x1x32xf32>
    %27 = vector.shape_cast %26 : vector<1x2x1x32xf32> to vector<2x1x32xf32>
    %c0_52 = arith.constant 0 : index
    %c0_53 = arith.constant 0 : index
    %c0_54 = arith.constant 0 : index
    %c0_55 = arith.constant 0 : index
    %28 = vector.load %arg17[%c0_52, %c0_53, %c0_54, %c0_55] : memref<1x2x1x32xf32, #tpu.memory_space<vmem>>, vector<1x2x1x32xf32>
    %29 = vector.shape_cast %28 : vector<1x2x1x32xf32> to vector<2x1x32xf32>
    %c0_56 = arith.constant 0 : index
    %c0_57 = arith.constant 0 : index
    %c0_58 = arith.constant 0 : index
    %30 = vector.load %arg18[%c0_56, %c0_57, %c0_58] : memref<1x32x256xbf16, #tpu.memory_space<vmem>>, vector<1x32x256xbf16>
    %31 = vector.shape_cast %30 : vector<1x32x256xbf16> to vector<32x256xbf16>
    %c0_59 = arith.constant 0 : index
    %c0_60 = arith.constant 0 : index
    %c0_61 = arith.constant 0 : index
    %32 = vector.load %arg19[%c0_59, %c0_60, %c0_61] : memref<1x1x256xf32, #tpu.memory_space<vmem>>, vector<1x1x256xf32>
    %33 = vector.shape_cast %32 : vector<1x1x256xf32> to vector<1x256xf32>
    %c0_62 = arith.constant 0 : index
    %c0_63 = arith.constant 0 : index
    %c0_64 = arith.constant 0 : index
    %c0_65 = arith.constant 0 : index
    %34 = vector.load %arg2[%c0_62, %c0_63, %c0_64, %c0_65] : memref<1x2x16x256xf32, #tpu.memory_space<vmem>>, vector<1x2x16x256xf32>
    %35 = vector.shape_cast %34 : vector<1x2x16x256xf32> to vector<2x16x256xf32>
    %36 = vector.shape_cast %35 : vector<2x16x256xf32> to vector<32x256xf32>
    %37 = tpu.concatenate %1, %1 in 0 : vector<16x32xf32>, vector<16x32xf32> -> vector<32x32xf32>
    %38 = arith.truncf %36 : vector<32x256xf32> to vector<32x256xbf16>
    %cst = arith.constant dense<0.000000e+00> : vector<32x32xf32>
    %39 = tpu.matmul %38, %3, %cst {dimension_numbers = #tpu.dot_dimension_numbers<[1], [0], [0], [1], [0, 0, 1, 1], [], []>} : vector<32x256xbf16>, vector<256x32xbf16>, vector<32x32xf32> -> vector<32x32xf32>
    %40 = vector.broadcast %5 : vector<1x32xf32> to vector<32x32xf32>
    %41 = arith.addf %39, %40 : vector<32x32xf32>
    %42 = arith.addf %41, %37 : vector<32x32xf32>
    %43 = vector.extract_strided_slice %7 {offsets = [0, 0, 0], sizes = [1, 32, 96], strides = [1, 1, 1]} : vector<2x32x96xbf16> to vector<1x32x96xbf16>
    %44 = vector.shape_cast %43 : vector<1x32x96xbf16> to vector<32x96xbf16>
    %45 = arith.truncf %42 : vector<32x32xf32> to vector<32x32xbf16>
    %cst_66 = arith.constant dense<0.000000e+00> : vector<32x96xf32>
    %46 = tpu.matmul %45, %44, %cst_66 {dimension_numbers = #tpu.dot_dimension_numbers<[1], [0], [0], [1], [0, 0, 1, 1], [], []>} : vector<32x32xbf16>, vector<32x96xbf16>, vector<32x96xf32> -> vector<32x96xf32>
    %47 = vector.extract_strided_slice %9 {offsets = [0, 0, 0], sizes = [1, 1, 96], strides = [1, 1, 1]} : vector<2x1x96xf32> to vector<1x1x96xf32>
    %48 = vector.shape_cast %47 : vector<1x1x96xf32> to vector<1x96xf32>
    %49 = vector.broadcast %48 : vector<1x96xf32> to vector<32x96xf32>
    %50 = arith.addf %46, %49 : vector<32x96xf32>
    %51 = vector.extract_strided_slice %50 {offsets = [0, 0], sizes = [32, 8], strides = [1, 1]} : vector<32x96xf32> to vector<32x8xf32>
    %52 = vector.shape_cast %51 : vector<32x8xf32> to vector<2x16x8xf32>
    %53 = vector.extract_strided_slice %50 {offsets = [0, 8], sizes = [32, 8], strides = [1, 1]} : vector<32x96xf32> to vector<32x8xf32>
    %54 = vector.shape_cast %53 : vector<32x8xf32> to vector<2x16x8xf32>
    %55 = vector.extract_strided_slice %50 {offsets = [0, 16], sizes = [32, 8], strides = [1, 1]} : vector<32x96xf32> to vector<32x8xf32>
    %56 = vector.shape_cast %55 : vector<32x8xf32> to vector<2x16x8xf32>
    %57 = vector.extract_strided_slice %50 {offsets = [0, 24], sizes = [32, 8], strides = [1, 1]} : vector<32x96xf32> to vector<32x8xf32>
    %58 = vector.shape_cast %57 : vector<32x8xf32> to vector<2x16x8xf32>
    %59 = tpu.concatenate %52, %54, %56, %58 in 0 : vector<2x16x8xf32>, vector<2x16x8xf32>, vector<2x16x8xf32>, vector<2x16x8xf32> -> vector<8x16x8xf32>
    %60 = vector.extract_strided_slice %50 {offsets = [0, 32], sizes = [32, 8], strides = [1, 1]} : vector<32x96xf32> to vector<32x8xf32>
    %61 = vector.shape_cast %60 : vector<32x8xf32> to vector<2x16x8xf32>
    %62 = vector.extract_strided_slice %50 {offsets = [0, 40], sizes = [32, 8], strides = [1, 1]} : vector<32x96xf32> to vector<32x8xf32>
    %63 = vector.shape_cast %62 : vector<32x8xf32> to vector<2x16x8xf32>
    %64 = vector.extract_strided_slice %50 {offsets = [0, 48], sizes = [32, 8], strides = [1, 1]} : vector<32x96xf32> to vector<32x8xf32>
    %65 = vector.shape_cast %64 : vector<32x8xf32> to vector<2x16x8xf32>
    %66 = vector.extract_strided_slice %50 {offsets = [0, 56], sizes = [32, 8], strides = [1, 1]} : vector<32x96xf32> to vector<32x8xf32>
    %67 = vector.shape_cast %66 : vector<32x8xf32> to vector<2x16x8xf32>
    %68 = tpu.concatenate %61, %63, %65, %67 in 0 : vector<2x16x8xf32>, vector<2x16x8xf32>, vector<2x16x8xf32>, vector<2x16x8xf32> -> vector<8x16x8xf32>
    %69 = vector.extract_strided_slice %50 {offsets = [0, 64], sizes = [32, 8], strides = [1, 1]} : vector<32x96xf32> to vector<32x8xf32>
    %70 = vector.shape_cast %69 : vector<32x8xf32> to vector<2x16x8xf32>
    %71 = vector.extract_strided_slice %50 {offsets = [0, 72], sizes = [32, 8], strides = [1, 1]} : vector<32x96xf32> to vector<32x8xf32>
    %72 = vector.shape_cast %71 : vector<32x8xf32> to vector<2x16x8xf32>
    %73 = vector.extract_strided_slice %50 {offsets = [0, 80], sizes = [32, 8], strides = [1, 1]} : vector<32x96xf32> to vector<32x8xf32>
    %74 = vector.shape_cast %73 : vector<32x8xf32> to vector<2x16x8xf32>
    %75 = vector.extract_strided_slice %50 {offsets = [0, 88], sizes = [32, 8], strides = [1, 1]} : vector<32x96xf32> to vector<32x8xf32>
    %76 = vector.shape_cast %75 : vector<32x8xf32> to vector<2x16x8xf32>
    %77 = tpu.concatenate %70, %72, %74, %76 in 0 : vector<2x16x8xf32>, vector<2x16x8xf32>, vector<2x16x8xf32>, vector<2x16x8xf32> -> vector<8x16x8xf32>
    %78 = arith.truncf %59 : vector<8x16x8xf32> to vector<8x16x8xbf16>
    %79 = arith.truncf %68 : vector<8x16x8xf32> to vector<8x16x8xbf16>
    "tpu.trace_start"() <{level = 10 : i32, message = "gqd,gkd->gqk"}> : () -> ()
    %cst_67 = arith.constant dense<0.000000e+00> : vector<8x16x16xf32>
    %80 = tpu.matmul %78, %79, %cst_67 {dimension_numbers = #tpu.dot_dimension_numbers<[2], [2], [1], [1], [0, 0, 0, 1, 1, 1], [0], [0]>} : vector<8x16x8xbf16>, vector<8x16x8xbf16>, vector<8x16x16xf32> -> vector<8x16x16xf32>
    "tpu.trace_stop"() : () -> ()
    %cst_68 = arith.constant dense<0xFF800000> : vector<8x16xf32>
    %81 = vector.multi_reduction <maximumf>, %80, %cst_68 [2] : vector<8x16x16xf32> to vector<8x16xf32>
    %82 = vector.shape_cast %81 : vector<8x16xf32> to vector<8x16x1xf32>
    %83 = vector.broadcast %82 : vector<8x16x1xf32> to vector<8x16x16xf32>
    %84 = arith.subf %80, %83 : vector<8x16x16xf32>
    %85 = math.exp %84 : vector<8x16x16xf32>
    %cst_69 = arith.constant dense<0.000000e+00> : vector<8x16xf32>
    %86 = vector.multi_reduction <add>, %85, %cst_69 [2] : vector<8x16x16xf32> to vector<8x16xf32>
    %87 = vector.shape_cast %86 : vector<8x16xf32> to vector<8x16x1xf32>
    %88 = tpu.reciprocal %87 {approx = true} : vector<8x16x1xf32> -> vector<8x16x1xf32>
    %89 = vector.broadcast %88 : vector<8x16x1xf32> to vector<8x16x16xf32>
    %90 = arith.mulf %85, %89 : vector<8x16x16xf32>
    %91 = arith.truncf %90 : vector<8x16x16xf32> to vector<8x16x16xbf16>
    %92 = arith.truncf %77 : vector<8x16x8xf32> to vector<8x16x8xbf16>
    "tpu.trace_start"() <{level = 10 : i32, message = "gqk,gkd->gqd"}> : () -> ()
    %cst_70 = arith.constant dense<0.000000e+00> : vector<8x16x8xf32>
    %93 = tpu.matmul %91, %92, %cst_70 {dimension_numbers = #tpu.dot_dimension_numbers<[2], [1], [1], [2], [0, 0, 0, 1, 1, 2], [0], [0]>} : vector<8x16x16xbf16>, vector<8x16x8xbf16>, vector<8x16x8xf32> -> vector<8x16x8xf32>
    "tpu.trace_stop"() : () -> ()
    %94 = vector.extract_strided_slice %13 {offsets = [0, 0, 0], sizes = [1, 1, 32], strides = [1, 1, 1]} : vector<2x1x32xf32> to vector<1x1x32xf32>
    %95 = vector.shape_cast %94 : vector<1x1x32xf32> to vector<1x32xf32>
    %96 = vector.extract_strided_slice %93 {offsets = [0, 0, 0], sizes = [2, 16, 8], strides = [1, 1, 1]} : vector<8x16x8xf32> to vector<2x16x8xf32>
    %97 = vector.shape_cast %96 : vector<2x16x8xf32> to vector<32x8xf32>
    %98 = vector.extract_strided_slice %11 {offsets = [0, 0, 0], sizes = [1, 8, 32], strides = [1, 1, 1]} : vector<2x32x32xbf16> to vector<1x8x32xbf16>
    %99 = vector.shape_cast %98 : vector<1x8x32xbf16> to vector<8x32xbf16>
    %100 = arith.truncf %97 : vector<32x8xf32> to vector<32x8xbf16>
    %cst_71 = arith.constant dense<0.000000e+00> : vector<32x32xf32>
    %101 = tpu.matmul %100, %99, %cst_71 {dimension_numbers = #tpu.dot_dimension_numbers<[1], [0], [0], [1], [0, 0, 1, 1], [], []>} : vector<32x8xbf16>, vector<8x32xbf16>, vector<32x32xf32> -> vector<32x32xf32>
    %102 = vector.broadcast %95 : vector<1x32xf32> to vector<32x32xf32>
    %103 = arith.addf %102, %101 : vector<32x32xf32>
    %104 = vector.extract_strided_slice %93 {offsets = [2, 0, 0], sizes = [2, 16, 8], strides = [1, 1, 1]} : vector<8x16x8xf32> to vector<2x16x8xf32>
    %105 = vector.shape_cast %104 : vector<2x16x8xf32> to vector<32x8xf32>
    %106 = vector.extract_strided_slice %11 {offsets = [0, 8, 0], sizes = [1, 8, 32], strides = [1, 1, 1]} : vector<2x32x32xbf16> to vector<1x8x32xbf16>
    %107 = vector.shape_cast %106 : vector<1x8x32xbf16> to vector<8x32xbf16>
    %108 = arith.truncf %105 : vector<32x8xf32> to vector<32x8xbf16>
    %cst_72 = arith.constant dense<0.000000e+00> : vector<32x32xf32>
    %109 = tpu.matmul %108, %107, %cst_72 {dimension_numbers = #tpu.dot_dimension_numbers<[1], [0], [0], [1], [0, 0, 1, 1], [], []>} : vector<32x8xbf16>, vector<8x32xbf16>, vector<32x32xf32> -> vector<32x32xf32>
    %110 = arith.addf %103, %109 : vector<32x32xf32>
    %111 = vector.extract_strided_slice %93 {offsets = [4, 0, 0], sizes = [2, 16, 8], strides = [1, 1, 1]} : vector<8x16x8xf32> to vector<2x16x8xf32>
    %112 = vector.shape_cast %111 : vector<2x16x8xf32> to vector<32x8xf32>
    %113 = vector.extract_strided_slice %11 {offsets = [0, 16, 0], sizes = [1, 8, 32], strides = [1, 1, 1]} : vector<2x32x32xbf16> to vector<1x8x32xbf16>
    %114 = vector.shape_cast %113 : vector<1x8x32xbf16> to vector<8x32xbf16>
    %115 = arith.truncf %112 : vector<32x8xf32> to vector<32x8xbf16>
    %cst_73 = arith.constant dense<0.000000e+00> : vector<32x32xf32>
    %116 = tpu.matmul %115, %114, %cst_73 {dimension_numbers = #tpu.dot_dimension_numbers<[1], [0], [0], [1], [0, 0, 1, 1], [], []>} : vector<32x8xbf16>, vector<8x32xbf16>, vector<32x32xf32> -> vector<32x32xf32>
    %117 = arith.addf %110, %116 : vector<32x32xf32>
    %118 = vector.extract_strided_slice %93 {offsets = [6, 0, 0], sizes = [2, 16, 8], strides = [1, 1, 1]} : vector<8x16x8xf32> to vector<2x16x8xf32>
    %119 = vector.shape_cast %118 : vector<2x16x8xf32> to vector<32x8xf32>
    %120 = vector.extract_strided_slice %11 {offsets = [0, 24, 0], sizes = [1, 8, 32], strides = [1, 1, 1]} : vector<2x32x32xbf16> to vector<1x8x32xbf16>
    %121 = vector.shape_cast %120 : vector<1x8x32xbf16> to vector<8x32xbf16>
    %122 = arith.truncf %119 : vector<32x8xf32> to vector<32x8xbf16>
    %cst_74 = arith.constant dense<0.000000e+00> : vector<32x32xf32>
    %123 = tpu.matmul %122, %121, %cst_74 {dimension_numbers = #tpu.dot_dimension_numbers<[1], [0], [0], [1], [0, 0, 1, 1], [], []>} : vector<32x8xbf16>, vector<8x32xbf16>, vector<32x32xf32> -> vector<32x32xf32>
    %124 = arith.addf %117, %123 : vector<32x32xf32>
    %125 = arith.addf %42, %124 : vector<32x32xf32>
    %126 = vector.extract_strided_slice %23 {offsets = [0, 0, 0], sizes = [1, 1, 32], strides = [1, 1, 1]} : vector<2x1x32xf32> to vector<1x1x32xf32>
    %127 = vector.shape_cast %126 : vector<1x1x32xf32> to vector<1x32xf32>
    %128 = vector.extract_strided_slice %25 {offsets = [0, 0, 0], sizes = [1, 1, 32], strides = [1, 1, 1]} : vector<2x1x32xf32> to vector<1x1x32xf32>
    %129 = vector.shape_cast %128 : vector<1x1x32xf32> to vector<1x32xf32>
    %cst_75 = arith.constant dense<0.000000e+00> : vector<32xf32>
    %130 = vector.multi_reduction <add>, %125, %cst_75 [1] : vector<32x32xf32> to vector<32xf32>
    %131 = vector.shape_cast %130 : vector<32xf32> to vector<32x1xf32>
    %cst_76 = arith.constant 3.200000e+01 : f32
    %132 = vector.broadcast %cst_76 : f32 to vector<32x1xf32>
    %133 = arith.divf %131, %132 : vector<32x1xf32>
    %134 = vector.broadcast %133 : vector<32x1xf32> to vector<32x32xf32>
    %135 = arith.subf %125, %134 : vector<32x32xf32>
    %136 = arith.mulf %135, %135 : vector<32x32xf32>
    %cst_77 = arith.constant dense<0.000000e+00> : vector<32xf32>
    %137 = vector.multi_reduction <add>, %136, %cst_77 [1] : vector<32x32xf32> to vector<32xf32>
    %138 = vector.shape_cast %137 : vector<32xf32> to vector<32x1xf32>
    %cst_78 = arith.constant 3.200000e+01 : f32
    %139 = vector.broadcast %cst_78 : f32 to vector<32x1xf32>
    %140 = arith.divf %138, %139 : vector<32x1xf32>
    %cst_79 = arith.constant 9.99999974E-6 : f32
    %141 = vector.broadcast %cst_79 : f32 to vector<32x1xf32>
    %142 = arith.addf %140, %141 : vector<32x1xf32>
    %143 = math.rsqrt %142 : vector<32x1xf32>
    %144 = vector.broadcast %143 : vector<32x1xf32> to vector<32x32xf32>
    %145 = arith.mulf %135, %144 : vector<32x32xf32>
    %146 = vector.broadcast %127 : vector<1x32xf32> to vector<32x32xf32>
    %147 = arith.mulf %145, %146 : vector<32x32xf32>
    %148 = vector.broadcast %129 : vector<1x32xf32> to vector<32x32xf32>
    %149 = arith.addf %147, %148 : vector<32x32xf32>
    %150 = vector.extract_strided_slice %15 {offsets = [0, 0, 0], sizes = [1, 32, 128], strides = [1, 1, 1]} : vector<2x32x128xbf16> to vector<1x32x128xbf16>
    %151 = vector.shape_cast %150 : vector<1x32x128xbf16> to vector<32x128xbf16>
    %152 = arith.truncf %149 : vector<32x32xf32> to vector<32x32xbf16>
    %cst_80 = arith.constant dense<0.000000e+00> : vector<32x128xf32>
    %153 = tpu.matmul %152, %151, %cst_80 {dimension_numbers = #tpu.dot_dimension_numbers<[1], [0], [0], [1], [0, 0, 1, 1], [], []>} : vector<32x32xbf16>, vector<32x128xbf16>, vector<32x128xf32> -> vector<32x128xf32>
    %154 = vector.extract_strided_slice %17 {offsets = [0, 0, 0], sizes = [1, 1, 128], strides = [1, 1, 1]} : vector<2x1x128xf32> to vector<1x1x128xf32>
    %155 = vector.shape_cast %154 : vector<1x1x128xf32> to vector<1x128xf32>
    %156 = vector.broadcast %155 : vector<1x128xf32> to vector<32x128xf32>
    %157 = arith.addf %153, %156 : vector<32x128xf32>
    %cst_81 = arith.constant 0.000000e+00 : f32
    %158 = vector.broadcast %cst_81 : f32 to vector<32x128xf32>
    %159 = arith.maximumf %157, %158 : vector<32x128xf32>
    %160 = vector.extract_strided_slice %19 {offsets = [0, 0, 0], sizes = [1, 128, 32], strides = [1, 1, 1]} : vector<2x128x32xbf16> to vector<1x128x32xbf16>
    %161 = vector.shape_cast %160 : vector<1x128x32xbf16> to vector<128x32xbf16>
    %162 = arith.truncf %159 : vector<32x128xf32> to vector<32x128xbf16>
    %cst_82 = arith.constant dense<0.000000e+00> : vector<32x32xf32>
    %163 = tpu.matmul %162, %161, %cst_82 {dimension_numbers = #tpu.dot_dimension_numbers<[1], [0], [0], [1], [0, 0, 1, 1], [], []>} : vector<32x128xbf16>, vector<128x32xbf16>, vector<32x32xf32> -> vector<32x32xf32>
    %164 = vector.extract_strided_slice %21 {offsets = [0, 0, 0], sizes = [1, 1, 32], strides = [1, 1, 1]} : vector<2x1x32xf32> to vector<1x1x32xf32>
    %165 = vector.shape_cast %164 : vector<1x1x32xf32> to vector<1x32xf32>
    %166 = vector.broadcast %165 : vector<1x32xf32> to vector<32x32xf32>
    %167 = arith.addf %163, %166 : vector<32x32xf32>
    %168 = arith.addf %149, %167 : vector<32x32xf32>
    %169 = vector.extract_strided_slice %27 {offsets = [0, 0, 0], sizes = [1, 1, 32], strides = [1, 1, 1]} : vector<2x1x32xf32> to vector<1x1x32xf32>
    %170 = vector.shape_cast %169 : vector<1x1x32xf32> to vector<1x32xf32>
    %171 = vector.extract_strided_slice %29 {offsets = [0, 0, 0], sizes = [1, 1, 32], strides = [1, 1, 1]} : vector<2x1x32xf32> to vector<1x1x32xf32>
    %172 = vector.shape_cast %171 : vector<1x1x32xf32> to vector<1x32xf32>
    %cst_83 = arith.constant dense<0.000000e+00> : vector<32xf32>
    %173 = vector.multi_reduction <add>, %168, %cst_83 [1] : vector<32x32xf32> to vector<32xf32>
    %174 = vector.shape_cast %173 : vector<32xf32> to vector<32x1xf32>
    %cst_84 = arith.constant 3.200000e+01 : f32
    %175 = vector.broadcast %cst_84 : f32 to vector<32x1xf32>
    %176 = arith.divf %174, %175 : vector<32x1xf32>
    %177 = vector.broadcast %176 : vector<32x1xf32> to vector<32x32xf32>
    %178 = arith.subf %168, %177 : vector<32x32xf32>
    %179 = arith.mulf %178, %178 : vector<32x32xf32>
    %cst_85 = arith.constant dense<0.000000e+00> : vector<32xf32>
    %180 = vector.multi_reduction <add>, %179, %cst_85 [1] : vector<32x32xf32> to vector<32xf32>
    %181 = vector.shape_cast %180 : vector<32xf32> to vector<32x1xf32>
    %cst_86 = arith.constant 3.200000e+01 : f32
    %182 = vector.broadcast %cst_86 : f32 to vector<32x1xf32>
    %183 = arith.divf %181, %182 : vector<32x1xf32>
    %cst_87 = arith.constant 9.99999974E-6 : f32
    %184 = vector.broadcast %cst_87 : f32 to vector<32x1xf32>
    %185 = arith.addf %183, %184 : vector<32x1xf32>
    %186 = math.rsqrt %185 : vector<32x1xf32>
    %187 = vector.broadcast %186 : vector<32x1xf32> to vector<32x32xf32>
    %188 = arith.mulf %178, %187 : vector<32x32xf32>
    %189 = vector.broadcast %170 : vector<1x32xf32> to vector<32x32xf32>
    %190 = arith.mulf %188, %189 : vector<32x32xf32>
    %191 = vector.broadcast %172 : vector<1x32xf32> to vector<32x32xf32>
    %192 = arith.addf %190, %191 : vector<32x32xf32>
    %193 = vector.extract_strided_slice %7 {offsets = [1, 0, 0], sizes = [1, 32, 96], strides = [1, 1, 1]} : vector<2x32x96xbf16> to vector<1x32x96xbf16>
    %194 = vector.shape_cast %193 : vector<1x32x96xbf16> to vector<32x96xbf16>
    %195 = arith.truncf %192 : vector<32x32xf32> to vector<32x32xbf16>
    %cst_88 = arith.constant dense<0.000000e+00> : vector<32x96xf32>
    %196 = tpu.matmul %195, %194, %cst_88 {dimension_numbers = #tpu.dot_dimension_numbers<[1], [0], [0], [1], [0, 0, 1, 1], [], []>} : vector<32x32xbf16>, vector<32x96xbf16>, vector<32x96xf32> -> vector<32x96xf32>
    %197 = vector.extract_strided_slice %9 {offsets = [1, 0, 0], sizes = [1, 1, 96], strides = [1, 1, 1]} : vector<2x1x96xf32> to vector<1x1x96xf32>
    %198 = vector.shape_cast %197 : vector<1x1x96xf32> to vector<1x96xf32>
    %199 = vector.broadcast %198 : vector<1x96xf32> to vector<32x96xf32>
    %200 = arith.addf %196, %199 : vector<32x96xf32>
    %201 = vector.extract_strided_slice %200 {offsets = [0, 0], sizes = [32, 8], strides = [1, 1]} : vector<32x96xf32> to vector<32x8xf32>
    %202 = vector.shape_cast %201 : vector<32x8xf32> to vector<2x16x8xf32>
    %203 = vector.extract_strided_slice %200 {offsets = [0, 8], sizes = [32, 8], strides = [1, 1]} : vector<32x96xf32> to vector<32x8xf32>
    %204 = vector.shape_cast %203 : vector<32x8xf32> to vector<2x16x8xf32>
    %205 = vector.extract_strided_slice %200 {offsets = [0, 16], sizes = [32, 8], strides = [1, 1]} : vector<32x96xf32> to vector<32x8xf32>
    %206 = vector.shape_cast %205 : vector<32x8xf32> to vector<2x16x8xf32>
    %207 = vector.extract_strided_slice %200 {offsets = [0, 24], sizes = [32, 8], strides = [1, 1]} : vector<32x96xf32> to vector<32x8xf32>
    %208 = vector.shape_cast %207 : vector<32x8xf32> to vector<2x16x8xf32>
    %209 = tpu.concatenate %202, %204, %206, %208 in 0 : vector<2x16x8xf32>, vector<2x16x8xf32>, vector<2x16x8xf32>, vector<2x16x8xf32> -> vector<8x16x8xf32>
    %210 = vector.extract_strided_slice %200 {offsets = [0, 32], sizes = [32, 8], strides = [1, 1]} : vector<32x96xf32> to vector<32x8xf32>
    %211 = vector.shape_cast %210 : vector<32x8xf32> to vector<2x16x8xf32>
    %212 = vector.extract_strided_slice %200 {offsets = [0, 40], sizes = [32, 8], strides = [1, 1]} : vector<32x96xf32> to vector<32x8xf32>
    %213 = vector.shape_cast %212 : vector<32x8xf32> to vector<2x16x8xf32>
    %214 = vector.extract_strided_slice %200 {offsets = [0, 48], sizes = [32, 8], strides = [1, 1]} : vector<32x96xf32> to vector<32x8xf32>
    %215 = vector.shape_cast %214 : vector<32x8xf32> to vector<2x16x8xf32>
    %216 = vector.extract_strided_slice %200 {offsets = [0, 56], sizes = [32, 8], strides = [1, 1]} : vector<32x96xf32> to vector<32x8xf32>
    %217 = vector.shape_cast %216 : vector<32x8xf32> to vector<2x16x8xf32>
    %218 = tpu.concatenate %211, %213, %215, %217 in 0 : vector<2x16x8xf32>, vector<2x16x8xf32>, vector<2x16x8xf32>, vector<2x16x8xf32> -> vector<8x16x8xf32>
    %219 = vector.extract_strided_slice %200 {offsets = [0, 64], sizes = [32, 8], strides = [1, 1]} : vector<32x96xf32> to vector<32x8xf32>
    %220 = vector.shape_cast %219 : vector<32x8xf32> to vector<2x16x8xf32>
    %221 = vector.extract_strided_slice %200 {offsets = [0, 72], sizes = [32, 8], strides = [1, 1]} : vector<32x96xf32> to vector<32x8xf32>
    %222 = vector.shape_cast %221 : vector<32x8xf32> to vector<2x16x8xf32>
    %223 = vector.extract_strided_slice %200 {offsets = [0, 80], sizes = [32, 8], strides = [1, 1]} : vector<32x96xf32> to vector<32x8xf32>
    %224 = vector.shape_cast %223 : vector<32x8xf32> to vector<2x16x8xf32>
    %225 = vector.extract_strided_slice %200 {offsets = [0, 88], sizes = [32, 8], strides = [1, 1]} : vector<32x96xf32> to vector<32x8xf32>
    %226 = vector.shape_cast %225 : vector<32x8xf32> to vector<2x16x8xf32>
    %227 = tpu.concatenate %220, %222, %224, %226 in 0 : vector<2x16x8xf32>, vector<2x16x8xf32>, vector<2x16x8xf32>, vector<2x16x8xf32> -> vector<8x16x8xf32>
    %228 = arith.truncf %209 : vector<8x16x8xf32> to vector<8x16x8xbf16>
    %229 = arith.truncf %218 : vector<8x16x8xf32> to vector<8x16x8xbf16>
    "tpu.trace_start"() <{level = 10 : i32, message = "gqd,gkd->gqk"}> : () -> ()
    %cst_89 = arith.constant dense<0.000000e+00> : vector<8x16x16xf32>
    %230 = tpu.matmul %228, %229, %cst_89 {dimension_numbers = #tpu.dot_dimension_numbers<[2], [2], [1], [1], [0, 0, 0, 1, 1, 1], [0], [0]>} : vector<8x16x8xbf16>, vector<8x16x8xbf16>, vector<8x16x16xf32> -> vector<8x16x16xf32>
    "tpu.trace_stop"() : () -> ()
    %cst_90 = arith.constant dense<0xFF800000> : vector<8x16xf32>
    %231 = vector.multi_reduction <maximumf>, %230, %cst_90 [2] : vector<8x16x16xf32> to vector<8x16xf32>
    %232 = vector.shape_cast %231 : vector<8x16xf32> to vector<8x16x1xf32>
    %233 = vector.broadcast %232 : vector<8x16x1xf32> to vector<8x16x16xf32>
    %234 = arith.subf %230, %233 : vector<8x16x16xf32>
    %235 = math.exp %234 : vector<8x16x16xf32>
    %cst_91 = arith.constant dense<0.000000e+00> : vector<8x16xf32>
    %236 = vector.multi_reduction <add>, %235, %cst_91 [2] : vector<8x16x16xf32> to vector<8x16xf32>
    %237 = vector.shape_cast %236 : vector<8x16xf32> to vector<8x16x1xf32>
    %238 = tpu.reciprocal %237 {approx = true} : vector<8x16x1xf32> -> vector<8x16x1xf32>
    %239 = vector.broadcast %238 : vector<8x16x1xf32> to vector<8x16x16xf32>
    %240 = arith.mulf %235, %239 : vector<8x16x16xf32>
    %241 = arith.truncf %240 : vector<8x16x16xf32> to vector<8x16x16xbf16>
    %242 = arith.truncf %227 : vector<8x16x8xf32> to vector<8x16x8xbf16>
    "tpu.trace_start"() <{level = 10 : i32, message = "gqk,gkd->gqd"}> : () -> ()
    %cst_92 = arith.constant dense<0.000000e+00> : vector<8x16x8xf32>
    %243 = tpu.matmul %241, %242, %cst_92 {dimension_numbers = #tpu.dot_dimension_numbers<[2], [1], [1], [2], [0, 0, 0, 1, 1, 2], [0], [0]>} : vector<8x16x16xbf16>, vector<8x16x8xbf16>, vector<8x16x8xf32> -> vector<8x16x8xf32>
    "tpu.trace_stop"() : () -> ()
    %244 = vector.extract_strided_slice %13 {offsets = [1, 0, 0], sizes = [1, 1, 32], strides = [1, 1, 1]} : vector<2x1x32xf32> to vector<1x1x32xf32>
    %245 = vector.shape_cast %244 : vector<1x1x32xf32> to vector<1x32xf32>
    %246 = vector.extract_strided_slice %243 {offsets = [0, 0, 0], sizes = [2, 16, 8], strides = [1, 1, 1]} : vector<8x16x8xf32> to vector<2x16x8xf32>
    %247 = vector.shape_cast %246 : vector<2x16x8xf32> to vector<32x8xf32>
    %248 = vector.extract_strided_slice %11 {offsets = [1, 0, 0], sizes = [1, 8, 32], strides = [1, 1, 1]} : vector<2x32x32xbf16> to vector<1x8x32xbf16>
    %249 = vector.shape_cast %248 : vector<1x8x32xbf16> to vector<8x32xbf16>
    %250 = arith.truncf %247 : vector<32x8xf32> to vector<32x8xbf16>
    %cst_93 = arith.constant dense<0.000000e+00> : vector<32x32xf32>
    %251 = tpu.matmul %250, %249, %cst_93 {dimension_numbers = #tpu.dot_dimension_numbers<[1], [0], [0], [1], [0, 0, 1, 1], [], []>} : vector<32x8xbf16>, vector<8x32xbf16>, vector<32x32xf32> -> vector<32x32xf32>
    %252 = vector.broadcast %245 : vector<1x32xf32> to vector<32x32xf32>
    %253 = arith.addf %252, %251 : vector<32x32xf32>
    %254 = vector.extract_strided_slice %243 {offsets = [2, 0, 0], sizes = [2, 16, 8], strides = [1, 1, 1]} : vector<8x16x8xf32> to vector<2x16x8xf32>
    %255 = vector.shape_cast %254 : vector<2x16x8xf32> to vector<32x8xf32>
    %256 = vector.extract_strided_slice %11 {offsets = [1, 8, 0], sizes = [1, 8, 32], strides = [1, 1, 1]} : vector<2x32x32xbf16> to vector<1x8x32xbf16>
    %257 = vector.shape_cast %256 : vector<1x8x32xbf16> to vector<8x32xbf16>
    %258 = arith.truncf %255 : vector<32x8xf32> to vector<32x8xbf16>
    %cst_94 = arith.constant dense<0.000000e+00> : vector<32x32xf32>
    %259 = tpu.matmul %258, %257, %cst_94 {dimension_numbers = #tpu.dot_dimension_numbers<[1], [0], [0], [1], [0, 0, 1, 1], [], []>} : vector<32x8xbf16>, vector<8x32xbf16>, vector<32x32xf32> -> vector<32x32xf32>
    %260 = arith.addf %253, %259 : vector<32x32xf32>
    %261 = vector.extract_strided_slice %243 {offsets = [4, 0, 0], sizes = [2, 16, 8], strides = [1, 1, 1]} : vector<8x16x8xf32> to vector<2x16x8xf32>
    %262 = vector.shape_cast %261 : vector<2x16x8xf32> to vector<32x8xf32>
    %263 = vector.extract_strided_slice %11 {offsets = [1, 16, 0], sizes = [1, 8, 32], strides = [1, 1, 1]} : vector<2x32x32xbf16> to vector<1x8x32xbf16>
    %264 = vector.shape_cast %263 : vector<1x8x32xbf16> to vector<8x32xbf16>
    %265 = arith.truncf %262 : vector<32x8xf32> to vector<32x8xbf16>
    %cst_95 = arith.constant dense<0.000000e+00> : vector<32x32xf32>
    %266 = tpu.matmul %265, %264, %cst_95 {dimension_numbers = #tpu.dot_dimension_numbers<[1], [0], [0], [1], [0, 0, 1, 1], [], []>} : vector<32x8xbf16>, vector<8x32xbf16>, vector<32x32xf32> -> vector<32x32xf32>
    %267 = arith.addf %260, %266 : vector<32x32xf32>
    %268 = vector.extract_strided_slice %243 {offsets = [6, 0, 0], sizes = [2, 16, 8], strides = [1, 1, 1]} : vector<8x16x8xf32> to vector<2x16x8xf32>
    %269 = vector.shape_cast %268 : vector<2x16x8xf32> to vector<32x8xf32>
    %270 = vector.extract_strided_slice %11 {offsets = [1, 24, 0], sizes = [1, 8, 32], strides = [1, 1, 1]} : vector<2x32x32xbf16> to vector<1x8x32xbf16>
    %271 = vector.shape_cast %270 : vector<1x8x32xbf16> to vector<8x32xbf16>
    %272 = arith.truncf %269 : vector<32x8xf32> to vector<32x8xbf16>
    %cst_96 = arith.constant dense<0.000000e+00> : vector<32x32xf32>
    %273 = tpu.matmul %272, %271, %cst_96 {dimension_numbers = #tpu.dot_dimension_numbers<[1], [0], [0], [1], [0, 0, 1, 1], [], []>} : vector<32x8xbf16>, vector<8x32xbf16>, vector<32x32xf32> -> vector<32x32xf32>
    %274 = arith.addf %267, %273 : vector<32x32xf32>
    %275 = arith.addf %192, %274 : vector<32x32xf32>
    %276 = vector.extract_strided_slice %23 {offsets = [1, 0, 0], sizes = [1, 1, 32], strides = [1, 1, 1]} : vector<2x1x32xf32> to vector<1x1x32xf32>
    %277 = vector.shape_cast %276 : vector<1x1x32xf32> to vector<1x32xf32>
    %278 = vector.extract_strided_slice %25 {offsets = [1, 0, 0], sizes = [1, 1, 32], strides = [1, 1, 1]} : vector<2x1x32xf32> to vector<1x1x32xf32>
    %279 = vector.shape_cast %278 : vector<1x1x32xf32> to vector<1x32xf32>
    %cst_97 = arith.constant dense<0.000000e+00> : vector<32xf32>
    %280 = vector.multi_reduction <add>, %275, %cst_97 [1] : vector<32x32xf32> to vector<32xf32>
    %281 = vector.shape_cast %280 : vector<32xf32> to vector<32x1xf32>
    %cst_98 = arith.constant 3.200000e+01 : f32
    %282 = vector.broadcast %cst_98 : f32 to vector<32x1xf32>
    %283 = arith.divf %281, %282 : vector<32x1xf32>
    %284 = vector.broadcast %283 : vector<32x1xf32> to vector<32x32xf32>
    %285 = arith.subf %275, %284 : vector<32x32xf32>
    %286 = arith.mulf %285, %285 : vector<32x32xf32>
    %cst_99 = arith.constant dense<0.000000e+00> : vector<32xf32>
    %287 = vector.multi_reduction <add>, %286, %cst_99 [1] : vector<32x32xf32> to vector<32xf32>
    %288 = vector.shape_cast %287 : vector<32xf32> to vector<32x1xf32>
    %cst_100 = arith.constant 3.200000e+01 : f32
    %289 = vector.broadcast %cst_100 : f32 to vector<32x1xf32>
    %290 = arith.divf %288, %289 : vector<32x1xf32>
    %cst_101 = arith.constant 9.99999974E-6 : f32
    %291 = vector.broadcast %cst_101 : f32 to vector<32x1xf32>
    %292 = arith.addf %290, %291 : vector<32x1xf32>
    %293 = math.rsqrt %292 : vector<32x1xf32>
    %294 = vector.broadcast %293 : vector<32x1xf32> to vector<32x32xf32>
    %295 = arith.mulf %285, %294 : vector<32x32xf32>
    %296 = vector.broadcast %277 : vector<1x32xf32> to vector<32x32xf32>
    %297 = arith.mulf %295, %296 : vector<32x32xf32>
    %298 = vector.broadcast %279 : vector<1x32xf32> to vector<32x32xf32>
    %299 = arith.addf %297, %298 : vector<32x32xf32>
    %300 = vector.extract_strided_slice %15 {offsets = [1, 0, 0], sizes = [1, 32, 128], strides = [1, 1, 1]} : vector<2x32x128xbf16> to vector<1x32x128xbf16>
    %301 = vector.shape_cast %300 : vector<1x32x128xbf16> to vector<32x128xbf16>
    %302 = arith.truncf %299 : vector<32x32xf32> to vector<32x32xbf16>
    %cst_102 = arith.constant dense<0.000000e+00> : vector<32x128xf32>
    %303 = tpu.matmul %302, %301, %cst_102 {dimension_numbers = #tpu.dot_dimension_numbers<[1], [0], [0], [1], [0, 0, 1, 1], [], []>} : vector<32x32xbf16>, vector<32x128xbf16>, vector<32x128xf32> -> vector<32x128xf32>
    %304 = vector.extract_strided_slice %17 {offsets = [1, 0, 0], sizes = [1, 1, 128], strides = [1, 1, 1]} : vector<2x1x128xf32> to vector<1x1x128xf32>
    %305 = vector.shape_cast %304 : vector<1x1x128xf32> to vector<1x128xf32>
    %306 = vector.broadcast %305 : vector<1x128xf32> to vector<32x128xf32>
    %307 = arith.addf %303, %306 : vector<32x128xf32>
    %cst_103 = arith.constant 0.000000e+00 : f32
    %308 = vector.broadcast %cst_103 : f32 to vector<32x128xf32>
    %309 = arith.maximumf %307, %308 : vector<32x128xf32>
    %310 = vector.extract_strided_slice %19 {offsets = [1, 0, 0], sizes = [1, 128, 32], strides = [1, 1, 1]} : vector<2x128x32xbf16> to vector<1x128x32xbf16>
    %311 = vector.shape_cast %310 : vector<1x128x32xbf16> to vector<128x32xbf16>
    %312 = arith.truncf %309 : vector<32x128xf32> to vector<32x128xbf16>
    %cst_104 = arith.constant dense<0.000000e+00> : vector<32x32xf32>
    %313 = tpu.matmul %312, %311, %cst_104 {dimension_numbers = #tpu.dot_dimension_numbers<[1], [0], [0], [1], [0, 0, 1, 1], [], []>} : vector<32x128xbf16>, vector<128x32xbf16>, vector<32x32xf32> -> vector<32x32xf32>
    %314 = vector.extract_strided_slice %21 {offsets = [1, 0, 0], sizes = [1, 1, 32], strides = [1, 1, 1]} : vector<2x1x32xf32> to vector<1x1x32xf32>
    %315 = vector.shape_cast %314 : vector<1x1x32xf32> to vector<1x32xf32>
    %316 = vector.broadcast %315 : vector<1x32xf32> to vector<32x32xf32>
    %317 = arith.addf %313, %316 : vector<32x32xf32>
    %318 = arith.addf %299, %317 : vector<32x32xf32>
    %319 = vector.extract_strided_slice %27 {offsets = [1, 0, 0], sizes = [1, 1, 32], strides = [1, 1, 1]} : vector<2x1x32xf32> to vector<1x1x32xf32>
    %320 = vector.shape_cast %319 : vector<1x1x32xf32> to vector<1x32xf32>
    %321 = vector.extract_strided_slice %29 {offsets = [1, 0, 0], sizes = [1, 1, 32], strides = [1, 1, 1]} : vector<2x1x32xf32> to vector<1x1x32xf32>
    %322 = vector.shape_cast %321 : vector<1x1x32xf32> to vector<1x32xf32>
    %cst_105 = arith.constant dense<0.000000e+00> : vector<32xf32>
    %323 = vector.multi_reduction <add>, %318, %cst_105 [1] : vector<32x32xf32> to vector<32xf32>
    %324 = vector.shape_cast %323 : vector<32xf32> to vector<32x1xf32>
    %cst_106 = arith.constant 3.200000e+01 : f32
    %325 = vector.broadcast %cst_106 : f32 to vector<32x1xf32>
    %326 = arith.divf %324, %325 : vector<32x1xf32>
    %327 = vector.broadcast %326 : vector<32x1xf32> to vector<32x32xf32>
    %328 = arith.subf %318, %327 : vector<32x32xf32>
    %329 = arith.mulf %328, %328 : vector<32x32xf32>
    %cst_107 = arith.constant dense<0.000000e+00> : vector<32xf32>
    %330 = vector.multi_reduction <add>, %329, %cst_107 [1] : vector<32x32xf32> to vector<32xf32>
    %331 = vector.shape_cast %330 : vector<32xf32> to vector<32x1xf32>
    %cst_108 = arith.constant 3.200000e+01 : f32
    %332 = vector.broadcast %cst_108 : f32 to vector<32x1xf32>
    %333 = arith.divf %331, %332 : vector<32x1xf32>
    %cst_109 = arith.constant 9.99999974E-6 : f32
    %334 = vector.broadcast %cst_109 : f32 to vector<32x1xf32>
    %335 = arith.addf %333, %334 : vector<32x1xf32>
    %336 = math.rsqrt %335 : vector<32x1xf32>
    %337 = vector.broadcast %336 : vector<32x1xf32> to vector<32x32xf32>
    %338 = arith.mulf %328, %337 : vector<32x32xf32>
    %339 = vector.broadcast %320 : vector<1x32xf32> to vector<32x32xf32>
    %340 = arith.mulf %338, %339 : vector<32x32xf32>
    %341 = vector.broadcast %322 : vector<1x32xf32> to vector<32x32xf32>
    %342 = arith.addf %340, %341 : vector<32x32xf32>
    %343 = arith.truncf %342 : vector<32x32xf32> to vector<32x32xbf16>
    %cst_110 = arith.constant dense<0.000000e+00> : vector<32x256xf32>
    %344 = tpu.matmul %343, %31, %cst_110 {dimension_numbers = #tpu.dot_dimension_numbers<[1], [0], [0], [1], [0, 0, 1, 1], [], []>} : vector<32x32xbf16>, vector<32x256xbf16>, vector<32x256xf32> -> vector<32x256xf32>
    %345 = vector.broadcast %33 : vector<1x256xf32> to vector<32x256xf32>
    %346 = arith.addf %344, %345 : vector<32x256xf32>
    %347 = arith.addf %36, %346 : vector<32x256xf32>
    %cst_111 = arith.constant 0.000000e+00 : f32
    %cst_112 = arith.constant 1.000000e+00 : f32
    %348 = vector.broadcast %cst_111 : f32 to vector<32x256xf32>
    %349 = arith.maximumf %348, %347 : vector<32x256xf32>
    %350 = vector.broadcast %cst_112 : f32 to vector<32x256xf32>
    %351 = arith.minimumf %350, %349 : vector<32x256xf32>
    %352 = vector.shape_cast %351 : vector<32x256xf32> to vector<2x16x256xf32>
    %c0_113 = arith.constant 0 : index
    %c0_114 = arith.constant 0 : index
    %c0_115 = arith.constant 0 : index
    %c0_116 = arith.constant 0 : index
    %353 = vector.load %arg20[%c0_113, %c0_114, %c0_115, %c0_116] : memref<1x2x16x256xf32, #tpu.memory_space<vmem>>, vector<1x2x16x256xf32>
    %354 = vector.shape_cast %353 : vector<1x2x16x256xf32> to vector<2x16x256xf32>
    %355 = vector.shape_cast %352 : vector<2x16x256xf32> to vector<1x2x16x256xf32>
    tpu.vector_store %arg20[%c0_113, %c0_114, %c0_115, %c0_116], %355 {strides = array<i32>} : memref<1x2x16x256xf32, #tpu.memory_space<vmem>>, vector<1x2x16x256xf32>,
    return
  }
  func.func @transform_0(%arg0: i32, %arg1: i32) -> (i32, i32, i32, i32) {
    %c0_i32 = arith.constant 0 : i32
    %c0_i32_0 = arith.constant 0 : i32
    %c0_i32_1 = arith.constant 0 : i32
    return %arg0, %arg1, %c0_i32, %c0_i32_0 : i32, i32, i32, i32
  }
  func.func @transform_1(%arg0: i32, %arg1: i32) -> (i32, i32, i32) {
    %c0_i32 = arith.constant 0 : i32
    %c0_i32_0 = arith.constant 0 : i32
    %c0_i32_1 = arith.constant 0 : i32
    return %arg0, %c0_i32, %c0_i32_0 : i32, i32, i32
  }
  func.func @transform_2(%arg0: i32, %arg1: i32) -> (i32, i32, i32) {
    %c0_i32 = arith.constant 0 : i32
    %c0_i32_0 = arith.constant 0 : i32
    %c0_i32_1 = arith.constant 0 : i32
    return %arg0, %c0_i32, %c0_i32_0 : i32, i32, i32
  }
  func.func @transform_3(%arg0: i32, %arg1: i32) -> (i32, i32, i32) {
    %c0_i32 = arith.constant 0 : i32
    %c0_i32_0 = arith.constant 0 : i32
    %c0_i32_1 = arith.constant 0 : i32
    return %arg0, %c0_i32, %c0_i32_0 : i32, i32, i32
  }
  func.func @transform_4(%arg0: i32, %arg1: i32) -> (i32, i32, i32, i32) {
    %c0_i32 = arith.constant 0 : i32
    %c0_i32_0 = arith.constant 0 : i32
    %c0_i32_1 = arith.constant 0 : i32
    %c0_i32_2 = arith.constant 0 : i32
    return %arg0, %c0_i32, %c0_i32_0, %c0_i32_1 : i32, i32, i32, i32
  }
  func.func @transform_5(%arg0: i32, %arg1: i32) -> (i32, i32, i32, i32) {
    %c0_i32 = arith.constant 0 : i32
    %c0_i32_0 = arith.constant 0 : i32
    %c0_i32_1 = arith.constant 0 : i32
    %c0_i32_2 = arith.constant 0 : i32
    return %arg0, %c0_i32, %c0_i32_0, %c0_i32_1 : i32, i32, i32, i32
  }
  func.func @transform_6(%arg0: i32, %arg1: i32) -> (i32, i32, i32, i32) {
    %c0_i32 = arith.constant 0 : i32
    %c0_i32_0 = arith.constant 0 : i32
    %c0_i32_1 = arith.constant 0 : i32
    %c0_i32_2 = arith.constant 0 : i32
    return %arg0, %c0_i32, %c0_i32_0, %c0_i32_1 : i32, i32, i32, i32
  }
  func.func @transform_7(%arg0: i32, %arg1: i32) -> (i32, i32, i32, i32) {
    %c0_i32 = arith.constant 0 : i32
    %c0_i32_0 = arith.constant 0 : i32
    %c0_i32_1 = arith.constant 0 : i32
    %c0_i32_2 = arith.constant 0 : i32
    return %arg0, %c0_i32, %c0_i32_0, %c0_i32_1 : i32, i32, i32, i32
  }
  func.func @transform_8(%arg0: i32, %arg1: i32) -> (i32, i32, i32, i32) {
    %c0_i32 = arith.constant 0 : i32
    %c0_i32_0 = arith.constant 0 : i32
    %c0_i32_1 = arith.constant 0 : i32
    %c0_i32_2 = arith.constant 0 : i32
    return %arg0, %c0_i32, %c0_i32_0, %c0_i32_1 : i32, i32, i32, i32
  }
  func.func @transform_9(%arg0: i32, %arg1: i32) -> (i32, i32, i32, i32) {
    %c0_i32 = arith.constant 0 : i32
    %c0_i32_0 = arith.constant 0 : i32
    %c0_i32_1 = arith.constant 0 : i32
    %c0_i32_2 = arith.constant 0 : i32
    return %arg0, %c0_i32, %c0_i32_0, %c0_i32_1 : i32, i32, i32, i32
  }
  func.func @transform_10(%arg0: i32, %arg1: i32) -> (i32, i32, i32, i32) {
    %c0_i32 = arith.constant 0 : i32
    %c0_i32_0 = arith.constant 0 : i32
    %c0_i32_1 = arith.constant 0 : i32
    %c0_i32_2 = arith.constant 0 : i32
    return %arg0, %c0_i32, %c0_i32_0, %c0_i32_1 : i32, i32, i32, i32
  }
  func.func @transform_11(%arg0: i32, %arg1: i32) -> (i32, i32, i32, i32) {
    %c0_i32 = arith.constant 0 : i32
    %c0_i32_0 = arith.constant 0 : i32
    %c0_i32_1 = arith.constant 0 : i32
    %c0_i32_2 = arith.constant 0 : i32
    return %arg0, %c0_i32, %c0_i32_0, %c0_i32_1 : i32, i32, i32, i32
  }
  func.func @transform_12(%arg0: i32, %arg1: i32) -> (i32, i32, i32, i32) {
    %c0_i32 = arith.constant 0 : i32
    %c0_i32_0 = arith.constant 0 : i32
    %c0_i32_1 = arith.constant 0 : i32
    %c0_i32_2 = arith.constant 0 : i32
    return %arg0, %c0_i32, %c0_i32_0, %c0_i32_1 : i32, i32, i32, i32
  }
  func.func @transform_13(%arg0: i32, %arg1: i32) -> (i32, i32, i32, i32) {
    %c0_i32 = arith.constant 0 : i32
    %c0_i32_0 = arith.constant 0 : i32
    %c0_i32_1 = arith.constant 0 : i32
    %c0_i32_2 = arith.constant 0 : i32
    return %arg0, %c0_i32, %c0_i32_0, %c0_i32_1 : i32, i32, i32, i32
  }
  func.func @transform_14(%arg0: i32, %arg1: i32) -> (i32, i32, i32, i32) {
    %c0_i32 = arith.constant 0 : i32
    %c0_i32_0 = arith.constant 0 : i32
    %c0_i32_1 = arith.constant 0 : i32
    %c0_i32_2 = arith.constant 0 : i32
    return %arg0, %c0_i32, %c0_i32_0, %c0_i32_1 : i32, i32, i32, i32
  }
  func.func @transform_15(%arg0: i32, %arg1: i32) -> (i32, i32, i32, i32) {
    %c0_i32 = arith.constant 0 : i32
    %c0_i32_0 = arith.constant 0 : i32
    %c0_i32_1 = arith.constant 0 : i32
    %c0_i32_2 = arith.constant 0 : i32
    return %arg0, %c0_i32, %c0_i32_0, %c0_i32_1 : i32, i32, i32, i32
  }
  func.func @transform_16(%arg0: i32, %arg1: i32) -> (i32, i32, i32) {
    %c0_i32 = arith.constant 0 : i32
    %c0_i32_0 = arith.constant 0 : i32
    %c0_i32_1 = arith.constant 0 : i32
    return %arg0, %c0_i32, %c0_i32_0 : i32, i32, i32
  }
  func.func @transform_17(%arg0: i32, %arg1: i32) -> (i32, i32, i32) {
    %c0_i32 = arith.constant 0 : i32
    %c0_i32_0 = arith.constant 0 : i32
    %c0_i32_1 = arith.constant 0 : i32
    return %arg0, %c0_i32, %c0_i32_0 : i32, i32, i32
  }
  func.func @transform_18(%arg0: i32, %arg1: i32) -> (i32, i32, i32, i32) {
    %c0_i32 = arith.constant 0 : i32
    %c0_i32_0 = arith.constant 0 : i32
    %c0_i32_1 = arith.constant 0 : i32
    return %arg0, %arg1, %c0_i32, %c0_i32_0 : i32, i32, i32, i32
  }
}

</mosaic_0001>

<llo_original>
// kernel: squeeze.5
$region0: #{squeeze.5}
  %s0 = inlined_call_operand.vmem [shape: f32[1,2,16,256], index: 0, kind: input, shape index: {}]
  %s1 = inlined_call_operand.vmem [shape: f32[2,4,4,8,8,4], index: 1, kind: output, shape index: {}]
  %v2 = vld [vmem:[%s0] sm:$0xff]
  %vm3 = vcmask 31744
  %4 = vst.msk [vmem:[%s1] sm:$0x1] %vm3, %v2
  %s5 = scalar_lea.vmem %s1, 63
  %6 = vst.msk [vmem:[%s5] sm:$0x2] %vm3, %v2
  %s7 = scalar_lea.vmem %s1, 126
  %8 = vst.msk [vmem:[%s7] sm:$0x4] %vm3, %v2
  %s9 = scalar_lea.vmem %s1, 189
  %10 = vst.msk [vmem:[%s9] sm:$0x8] %vm3, %v2
  %s11 = scalar_lea.vmem %s1, 252
  %12 = vst.msk [vmem:[%s11] sm:$0x10] %vm3, %v2
  %s13 = scalar_lea.vmem %s1, 315
  %14 = vst.msk [vmem:[%s13] sm:$0x20] %vm3, %v2
  %s15 = scalar_lea.vmem %s1, 378
  %16 = vst.msk [vmem:[%s15] sm:$0x40] %vm3, %v2
  %s17 = scalar_lea.vmem %s1, 441
  %18 = vst.msk [vmem:[%s17] sm:$0x80] %vm3, %v2
  %s19 = scalar_lea.vmem %s0, 8
  %v20 = vld [vmem:[%s19] sm:$0xff]
  %vm21 = vcmask 31744
  %s22 = scalar_lea.vmem %s1, 32
  %23 = vst.msk [vmem:[%s22] sm:$0x1] %vm21, %v20
  %s24 = scalar_lea.vmem %s1, 95
  %25 = vst.msk [vmem:[%s24] sm:$0x2] %vm21, %v20
  %s26 = scalar_lea.vmem %s1, 158
  %27 = vst.msk [vmem:[%s26] sm:$0x4] %vm21, %v20
  %s28 = scalar_lea.vmem %s1, 221
  %29 = vst.msk [vmem:[%s28] sm:$0x8] %vm21, %v20
  %s30 = scalar_lea.vmem %s1, 284
  %31 = vst.msk [vmem:[%s30] sm:$0x10] %vm21, %v20
  %s32 = scalar_lea.vmem %s1, 347
  %33 = vst.msk [vmem:[%s32] sm:$0x20] %vm21, %v20
  %s34 = scalar_lea.vmem %s1, 410
  %35 = vst.msk [vmem:[%s34] sm:$0x40] %vm21, %v20
  %s36 = scalar_lea.vmem %s1, 473
  %37 = vst.msk [vmem:[%s36] sm:$0x80] %vm21, %v20
  %s38 = scalar_lea.vmem %s0, 16
  %v39 = vld [vmem:[%s38] sm:$0xff]
  %vm40 = vcmask 31744
  %s41 = scalar_lea.vmem %s1, 512
  %42 = vst.msk [vmem:[%s41] sm:$0x1] %vm40, %v39
  %s43 = scalar_lea.vmem %s1, 575
  %44 = vst.msk [vmem:[%s43] sm:$0x2] %vm40, %v39
  %s45 = scalar_lea.vmem %s1, 638
  %46 = vst.msk [vmem:[%s45] sm:$0x4] %vm40, %v39
  %s47 = scalar_lea.vmem %s1, 701
  %48 = vst.msk [vmem:[%s47] sm:$0x8] %vm40, %v39
  %s49 = scalar_lea.vmem %s1, 764
  %50 = vst.msk [vmem:[%s49] sm:$0x10] %vm40, %v39
  %s51 = scalar_lea.vmem %s1, 827
  %52 = vst.msk [vmem:[%s51] sm:$0x20] %vm40, %v39
  %s53 = scalar_lea.vmem %s1, 890
  %54 = vst.msk [vmem:[%s53] sm:$0x40] %vm40, %v39
  %s55 = scalar_lea.vmem %s1, 953
  %56 = vst.msk [vmem:[%s55] sm:$0x80] %vm40, %v39
  %s57 = scalar_lea.vmem %s0, 24
  %v58 = vld [vmem:[%s57] sm:$0xff]
  %vm59 = vcmask 31744
  %s60 = scalar_lea.vmem %s1, 544
  %61 = vst.msk [vmem:[%s60] sm:$0x1] %vm59, %v58
  %s62 = scalar_lea.vmem %s1, 607
  %63 = vst.msk [vmem:[%s62] sm:$0x2] %vm59, %v58
  %s64 = scalar_lea.vmem %s1, 670
  %65 = vst.msk [vmem:[%s64] sm:$0x4] %vm59, %v58
  %s66 = scalar_lea.vmem %s1, 733
  %67 = vst.msk [vmem:[%s66] sm:$0x8] %vm59, %v58
  %s68 = scalar_lea.vmem %s1, 796
  %69 = vst.msk [vmem:[%s68] sm:$0x10] %vm59, %v58
  %s70 = scalar_lea.vmem %s1, 859
  %71 = vst.msk [vmem:[%s70] sm:$0x20] %vm59, %v58
  %s72 = scalar_lea.vmem %s1, 922
  %73 = vst.msk [vmem:[%s72] sm:$0x40] %vm59, %v58
  %s74 = scalar_lea.vmem %s1, 985
  %75 = vst.msk [vmem:[%s74] sm:$0x80] %vm59, %v58
  %s76 = scalar_lea.vmem %s0, 32
  %v77 = vld [vmem:[%s76] sm:$0xff]
  %vm78 = vcmask 31744
  %s79 = scalar_lea.vmem %s1, 1024
  %80 = vst.msk [vmem:[%s79] sm:$0x1] %vm78, %v77
  %s81 = scalar_lea.vmem %s1, 1087
  %82 = vst.msk [vmem:[%s81] sm:$0x2] %vm78, %v77
  %s83 = scalar_lea.vmem %s1, 1150
  %84 = vst.msk [vmem:[%s83] sm:$0x4] %vm78, %v77
  %s85 = scalar_lea.vmem %s1, 1213
  %86 = vst.msk [vmem:[%s85] sm:$0x8] %vm78, %v77
  %s87 = scalar_lea.vmem %s1, 1276
  %88 = vst.msk [vmem:[%s87] sm:$0x10] %vm78, %v77
  %s89 = scalar_lea.vmem %s1, 1339
  %90 = vst.msk [vmem:[%s89] sm:$0x20] %vm78, %v77
  %s91 = scalar_lea.vmem %s1, 1402
  %92 = vst.msk [vmem:[%s91] sm:$0x40] %vm78, %v77
  %s93 = scalar_lea.vmem %s1, 1465
  %94 = vst.msk [vmem:[%s93] sm:$0x80] %vm78, %v77
  %s95 = scalar_lea.vmem %s0, 40
  %v96 = vld [vmem:[%s95] sm:$0xff]
  %vm97 = vcmask 31744
  %s98 = scalar_lea.vmem %s1, 1056
  %99 = vst.msk [vmem:[%s98] sm:$0x1] %vm97, %v96
  %s100 = scalar_lea.vmem %s1, 1119
  %101 = vst.msk [vmem:[%s100] sm:$0x2] %vm97, %v96
  %s102 = scalar_lea.vmem %s1, 1182
  %103 = vst.msk [vmem:[%s102] sm:$0x4] %vm97, %v96
  %s104 = scalar_lea.vmem %s1, 1245
  %105 = vst.msk [vmem:[%s104] sm:$0x8] %vm97, %v96
  %s106 = scalar_lea.vmem %s1, 1308
  %107 = vst.msk [vmem:[%s106] sm:$0x10] %vm97, %v96
  %s108 = scalar_lea.vmem %s1, 1371
  %109 = vst.msk [vmem:[%s108] sm:$0x20] %vm97, %v96
  %s110 = scalar_lea.vmem %s1, 1434
  %111 = vst.msk [vmem:[%s110] sm:$0x40] %vm97, %v96
  %s112 = scalar_lea.vmem %s1, 1497
  %113 = vst.msk [vmem:[%s112] sm:$0x80] %vm97, %v96
  %s114 = scalar_lea.vmem %s0, 48
  %v115 = vld [vmem:[%s114] sm:$0xff]
  %vm116 = vcmask 31744
  %s117 = scalar_lea.vmem %s1, 1536
  %118 = vst.msk [vmem:[%s117] sm:$0x1] %vm116, %v115
  %s119 = scalar_lea.vmem %s1, 1599
  %120 = vst.msk [vmem:[%s119] sm:$0x2] %vm116, %v115
  %s121 = scalar_lea.vmem %s1, 1662
  %122 = vst.msk [vmem:[%s121] sm:$0x4] %vm116, %v115
  %s123 = scalar_lea.vmem %s1, 1725
  %124 = vst.msk [vmem:[%s123] sm:$0x8] %vm116, %v115
  %s125 = scalar_lea.vmem %s1, 1788
  %126 = vst.msk [vmem:[%s125] sm:$0x10] %vm116, %v115
  %s127 = scalar_lea.vmem %s1, 1851
  %128 = vst.msk [vmem:[%s127] sm:$0x20] %vm116, %v115
  %s129 = scalar_lea.vmem %s1, 1914
  %130 = vst.msk [vmem:[%s129] sm:$0x40] %vm116, %v115
  %s131 = scalar_lea.vmem %s1, 1977
  %132 = vst.msk [vmem:[%s131] sm:$0x80] %vm116, %v115
  %s133 = scalar_lea.vmem %s0, 56
  %v134 = vld [vmem:[%s133] sm:$0xff]
  %vm135 = vcmask 31744
  %s136 = scalar_lea.vmem %s1, 1568
  %137 = vst.msk [vmem:[%s136] sm:$0x1] %vm135, %v134
  %s138 = scalar_lea.vmem %s1, 1631
  %139 = vst.msk [vmem:[%s138] sm:$0x2] %vm135, %v134
  %s140 = scalar_lea.vmem %s1, 1694
  %141 = vst.msk [vmem:[%s140] sm:$0x4] %vm135, %v134
  %s142 = scalar_lea.vmem %s1, 1757
  %143 = vst.msk [vmem:[%s142] sm:$0x8] %vm135, %v134
  %s144 = scalar_lea.vmem %s1, 1820
  %145 = vst.msk [vmem:[%s144] sm:$0x10] %vm135, %v134
  %s146 = scalar_lea.vmem %s1, 1883
  %147 = vst.msk [vmem:[%s146] sm:$0x20] %vm135, %v134
  %s148 = scalar_lea.vmem %s1, 1946
  %149 = vst.msk [vmem:[%s148] sm:$0x40] %vm135, %v134
  %s150 = scalar_lea.vmem %s1, 2009
  %151 = vst.msk [vmem:[%s150] sm:$0x80] %vm135, %v134
  %v152 = vld [vmem:[%s0] sm:$0xff]
  %153 = vrot.lane.b32.xlu0 %v152, 124
  %v154 = vpop.permute.xlu0 %153
  %vm155 = vcmask 31744
  %s156 = scalar_lea.vmem %s1, 1
  %157 = vst.msk [vmem:[%s156] sm:$0x1] %vm155, %v154
  %s158 = scalar_lea.vmem %s1, 64
  %159 = vst.msk [vmem:[%s158] sm:$0x2] %vm155, %v154
  %s160 = scalar_lea.vmem %s1, 127
  %161 = vst.msk [vmem:[%s160] sm:$0x4] %vm155, %v154
  %s162 = scalar_lea.vmem %s1, 190
  %163 = vst.msk [vmem:[%s162] sm:$0x8] %vm155, %v154
  %s164 = scalar_lea.vmem %s1, 253
  %165 = vst.msk [vmem:[%s164] sm:$0x10] %vm155, %v154
  %s166 = scalar_lea.vmem %s1, 316
  %167 = vst.msk [vmem:[%s166] sm:$0x20] %vm155, %v154
  %s168 = scalar_lea.vmem %s1, 379
  %169 = vst.msk [vmem:[%s168] sm:$0x40] %vm155, %v154
  %s170 = scalar_lea.vmem %s1, 442
  %171 = vst.msk [vmem:[%s170] sm:$0x80] %vm155, %v154
  %s172 = scalar_lea.vmem %s0, 8
  %v173 = vld [vmem:[%s172] sm:$0xff]
  %174 = vrot.lane.b32.xlu0 %v173, 124
  %v175 = vpop.permute.xlu0 %174
  %vm176 = vcmask 31744
  %s177 = scalar_lea.vmem %s1, 33
  %178 = vst.msk [vmem:[%s177] sm:$0x1] %vm176, %v175
  %s179 = scalar_lea.vmem %s1, 96
  %180 = vst.msk [vmem:[%s179] sm:$0x2] %vm176, %v175
  %s181 = scalar_lea.vmem %s1, 159
  %182 = vst.msk [vmem:[%s181] sm:$0x4] %vm176, %v175
  %s183 = scalar_lea.vmem %s1, 222
  %184 = vst.msk [vmem:[%s183] sm:$0x8] %vm176, %v175
  %s185 = scalar_lea.vmem %s1, 285
  %186 = vst.msk [vmem:[%s185] sm:$0x10] %vm176, %v175
  %s187 = scalar_lea.vmem %s1, 348
  %188 = vst.msk [vmem:[%s187] sm:$0x20] %vm176, %v175
  %s189 = scalar_lea.vmem %s1, 411
  %190 = vst.msk [vmem:[%s189] sm:$0x40] %vm176, %v175
  %s191 = scalar_lea.vmem %s1, 474
  %192 = vst.msk [vmem:[%s191] sm:$0x80] %vm176, %v175
  %s193 = scalar_lea.vmem %s0, 16
  %v194 = vld [vmem:[%s193] sm:$0xff]
  %195 = vrot.lane.b32.xlu0 %v194, 124
  %v196 = vpop.permute.xlu0 %195
  %vm197 = vcmask 31744
  %s198 = scalar_lea.vmem %s1, 513
  %199 = vst.msk [vmem:[%s198] sm:$0x1] %vm197, %v196
  %s200 = scalar_lea.vmem %s1, 576
  %201 = vst.msk [vmem:[%s200] sm:$0x2] %vm197, %v196
  %s202 = scalar_lea.vmem %s1, 639
  %203 = vst.msk [vmem:[%s202] sm:$0x4] %vm197, %v196
  %s204 = scalar_lea.vmem %s1, 702
  %205 = vst.msk [vmem:[%s204] sm:$0x8] %vm197, %v196
  %s206 = scalar_lea.vmem %s1, 765
  %207 = vst.msk [vmem:[%s206] sm:$0x10] %vm197, %v196
  %s208 = scalar_lea.vmem %s1, 828
  %209 = vst.msk [vmem:[%s208] sm:$0x20] %vm197, %v196
  %s210 = scalar_lea.vmem %s1, 891
  %211 = vst.msk [vmem:[%s210] sm:$0x40] %vm197, %v196
  %s212 = scalar_lea.vmem %s1, 954
  %213 = vst.msk [vmem:[%s212] sm:$0x80] %vm197, %v196
  %s214 = scalar_lea.vmem %s0, 24
  %v215 = vld [vmem:[%s214] sm:$0xff]
  %216 = vrot.lane.b32.xlu0 %v215, 124
  %v217 = vpop.permute.xlu0 %216
  %vm218 = vcmask 31744
  %s219 = scalar_lea.vmem %s1, 545
  %220 = vst.msk [vmem:[%s219] sm:$0x1] %vm218, %v217
  %s221 = scalar_lea.vmem %s1, 608
  %222 = vst.msk [vmem:[%s221] sm:$0x2] %vm218, %v217
  %s223 = scalar_lea.vmem %s1, 671
  %224 = vst.msk [vmem:[%s223] sm:$0x4] %vm218, %v217
  %s225 = scalar_lea.vmem %s1, 734
  %226 = vst.msk [vmem:[%s225] sm:$0x8] %vm218, %v217
  %s227 = scalar_lea.vmem %s1, 797
  %228 = vst.msk [vmem:[%s227] sm:$0x10] %vm218, %v217
  %s229 = scalar_lea.vmem %s1, 860
  %230 = vst.msk [vmem:[%s229] sm:$0x20] %vm218, %v217
  %s231 = scalar_lea.vmem %s1, 923
  %232 = vst.msk [vmem:[%s231] sm:$0x40] %vm218, %v217
  %s233 = scalar_lea.vmem %s1, 986
  %234 = vst.msk [vmem:[%s233] sm:$0x80] %vm218, %v217
  %s235 = scalar_lea.vmem %s0, 32
  %v236 = vld [vmem:[%s235] sm:$0xff]
  %237 = vrot.lane.b32.xlu0 %v236, 124
  %v238 = vpop.permute.xlu0 %237
  %vm239 = vcmask 31744
  %s240 = scalar_lea.vmem %s1, 1025
  %241 = vst.msk [vmem:[%s240] sm:$0x1] %vm239, %v238
  %s242 = scalar_lea.vmem %s1, 1088
  %243 = vst.msk [vmem:[%s242] sm:$0x2] %vm239, %v238
  %s244 = scalar_lea.vmem %s1, 1151
  %245 = vst.msk [vmem:[%s244] sm:$0x4] %vm239, %v238
  %s246 = scalar_lea.vmem %s1, 1214
  %247 = vst.msk [vmem:[%s246] sm:$0x8] %vm239, %v238
  %s248 = scalar_lea.vmem %s1, 1277
  %249 = vst.msk [vmem:[%s248] sm:$0x10] %vm239, %v238
  %s250 = scalar_lea.vmem %s1, 1340
  %251 = vst.msk [vmem:[%s250] sm:$0x20] %vm239, %v238
  %s252 = scalar_lea.vmem %s1, 1403
  %253 = vst.msk [vmem:[%s252] sm:$0x40] %vm239, %v238
  %s254 = scalar_lea.vmem %s1, 1466
  %255 = vst.msk [vmem:[%s254] sm:$0x80] %vm239, %v238
  %s256 = scalar_lea.vmem %s0, 40
  %v257 = vld [vmem:[%s256] sm:$0xff]
  %258 = vrot.lane.b32.xlu0 %v257, 124
  %v259 = vpop.permute.xlu0 %258
  %vm260 = vcmask 31744
  %s261 = scalar_lea.vmem %s1, 1057
  %262 = vst.msk [vmem:[%s261] sm:$0x1] %vm260, %v259
  %s263 = scalar_lea.vmem %s1, 1120
  %264 = vst.msk [vmem:[%s263] sm:$0x2] %vm260, %v259
  %s265 = scalar_lea.vmem %s1, 1183
  %266 = vst.msk [vmem:[%s265] sm:$0x4] %vm260, %v259
  %s267 = scalar_lea.vmem %s1, 1246
  %268 = vst.msk [vmem:[%s267] sm:$0x8] %vm260, %v259
  %s269 = scalar_lea.vmem %s1, 1309
  %270 = vst.msk [vmem:[%s269] sm:$0x10] %vm260, %v259
  %s271 = scalar_lea.vmem %s1, 1372
  %272 = vst.msk [vmem:[%s271] sm:$0x20] %vm260, %v259
  %s273 = scalar_lea.vmem %s1, 1435
  %274 = vst.msk [vmem:[%s273] sm:$0x40] %vm260, %v259
  %s275 = scalar_lea.vmem %s1, 1498
  %276 = vst.msk [vmem:[%s275] sm:$0x80] %vm260, %v259
  %s277 = scalar_lea.vmem %s0, 48
  %v278 = vld [vmem:[%s277] sm:$0xff]
  %279 = vrot.lane.b32.xlu0 %v278, 124
  %v280 = vpop.permute.xlu0 %279
  %vm281 = vcmask 31744
  %s282 = scalar_lea.vmem %s1, 1537
  %283 = vst.msk [vmem:[%s282] sm:$0x1] %vm281, %v280
  %s284 = scalar_lea.vmem %s1, 1600
  %285 = vst.msk [vmem:[%s284] sm:$0x2] %vm281, %v280
  %s286 = scalar_lea.vmem %s1, 1663
  %287 = vst.msk [vmem:[%s286] sm:$0x4] %vm281, %v280
  %s288 = scalar_lea.vmem %s1, 1726
  %289 = vst.msk [vmem:[%s288] sm:$0x8] %vm281, %v280
  %s290 = scalar_lea.vmem %s1, 1789
  %291 = vst.msk [vmem:[%s290] sm:$0x10] %vm281, %v280
  %s292 = scalar_lea.vmem %s1, 1852
  %293 = vst.msk [vmem:[%s292] sm:$0x20] %vm281, %v280
  %s294 = scalar_lea.vmem %s1, 1915
  %295 = vst.msk [vmem:[%s294] sm:$0x40] %vm281, %v280
  %s296 = scalar_lea.vmem %s1, 1978
  %297 = vst.msk [vmem:[%s296] sm:$0x80] %vm281, %v280
  %s298 = scalar_lea.vmem %s0, 56
  %v299 = vld [vmem:[%s298] sm:$0xff]
  %300 = vrot.lane.b32.xlu0 %v299, 124
  %v301 = vpop.permute.xlu0 %300
  %vm302 = vcmask 31744
  %s303 = scalar_lea.vmem %s1, 1569
  %304 = vst.msk [vmem:[%s303] sm:$0x1] %vm302, %v301
  %s305 = scalar_lea.vmem %s1, 1632
  %306 = vst.msk [vmem:[%s305] sm:$0x2] %vm302, %v301
  %s307 = scalar_lea.vmem %s1, 1695
  %308 = vst.msk [vmem:[%s307] sm:$0x4] %vm302, %v301
  %s309 = scalar_lea.vmem %s1, 1758
  %310 = vst.msk [vmem:[%s309] sm:$0x8] %vm302, %v301
  %s311 = scalar_lea.vmem %s1, 1821
  %312 = vst.msk [vmem:[%s311] sm:$0x10] %vm302, %v301
  %s313 = scalar_lea.vmem %s1, 1884
  %314 = vst.msk [vmem:[%s313] sm:$0x20] %vm302, %v301
  %s315 = scalar_lea.vmem %s1, 1947
  %316 = vst.msk [vmem:[%s315] sm:$0x40] %vm302, %v301
  %s317 = scalar_lea.vmem %s1, 2010
  %318 = vst.msk [vmem:[%s317] sm:$0x80] %vm302, %v301
  %v319 = vld [vmem:[%s0] sm:$0xff]
  %320 = vrot.lane.b32.xlu0 %v319, 120
  %v321 = vpop.permute.xlu0 %320
  %vm322 = vcmask 31744
  %s323 = scalar_lea.vmem %s1, 2
  %324 = vst.msk [vmem:[%s323] sm:$0x1] %vm322, %v321
  %s325 = scalar_lea.vmem %s1, 65
  %326 = vst.msk [vmem:[%s325] sm:$0x2] %vm322, %v321
  %s327 = scalar_lea.vmem %s1, 128
  %328 = vst.msk [vmem:[%s327] sm:$0x4] %vm322, %v321
  %s329 = scalar_lea.vmem %s1, 191
  %330 = vst.msk [vmem:[%s329] sm:$0x8] %vm322, %v321
  %s331 = scalar_lea.vmem %s1, 254
  %332 = vst.msk [vmem:[%s331] sm:$0x10] %vm322, %v321
  %s333 = scalar_lea.vmem %s1, 317
  %334 = vst.msk [vmem:[%s333] sm:$0x20] %vm322, %v321
  %s335 = scalar_lea.vmem %s1, 380
  %336 = vst.msk [vmem:[%s335] sm:$0x40] %vm322, %v321
  %s337 = scalar_lea.vmem %s1, 443
  %338 = vst.msk [vmem:[%s337] sm:$0x80] %vm322, %v321
  %s339 = scalar_lea.vmem %s0, 8
  %v340 = vld [vmem:[%s339] sm:$0xff]
  %341 = vrot.lane.b32.xlu0 %v340, 120
  %v342 = vpop.permute.xlu0 %341
  %vm343 = vcmask 31744
  %s344 = scalar_lea.vmem %s1, 34
  %345 = vst.msk [vmem:[%s344] sm:$0x1] %vm343, %v342
  %s346 = scalar_lea.vmem %s1, 97
  %347 = vst.msk [vmem:[%s346] sm:$0x2] %vm343, %v342
  %s348 = scalar_lea.vmem %s1, 160
  %349 = vst.msk [vmem:[%s348] sm:$0x4] %vm343, %v342
  %s350 = scalar_lea.vmem %s1, 223
  %351 = vst.msk [vmem:[%s350] sm:$0x8] %vm343, %v342
  %s352 = scalar_lea.vmem %s1, 286
  %353 = vst.msk [vmem:[%s352] sm:$0x10] %vm343, %v342
  %s354 = scalar_lea.vmem %s1, 349
  %355 = vst.msk [vmem:[%s354] sm:$0x20] %vm343, %v342
  %s356 = scalar_lea.vmem %s1, 412
  %357 = vst.msk [vmem:[%s356] sm:$0x40] %vm343, %v342
  %s358 = scalar_lea.vmem %s1, 475
  %359 = vst.msk [vmem:[%s358] sm:$0x80] %vm343, %v342
  %s360 = scalar_lea.vmem %s0, 16
  %v361 = vld [vmem:[%s360] sm:$0xff]
  %362 = vrot.lane.b32.xlu0 %v361, 120
  %v363 = vpop.permute.xlu0 %362
  %vm364 = vcmask 31744
  %s365 = scalar_lea.vmem %s1, 514
  %366 = vst.msk [vmem:[%s365] sm:$0x1] %vm364, %v363
  %s367 = scalar_lea.vmem %s1, 577
  %368 = vst.msk [vmem:[%s367] sm:$0x2] %vm364, %v363
  %s369 = scalar_lea.vmem %s1, 640
  %370 = vst.msk [vmem:[%s369] sm:$0x4] %vm364, %v363
  %s371 = scalar_lea.vmem %s1, 703
  %372 = vst.msk [vmem:[%s371] sm:$0x8] %vm364, %v363
  %s373 = scalar_lea.vmem %s1, 766
  %374 = vst.msk [vmem:[%s373] sm:$0x10] %vm364, %v363
  %s375 = scalar_lea.vmem %s1, 829
  %376 = vst.msk [vmem:[%s375] sm:$0x20] %vm364, %v363
  %s377 = scalar_lea.vmem %s1, 892
  %378 = vst.msk [vmem:[%s377] sm:$0x40] %vm364, %v363
  %s379 = scalar_lea.vmem %s1, 955
  %380 = vst.msk [vmem:[%s379] sm:$0x80] %vm364, %v363
  %s381 = scalar_lea.vmem %s0, 24
  %v382 = vld [vmem:[%s381] sm:$0xff]
  %383 = vrot.lane.b32.xlu0 %v382, 120
  %v384 = vpop.permute.xlu0 %383
  %vm385 = vcmask 31744
  %s386 = scalar_lea.vmem %s1, 546
  %387 = vst.msk [vmem:[%s386] sm:$0x1] %vm385, %v384
  %s388 = scalar_lea.vmem %s1, 609
  %389 = vst.msk [vmem:[%s388] sm:$0x2] %vm385, %v384
  %s390 = scalar_lea.vmem %s1, 672
  %391 = vst.msk [vmem:[%s390] sm:$0x4] %vm385, %v384
  %s392 = scalar_lea.vmem %s1, 735
  %393 = vst.msk [vmem:[%s392] sm:$0x8] %vm385, %v384
  %s394 = scalar_lea.vmem %s1, 798
  %395 = vst.msk [vmem:[%s394] sm:$0x10] %vm385, %v384
  %s396 = scalar_lea.vmem %s1, 861
  %397 = vst.msk [vmem:[%s396] sm:$0x20] %vm385, %v384
  %s398 = scalar_lea.vmem %s1, 924
  %399 = vst.msk [vmem:[%s398] sm:$0x40] %vm385, %v384
  %s400 = scalar_lea.vmem %s1, 987
  %401 = vst.msk [vmem:[%s400] sm:$0x80] %vm385, %v384
  %s402 = scalar_lea.vmem %s0, 32
  %v403 = vld [vmem:[%s402] sm:$0xff]
  %404 = vrot.lane.b32.xlu0 %v403, 120
  %v405 = vpop.permute.xlu0 %404
  %vm406 = vcmask 31744
  %s407 = scalar_lea.vmem %s1, 1026
  %408 = vst.msk [vmem:[%s407] sm:$0x1] %vm406, %v405
  %s409 = scalar_lea.vmem %s1, 1089
  %410 = vst.msk [vmem:[%s409] sm:$0x2] %vm406, %v405
  %s411 = scalar_lea.vmem %s1, 1152
  %412 = vst.msk [vmem:[%s411] sm:$0x4] %vm406, %v405
  %s413 = scalar_lea.vmem %s1, 1215
  %414 = vst.msk [vmem:[%s413] sm:$0x8] %vm406, %v405
  %s415 = scalar_lea.vmem %s1, 1278
  %416 = vst.msk [vmem:[%s415] sm:$0x10] %vm406, %v405
  %s417 = scalar_lea.vmem %s1, 1341
  %418 = vst.msk [vmem:[%s417] sm:$0x20] %vm406, %v405
  %s419 = scalar_lea.vmem %s1, 1404
  %420 = vst.msk [vmem:[%s419] sm:$0x40] %vm406, %v405
  %s421 = scalar_lea.vmem %s1, 1467
  %422 = vst.msk [vmem:[%s421] sm:$0x80] %vm406, %v405
  %s423 = scalar_lea.vmem %s0, 40
  %v424 = vld [vmem:[%s423] sm:$0xff]
  %425 = vrot.lane.b32.xlu0 %v424, 120
  %v426 = vpop.permute.xlu0 %425
  %vm427 = vcmask 31744
  %s428 = scalar_lea.vmem %s1, 1058
  %429 = vst.msk [vmem:[%s428] sm:$0x1] %vm427, %v426
  %s430 = scalar_lea.vmem %s1, 1121
  %431 = vst.msk [vmem:[%s430] sm:$0x2] %vm427, %v426
  %s432 = scalar_lea.vmem %s1, 1184
  %433 = vst.msk [vmem:[%s432] sm:$0x4] %vm427, %v426
  %s434 = scalar_lea.vmem %s1, 1247
  %435 = vst.msk [vmem:[%s434] sm:$0x8] %vm427, %v426
  %s436 = scalar_lea.vmem %s1, 1310
  %437 = vst.msk [vmem:[%s436] sm:$0x10] %vm427, %v426
  %s438 = scalar_lea.vmem %s1, 1373
  %439 = vst.msk [vmem:[%s438] sm:$0x20] %vm427, %v426
  %s440 = scalar_lea.vmem %s1, 1436
  %441 = vst.msk [vmem:[%s440] sm:$0x40] %vm427, %v426
  %s442 = scalar_lea.vmem %s1, 1499
  %443 = vst.msk [vmem:[%s442] sm:$0x80] %vm427, %v426
  %s444 = scalar_lea.vmem %s0, 48
  %v445 = vld [vmem:[%s444] sm:$0xff]
  %446 = vrot.lane.b32.xlu0 %v445, 120
  %v447 = vpop.permute.xlu0 %446
  %vm448 = vcmask 31744
  %s449 = scalar_lea.vmem %s1, 1538
  %450 = vst.msk [vmem:[%s449] sm:$0x1] %vm448, %v447
  %s451 = scalar_lea.vmem %s1, 1601
  %452 = vst.msk [vmem:[%s451] sm:$0x2] %vm448, %v447
  %s453 = scalar_lea.vmem %s1, 1664
  %454 = vst.msk [vmem:[%s453] sm:$0x4] %vm448, %v447
  %s455 = scalar_lea.vmem %s1, 1727
  %456 = vst.msk [vmem:[%s455] sm:$0x8] %vm448, %v447
  %s457 = scalar_lea.vmem %s1, 1790
  %458 = vst.msk [vmem:[%s457] sm:$0x10] %vm448, %v447
  %s459 = scalar_lea.vmem %s1, 1853
  %460 = vst.msk [vmem:[%s459] sm:$0x20] %vm448, %v447
  %s461 = scalar_lea.vmem %s1, 1916
  %462 = vst.msk [vmem:[%s461] sm:$0x40] %vm448, %v447
  %s463 = scalar_lea.vmem %s1, 1979
  %464 = vst.msk [vmem:[%s463] sm:$0x80] %vm448, %v447
  %s465 = scalar_lea.vmem %s0, 56
  %v466 = vld [vmem:[%s465] sm:$0xff]
  %467 = vrot.lane.b32.xlu0 %v466, 120
  %v468 = vpop.permute.xlu0 %467
  %vm469 = vcmask 31744
  %s470 = scalar_lea.vmem %s1, 1570
  %471 = vst.msk [vmem:[%s470] sm:$0x1] %vm469, %v468
  %s472 = scalar_lea.vmem %s1, 1633
  %473 = vst.msk [vmem:[%s472] sm:$0x2] %vm469, %v468
  %s474 = scalar_lea.vmem %s1, 1696
  %475 = vst.msk [vmem:[%s474] sm:$0x4] %vm469, %v468
  %s476 = scalar_lea.vmem %s1, 1759
  %477 = vst.msk [vmem:[%s476] sm:$0x8] %vm469, %v468
  %s478 = scalar_lea.vmem %s1, 1822
  %479 = vst.msk [vmem:[%s478] sm:$0x10] %vm469, %v468
  %s480 = scalar_lea.vmem %s1, 1885
  %481 = vst.msk [vmem:[%s480] sm:$0x20] %vm469, %v468
  %s482 = scalar_lea.vmem %s1, 1948
  %483 = vst.msk [vmem:[%s482] sm:$0x40] %vm469, %v468
  %s484 = scalar_lea.vmem %s1, 2011
  %485 = vst.msk [vmem:[%s484] sm:$0x80] %vm469, %v468
  %v486 = vld [vmem:[%s0] sm:$0xff]
  %487 = vrot.lane.b32.xlu0 %v486, 116
  %v488 = vpop.permute.xlu0 %487
  %vm489 = vcmask 31744
  %s490 = scalar_lea.vmem %s1, 3
  %491 = vst.msk [vmem:[%s490] sm:$0x1] %vm489, %v488
  %s492 = scalar_lea.vmem %s1, 66
  %493 = vst.msk [vmem:[%s492] sm:$0x2] %vm489, %v488
  %s494 = scalar_lea.vmem %s1, 129
  %495 = vst.msk [vmem:[%s494] sm:$0x4] %vm489, %v488
  %s496 = scalar_lea.vmem %s1, 192
  %497 = vst.msk [vmem:[%s496] sm:$0x8] %vm489, %v488
  %s498 = scalar_lea.vmem %s1, 255
  %499 = vst.msk [vmem:[%s498] sm:$0x10] %vm489, %v488
  %s500 = scalar_lea.vmem %s1, 318
  %501 = vst.msk [vmem:[%s500] sm:$0x20] %vm489, %v488
  %s502 = scalar_lea.vmem %s1, 381
  %503 = vst.msk [vmem:[%s502] sm:$0x40] %vm489, %v488
  %s504 = scalar_lea.vmem %s1, 444
  %505 = vst.msk [vmem:[%s504] sm:$0x80] %vm489, %v488
  %s506 = scalar_lea.vmem %s0, 8
  %v507 = vld [vmem:[%s506] sm:$0xff]
  %508 = vrot.lane.b32.xlu0 %v507, 116
  %v509 = vpop.permute.xlu0 %508
  %vm510 = vcmask 31744
  %s511 = scalar_lea.vmem %s1, 35
  %512 = vst.msk [vmem:[%s511] sm:$0x1] %vm510, %v509
  %s513 = scalar_lea.vmem %s1, 98
  %514 = vst.msk [vmem:[%s513] sm:$0x2] %vm510, %v509
  %s515 = scalar_lea.vmem %s1, 161
  %516 = vst.msk [vmem:[%s515] sm:$0x4] %vm510, %v509
  %s517 = scalar_lea.vmem %s1, 224
  %518 = vst.msk [vmem:[%s517] sm:$0x8] %vm510, %v509
  %s519 = scalar_lea.vmem %s1, 287
  %520 = vst.msk [vmem:[%s519] sm:$0x10] %vm510, %v509
  %s521 = scalar_lea.vmem %s1, 350
  %522 = vst.msk [vmem:[%s521] sm:$0x20] %vm510, %v509
  %s523 = scalar_lea.vmem %s1, 413
  %524 = vst.msk [vmem:[%s523] sm:$0x40] %vm510, %v509
  %s525 = scalar_lea.vmem %s1, 476
  %526 = vst.msk [vmem:[%s525] sm:$0x80] %vm510, %v509
  %s527 = scalar_lea.vmem %s0, 16
  %v528 = vld [vmem:[%s527] sm:$0xff]
  %529 = vrot.lane.b32.xlu0 %v528, 116
  %v530 = vpop.permute.xlu0 %529
  %vm531 = vcmask 31744
  %s532 = scalar_lea.vmem %s1, 515
  %533 = vst.msk [vmem:[%s532] sm:$0x1] %vm531, %v530
  %s534 = scalar_lea.vmem %s1, 578
  %535 = vst.msk [vmem:[%s534] sm:$0x2] %vm531, %v530
  %s536 = scalar_lea.vmem %s1, 641
  %537 = vst.msk [vmem:[%s536] sm:$0x4] %vm531, %v530
  %s538 = scalar_lea.vmem %s1, 704
  %539 = vst.msk [vmem:[%s538] sm:$0x8] %vm531, %v530
  %s540 = scalar_lea.vmem %s1, 767
  %541 = vst.msk [vmem:[%s540] sm:$0x10] %vm531, %v530
  %s542 = scalar_lea.vmem %s1, 830
  %543 = vst.msk [vmem:[%s542] sm:$0x20] %vm531, %v530
  %s544 = scalar_lea.vmem %s1, 893
  %545 = vst.msk [vmem:[%s544] sm:$0x40] %vm531, %v530
  %s546 = scalar_lea.vmem %s1, 956
  %547 = vst.msk [vmem:[%s546] sm:$0x80] %vm531, %v530
  %s548 = scalar_lea.vmem %s0, 24
  %v549 = vld [vmem:[%s548] sm:$0xff]
  %550 = vrot.lane.b32.xlu0 %v549, 116
  %v551 = vpop.permute.xlu0 %550
  %vm552 = vcmask 31744
  %s553 = scalar_lea.vmem %s1, 547
  %554 = vst.msk [vmem:[%s553] sm:$0x1] %vm552, %v551
  %s555 = scalar_lea.vmem %s1, 610
  %556 = vst.msk [vmem:[%s555] sm:$0x2] %vm552, %v551
  %s557 = scalar_lea.vmem %s1, 673
  %558 = vst.msk [vmem:[%s557] sm:$0x4] %vm552, %v551
  %s559 = scalar_lea.vmem %s1, 736
  %560 = vst.msk [vmem:[%s559] sm:$0x8] %vm552, %v551
  %s561 = scalar_lea.vmem %s1, 799
  %562 = vst.msk [vmem:[%s561] sm:$0x10] %vm552, %v551
  %s563 = scalar_lea.vmem %s1, 862
  %564 = vst.msk [vmem:[%s563] sm:$0x20] %vm552, %v551
  %s565 = scalar_lea.vmem %s1, 925
  %566 = vst.msk [vmem:[%s565] sm:$0x40] %vm552, %v551
  %s567 = scalar_lea.vmem %s1, 988
  %568 = vst.msk [vmem:[%s567] sm:$0x80] %vm552, %v551
  %s569 = scalar_lea.vmem %s0, 32
  %v570 = vld [vmem:[%s569] sm:$0xff]
  %571 = vrot.lane.b32.xlu0 %v570, 116
  %v572 = vpop.permute.xlu0 %571
  %vm573 = vcmask 31744
  %s574 = scalar_lea.vmem %s1, 1027
  %575 = vst.msk [vmem:[%s574] sm:$0x1] %vm573, %v572
  %s576 = scalar_lea.vmem %s1, 1090
  %577 = vst.msk [vmem:[%s576] sm:$0x2] %vm573, %v572
  %s578 = scalar_lea.vmem %s1, 1153
  %579 = vst.msk [vmem:[%s578] sm:$0x4] %vm573, %v572
  %s580 = scalar_lea.vmem %s1, 1216
  %581 = vst.msk [vmem:[%s580] sm:$0x8] %vm573, %v572
  %s582 = scalar_lea.vmem %s1, 1279
  %583 = vst.msk [vmem:[%s582] sm:$0x10] %vm573, %v572
  %s584 = scalar_lea.vmem %s1, 1342
  %585 = vst.msk [vmem:[%s584] sm:$0x20] %vm573, %v572
  %s586 = scalar_lea.vmem %s1, 1405
  %587 = vst.msk [vmem:[%s586] sm:$0x40] %vm573, %v572
  %s588 = scalar_lea.vmem %s1, 1468
  %589 = vst.msk [vmem:[%s588] sm:$0x80] %vm573, %v572
  %s590 = scalar_lea.vmem %s0, 40
  %v591 = vld [vmem:[%s590] sm:$0xff]
  %592 = vrot.lane.b32.xlu0 %v591, 116
  %v593 = vpop.permute.xlu0 %592
  %vm594 = vcmask 31744
  %s595 = scalar_lea.vmem %s1, 1059
  %596 = vst.msk [vmem:[%s595] sm:$0x1] %vm594, %v593
  %s597 = scalar_lea.vmem %s1, 1122
  %598 = vst.msk [vmem:[%s597] sm:$0x2] %vm594, %v593
  %s599 = scalar_lea.vmem %s1, 1185
  %600 = vst.msk [vmem:[%s599] sm:$0x4] %vm594, %v593
  %s601 = scalar_lea.vmem %s1, 1248
  %602 = vst.msk [vmem:[%s601] sm:$0x8] %vm594, %v593
  %s603 = scalar_lea.vmem %s1, 1311
  %604 = vst.msk [vmem:[%s603] sm:$0x10] %vm594, %v593
  %s605 = scalar_lea.vmem %s1, 1374
  %606 = vst.msk [vmem:[%s605] sm:$0x20] %vm594, %v593
  %s607 = scalar_lea.vmem %s1, 1437
  %608 = vst.msk [vmem:[%s607] sm:$0x40] %vm594, %v593
  %s609 = scalar_lea.vmem %s1, 1500
  %610 = vst.msk [vmem:[%s609] sm:$0x80] %vm594, %v593
  %s611 = scalar_lea.vmem %s0, 48
  %v612 = vld [vmem:[%s611] sm:$0xff]
  %613 = vrot.lane.b32.xlu0 %v612, 116
  %v614 = vpop.permute.xlu0 %613
  %vm615 = vcmask 31744
  %s616 = scalar_lea.vmem %s1, 1539
  %617 = vst.msk [vmem:[%s616] sm:$0x1] %vm615, %v614
  %s618 = scalar_lea.vmem %s1, 1602
  %619 = vst.msk [vmem:[%s618] sm:$0x2] %vm615, %v614
  %s620 = scalar_lea.vmem %s1, 1665
  %621 = vst.msk [vmem:[%s620] sm:$0x4] %vm615, %v614
  %s622 = scalar_lea.vmem %s1, 1728
  %623 = vst.msk [vmem:[%s622] sm:$0x8] %vm615, %v614
  %s624 = scalar_lea.vmem %s1, 1791
  %625 = vst.msk [vmem:[%s624] sm:$0x10] %vm615, %v614
  %s626 = scalar_lea.vmem %s1, 1854
  %627 = vst.msk [vmem:[%s626] sm:$0x20] %vm615, %v614
  %s628 = scalar_lea.vmem %s1, 1917
  %629 = vst.msk [vmem:[%s628] sm:$0x40] %vm615, %v614
  %s630 = scalar_lea.vmem %s1, 1980
  %631 = vst.msk [vmem:[%s630] sm:$0x80] %vm615, %v614
  %s632 = scalar_lea.vmem %s0, 56
  %v633 = vld [vmem:[%s632] sm:$0xff]
  %634 = vrot.lane.b32.xlu0 %v633, 116
  %v635 = vpop.permute.xlu0 %634
  %vm636 = vcmask 31744
  %s637 = scalar_lea.vmem %s1, 1571
  %638 = vst.msk [vmem:[%s637] sm:$0x1] %vm636, %v635
  %s639 = scalar_lea.vmem %s1, 1634
  %640 = vst.msk [vmem:[%s639] sm:$0x2] %vm636, %v635
  %s641 = scalar_lea.vmem %s1, 1697
  %642 = vst.msk [vmem:[%s641] sm:$0x4] %vm636, %v635
  %s643 = scalar_lea.vmem %s1, 1760
  %644 = vst.msk [vmem:[%s643] sm:$0x8] %vm636, %v635
  %s645 = scalar_lea.vmem %s1, 1823
  %646 = vst.msk [vmem:[%s645] sm:$0x10] %vm636, %v635
  %s647 = scalar_lea.vmem %s1, 1886
  %648 = vst.msk [vmem:[%s647] sm:$0x20] %vm636, %v635
  %s649 = scalar_lea.vmem %s1, 1949
  %650 = vst.msk [vmem:[%s649] sm:$0x40] %vm636, %v635
  %s651 = scalar_lea.vmem %s1, 2012
  %652 = vst.msk [vmem:[%s651] sm:$0x80] %vm636, %v635
  %v653 = vld [vmem:[%s0] sm:$0xff]
  %654 = vrot.lane.b32.xlu0 %v653, 112
  %v655 = vpop.permute.xlu0 %654
  %vm656 = vcmask 31744
  %s657 = scalar_lea.vmem %s1, 4
  %658 = vst.msk [vmem:[%s657] sm:$0x1] %vm656, %v655
  %s659 = scalar_lea.vmem %s1, 67
  %660 = vst.msk [vmem:[%s659] sm:$0x2] %vm656, %v655
  %s661 = scalar_lea.vmem %s1, 130
  %662 = vst.msk [vmem:[%s661] sm:$0x4] %vm656, %v655
  %s663 = scalar_lea.vmem %s1, 193
  %664 = vst.msk [vmem:[%s663] sm:$0x8] %vm656, %v655
  %s665 = scalar_lea.vmem %s1, 256
  %666 = vst.msk [vmem:[%s665] sm:$0x10] %vm656, %v655
  %s667 = scalar_lea.vmem %s1, 319
  %668 = vst.msk [vmem:[%s667] sm:$0x20] %vm656, %v655
  %s669 = scalar_lea.vmem %s1, 382
  %670 = vst.msk [vmem:[%s669] sm:$0x40] %vm656, %v655
  %s671 = scalar_lea.vmem %s1, 445
  %672 = vst.msk [vmem:[%s671] sm:$0x80] %vm656, %v655
  %s673 = scalar_lea.vmem %s0, 8
  %v674 = vld [vmem:[%s673] sm:$0xff]
  %675 = vrot.lane.b32.xlu0 %v674, 112
  %v676 = vpop.permute.xlu0 %675
  %vm677 = vcmask 31744
  %s678 = scalar_lea.vmem %s1, 36
  %679 = vst.msk [vmem:[%s678] sm:$0x1] %vm677, %v676
  %s680 = scalar_lea.vmem %s1, 99
  %681 = vst.msk [vmem:[%s680] sm:$0x2] %vm677, %v676
  %s682 = scalar_lea.vmem %s1, 162
  %683 = vst.msk [vmem:[%s682] sm:$0x4] %vm677, %v676
  %s684 = scalar_lea.vmem %s1, 225
  %685 = vst.msk [vmem:[%s684] sm:$0x8] %vm677, %v676
  %s686 = scalar_lea.vmem %s1, 288
  %687 = vst.msk [vmem:[%s686] sm:$0x10] %vm677, %v676
  %s688 = scalar_lea.vmem %s1, 351
  %689 = vst.msk [vmem:[%s688] sm:$0x20] %vm677, %v676
  %s690 = scalar_lea.vmem %s1, 414
  %691 = vst.msk [vmem:[%s690] sm:$0x40] %vm677, %v676
  %s692 = scalar_lea.vmem %s1, 477
  %693 = vst.msk [vmem:[%s692] sm:$0x80] %vm677, %v676
  %s694 = scalar_lea.vmem %s0, 16
  %v695 = vld [vmem:[%s694] sm:$0xff]
  %696 = vrot.lane.b32.xlu0 %v695, 112
  %v697 = vpop.permute.xlu0 %696
  %vm698 = vcmask 31744
  %s699 = scalar_lea.vmem %s1, 516
  %700 = vst.msk [vmem:[%s699] sm:$0x1] %vm698, %v697
  %s701 = scalar_lea.vmem %s1, 579
  %702 = vst.msk [vmem:[%s701] sm:$0x2] %vm698, %v697
  %s703 = scalar_lea.vmem %s1, 642
  %704 = vst.msk [vmem:[%s703] sm:$0x4] %vm698, %v697
  %s705 = scalar_lea.vmem %s1, 705
  %706 = vst.msk [vmem:[%s705] sm:$0x8] %vm698, %v697
  %s707 = scalar_lea.vmem %s1, 768
  %708 = vst.msk [vmem:[%s707] sm:$0x10] %vm698, %v697
  %s709 = scalar_lea.vmem %s1, 831
  %710 = vst.msk [vmem:[%s709] sm:$0x20] %vm698, %v697
  %s711 = scalar_lea.vmem %s1, 894
  %712 = vst.msk [vmem:[%s711] sm:$0x40] %vm698, %v697
  %s713 = scalar_lea.vmem %s1, 957
  %714 = vst.msk [vmem:[%s713] sm:$0x80] %vm698, %v697
  %s715 = scalar_lea.vmem %s0, 24
  %v716 = vld [vmem:[%s715] sm:$0xff]
  %717 = vrot.lane.b32.xlu0 %v716, 112
  %v718 = vpop.permute.xlu0 %717
  %vm719 = vcmask 31744
  %s720 = scalar_lea.vmem %s1, 548
  %721 = vst.msk [vmem:[%s720] sm:$0x1] %vm719, %v718
  %s722 = scalar_lea.vmem %s1, 611
  %723 = vst.msk [vmem:[%s722] sm:$0x2] %vm719, %v718
  %s724 = scalar_lea.vmem %s1, 674
  %725 = vst.msk [vmem:[%s724] sm:$0x4] %vm719, %v718
  %s726 = scalar_lea.vmem %s1, 737
  %727 = vst.msk [vmem:[%s726] sm:$0x8] %vm719, %v718
  %s728 = scalar_lea.vmem %s1, 800
  %729 = vst.msk [vmem:[%s728] sm:$0x10] %vm719, %v718
  %s730 = scalar_lea.vmem %s1, 863
  %731 = vst.msk [vmem:[%s730] sm:$0x20] %vm719, %v718
  %s732 = scalar_lea.vmem %s1, 926
  %733 = vst.msk [vmem:[%s732] sm:$0x40] %vm719, %v718
  %s734 = scalar_lea.vmem %s1, 989
  %735 = vst.msk [vmem:[%s734] sm:$0x80] %vm719, %v718
  %s736 = scalar_lea.vmem %s0, 32
  %v737 = vld [vmem:[%s736] sm:$0xff]
  %738 = vrot.lane.b32.xlu0 %v737, 112
  %v739 = vpop.permute.xlu0 %738
  %vm740 = vcmask 31744
  %s741 = scalar_lea.vmem %s1, 1028
  %742 = vst.msk [vmem:[%s741] sm:$0x1] %vm740, %v739
  %s743 = scalar_lea.vmem %s1, 1091
  %744 = vst.msk [vmem:[%s743] sm:$0x2] %vm740, %v739
  %s745 = scalar_lea.vmem %s1, 1154
  %746 = vst.msk [vmem:[%s745] sm:$0x4] %vm740, %v739
  %s747 = scalar_lea.vmem %s1, 1217
  %748 = vst.msk [vmem:[%s747] sm:$0x8] %vm740, %v739
  %s749 = scalar_lea.vmem %s1, 1280
  %750 = vst.msk [vmem:[%s749] sm:$0x10] %vm740, %v739
  %s751 = scalar_lea.vmem %s1, 1343
  %752 = vst.msk [vmem:[%s751] sm:$0x20] %vm740, %v739
  %s753 = scalar_lea.vmem %s1, 1406
  %754 = vst.msk [vmem:[%s753] sm:$0x40] %vm740, %v739
  %s755 = scalar_lea.vmem %s1, 1469
  %756 = vst.msk [vmem:[%s755] sm:$0x80] %vm740, %v739
  %s757 = scalar_lea.vmem %s0, 40
  %v758 = vld [vmem:[%s757] sm:$0xff]
  %759 = vrot.lane.b32.xlu0 %v758, 112
  %v760 = vpop.permute.xlu0 %759
  %vm761 = vcmask 31744
  %s762 = scalar_lea.vmem %s1, 1060
  %763 = vst.msk [vmem:[%s762] sm:$0x1] %vm761, %v760
  %s764 = scalar_lea.vmem %s1, 1123
  %765 = vst.msk [vmem:[%s764] sm:$0x2] %vm761, %v760
  %s766 = scalar_lea.vmem %s1, 1186
  %767 = vst.msk [vmem:[%s766] sm:$0x4] %vm761, %v760
  %s768 = scalar_lea.vmem %s1, 1249
  %769 = vst.msk [vmem:[%s768] sm:$0x8] %vm761, %v760
  %s770 = scalar_lea.vmem %s1, 1312
  %771 = vst.msk [vmem:[%s770] sm:$0x10] %vm761, %v760
  %s772 = scalar_lea.vmem %s1, 1375
  %773 = vst.msk [vmem:[%s772] sm:$0x20] %vm761, %v760
  %s774 = scalar_lea.vmem %s1, 1438
  %775 = vst.msk [vmem:[%s774] sm:$0x40] %vm761, %v760
  %s776 = scalar_lea.vmem %s1, 1501
  %777 = vst.msk [vmem:[%s776] sm:$0x80] %vm761, %v760
  %s778 = scalar_lea.vmem %s0, 48
  %v779 = vld [vmem:[%s778] sm:$0xff]
  %780 = vrot.lane.b32.xlu0 %v779, 112
  %v781 = vpop.permute.xlu0 %780
  %vm782 = vcmask 31744
  %s783 = scalar_lea.vmem %s1, 1540
  %784 = vst.msk [vmem:[%s783] sm:$0x1] %vm782, %v781
  %s785 = scalar_lea.vmem %s1, 1603
  %786 = vst.msk [vmem:[%s785] sm:$0x2] %vm782, %v781
  %s787 = scalar_lea.vmem %s1, 1666
  %788 = vst.msk [vmem:[%s787] sm:$0x4] %vm782, %v781
  %s789 = scalar_lea.vmem %s1, 1729
  %790 = vst.msk [vmem:[%s789] sm:$0x8] %vm782, %v781
  %s791 = scalar_lea.vmem %s1, 1792
  %792 = vst.msk [vmem:[%s791] sm:$0x10] %vm782, %v781
  %s793 = scalar_lea.vmem %s1, 1855
  %794 = vst.msk [vmem:[%s793] sm:$0x20] %vm782, %v781
  %s795 = scalar_lea.vmem %s1, 1918
  %796 = vst.msk [vmem:[%s795] sm:$0x40] %vm782, %v781
  %s797 = scalar_lea.vmem %s1, 1981
  %798 = vst.msk [vmem:[%s797] sm:$0x80] %vm782, %v781
  %s799 = scalar_lea.vmem %s0, 56
  %v800 = vld [vmem:[%s799] sm:$0xff]
  %801 = vrot.lane.b32.xlu0 %v800, 112
  %v802 = vpop.permute.xlu0 %801
  %vm803 = vcmask 31744
  %s804 = scalar_lea.vmem %s1, 1572
  %805 = vst.msk [vmem:[%s804] sm:$0x1] %vm803, %v802
  %s806 = scalar_lea.vmem %s1, 1635
  %807 = vst.msk [vmem:[%s806] sm:$0x2] %vm803, %v802
  %s808 = scalar_lea.vmem %s1, 1698
  %809 = vst.msk [vmem:[%s808] sm:$0x4] %vm803, %v802
  %s810 = scalar_lea.vmem %s1, 1761
  %811 = vst.msk [vmem:[%s810] sm:$0x8] %vm803, %v802
  %s812 = scalar_lea.vmem %s1, 1824
  %813 = vst.msk [vmem:[%s812] sm:$0x10] %vm803, %v802
  %s814 = scalar_lea.vmem %s1, 1887
  %815 = vst.msk [vmem:[%s814] sm:$0x20] %vm803, %v802
  %s816 = scalar_lea.vmem %s1, 1950
  %817 = vst.msk [vmem:[%s816] sm:$0x40] %vm803, %v802
  %s818 = scalar_lea.vmem %s1, 2013
  %819 = vst.msk [vmem:[%s818] sm:$0x80] %vm803, %v802
  %v820 = vld [vmem:[%s0] sm:$0xff]
  %821 = vrot.lane.b32.xlu0 %v820, 108
  %v822 = vpop.permute.xlu0 %821
  %vm823 = vcmask 31744
  %s824 = scalar_lea.vmem %s1, 5
  %825 = vst.msk [vmem:[%s824] sm:$0x1] %vm823, %v822
  %s826 = scalar_lea.vmem %s1, 68
  %827 = vst.msk [vmem:[%s826] sm:$0x2] %vm823, %v822
  %s828 = scalar_lea.vmem %s1, 131
  %829 = vst.msk [vmem:[%s828] sm:$0x4] %vm823, %v822
  %s830 = scalar_lea.vmem %s1, 194
  %831 = vst.msk [vmem:[%s830] sm:$0x8] %vm823, %v822
  %s832 = scalar_lea.vmem %s1, 257
  %833 = vst.msk [vmem:[%s832] sm:$0x10] %vm823, %v822
  %s834 = scalar_lea.vmem %s1, 320
  %835 = vst.msk [vmem:[%s834] sm:$0x20] %vm823, %v822
  %s836 = scalar_lea.vmem %s1, 383
  %837 = vst.msk [vmem:[%s836] sm:$0x40] %vm823, %v822
  %s838 = scalar_lea.vmem %s1, 446
  %839 = vst.msk [vmem:[%s838] sm:$0x80] %vm823, %v822
  %s840 = scalar_lea.vmem %s0, 8
  %v841 = vld [vmem:[%s840] sm:$0xff]
  %842 = vrot.lane.b32.xlu0 %v841, 108
  %v843 = vpop.permute.xlu0 %842
  %vm844 = vcmask 31744
  %s845 = scalar_lea.vmem %s1, 37
  %846 = vst.msk [vmem:[%s845] sm:$0x1] %vm844, %v843
  %s847 = scalar_lea.vmem %s1, 100
  %848 = vst.msk [vmem:[%s847] sm:$0x2] %vm844, %v843
  %s849 = scalar_lea.vmem %s1, 163
  %850 = vst.msk [vmem:[%s849] sm:$0x4] %vm844, %v843
  %s851 = scalar_lea.vmem %s1, 226
  %852 = vst.msk [vmem:[%s851] sm:$0x8] %vm844, %v843
  %s853 = scalar_lea.vmem %s1, 289
  %854 = vst.msk [vmem:[%s853] sm:$0x10] %vm844, %v843
  %s855 = scalar_lea.vmem %s1, 352
  %856 = vst.msk [vmem:[%s855] sm:$0x20] %vm844, %v843
  %s857 = scalar_lea.vmem %s1, 415
  %858 = vst.msk [vmem:[%s857] sm:$0x40] %vm844, %v843
  %s859 = scalar_lea.vmem %s1, 478
  %860 = vst.msk [vmem:[%s859] sm:$0x80] %vm844, %v843
  %s861 = scalar_lea.vmem %s0, 16
  %v862 = vld [vmem:[%s861] sm:$0xff]
  %863 = vrot.lane.b32.xlu0 %v862, 108
  %v864 = vpop.permute.xlu0 %863
  %vm865 = vcmask 31744
  %s866 = scalar_lea.vmem %s1, 517
  %867 = vst.msk [vmem:[%s866] sm:$0x1] %vm865, %v864
  %s868 = scalar_lea.vmem %s1, 580
  %869 = vst.msk [vmem:[%s868] sm:$0x2] %vm865, %v864
  %s870 = scalar_lea.vmem %s1, 643
  %871 = vst.msk [vmem:[%s870] sm:$0x4] %vm865, %v864
  %s872 = scalar_lea.vmem %s1, 706
  %873 = vst.msk [vmem:[%s872] sm:$0x8] %vm865, %v864
  %s874 = scalar_lea.vmem %s1, 769
  %875 = vst.msk [vmem:[%s874] sm:$0x10] %vm865, %v864
  %s876 = scalar_lea.vmem %s1, 832
  %877 = vst.msk [vmem:[%s876] sm:$0x20] %vm865, %v864
  %s878 = scalar_lea.vmem %s1, 895
  %879 = vst.msk [vmem:[%s878] sm:$0x40] %vm865, %v864
  %s880 = scalar_lea.vmem %s1, 958
  %881 = vst.msk [vmem:[%s880] sm:$0x80] %vm865, %v864
  %s882 = scalar_lea.vmem %s0, 24
  %v883 = vld [vmem:[%s882] sm:$0xff]
  %884 = vrot.lane.b32.xlu0 %v883, 108
  %v885 = vpop.permute.xlu0 %884
  %vm886 = vcmask 31744
  %s887 = scalar_lea.vmem %s1, 549
  %888 = vst.msk [vmem:[%s887] sm:$0x1] %vm886, %v885
  %s889 = scalar_lea.vmem %s1, 612
  %890 = vst.msk [vmem:[%s889] sm:$0x2] %vm886, %v885
  %s891 = scalar_lea.vmem %s1, 675
  %892 = vst.msk [vmem:[%s891] sm:$0x4] %vm886, %v885
  %s893 = scalar_lea.vmem %s1, 738
  %894 = vst.msk [vmem:[%s893] sm:$0x8] %vm886, %v885
  %s895 = scalar_lea.vmem %s1, 801
  %896 = vst.msk [vmem:[%s895] sm:$0x10] %vm886, %v885
  %s897 = scalar_lea.vmem %s1, 864
  %898 = vst.msk [vmem:[%s897] sm:$0x20] %vm886, %v885
  %s899 = scalar_lea.vmem %s1, 927
  %900 = vst.msk [vmem:[%s899] sm:$0x40] %vm886, %v885
  %s901 = scalar_lea.vmem %s1, 990
  %902 = vst.msk [vmem:[%s901] sm:$0x80] %vm886, %v885
  %s903 = scalar_lea.vmem %s0, 32
  %v904 = vld [vmem:[%s903] sm:$0xff]
  %905 = vrot.lane.b32.xlu0 %v904, 108
  %v906 = vpop.permute.xlu0 %905
  %vm907 = vcmask 31744
  %s908 = scalar_lea.vmem %s1, 1029
  %909 = vst.msk [vmem:[%s908] sm:$0x1] %vm907, %v906
  %s910 = scalar_lea.vmem %s1, 1092
  %911 = vst.msk [vmem:[%s910] sm:$0x2] %vm907, %v906
  %s912 = scalar_lea.vmem %s1, 1155
  %913 = vst.msk [vmem:[%s912] sm:$0x4] %vm907, %v906
  %s914 = scalar_lea.vmem %s1, 1218
  %915 = vst.msk [vmem:[%s914] sm:$0x8] %vm907, %v906
  %s916 = scalar_lea.vmem %s1, 1281
  %917 = vst.msk [vmem:[%s916] sm:$0x10] %vm907, %v906
  %s918 = scalar_lea.vmem %s1, 1344
  %919 = vst.msk [vmem:[%s918] sm:$0x20] %vm907, %v906
  %s920 = scalar_lea.vmem %s1, 1407
  %921 = vst.msk [vmem:[%s920] sm:$0x40] %vm907, %v906
  %s922 = scalar_lea.vmem %s1, 1470
  %923 = vst.msk [vmem:[%s922] sm:$0x80] %vm907, %v906
  %s924 = scalar_lea.vmem %s0, 40
  %v925 = vld [vmem:[%s924] sm:$0xff]
  %926 = vrot.lane.b32.xlu0 %v925, 108
  %v927 = vpop.permute.xlu0 %926
  %vm928 = vcmask 31744
  %s929 = scalar_lea.vmem %s1, 1061
  %930 = vst.msk [vmem:[%s929] sm:$0x1] %vm928, %v927
  %s931 = scalar_lea.vmem %s1, 1124
  %932 = vst.msk [vmem:[%s931] sm:$0x2] %vm928, %v927
  %s933 = scalar_lea.vmem %s1, 1187
  %934 = vst.msk [vmem:[%s933] sm:$0x4] %vm928, %v927
  %s935 = scalar_lea.vmem %s1, 1250
  %936 = vst.msk [vmem:[%s935] sm:$0x8] %vm928, %v927
  %s937 = scalar_lea.vmem %s1, 1313
  %938 = vst.msk [vmem:[%s937] sm:$0x10] %vm928, %v927
  %s939 = scalar_lea.vmem %s1, 1376
  %940 = vst.msk [vmem:[%s939] sm:$0x20] %vm928, %v927
  %s941 = scalar_lea.vmem %s1, 1439
  %942 = vst.msk [vmem:[%s941] sm:$0x40] %vm928, %v927
  %s943 = scalar_lea.vmem %s1, 1502
  %944 = vst.msk [vmem:[%s943] sm:$0x80] %vm928, %v927
  %s945 = scalar_lea.vmem %s0, 48
  %v946 = vld [vmem:[%s945] sm:$0xff]
  %947 = vrot.lane.b32.xlu0 %v946, 108
  %v948 = vpop.permute.xlu0 %947
  %vm949 = vcmask 31744
  %s950 = scalar_lea.vmem %s1, 1541
  %951 = vst.msk [vmem:[%s950] sm:$0x1] %vm949, %v948
  %s952 = scalar_lea.vmem %s1, 1604
  %953 = vst.msk [vmem:[%s952] sm:$0x2] %vm949, %v948
  %s954 = scalar_lea.vmem %s1, 1667
  %955 = vst.msk [vmem:[%s954] sm:$0x4] %vm949, %v948
  %s956 = scalar_lea.vmem %s1, 1730
  %957 = vst.msk [vmem:[%s956] sm:$0x8] %vm949, %v948
  %s958 = scalar_lea.vmem %s1, 1793
  %959 = vst.msk [vmem:[%s958] sm:$0x10] %vm949, %v948
  %s960 = scalar_lea.vmem %s1, 1856
  %961 = vst.msk [vmem:[%s960] sm:$0x20] %vm949, %v948
  %s962 = scalar_lea.vmem %s1, 1919
  %963 = vst.msk [vmem:[%s962] sm:$0x40] %vm949, %v948
  %s964 = scalar_lea.vmem %s1, 1982
  %965 = vst.msk [vmem:[%s964] sm:$0x80] %vm949, %v948
  %s966 = scalar_lea.vmem %s0, 56
  %v967 = vld [vmem:[%s966] sm:$0xff]
  %968 = vrot.lane.b32.xlu0 %v967, 108
  %v969 = vpop.permute.xlu0 %968
  %vm970 = vcmask 31744
  %s971 = scalar_lea.vmem %s1, 1573
  %972 = vst.msk [vmem:[%s971] sm:$0x1] %vm970, %v969
  %s973 = scalar_lea.vmem %s1, 1636
  %974 = vst.msk [vmem:[%s973] sm:$0x2] %vm970, %v969
  %s975 = scalar_lea.vmem %s1, 1699
  %976 = vst.msk [vmem:[%s975] sm:$0x4] %vm970, %v969
  %s977 = scalar_lea.vmem %s1, 1762
  %978 = vst.msk [vmem:[%s977] sm:$0x8] %vm970, %v969
  %s979 = scalar_lea.vmem %s1, 1825
  %980 = vst.msk [vmem:[%s979] sm:$0x10] %vm970, %v969
  %s981 = scalar_lea.vmem %s1, 1888
  %982 = vst.msk [vmem:[%s981] sm:$0x20] %vm970, %v969
  %s983 = scalar_lea.vmem %s1, 1951
  %984 = vst.msk [vmem:[%s983] sm:$0x40] %vm970, %v969
  %s985 = scalar_lea.vmem %s1, 2014
  %986 = vst.msk [vmem:[%s985] sm:$0x80] %vm970, %v969
  %v987 = vld [vmem:[%s0] sm:$0xff]
  %988 = vrot.lane.b32.xlu0 %v987, 104
  %v989 = vpop.permute.xlu0 %988
  %vm990 = vcmask 31744
  %s991 = scalar_lea.vmem %s1, 6
  %992 = vst.msk [vmem:[%s991] sm:$0x1] %vm990, %v989
  %s993 = scalar_lea.vmem %s1, 69
  %994 = vst.msk [vmem:[%s993] sm:$0x2] %vm990, %v989
  %s995 = scalar_lea.vmem %s1, 132
  %996 = vst.msk [vmem:[%s995] sm:$0x4] %vm990, %v989
  %s997 = scalar_lea.vmem %s1, 195
  %998 = vst.msk [vmem:[%s997] sm:$0x8] %vm990, %v989
  %s999 = scalar_lea.vmem %s1, 258
  %1000 = vst.msk [vmem:[%s999] sm:$0x10] %vm990, %v989
  %s1001 = scalar_lea.vmem %s1, 321
  %1002 = vst.msk [vmem:[%s1001] sm:$0x20] %vm990, %v989
  %s1003 = scalar_lea.vmem %s1, 384
  %1004 = vst.msk [vmem:[%s1003] sm:$0x40] %vm990, %v989
  %s1005 = scalar_lea.vmem %s1, 447
  %1006 = vst.msk [vmem:[%s1005] sm:$0x80] %vm990, %v989
  %s1007 = scalar_lea.vmem %s0, 8
  %v1008 = vld [vmem:[%s1007] sm:$0xff]
  %1009 = vrot.lane.b32.xlu0 %v1008, 104
  %v1010 = vpop.permute.xlu0 %1009
  %vm1011 = vcmask 31744
  %s1012 = scalar_lea.vmem %s1, 38
  %1013 = vst.msk [vmem:[%s1012] sm:$0x1] %vm1011, %v1010
  %s1014 = scalar_lea.vmem %s1, 101
  %1015 = vst.msk [vmem:[%s1014] sm:$0x2] %vm1011, %v1010
  %s1016 = scalar_lea.vmem %s1, 164
  %1017 = vst.msk [vmem:[%s1016] sm:$0x4] %vm1011, %v1010
  %s1018 = scalar_lea.vmem %s1, 227
  %1019 = vst.msk [vmem:[%s1018] sm:$0x8] %vm1011, %v1010
  %s1020 = scalar_lea.vmem %s1, 290
  %1021 = vst.msk [vmem:[%s1020] sm:$0x10] %vm1011, %v1010
  %s1022 = scalar_lea.vmem %s1, 353
  %1023 = vst.msk [vmem:[%s1022] sm:$0x20] %vm1011, %v1010
  %s1024 = scalar_lea.vmem %s1, 416
  %1025 = vst.msk [vmem:[%s1024] sm:$0x40] %vm1011, %v1010
  %s1026 = scalar_lea.vmem %s1, 479
  %1027 = vst.msk [vmem:[%s1026] sm:$0x80] %vm1011, %v1010
  %s1028 = scalar_lea.vmem %s0, 16
  %v1029 = vld [vmem:[%s1028] sm:$0xff]
  %1030 = vrot.lane.b32.xlu0 %v1029, 104
  %v1031 = vpop.permute.xlu0 %1030
  %vm1032 = vcmask 31744
  %s1033 = scalar_lea.vmem %s1, 518
  %1034 = vst.msk [vmem:[%s1033] sm:$0x1] %vm1032, %v1031
  %s1035 = scalar_lea.vmem %s1, 581
  %1036 = vst.msk [vmem:[%s1035] sm:$0x2] %vm1032, %v1031
  %s1037 = scalar_lea.vmem %s1, 644
  %1038 = vst.msk [vmem:[%s1037] sm:$0x4] %vm1032, %v1031
  %s1039 = scalar_lea.vmem %s1, 707
  %1040 = vst.msk [vmem:[%s1039] sm:$0x8] %vm1032, %v1031
  %s1041 = scalar_lea.vmem %s1, 770
  %1042 = vst.msk [vmem:[%s1041] sm:$0x10] %vm1032, %v1031
  %s1043 = scalar_lea.vmem %s1, 833
  %1044 = vst.msk [vmem:[%s1043] sm:$0x20] %vm1032, %v1031
  %s1045 = scalar_lea.vmem %s1, 896
  %1046 = vst.msk [vmem:[%s1045] sm:$0x40] %vm1032, %v1031
  %s1047 = scalar_lea.vmem %s1, 959
  %1048 = vst.msk [vmem:[%s1047] sm:$0x80] %vm1032, %v1031
  %s1049 = scalar_lea.vmem %s0, 24
  %v1050 = vld [vmem:[%s1049] sm:$0xff]
  %1051 = vrot.lane.b32.xlu0 %v1050, 104
  %v1052 = vpop.permute.xlu0 %1051
  %vm1053 = vcmask 31744
  %s1054 = scalar_lea.vmem %s1, 550
  %1055 = vst.msk [vmem:[%s1054] sm:$0x1] %vm1053, %v1052
  %s1056 = scalar_lea.vmem %s1, 613
  %1057 = vst.msk [vmem:[%s1056] sm:$0x2] %vm1053, %v1052
  %s1058 = scalar_lea.vmem %s1, 676
  %1059 = vst.msk [vmem:[%s1058] sm:$0x4] %vm1053, %v1052
  %s1060 = scalar_lea.vmem %s1, 739
  %1061 = vst.msk [vmem:[%s1060] sm:$0x8] %vm1053, %v1052
  %s1062 = scalar_lea.vmem %s1, 802
  %1063 = vst.msk [vmem:[%s1062] sm:$0x10] %vm1053, %v1052
  %s1064 = scalar_lea.vmem %s1, 865
  %1065 = vst.msk [vmem:[%s1064] sm:$0x20] %vm1053, %v1052
  %s1066 = scalar_lea.vmem %s1, 928
  %1067 = vst.msk [vmem:[%s1066] sm:$0x40] %vm1053, %v1052
  %s1068 = scalar_lea.vmem %s1, 991
  %1069 = vst.msk [vmem:[%s1068] sm:$0x80] %vm1053, %v1052
  %s1070 = scalar_lea.vmem %s0, 32
  %v1071 = vld [vmem:[%s1070] sm:$0xff]
  %1072 = vrot.lane.b32.xlu0 %v1071, 104
  %v1073 = vpop.permute.xlu0 %1072
  %vm1074 = vcmask 31744
  %s1075 = scalar_lea.vmem %s1, 1030
  %1076 = vst.msk [vmem:[%s1075] sm:$0x1] %vm1074, %v1073
  %s1077 = scalar_lea.vmem %s1, 1093
  %1078 = vst.msk [vmem:[%s1077] sm:$0x2] %vm1074, %v1073
  %s1079 = scalar_lea.vmem %s1, 1156
  %1080 = vst.msk [vmem:[%s1079] sm:$0x4] %vm1074, %v1073
  %s1081 = scalar_lea.vmem %s1, 1219
  %1082 = vst.msk [vmem:[%s1081] sm:$0x8] %vm1074, %v1073
  %s1083 = scalar_lea.vmem %s1, 1282
  %1084 = vst.msk [vmem:[%s1083] sm:$0x10] %vm1074, %v1073
  %s1085 = scalar_lea.vmem %s1, 1345
  %1086 = vst.msk [vmem:[%s1085] sm:$0x20] %vm1074, %v1073
  %s1087 = scalar_lea.vmem %s1, 1408
  %1088 = vst.msk [vmem:[%s1087] sm:$0x40] %vm1074, %v1073
  %s1089 = scalar_lea.vmem %s1, 1471
  %1090 = vst.msk [vmem:[%s1089] sm:$0x80] %vm1074, %v1073
  %s1091 = scalar_lea.vmem %s0, 40
  %v1092 = vld [vmem:[%s1091] sm:$0xff]
  %1093 = vrot.lane.b32.xlu0 %v1092, 104
  %v1094 = vpop.permute.xlu0 %1093
  %vm1095 = vcmask 31744
  %s1096 = scalar_lea.vmem %s1, 1062
  %1097 = vst.msk [vmem:[%s1096] sm:$0x1] %vm1095, %v1094
  %s1098 = scalar_lea.vmem %s1, 1125
  %1099 = vst.msk [vmem:[%s1098] sm:$0x2] %vm1095, %v1094
  %s1100 = scalar_lea.vmem %s1, 1188
  %1101 = vst.msk [vmem:[%s1100] sm:$0x4] %vm1095, %v1094
  %s1102 = scalar_lea.vmem %s1, 1251
  %1103 = vst.msk [vmem:[%s1102] sm:$0x8] %vm1095, %v1094
  %s1104 = scalar_lea.vmem %s1, 1314
  %1105 = vst.msk [vmem:[%s1104] sm:$0x10] %vm1095, %v1094
  %s1106 = scalar_lea.vmem %s1, 1377
  %1107 = vst.msk [vmem:[%s1106] sm:$0x20] %vm1095, %v1094
  %s1108 = scalar_lea.vmem %s1, 1440
  %1109 = vst.msk [vmem:[%s1108] sm:$0x40] %vm1095, %v1094
  %s1110 = scalar_lea.vmem %s1, 1503
  %1111 = vst.msk [vmem:[%s1110] sm:$0x80] %vm1095, %v1094
  %s1112 = scalar_lea.vmem %s0, 48
  %v1113 = vld [vmem:[%s1112] sm:$0xff]
  %1114 = vrot.lane.b32.xlu0 %v1113, 104
  %v1115 = vpop.permute.xlu0 %1114
  %vm1116 = vcmask 31744
  %s1117 = scalar_lea.vmem %s1, 1542
  %1118 = vst.msk [vmem:[%s1117] sm:$0x1] %vm1116, %v1115
  %s1119 = scalar_lea.vmem %s1, 1605
  %1120 = vst.msk [vmem:[%s1119] sm:$0x2] %vm1116, %v1115
  %s1121 = scalar_lea.vmem %s1, 1668
  %1122 = vst.msk [vmem:[%s1121] sm:$0x4] %vm1116, %v1115
  %s1123 = scalar_lea.vmem %s1, 1731
  %1124 = vst.msk [vmem:[%s1123] sm:$0x8] %vm1116, %v1115
  %s1125 = scalar_lea.vmem %s1, 1794
  %1126 = vst.msk [vmem:[%s1125] sm:$0x10] %vm1116, %v1115
  %s1127 = scalar_lea.vmem %s1, 1857
  %1128 = vst.msk [vmem:[%s1127] sm:$0x20] %vm1116, %v1115
  %s1129 = scalar_lea.vmem %s1, 1920
  %1130 = vst.msk [vmem:[%s1129] sm:$0x40] %vm1116, %v1115
  %s1131 = scalar_lea.vmem %s1, 1983
  %1132 = vst.msk [vmem:[%s1131] sm:$0x80] %vm1116, %v1115
  %s1133 = scalar_lea.vmem %s0, 56
  %v1134 = vld [vmem:[%s1133] sm:$0xff]
  %1135 = vrot.lane.b32.xlu0 %v1134, 104
  %v1136 = vpop.permute.xlu0 %1135
  %vm1137 = vcmask 31744
  %s1138 = scalar_lea.vmem %s1, 1574
  %1139 = vst.msk [vmem:[%s1138] sm:$0x1] %vm1137, %v1136
  %s1140 = scalar_lea.vmem %s1, 1637
  %1141 = vst.msk [vmem:[%s1140] sm:$0x2] %vm1137, %v1136
  %s1142 = scalar_lea.vmem %s1, 1700
  %1143 = vst.msk [vmem:[%s1142] sm:$0x4] %vm1137, %v1136
  %s1144 = scalar_lea.vmem %s1, 1763
  %1145 = vst.msk [vmem:[%s1144] sm:$0x8] %vm1137, %v1136
  %s1146 = scalar_lea.vmem %s1, 1826
  %1147 = vst.msk [vmem:[%s1146] sm:$0x10] %vm1137, %v1136
  %s1148 = scalar_lea.vmem %s1, 1889
  %1149 = vst.msk [vmem:[%s1148] sm:$0x20] %vm1137, %v1136
  %s1150 = scalar_lea.vmem %s1, 1952
  %1151 = vst.msk [vmem:[%s1150] sm:$0x40] %vm1137, %v1136
  %s1152 = scalar_lea.vmem %s1, 2015
  %1153 = vst.msk [vmem:[%s1152] sm:$0x80] %vm1137, %v1136
  %v1154 = vld [vmem:[%s0] sm:$0xff]
  %1155 = vrot.lane.b32.xlu0 %v1154, 100
  %v1156 = vpop.permute.xlu0 %1155
  %vm1157 = vcmask 31744
  %s1158 = scalar_lea.vmem %s1, 7
  %1159 = vst.msk [vmem:[%s1158] sm:$0x1] %vm1157, %v1156
  %s1160 = scalar_lea.vmem %s1, 70
  %1161 = vst.msk [vmem:[%s1160] sm:$0x2] %vm1157, %v1156
  %s1162 = scalar_lea.vmem %s1, 133
  %1163 = vst.msk [vmem:[%s1162] sm:$0x4] %vm1157, %v1156
  %s1164 = scalar_lea.vmem %s1, 196
  %1165 = vst.msk [vmem:[%s1164] sm:$0x8] %vm1157, %v1156
  %s1166 = scalar_lea.vmem %s1, 259
  %1167 = vst.msk [vmem:[%s1166] sm:$0x10] %vm1157, %v1156
  %s1168 = scalar_lea.vmem %s1, 322
  %1169 = vst.msk [vmem:[%s1168] sm:$0x20] %vm1157, %v1156
  %s1170 = scalar_lea.vmem %s1, 385
  %1171 = vst.msk [vmem:[%s1170] sm:$0x40] %vm1157, %v1156
  %s1172 = scalar_lea.vmem %s1, 448
  %1173 = vst.msk [vmem:[%s1172] sm:$0x80] %vm1157, %v1156
  %s1174 = scalar_lea.vmem %s0, 8
  %v1175 = vld [vmem:[%s1174] sm:$0xff]
  %1176 = vrot.lane.b32.xlu0 %v1175, 100
  %v1177 = vpop.permute.xlu0 %1176
  %vm1178 = vcmask 31744
  %s1179 = scalar_lea.vmem %s1, 39
  %1180 = vst.msk [vmem:[%s1179] sm:$0x1] %vm1178, %v1177
  %s1181 = scalar_lea.vmem %s1, 102
  %1182 = vst.msk [vmem:[%s1181] sm:$0x2] %vm1178, %v1177
  %s1183 = scalar_lea.vmem %s1, 165
  %1184 = vst.msk [vmem:[%s1183] sm:$0x4] %vm1178, %v1177
  %s1185 = scalar_lea.vmem %s1, 228
  %1186 = vst.msk [vmem:[%s1185] sm:$0x8] %vm1178, %v1177
  %s1187 = scalar_lea.vmem %s1, 291
  %1188 = vst.msk [vmem:[%s1187] sm:$0x10] %vm1178, %v1177
  %s1189 = scalar_lea.vmem %s1, 354
  %1190 = vst.msk [vmem:[%s1189] sm:$0x20] %vm1178, %v1177
  %s1191 = scalar_lea.vmem %s1, 417
  %1192 = vst.msk [vmem:[%s1191] sm:$0x40] %vm1178, %v1177
  %s1193 = scalar_lea.vmem %s1, 480
  %1194 = vst.msk [vmem:[%s1193] sm:$0x80] %vm1178, %v1177
  %s1195 = scalar_lea.vmem %s0, 16
  %v1196 = vld [vmem:[%s1195] sm:$0xff]
  %1197 = vrot.lane.b32.xlu0 %v1196, 100
  %v1198 = vpop.permute.xlu0 %1197
  %vm1199 = vcmask 31744
  %s1200 = scalar_lea.vmem %s1, 519
  %1201 = vst.msk [vmem:[%s1200] sm:$0x1] %vm1199, %v1198
  %s1202 = scalar_lea.vmem %s1, 582
  %1203 = vst.msk [vmem:[%s1202] sm:$0x2] %vm1199, %v1198
  %s1204 = scalar_lea.vmem %s1, 645
  %1205 = vst.msk [vmem:[%s1204] sm:$0x4] %vm1199, %v1198
  %s1206 = scalar_lea.vmem %s1, 708
  %1207 = vst.msk [vmem:[%s1206] sm:$0x8] %vm1199, %v1198
  %s1208 = scalar_lea.vmem %s1, 771
  %1209 = vst.msk [vmem:[%s1208] sm:$0x10] %vm1199, %v1198
  %s1210 = scalar_lea.vmem %s1, 834
  %1211 = vst.msk [vmem:[%s1210] sm:$0x20] %vm1199, %v1198
  %s1212 = scalar_lea.vmem %s1, 897
  %1213 = vst.msk [vmem:[%s1212] sm:$0x40] %vm1199, %v1198
  %s1214 = scalar_lea.vmem %s1, 960
  %1215 = vst.msk [vmem:[%s1214] sm:$0x80] %vm1199, %v1198
  %s1216 = scalar_lea.vmem %s0, 24
  %v1217 = vld [vmem:[%s1216] sm:$0xff]
  %1218 = vrot.lane.b32.xlu0 %v1217, 100
  %v1219 = vpop.permute.xlu0 %1218
  %vm1220 = vcmask 31744
  %s1221 = scalar_lea.vmem %s1, 551
  %1222 = vst.msk [vmem:[%s1221] sm:$0x1] %vm1220, %v1219
  %s1223 = scalar_lea.vmem %s1, 614
  %1224 = vst.msk [vmem:[%s1223] sm:$0x2] %vm1220, %v1219
  %s1225 = scalar_lea.vmem %s1, 677
  %1226 = vst.msk [vmem:[%s1225] sm:$0x4] %vm1220, %v1219
  %s1227 = scalar_lea.vmem %s1, 740
  %1228 = vst.msk [vmem:[%s1227] sm:$0x8] %vm1220, %v1219
  %s1229 = scalar_lea.vmem %s1, 803
  %1230 = vst.msk [vmem:[%s1229] sm:$0x10] %vm1220, %v1219
  %s1231 = scalar_lea.vmem %s1, 866
  %1232 = vst.msk [vmem:[%s1231] sm:$0x20] %vm1220, %v1219
  %s1233 = scalar_lea.vmem %s1, 929
  %1234 = vst.msk [vmem:[%s1233] sm:$0x40] %vm1220, %v1219
  %s1235 = scalar_lea.vmem %s1, 992
  %1236 = vst.msk [vmem:[%s1235] sm:$0x80] %vm1220, %v1219
  %s1237 = scalar_lea.vmem %s0, 32
  %v1238 = vld [vmem:[%s1237] sm:$0xff]
  %1239 = vrot.lane.b32.xlu0 %v1238, 100
  %v1240 = vpop.permute.xlu0 %1239
  %vm1241 = vcmask 31744
  %s1242 = scalar_lea.vmem %s1, 1031
  %1243 = vst.msk [vmem:[%s1242] sm:$0x1] %vm1241, %v1240
  %s1244 = scalar_lea.vmem %s1, 1094
  %1245 = vst.msk [vmem:[%s1244] sm:$0x2] %vm1241, %v1240
  %s1246 = scalar_lea.vmem %s1, 1157
  %1247 = vst.msk [vmem:[%s1246] sm:$0x4] %vm1241, %v1240
  %s1248 = scalar_lea.vmem %s1, 1220
  %1249 = vst.msk [vmem:[%s1248] sm:$0x8] %vm1241, %v1240
  %s1250 = scalar_lea.vmem %s1, 1283
  %1251 = vst.msk [vmem:[%s1250] sm:$0x10] %vm1241, %v1240
  %s1252 = scalar_lea.vmem %s1, 1346
  %1253 = vst.msk [vmem:[%s1252] sm:$0x20] %vm1241, %v1240
  %s1254 = scalar_lea.vmem %s1, 1409
  %1255 = vst.msk [vmem:[%s1254] sm:$0x40] %vm1241, %v1240
  %s1256 = scalar_lea.vmem %s1, 1472
  %1257 = vst.msk [vmem:[%s1256] sm:$0x80] %vm1241, %v1240
  %s1258 = scalar_lea.vmem %s0, 40
  %v1259 = vld [vmem:[%s1258] sm:$0xff]
  %1260 = vrot.lane.b32.xlu0 %v1259, 100
  %v1261 = vpop.permute.xlu0 %1260
  %vm1262 = vcmask 31744
  %s1263 = scalar_lea.vmem %s1, 1063
  %1264 = vst.msk [vmem:[%s1263] sm:$0x1] %vm1262, %v1261
  %s1265 = scalar_lea.vmem %s1, 1126
  %1266 = vst.msk [vmem:[%s1265] sm:$0x2] %vm1262, %v1261
  %s1267 = scalar_lea.vmem %s1, 1189
  %1268 = vst.msk [vmem:[%s1267] sm:$0x4] %vm1262, %v1261
  %s1269 = scalar_lea.vmem %s1, 1252
  %1270 = vst.msk [vmem:[%s1269] sm:$0x8] %vm1262, %v1261
  %s1271 = scalar_lea.vmem %s1, 1315
  %1272 = vst.msk [vmem:[%s1271] sm:$0x10] %vm1262, %v1261
  %s1273 = scalar_lea.vmem %s1, 1378
  %1274 = vst.msk [vmem:[%s1273] sm:$0x20] %vm1262, %v1261
  %s1275 = scalar_lea.vmem %s1, 1441
  %1276 = vst.msk [vmem:[%s1275] sm:$0x40] %vm1262, %v1261
  %s1277 = scalar_lea.vmem %s1, 1504
  %1278 = vst.msk [vmem:[%s1277] sm:$0x80] %vm1262, %v1261
  %s1279 = scalar_lea.vmem %s0, 48
  %v1280 = vld [vmem:[%s1279] sm:$0xff]
  %1281 = vrot.lane.b32.xlu0 %v1280, 100
  %v1282 = vpop.permute.xlu0 %1281
  %vm1283 = vcmask 31744
  %s1284 = scalar_lea.vmem %s1, 1543
  %1285 = vst.msk [vmem:[%s1284] sm:$0x1] %vm1283, %v1282
  %s1286 = scalar_lea.vmem %s1, 1606
  %1287 = vst.msk [vmem:[%s1286] sm:$0x2] %vm1283, %v1282
  %s1288 = scalar_lea.vmem %s1, 1669
  %1289 = vst.msk [vmem:[%s1288] sm:$0x4] %vm1283, %v1282
  %s1290 = scalar_lea.vmem %s1, 1732
  %1291 = vst.msk [vmem:[%s1290] sm:$0x8] %vm1283, %v1282
  %s1292 = scalar_lea.vmem %s1, 1795
  %1293 = vst.msk [vmem:[%s1292] sm:$0x10] %vm1283, %v1282
  %s1294 = scalar_lea.vmem %s1, 1858
  %1295 = vst.msk [vmem:[%s1294] sm:$0x20] %vm1283, %v1282
  %s1296 = scalar_lea.vmem %s1, 1921
  %1297 = vst.msk [vmem:[%s1296] sm:$0x40] %vm1283, %v1282
  %s1298 = scalar_lea.vmem %s1, 1984
  %1299 = vst.msk [vmem:[%s1298] sm:$0x80] %vm1283, %v1282
  %s1300 = scalar_lea.vmem %s0, 56
  %v1301 = vld [vmem:[%s1300] sm:$0xff]
  %1302 = vrot.lane.b32.xlu0 %v1301, 100
  %v1303 = vpop.permute.xlu0 %1302
  %vm1304 = vcmask 31744
  %s1305 = scalar_lea.vmem %s1, 1575
  %1306 = vst.msk [vmem:[%s1305] sm:$0x1] %vm1304, %v1303
  %s1307 = scalar_lea.vmem %s1, 1638
  %1308 = vst.msk [vmem:[%s1307] sm:$0x2] %vm1304, %v1303
  %s1309 = scalar_lea.vmem %s1, 1701
  %1310 = vst.msk [vmem:[%s1309] sm:$0x4] %vm1304, %v1303
  %s1311 = scalar_lea.vmem %s1, 1764
  %1312 = vst.msk [vmem:[%s1311] sm:$0x8] %vm1304, %v1303
  %s1313 = scalar_lea.vmem %s1, 1827
  %1314 = vst.msk [vmem:[%s1313] sm:$0x10] %vm1304, %v1303
  %s1315 = scalar_lea.vmem %s1, 1890
  %1316 = vst.msk [vmem:[%s1315] sm:$0x20] %vm1304, %v1303
  %s1317 = scalar_lea.vmem %s1, 1953
  %1318 = vst.msk [vmem:[%s1317] sm:$0x40] %vm1304, %v1303
  %s1319 = scalar_lea.vmem %s1, 2016
  %1320 = vst.msk [vmem:[%s1319] sm:$0x80] %vm1304, %v1303
  %v1321 = vld [vmem:[%s0] sm:$0xff]
  %1322 = vrot.lane.b32.xlu0 %v1321, 96
  %v1323 = vpop.permute.xlu0 %1322
  %vm1324 = vcmask 31744
  %s1325 = scalar_lea.vmem %s1, 8
  %1326 = vst.msk [vmem:[%s1325] sm:$0x1] %vm1324, %v1323
  %s1327 = scalar_lea.vmem %s1, 71
  %1328 = vst.msk [vmem:[%s1327] sm:$0x2] %vm1324, %v1323
  %s1329 = scalar_lea.vmem %s1, 134
  %1330 = vst.msk [vmem:[%s1329] sm:$0x4] %vm1324, %v1323
  %s1331 = scalar_lea.vmem %s1, 197
  %1332 = vst.msk [vmem:[%s1331] sm:$0x8] %vm1324, %v1323
  %s1333 = scalar_lea.vmem %s1, 260
  %1334 = vst.msk [vmem:[%s1333] sm:$0x10] %vm1324, %v1323
  %s1335 = scalar_lea.vmem %s1, 323
  %1336 = vst.msk [vmem:[%s1335] sm:$0x20] %vm1324, %v1323
  %s1337 = scalar_lea.vmem %s1, 386
  %1338 = vst.msk [vmem:[%s1337] sm:$0x40] %vm1324, %v1323
  %s1339 = scalar_lea.vmem %s1, 449
  %1340 = vst.msk [vmem:[%s1339] sm:$0x80] %vm1324, %v1323
  %s1341 = scalar_lea.vmem %s0, 8
  %v1342 = vld [vmem:[%s1341] sm:$0xff]
  %1343 = vrot.lane.b32.xlu0 %v1342, 96
  %v1344 = vpop.permute.xlu0 %1343
  %vm1345 = vcmask 31744
  %s1346 = scalar_lea.vmem %s1, 40
  %1347 = vst.msk [vmem:[%s1346] sm:$0x1] %vm1345, %v1344
  %s1348 = scalar_lea.vmem %s1, 103
  %1349 = vst.msk [vmem:[%s1348] sm:$0x2] %vm1345, %v1344
  %s1350 = scalar_lea.vmem %s1, 166
  %1351 = vst.msk [vmem:[%s1350] sm:$0x4] %vm1345, %v1344
  %s1352 = scalar_lea.vmem %s1, 229
  %1353 = vst.msk [vmem:[%s1352] sm:$0x8] %vm1345, %v1344
  %s1354 = scalar_lea.vmem %s1, 292
  %1355 = vst.msk [vmem:[%s1354] sm:$0x10] %vm1345, %v1344
  %s1356 = scalar_lea.vmem %s1, 355
  %1357 = vst.msk [vmem:[%s1356] sm:$0x20] %vm1345, %v1344
  %s1358 = scalar_lea.vmem %s1, 418
  %1359 = vst.msk [vmem:[%s1358] sm:$0x40] %vm1345, %v1344
  %s1360 = scalar_lea.vmem %s1, 481
  %1361 = vst.msk [vmem:[%s1360] sm:$0x80] %vm1345, %v1344
  %s1362 = scalar_lea.vmem %s0, 16
  %v1363 = vld [vmem:[%s1362] sm:$0xff]
  %1364 = vrot.lane.b32.xlu0 %v1363, 96
  %v1365 = vpop.permute.xlu0 %1364
  %vm1366 = vcmask 31744
  %s1367 = scalar_lea.vmem %s1, 520
  %1368 = vst.msk [vmem:[%s1367] sm:$0x1] %vm1366, %v1365
  %s1369 = scalar_lea.vmem %s1, 583
  %1370 = vst.msk [vmem:[%s1369] sm:$0x2] %vm1366, %v1365
  %s1371 = scalar_lea.vmem %s1, 646
  %1372 = vst.msk [vmem:[%s1371] sm:$0x4] %vm1366, %v1365
  %s1373 = scalar_lea.vmem %s1, 709
  %1374 = vst.msk [vmem:[%s1373] sm:$0x8] %vm1366, %v1365
  %s1375 = scalar_lea.vmem %s1, 772
  %1376 = vst.msk [vmem:[%s1375] sm:$0x10] %vm1366, %v1365
  %s1377 = scalar_lea.vmem %s1, 835
  %1378 = vst.msk [vmem:[%s1377] sm:$0x20] %vm1366, %v1365
  %s1379 = scalar_lea.vmem %s1, 898
  %1380 = vst.msk [vmem:[%s1379] sm:$0x40] %vm1366, %v1365
  %s1381 = scalar_lea.vmem %s1, 961
  %1382 = vst.msk [vmem:[%s1381] sm:$0x80] %vm1366, %v1365
  %s1383 = scalar_lea.vmem %s0, 24
  %v1384 = vld [vmem:[%s1383] sm:$0xff]
  %1385 = vrot.lane.b32.xlu0 %v1384, 96
  %v1386 = vpop.permute.xlu0 %1385
  %vm1387 = vcmask 31744
  %s1388 = scalar_lea.vmem %s1, 552
  %1389 = vst.msk [vmem:[%s1388] sm:$0x1] %vm1387, %v1386
  %s1390 = scalar_lea.vmem %s1, 615
  %1391 = vst.msk [vmem:[%s1390] sm:$0x2] %vm1387, %v1386
  %s1392 = scalar_lea.vmem %s1, 678
  %1393 = vst.msk [vmem:[%s1392] sm:$0x4] %vm1387, %v1386
  %s1394 = scalar_lea.vmem %s1, 741
  %1395 = vst.msk [vmem:[%s1394] sm:$0x8] %vm1387, %v1386
  %s1396 = scalar_lea.vmem %s1, 804
  %1397 = vst.msk [vmem:[%s1396] sm:$0x10] %vm1387, %v1386
  %s1398 = scalar_lea.vmem %s1, 867
  %1399 = vst.msk [vmem:[%s1398] sm:$0x20] %vm1387, %v1386
  %s1400 = scalar_lea.vmem %s1, 930
  %1401 = vst.msk [vmem:[%s1400] sm:$0x40] %vm1387, %v1386
  %s1402 = scalar_lea.vmem %s1, 993
  %1403 = vst.msk [vmem:[%s1402] sm:$0x80] %vm1387, %v1386
  %s1404 = scalar_lea.vmem %s0, 32
  %v1405 = vld [vmem:[%s1404] sm:$0xff]
  %1406 = vrot.lane.b32.xlu0 %v1405, 96
  %v1407 = vpop.permute.xlu0 %1406
  %vm1408 = vcmask 31744
  %s1409 = scalar_lea.vmem %s1, 1032
  %1410 = vst.msk [vmem:[%s1409] sm:$0x1] %vm1408, %v1407
  %s1411 = scalar_lea.vmem %s1, 1095
  %1412 = vst.msk [vmem:[%s1411] sm:$0x2] %vm1408, %v1407
  %s1413 = scalar_lea.vmem %s1, 1158
  %1414 = vst.msk [vmem:[%s1413] sm:$0x4] %vm1408, %v1407
  %s1415 = scalar_lea.vmem %s1, 1221
  %1416 = vst.msk [vmem:[%s1415] sm:$0x8] %vm1408, %v1407
  %s1417 = scalar_lea.vmem %s1, 1284
  %1418 = vst.msk [vmem:[%s1417] sm:$0x10] %vm1408, %v1407
  %s1419 = scalar_lea.vmem %s1, 1347
  %1420 = vst.msk [vmem:[%s1419] sm:$0x20] %vm1408, %v1407
  %s1421 = scalar_lea.vmem %s1, 1410
  %1422 = vst.msk [vmem:[%s1421] sm:$0x40] %vm1408, %v1407
  %s1423 = scalar_lea.vmem %s1, 1473
  %1424 = vst.msk [vmem:[%s1423] sm:$0x80] %vm1408, %v1407
  %s1425 = scalar_lea.vmem %s0, 40
  %v1426 = vld [vmem:[%s1425] sm:$0xff]
  %1427 = vrot.lane.b32.xlu0 %v1426, 96
  %v1428 = vpop.permute.xlu0 %1427
  %vm1429 = vcmask 31744
  %s1430 = scalar_lea.vmem %s1, 1064
  %1431 = vst.msk [vmem:[%s1430] sm:$0x1] %vm1429, %v1428
  %s1432 = scalar_lea.vmem %s1, 1127
  %1433 = vst.msk [vmem:[%s1432] sm:$0x2] %vm1429, %v1428
  %s1434 = scalar_lea.vmem %s1, 1190
  %1435 = vst.msk [vmem:[%s1434] sm:$0x4] %vm1429, %v1428
  %s1436 = scalar_lea.vmem %s1, 1253
  %1437 = vst.msk [vmem:[%s1436] sm:$0x8] %vm1429, %v1428
  %s1438 = scalar_lea.vmem %s1, 1316
  %1439 = vst.msk [vmem:[%s1438] sm:$0x10] %vm1429, %v1428
  %s1440 = scalar_lea.vmem %s1, 1379
  %1441 = vst.msk [vmem:[%s1440] sm:$0x20] %vm1429, %v1428
  %s1442 = scalar_lea.vmem %s1, 1442
  %1443 = vst.msk [vmem:[%s1442] sm:$0x40] %vm1429, %v1428
  %s1444 = scalar_lea.vmem %s1, 1505
  %1445 = vst.msk [vmem:[%s1444] sm:$0x80] %vm1429, %v1428
  %s1446 = scalar_lea.vmem %s0, 48
  %v1447 = vld [vmem:[%s1446] sm:$0xff]
  %1448 = vrot.lane.b32.xlu0 %v1447, 96
  %v1449 = vpop.permute.xlu0 %1448
  %vm1450 = vcmask 31744
  %s1451 = scalar_lea.vmem %s1, 1544
  %1452 = vst.msk [vmem:[%s1451] sm:$0x1] %vm1450, %v1449
  %s1453 = scalar_lea.vmem %s1, 1607
  %1454 = vst.msk [vmem:[%s1453] sm:$0x2] %vm1450, %v1449
  %s1455 = scalar_lea.vmem %s1, 1670
  %1456 = vst.msk [vmem:[%s1455] sm:$0x4] %vm1450, %v1449
  %s1457 = scalar_lea.vmem %s1, 1733
  %1458 = vst.msk [vmem:[%s1457] sm:$0x8] %vm1450, %v1449
  %s1459 = scalar_lea.vmem %s1, 1796
  %1460 = vst.msk [vmem:[%s1459] sm:$0x10] %vm1450, %v1449
  %s1461 = scalar_lea.vmem %s1, 1859
  %1462 = vst.msk [vmem:[%s1461] sm:$0x20] %vm1450, %v1449
  %s1463 = scalar_lea.vmem %s1, 1922
  %1464 = vst.msk [vmem:[%s1463] sm:$0x40] %vm1450, %v1449
  %s1465 = scalar_lea.vmem %s1, 1985
  %1466 = vst.msk [vmem:[%s1465] sm:$0x80] %vm1450, %v1449
  %s1467 = scalar_lea.vmem %s0, 56
  %v1468 = vld [vmem:[%s1467] sm:$0xff]
  %1469 = vrot.lane.b32.xlu0 %v1468, 96
  %v1470 = vpop.permute.xlu0 %1469
  %vm1471 = vcmask 31744
  %s1472 = scalar_lea.vmem %s1, 1576
  %1473 = vst.msk [vmem:[%s1472] sm:$0x1] %vm1471, %v1470
  %s1474 = scalar_lea.vmem %s1, 1639
  %1475 = vst.msk [vmem:[%s1474] sm:$0x2] %vm1471, %v1470
  %s1476 = scalar_lea.vmem %s1, 1702
  %1477 = vst.msk [vmem:[%s1476] sm:$0x4] %vm1471, %v1470
  %s1478 = scalar_lea.vmem %s1, 1765
  %1479 = vst.msk [vmem:[%s1478] sm:$0x8] %vm1471, %v1470
  %s1480 = scalar_lea.vmem %s1, 1828
  %1481 = vst.msk [vmem:[%s1480] sm:$0x10] %vm1471, %v1470
  %s1482 = scalar_lea.vmem %s1, 1891
  %1483 = vst.msk [vmem:[%s1482] sm:$0x20] %vm1471, %v1470
  %s1484 = scalar_lea.vmem %s1, 1954
  %1485 = vst.msk [vmem:[%s1484] sm:$0x40] %vm1471, %v1470
  %s1486 = scalar_lea.vmem %s1, 2017
  %1487 = vst.msk [vmem:[%s1486] sm:$0x80] %vm1471, %v1470
  %v1488 = vld [vmem:[%s0] sm:$0xff]
  %1489 = vrot.lane.b32.xlu0 %v1488, 92
  %v1490 = vpop.permute.xlu0 %1489
  %vm1491 = vcmask 31744
  %s1492 = scalar_lea.vmem %s1, 9
  %1493 = vst.msk [vmem:[%s1492] sm:$0x1] %vm1491, %v1490
  %s1494 = scalar_lea.vmem %s1, 72
  %1495 = vst.msk [vmem:[%s1494] sm:$0x2] %vm1491, %v1490
  %s1496 = scalar_lea.vmem %s1, 135
  %1497 = vst.msk [vmem:[%s1496] sm:$0x4] %vm1491, %v1490
  %s1498 = scalar_lea.vmem %s1, 198
  %1499 = vst.msk [vmem:[%s1498] sm:$0x8] %vm1491, %v1490
  %s1500 = scalar_lea.vmem %s1, 261
  %1501 = vst.msk [vmem:[%s1500] sm:$0x10] %vm1491, %v1490
  %s1502 = scalar_lea.vmem %s1, 324
  %1503 = vst.msk [vmem:[%s1502] sm:$0x20] %vm1491, %v1490
  %s1504 = scalar_lea.vmem %s1, 387
  %1505 = vst.msk [vmem:[%s1504] sm:$0x40] %vm1491, %v1490
  %s1506 = scalar_lea.vmem %s1, 450
  %1507 = vst.msk [vmem:[%s1506] sm:$0x80] %vm1491, %v1490
  %s1508 = scalar_lea.vmem %s0, 8
  %v1509 = vld [vmem:[%s1508] sm:$0xff]
  %1510 = vrot.lane.b32.xlu0 %v1509, 92
  %v1511 = vpop.permute.xlu0 %1510
  %vm1512 = vcmask 31744
  %s1513 = scalar_lea.vmem %s1, 41
  %1514 = vst.msk [vmem:[%s1513] sm:$0x1] %vm1512, %v1511
  %s1515 = scalar_lea.vmem %s1, 104
  %1516 = vst.msk [vmem:[%s1515] sm:$0x2] %vm1512, %v1511
  %s1517 = scalar_lea.vmem %s1, 167
  %1518 = vst.msk [vmem:[%s1517] sm:$0x4] %vm1512, %v1511
  %s1519 = scalar_lea.vmem %s1, 230
  %1520 = vst.msk [vmem:[%s1519] sm:$0x8] %vm1512, %v1511
  %s1521 = scalar_lea.vmem %s1, 293
  %1522 = vst.msk [vmem:[%s1521] sm:$0x10] %vm1512, %v1511
  %s1523 = scalar_lea.vmem %s1, 356
  %1524 = vst.msk [vmem:[%s1523] sm:$0x20] %vm1512, %v1511
  %s1525 = scalar_lea.vmem %s1, 419
  %1526 = vst.msk [vmem:[%s1525] sm:$0x40] %vm1512, %v1511
  %s1527 = scalar_lea.vmem %s1, 482
  %1528 = vst.msk [vmem:[%s1527] sm:$0x80] %vm1512, %v1511
  %s1529 = scalar_lea.vmem %s0, 16
  %v1530 = vld [vmem:[%s1529] sm:$0xff]
  %1531 = vrot.lane.b32.xlu0 %v1530, 92
  %v1532 = vpop.permute.xlu0 %1531
  %vm1533 = vcmask 31744
  %s1534 = scalar_lea.vmem %s1, 521
  %1535 = vst.msk [vmem:[%s1534] sm:$0x1] %vm1533, %v1532
  %s1536 = scalar_lea.vmem %s1, 584
  %1537 = vst.msk [vmem:[%s1536] sm:$0x2] %vm1533, %v1532
  %s1538 = scalar_lea.vmem %s1, 647
  %1539 = vst.msk [vmem:[%s1538] sm:$0x4] %vm1533, %v1532
  %s1540 = scalar_lea.vmem %s1, 710
  %1541 = vst.msk [vmem:[%s1540] sm:$0x8] %vm1533, %v1532
  %s1542 = scalar_lea.vmem %s1, 773
  %1543 = vst.msk [vmem:[%s1542] sm:$0x10] %vm1533, %v1532
  %s1544 = scalar_lea.vmem %s1, 836
  %1545 = vst.msk [vmem:[%s1544] sm:$0x20] %vm1533, %v1532
  %s1546 = scalar_lea.vmem %s1, 899
  %1547 = vst.msk [vmem:[%s1546] sm:$0x40] %vm1533, %v1532
  %s1548 = scalar_lea.vmem %s1, 962
  %1549 = vst.msk [vmem:[%s1548] sm:$0x80] %vm1533, %v1532
  %s1550 = scalar_lea.vmem %s0, 24
  %v1551 = vld [vmem:[%s1550] sm:$0xff]
  %1552 = vrot.lane.b32.xlu0 %v1551, 92
  %v1553 = vpop.permute.xlu0 %1552
  %vm1554 = vcmask 31744
  %s1555 = scalar_lea.vmem %s1, 553
  %1556 = vst.msk [vmem:[%s1555] sm:$0x1] %vm1554, %v1553
  %s1557 = scalar_lea.vmem %s1, 616
  %1558 = vst.msk [vmem:[%s1557] sm:$0x2] %vm1554, %v1553
  %s1559 = scalar_lea.vmem %s1, 679
  %1560 = vst.msk [vmem:[%s1559] sm:$0x4] %vm1554, %v1553
  %s1561 = scalar_lea.vmem %s1, 742
  %1562 = vst.msk [vmem:[%s1561] sm:$0x8] %vm1554, %v1553
  %s1563 = scalar_lea.vmem %s1, 805
  %1564 = vst.msk [vmem:[%s1563] sm:$0x10] %vm1554, %v1553
  %s1565 = scalar_lea.vmem %s1, 868
  %1566 = vst.msk [vmem:[%s1565] sm:$0x20] %vm1554, %v1553
  %s1567 = scalar_lea.vmem %s1, 931
  %1568 = vst.msk [vmem:[%s1567] sm:$0x40] %vm1554, %v1553
  %s1569 = scalar_lea.vmem %s1, 994
  %1570 = vst.msk [vmem:[%s1569] sm:$0x80] %vm1554, %v1553
  %s1571 = scalar_lea.vmem %s0, 32
  %v1572 = vld [vmem:[%s1571] sm:$0xff]
  %1573 = vrot.lane.b32.xlu0 %v1572, 92
  %v1574 = vpop.permute.xlu0 %1573
  %vm1575 = vcmask 31744
  %s1576 = scalar_lea.vmem %s1, 1033
  %1577 = vst.msk [vmem:[%s1576] sm:$0x1] %vm1575, %v1574
  %s1578 = scalar_lea.vmem %s1, 1096
  %1579 = vst.msk [vmem:[%s1578] sm:$0x2] %vm1575, %v1574
  %s1580 = scalar_lea.vmem %s1, 1159
  %1581 = vst.msk [vmem:[%s1580] sm:$0x4] %vm1575, %v1574
  %s1582 = scalar_lea.vmem %s1, 1222
  %1583 = vst.msk [vmem:[%s1582] sm:$0x8] %vm1575, %v1574
  %s1584 = scalar_lea.vmem %s1, 1285
  %1585 = vst.msk [vmem:[%s1584] sm:$0x10] %vm1575, %v1574
  %s1586 = scalar_lea.vmem %s1, 1348
  %1587 = vst.msk [vmem:[%s1586] sm:$0x20] %vm1575, %v1574
  %s1588 = scalar_lea.vmem %s1, 1411
  %1589 = vst.msk [vmem:[%s1588] sm:$0x40] %vm1575, %v1574
  %s1590 = scalar_lea.vmem %s1, 1474
  %1591 = vst.msk [vmem:[%s1590] sm:$0x80] %vm1575, %v1574
  %s1592 = scalar_lea.vmem %s0, 40
  %v1593 = vld [vmem:[%s1592] sm:$0xff]
  %1594 = vrot.lane.b32.xlu0 %v1593, 92
  %v1595 = vpop.permute.xlu0 %1594
  %vm1596 = vcmask 31744
  %s1597 = scalar_lea.vmem %s1, 1065
  %1598 = vst.msk [vmem:[%s1597] sm:$0x1] %vm1596, %v1595
  %s1599 = scalar_lea.vmem %s1, 1128
  %1600 = vst.msk [vmem:[%s1599] sm:$0x2] %vm1596, %v1595
  %s1601 = scalar_lea.vmem %s1, 1191
  %1602 = vst.msk [vmem:[%s1601] sm:$0x4] %vm1596, %v1595
  %s1603 = scalar_lea.vmem %s1, 1254
  %1604 = vst.msk [vmem:[%s1603] sm:$0x8] %vm1596, %v1595
  %s1605 = scalar_lea.vmem %s1, 1317
  %1606 = vst.msk [vmem:[%s1605] sm:$0x10] %vm1596, %v1595
  %s1607 = scalar_lea.vmem %s1, 1380
  %1608 = vst.msk [vmem:[%s1607] sm:$0x20] %vm1596, %v1595
  %s1609 = scalar_lea.vmem %s1, 1443
  %1610 = vst.msk [vmem:[%s1609] sm:$0x40] %vm1596, %v1595
  %s1611 = scalar_lea.vmem %s1, 1506
  %1612 = vst.msk [vmem:[%s1611] sm:$0x80] %vm1596, %v1595
  %s1613 = scalar_lea.vmem %s0, 48
  %v1614 = vld [vmem:[%s1613] sm:$0xff]
  %1615 = vrot.lane.b32.xlu0 %v1614, 92
  %v1616 = vpop.permute.xlu0 %1615
  %vm1617 = vcmask 31744
  %s1618 = scalar_lea.vmem %s1, 1545
  %1619 = vst.msk [vmem:[%s1618] sm:$0x1] %vm1617, %v1616
  %s1620 = scalar_lea.vmem %s1, 1608
  %1621 = vst.msk [vmem:[%s1620] sm:$0x2] %vm1617, %v1616
  %s1622 = scalar_lea.vmem %s1, 1671
  %1623 = vst.msk [vmem:[%s1622] sm:$0x4] %vm1617, %v1616
  %s1624 = scalar_lea.vmem %s1, 1734
  %1625 = vst.msk [vmem:[%s1624] sm:$0x8] %vm1617, %v1616
  %s1626 = scalar_lea.vmem %s1, 1797
  %1627 = vst.msk [vmem:[%s1626] sm:$0x10] %vm1617, %v1616
  %s1628 = scalar_lea.vmem %s1, 1860
  %1629 = vst.msk [vmem:[%s1628] sm:$0x20] %vm1617, %v1616
  %s1630 = scalar_lea.vmem %s1, 1923
  %1631 = vst.msk [vmem:[%s1630] sm:$0x40] %vm1617, %v1616
  %s1632 = scalar_lea.vmem %s1, 1986
  %1633 = vst.msk [vmem:[%s1632] sm:$0x80] %vm1617, %v1616
  %s1634 = scalar_lea.vmem %s0, 56
  %v1635 = vld [vmem:[%s1634] sm:$0xff]
  %1636 = vrot.lane.b32.xlu0 %v1635, 92
  %v1637 = vpop.permute.xlu0 %1636
  %vm1638 = vcmask 31744
  %s1639 = scalar_lea.vmem %s1, 1577
  %1640 = vst.msk [vmem:[%s1639] sm:$0x1] %vm1638, %v1637
  %s1641 = scalar_lea.vmem %s1, 1640
  %1642 = vst.msk [vmem:[%s1641] sm:$0x2] %vm1638, %v1637
  %s1643 = scalar_lea.vmem %s1, 1703
  %1644 = vst.msk [vmem:[%s1643] sm:$0x4] %vm1638, %v1637
  %s1645 = scalar_lea.vmem %s1, 1766
  %1646 = vst.msk [vmem:[%s1645] sm:$0x8] %vm1638, %v1637
  %s1647 = scalar_lea.vmem %s1, 1829
  %1648 = vst.msk [vmem:[%s1647] sm:$0x10] %vm1638, %v1637
  %s1649 = scalar_lea.vmem %s1, 1892
  %1650 = vst.msk [vmem:[%s1649] sm:$0x20] %vm1638, %v1637
  %s1651 = scalar_lea.vmem %s1, 1955
  %1652 = vst.msk [vmem:[%s1651] sm:$0x40] %vm1638, %v1637
  %s1653 = scalar_lea.vmem %s1, 2018
  %1654 = vst.msk [vmem:[%s1653] sm:$0x80] %vm1638, %v1637
  %v1655 = vld [vmem:[%s0] sm:$0xff]
  %1656 = vrot.lane.b32.xlu0 %v1655, 88
  %v1657 = vpop.permute.xlu0 %1656
  %vm1658 = vcmask 31744
  %s1659 = scalar_lea.vmem %s1, 10
  %1660 = vst.msk [vmem:[%s1659] sm:$0x1] %vm1658, %v1657
  %s1661 = scalar_lea.vmem %s1, 73
  %1662 = vst.msk [vmem:[%s1661] sm:$0x2] %vm1658, %v1657
  %s1663 = scalar_lea.vmem %s1, 136
  %1664 = vst.msk [vmem:[%s1663] sm:$0x4] %vm1658, %v1657
  %s1665 = scalar_lea.vmem %s1, 199
  %1666 = vst.msk [vmem:[%s1665] sm:$0x8] %vm1658, %v1657
  %s1667 = scalar_lea.vmem %s1, 262
  %1668 = vst.msk [vmem:[%s1667] sm:$0x10] %vm1658, %v1657
  %s1669 = scalar_lea.vmem %s1, 325
  %1670 = vst.msk [vmem:[%s1669] sm:$0x20] %vm1658, %v1657
  %s1671 = scalar_lea.vmem %s1, 388
  %1672 = vst.msk [vmem:[%s1671] sm:$0x40] %vm1658, %v1657
  %s1673 = scalar_lea.vmem %s1, 451
  %1674 = vst.msk [vmem:[%s1673] sm:$0x80] %vm1658, %v1657
  %s1675 = scalar_lea.vmem %s0, 8
  %v1676 = vld [vmem:[%s1675] sm:$0xff]
  %1677 = vrot.lane.b32.xlu0 %v1676, 88
  %v1678 = vpop.permute.xlu0 %1677
  %vm1679 = vcmask 31744
  %s1680 = scalar_lea.vmem %s1, 42
  %1681 = vst.msk [vmem:[%s1680] sm:$0x1] %vm1679, %v1678
  %s1682 = scalar_lea.vmem %s1, 105
  %1683 = vst.msk [vmem:[%s1682] sm:$0x2] %vm1679, %v1678
  %s1684 = scalar_lea.vmem %s1, 168
  %1685 = vst.msk [vmem:[%s1684] sm:$0x4] %vm1679, %v1678
  %s1686 = scalar_lea.vmem %s1, 231
  %1687 = vst.msk [vmem:[%s1686] sm:$0x8] %vm1679, %v1678
  %s1688 = scalar_lea.vmem %s1, 294
  %1689 = vst.msk [vmem:[%s1688] sm:$0x10] %vm1679, %v1678
  %s1690 = scalar_lea.vmem %s1, 357
  %1691 = vst.msk [vmem:[%s1690] sm:$0x20] %vm1679, %v1678
  %s1692 = scalar_lea.vmem %s1, 420
  %1693 = vst.msk [vmem:[%s1692] sm:$0x40] %vm1679, %v1678
  %s1694 = scalar_lea.vmem %s1, 483
  %1695 = vst.msk [vmem:[%s1694] sm:$0x80] %vm1679, %v1678
  %s1696 = scalar_lea.vmem %s0, 16
  %v1697 = vld [vmem:[%s1696] sm:$0xff]
  %1698 = vrot.lane.b32.xlu0 %v1697, 88
  %v1699 = vpop.permute.xlu0 %1698
  %vm1700 = vcmask 31744
  %s1701 = scalar_lea.vmem %s1, 522
  %1702 = vst.msk [vmem:[%s1701] sm:$0x1] %vm1700, %v1699
  %s1703 = scalar_lea.vmem %s1, 585
  %1704 = vst.msk [vmem:[%s1703] sm:$0x2] %vm1700, %v1699
  %s1705 = scalar_lea.vmem %s1, 648
  %1706 = vst.msk [vmem:[%s1705] sm:$0x4] %vm1700, %v1699
  %s1707 = scalar_lea.vmem %s1, 711
  %1708 = vst.msk [vmem:[%s1707] sm:$0x8] %vm1700, %v1699
  %s1709 = scalar_lea.vmem %s1, 774
  %1710 = vst.msk [vmem:[%s1709] sm:$0x10] %vm1700, %v1699
  %s1711 = scalar_lea.vmem %s1, 837
  %1712 = vst.msk [vmem:[%s1711] sm:$0x20] %vm1700, %v1699
  %s1713 = scalar_lea.vmem %s1, 900
  %1714 = vst.msk [vmem:[%s1713] sm:$0x40] %vm1700, %v1699
  %s1715 = scalar_lea.vmem %s1, 963
  %1716 = vst.msk [vmem:[%s1715] sm:$0x80] %vm1700, %v1699
  %s1717 = scalar_lea.vmem %s0, 24
  %v1718 = vld [vmem:[%s1717] sm:$0xff]
  %1719 = vrot.lane.b32.xlu0 %v1718, 88
  %v1720 = vpop.permute.xlu0 %1719
  %vm1721 = vcmask 31744
  %s1722 = scalar_lea.vmem %s1, 554
  %1723 = vst.msk [vmem:[%s1722] sm:$0x1] %vm1721, %v1720
  %s1724 = scalar_lea.vmem %s1, 617
  %1725 = vst.msk [vmem:[%s1724] sm:$0x2] %vm1721, %v1720
  %s1726 = scalar_lea.vmem %s1, 680
  %1727 = vst.msk [vmem:[%s1726] sm:$0x4] %vm1721, %v1720
  %s1728 = scalar_lea.vmem %s1, 743
  %1729 = vst.msk [vmem:[%s1728] sm:$0x8] %vm1721, %v1720
  %s1730 = scalar_lea.vmem %s1, 806
  %1731 = vst.msk [vmem:[%s1730] sm:$0x10] %vm1721, %v1720
  %s1732 = scalar_lea.vmem %s1, 869
  %1733 = vst.msk [vmem:[%s1732] sm:$0x20] %vm1721, %v1720
  %s1734 = scalar_lea.vmem %s1, 932
  %1735 = vst.msk [vmem:[%s1734] sm:$0x40] %vm1721, %v1720
  %s1736 = scalar_lea.vmem %s1, 995
  %1737 = vst.msk [vmem:[%s1736] sm:$0x80] %vm1721, %v1720
  %s1738 = scalar_lea.vmem %s0, 32
  %v1739 = vld [vmem:[%s1738] sm:$0xff]
  %1740 = vrot.lane.b32.xlu0 %v1739, 88
  %v1741 = vpop.permute.xlu0 %1740
  %vm1742 = vcmask 31744
  %s1743 = scalar_lea.vmem %s1, 1034
  %1744 = vst.msk [vmem:[%s1743] sm:$0x1] %vm1742, %v1741
  %s1745 = scalar_lea.vmem %s1, 1097
  %1746 = vst.msk [vmem:[%s1745] sm:$0x2] %vm1742, %v1741
  %s1747 = scalar_lea.vmem %s1, 1160
  %1748 = vst.msk [vmem:[%s1747] sm:$0x4] %vm1742, %v1741
  %s1749 = scalar_lea.vmem %s1, 1223
  %1750 = vst.msk [vmem:[%s1749] sm:$0x8] %vm1742, %v1741
  %s1751 = scalar_lea.vmem %s1, 1286
  %1752 = vst.msk [vmem:[%s1751] sm:$0x10] %vm1742, %v1741
  %s1753 = scalar_lea.vmem %s1, 1349
  %1754 = vst.msk [vmem:[%s1753] sm:$0x20] %vm1742, %v1741
  %s1755 = scalar_lea.vmem %s1, 1412
  %1756 = vst.msk [vmem:[%s1755] sm:$0x40] %vm1742, %v1741
  %s1757 = scalar_lea.vmem %s1, 1475
  %1758 = vst.msk [vmem:[%s1757] sm:$0x80] %vm1742, %v1741
  %s1759 = scalar_lea.vmem %s0, 40
  %v1760 = vld [vmem:[%s1759] sm:$0xff]
  %1761 = vrot.lane.b32.xlu0 %v1760, 88
  %v1762 = vpop.permute.xlu0 %1761
  %vm1763 = vcmask 31744
  %s1764 = scalar_lea.vmem %s1, 1066
  %1765 = vst.msk [vmem:[%s1764] sm:$0x1] %vm1763, %v1762
  %s1766 = scalar_lea.vmem %s1, 1129
  %1767 = vst.msk [vmem:[%s1766] sm:$0x2] %vm1763, %v1762
  %s1768 = scalar_lea.vmem %s1, 1192
  %1769 = vst.msk [vmem:[%s1768] sm:$0x4] %vm1763, %v1762
  %s1770 = scalar_lea.vmem %s1, 1255
  %1771 = vst.msk [vmem:[%s1770] sm:$0x8] %vm1763, %v1762
  %s1772 = scalar_lea.vmem %s1, 1318
  %1773 = vst.msk [vmem:[%s1772] sm:$0x10] %vm1763, %v1762
  %s1774 = scalar_lea.vmem %s1, 1381
  %1775 = vst.msk [vmem:[%s1774] sm:$0x20] %vm1763, %v1762
  %s1776 = scalar_lea.vmem %s1, 1444
  %1777 = vst.msk [vmem:[%s1776] sm:$0x40] %vm1763, %v1762
  %s1778 = scalar_lea.vmem %s1, 1507
  %1779 = vst.msk [vmem:[%s1778] sm:$0x80] %vm1763, %v1762
  %s1780 = scalar_lea.vmem %s0, 48
  %v1781 = vld [vmem:[%s1780] sm:$0xff]
  %1782 = vrot.lane.b32.xlu0 %v1781, 88
  %v1783 = vpop.permute.xlu0 %1782
  %vm1784 = vcmask 31744
  %s1785 = scalar_lea.vmem %s1, 1546
  %1786 = vst.msk [vmem:[%s1785] sm:$0x1] %vm1784, %v1783
  %s1787 = scalar_lea.vmem %s1, 1609
  %1788 = vst.msk [vmem:[%s1787] sm:$0x2] %vm1784, %v1783
  %s1789 = scalar_lea.vmem %s1, 1672
  %1790 = vst.msk [vmem:[%s1789] sm:$0x4] %vm1784, %v1783
  %s1791 = scalar_lea.vmem %s1, 1735
  %1792 = vst.msk [vmem:[%s1791] sm:$0x8] %vm1784, %v1783
  %s1793 = scalar_lea.vmem %s1, 1798
  %1794 = vst.msk [vmem:[%s1793] sm:$0x10] %vm1784, %v1783
  %s1795 = scalar_lea.vmem %s1, 1861
  %1796 = vst.msk [vmem:[%s1795] sm:$0x20] %vm1784, %v1783
  %s1797 = scalar_lea.vmem %s1, 1924
  %1798 = vst.msk [vmem:[%s1797] sm:$0x40] %vm1784, %v1783
  %s1799 = scalar_lea.vmem %s1, 1987
  %1800 = vst.msk [vmem:[%s1799] sm:$0x80] %vm1784, %v1783
  %s1801 = scalar_lea.vmem %s0, 56
  %v1802 = vld [vmem:[%s1801] sm:$0xff]
  %1803 = vrot.lane.b32.xlu0 %v1802, 88
  %v1804 = vpop.permute.xlu0 %1803
  %vm1805 = vcmask 31744
  %s1806 = scalar_lea.vmem %s1, 1578
  %1807 = vst.msk [vmem:[%s1806] sm:$0x1] %vm1805, %v1804
  %s1808 = scalar_lea.vmem %s1, 1641
  %1809 = vst.msk [vmem:[%s1808] sm:$0x2] %vm1805, %v1804
  %s1810 = scalar_lea.vmem %s1, 1704
  %1811 = vst.msk [vmem:[%s1810] sm:$0x4] %vm1805, %v1804
  %s1812 = scalar_lea.vmem %s1, 1767
  %1813 = vst.msk [vmem:[%s1812] sm:$0x8] %vm1805, %v1804
  %s1814 = scalar_lea.vmem %s1, 1830
  %1815 = vst.msk [vmem:[%s1814] sm:$0x10] %vm1805, %v1804
  %s1816 = scalar_lea.vmem %s1, 1893
  %1817 = vst.msk [vmem:[%s1816] sm:$0x20] %vm1805, %v1804
  %s1818 = scalar_lea.vmem %s1, 1956
  %1819 = vst.msk [vmem:[%s1818] sm:$0x40] %vm1805, %v1804
  %s1820 = scalar_lea.vmem %s1, 2019
  %1821 = vst.msk [vmem:[%s1820] sm:$0x80] %vm1805, %v1804
  %v1822 = vld [vmem:[%s0] sm:$0xff]
  %1823 = vrot.lane.b32.xlu0 %v1822, 84
  %v1824 = vpop.permute.xlu0 %1823
  %vm1825 = vcmask 31744
  %s1826 = scalar_lea.vmem %s1, 11
  %1827 = vst.msk [vmem:[%s1826] sm:$0x1] %vm1825, %v1824
  %s1828 = scalar_lea.vmem %s1, 74
  %1829 = vst.msk [vmem:[%s1828] sm:$0x2] %vm1825, %v1824
  %s1830 = scalar_lea.vmem %s1, 137
  %1831 = vst.msk [vmem:[%s1830] sm:$0x4] %vm1825, %v1824
  %s1832 = scalar_lea.vmem %s1, 200
  %1833 = vst.msk [vmem:[%s1832] sm:$0x8] %vm1825, %v1824
  %s1834 = scalar_lea.vmem %s1, 263
  %1835 = vst.msk [vmem:[%s1834] sm:$0x10] %vm1825, %v1824
  %s1836 = scalar_lea.vmem %s1, 326
  %1837 = vst.msk [vmem:[%s1836] sm:$0x20] %vm1825, %v1824
  %s1838 = scalar_lea.vmem %s1, 389
  %1839 = vst.msk [vmem:[%s1838] sm:$0x40] %vm1825, %v1824
  %s1840 = scalar_lea.vmem %s1, 452
  %1841 = vst.msk [vmem:[%s1840] sm:$0x80] %vm1825, %v1824
  %s1842 = scalar_lea.vmem %s0, 8
  %v1843 = vld [vmem:[%s1842] sm:$0xff]
  %1844 = vrot.lane.b32.xlu0 %v1843, 84
  %v1845 = vpop.permute.xlu0 %1844
  %vm1846 = vcmask 31744
  %s1847 = scalar_lea.vmem %s1, 43
  %1848 = vst.msk [vmem:[%s1847] sm:$0x1] %vm1846, %v1845
  %s1849 = scalar_lea.vmem %s1, 106
  %1850 = vst.msk [vmem:[%s1849] sm:$0x2] %vm1846, %v1845
  %s1851 = scalar_lea.vmem %s1, 169
  %1852 = vst.msk [vmem:[%s1851] sm:$0x4] %vm1846, %v1845
  %s1853 = scalar_lea.vmem %s1, 232
  %1854 = vst.msk [vmem:[%s1853] sm:$0x8] %vm1846, %v1845
  %s1855 = scalar_lea.vmem %s1, 295
  %1856 = vst.msk [vmem:[%s1855] sm:$0x10] %vm1846, %v1845
  %s1857 = scalar_lea.vmem %s1, 358
  %1858 = vst.msk [vmem:[%s1857] sm:$0x20] %vm1846, %v1845
  %s1859 = scalar_lea.vmem %s1, 421
  %1860 = vst.msk [vmem:[%s1859] sm:$0x40] %vm1846, %v1845
  %s1861 = scalar_lea.vmem %s1, 484
  %1862 = vst.msk [vmem:[%s1861] sm:$0x80] %vm1846, %v1845
  %s1863 = scalar_lea.vmem %s0, 16
  %v1864 = vld [vmem:[%s1863] sm:$0xff]
  %1865 = vrot.lane.b32.xlu0 %v1864, 84
  %v1866 = vpop.permute.xlu0 %1865
  %vm1867 = vcmask 31744
  %s1868 = scalar_lea.vmem %s1, 523
  %1869 = vst.msk [vmem:[%s1868] sm:$0x1] %vm1867, %v1866
  %s1870 = scalar_lea.vmem %s1, 586
  %1871 = vst.msk [vmem:[%s1870] sm:$0x2] %vm1867, %v1866
  %s1872 = scalar_lea.vmem %s1, 649
  %1873 = vst.msk [vmem:[%s1872] sm:$0x4] %vm1867, %v1866
  %s1874 = scalar_lea.vmem %s1, 712
  %1875 = vst.msk [vmem:[%s1874] sm:$0x8] %vm1867, %v1866
  %s1876 = scalar_lea.vmem %s1, 775
  %1877 = vst.msk [vmem:[%s1876] sm:$0x10] %vm1867, %v1866
  %s1878 = scalar_lea.vmem %s1, 838
  %1879 = vst.msk [vmem:[%s1878] sm:$0x20] %vm1867, %v1866
  %s1880 = scalar_lea.vmem %s1, 901
  %1881 = vst.msk [vmem:[%s1880] sm:$0x40] %vm1867, %v1866
  %s1882 = scalar_lea.vmem %s1, 964
  %1883 = vst.msk [vmem:[%s1882] sm:$0x80] %vm1867, %v1866
  %s1884 = scalar_lea.vmem %s0, 24
  %v1885 = vld [vmem:[%s1884] sm:$0xff]
  %1886 = vrot.lane.b32.xlu0 %v1885, 84
  %v1887 = vpop.permute.xlu0 %1886
  %vm1888 = vcmask 31744
  %s1889 = scalar_lea.vmem %s1, 555
  %1890 = vst.msk [vmem:[%s1889] sm:$0x1] %vm1888, %v1887
  %s1891 = scalar_lea.vmem %s1, 618
  %1892 = vst.msk [vmem:[%s1891] sm:$0x2] %vm1888, %v1887
  %s1893 = scalar_lea.vmem %s1, 681
  %1894 = vst.msk [vmem:[%s1893] sm:$0x4] %vm1888, %v1887
  %s1895 = scalar_lea.vmem %s1, 744
  %1896 = vst.msk [vmem:[%s1895] sm:$0x8] %vm1888, %v1887
  %s1897 = scalar_lea.vmem %s1, 807
  %1898 = vst.msk [vmem:[%s1897] sm:$0x10] %vm1888, %v1887
  %s1899 = scalar_lea.vmem %s1, 870
  %1900 = vst.msk [vmem:[%s1899] sm:$0x20] %vm1888, %v1887
  %s1901 = scalar_lea.vmem %s1, 933
  %1902 = vst.msk [vmem:[%s1901] sm:$0x40] %vm1888, %v1887
  %s1903 = scalar_lea.vmem %s1, 996
  %1904 = vst.msk [vmem:[%s1903] sm:$0x80] %vm1888, %v1887
  %s1905 = scalar_lea.vmem %s0, 32
  %v1906 = vld [vmem:[%s1905] sm:$0xff]
  %1907 = vrot.lane.b32.xlu0 %v1906, 84
  %v1908 = vpop.permute.xlu0 %1907
  %vm1909 = vcmask 31744
  %s1910 = scalar_lea.vmem %s1, 1035
  %1911 = vst.msk [vmem:[%s1910] sm:$0x1] %vm1909, %v1908
  %s1912 = scalar_lea.vmem %s1, 1098
  %1913 = vst.msk [vmem:[%s1912] sm:$0x2] %vm1909, %v1908
  %s1914 = scalar_lea.vmem %s1, 1161
  %1915 = vst.msk [vmem:[%s1914] sm:$0x4] %vm1909, %v1908
  %s1916 = scalar_lea.vmem %s1, 1224
  %1917 = vst.msk [vmem:[%s1916] sm:$0x8] %vm1909, %v1908
  %s1918 = scalar_lea.vmem %s1, 1287
  %1919 = vst.msk [vmem:[%s1918] sm:$0x10] %vm1909, %v1908
  %s1920 = scalar_lea.vmem %s1, 1350
  %1921 = vst.msk [vmem:[%s1920] sm:$0x20] %vm1909, %v1908
  %s1922 = scalar_lea.vmem %s1, 1413
  %1923 = vst.msk [vmem:[%s1922] sm:$0x40] %vm1909, %v1908
  %s1924 = scalar_lea.vmem %s1, 1476
  %1925 = vst.msk [vmem:[%s1924] sm:$0x80] %vm1909, %v1908
  %s1926 = scalar_lea.vmem %s0, 40
  %v1927 = vld [vmem:[%s1926] sm:$0xff]
  %1928 = vrot.lane.b32.xlu0 %v1927, 84
  %v1929 = vpop.permute.xlu0 %1928
  %vm1930 = vcmask 31744
  %s1931 = scalar_lea.vmem %s1, 1067
  %1932 = vst.msk [vmem:[%s1931] sm:$0x1] %vm1930, %v1929
  %s1933 = scalar_lea.vmem %s1, 1130
  %1934 = vst.msk [vmem:[%s1933] sm:$0x2] %vm1930, %v1929
  %s1935 = scalar_lea.vmem %s1, 1193
  %1936 = vst.msk [vmem:[%s1935] sm:$0x4] %vm1930, %v1929
  %s1937 = scalar_lea.vmem %s1, 1256
  %1938 = vst.msk [vmem:[%s1937] sm:$0x8] %vm1930, %v1929
  %s1939 = scalar_lea.vmem %s1, 1319
  %1940 = vst.msk [vmem:[%s1939] sm:$0x10] %vm1930, %v1929
  %s1941 = scalar_lea.vmem %s1, 1382
  %1942 = vst.msk [vmem:[%s1941] sm:$0x20] %vm1930, %v1929
  %s1943 = scalar_lea.vmem %s1, 1445
  %1944 = vst.msk [vmem:[%s1943] sm:$0x40] %vm1930, %v1929
  %s1945 = scalar_lea.vmem %s1, 1508
  %1946 = vst.msk [vmem:[%s1945] sm:$0x80] %vm1930, %v1929
  %s1947 = scalar_lea.vmem %s0, 48
  %v1948 = vld [vmem:[%s1947] sm:$0xff]
  %1949 = vrot.lane.b32.xlu0 %v1948, 84
  %v1950 = vpop.permute.xlu0 %1949
  %vm1951 = vcmask 31744
  %s1952 = scalar_lea.vmem %s1, 1547
  %1953 = vst.msk [vmem:[%s1952] sm:$0x1] %vm1951, %v1950
  %s1954 = scalar_lea.vmem %s1, 1610
  %1955 = vst.msk [vmem:[%s1954] sm:$0x2] %vm1951, %v1950
  %s1956 = scalar_lea.vmem %s1, 1673
  %1957 = vst.msk [vmem:[%s1956] sm:$0x4] %vm1951, %v1950
  %s1958 = scalar_lea.vmem %s1, 1736
  %1959 = vst.msk [vmem:[%s1958] sm:$0x8] %vm1951, %v1950
  %s1960 = scalar_lea.vmem %s1, 1799
  %1961 = vst.msk [vmem:[%s1960] sm:$0x10] %vm1951, %v1950
  %s1962 = scalar_lea.vmem %s1, 1862
  %1963 = vst.msk [vmem:[%s1962] sm:$0x20] %vm1951, %v1950
  %s1964 = scalar_lea.vmem %s1, 1925
  %1965 = vst.msk [vmem:[%s1964] sm:$0x40] %vm1951, %v1950
  %s1966 = scalar_lea.vmem %s1, 1988
  %1967 = vst.msk [vmem:[%s1966] sm:$0x80] %vm1951, %v1950
  %s1968 = scalar_lea.vmem %s0, 56
  %v1969 = vld [vmem:[%s1968] sm:$0xff]
  %1970 = vrot.lane.b32.xlu0 %v1969, 84
  %v1971 = vpop.permute.xlu0 %1970
  %vm1972 = vcmask 31744
  %s1973 = scalar_lea.vmem %s1, 1579
  %1974 = vst.msk [vmem:[%s1973] sm:$0x1] %vm1972, %v1971
  %s1975 = scalar_lea.vmem %s1, 1642
  %1976 = vst.msk [vmem:[%s1975] sm:$0x2] %vm1972, %v1971
  %s1977 = scalar_lea.vmem %s1, 1705
  %1978 = vst.msk [vmem:[%s1977] sm:$0x4] %vm1972, %v1971
  %s1979 = scalar_lea.vmem %s1, 1768
  %1980 = vst.msk [vmem:[%s1979] sm:$0x8] %vm1972, %v1971
  %s1981 = scalar_lea.vmem %s1, 1831
  %1982 = vst.msk [vmem:[%s1981] sm:$0x10] %vm1972, %v1971
  %s1983 = scalar_lea.vmem %s1, 1894
  %1984 = vst.msk [vmem:[%s1983] sm:$0x20] %vm1972, %v1971
  %s1985 = scalar_lea.vmem %s1, 1957
  %1986 = vst.msk [vmem:[%s1985] sm:$0x40] %vm1972, %v1971
  %s1987 = scalar_lea.vmem %s1, 2020
  %1988 = vst.msk [vmem:[%s1987] sm:$0x80] %vm1972, %v1971
  %v1989 = vld [vmem:[%s0] sm:$0xff]
  %1990 = vrot.lane.b32.xlu0 %v1989, 80
  %v1991 = vpop.permute.xlu0 %1990
  %vm1992 = vcmask 31744
  %s1993 = scalar_lea.vmem %s1, 12
  %1994 = vst.msk [vmem:[%s1993] sm:$0x1] %vm1992, %v1991
  %s1995 = scalar_lea.vmem %s1, 75
  %1996 = vst.msk [vmem:[%s1995] sm:$0x2] %vm1992, %v1991
  %s1997 = scalar_lea.vmem %s1, 138
  %1998 = vst.msk [vmem:[%s1997] sm:$0x4] %vm1992, %v1991
  %s1999 = scalar_lea.vmem %s1, 201
  %2000 = vst.msk [vmem:[%s1999] sm:$0x8] %vm1992, %v1991
  %s2001 = scalar_lea.vmem %s1, 264
  %2002 = vst.msk [vmem:[%s2001] sm:$0x10] %vm1992, %v1991
  %s2003 = scalar_lea.vmem %s1, 327
  %2004 = vst.msk [vmem:[%s2003] sm:$0x20] %vm1992, %v1991
  %s2005 = scalar_lea.vmem %s1, 390
  %2006 = vst.msk [vmem:[%s2005] sm:$0x40] %vm1992, %v1991
  %s2007 = scalar_lea.vmem %s1, 453
  %2008 = vst.msk [vmem:[%s2007] sm:$0x80] %vm1992, %v1991
  %s2009 = scalar_lea.vmem %s0, 8
  %v2010 = vld [vmem:[%s2009] sm:$0xff]
  %2011 = vrot.lane.b32.xlu0 %v2010, 80
  %v2012 = vpop.permute.xlu0 %2011
  %vm2013 = vcmask 31744
  %s2014 = scalar_lea.vmem %s1, 44
  %2015 = vst.msk [vmem:[%s2014] sm:$0x1] %vm2013, %v2012
  %s2016 = scalar_lea.vmem %s1, 107
  %2017 = vst.msk [vmem:[%s2016] sm:$0x2] %vm2013, %v2012
  %s2018 = scalar_lea.vmem %s1, 170
  %2019 = vst.msk [vmem:[%s2018] sm:$0x4] %vm2013, %v2012
  %s2020 = scalar_lea.vmem %s1, 233
  %2021 = vst.msk [vmem:[%s2020] sm:$0x8] %vm2013, %v2012
  %s2022 = scalar_lea.vmem %s1, 296
  %2023 = vst.msk [vmem:[%s2022] sm:$0x10] %vm2013, %v2012
  %s2024 = scalar_lea.vmem %s1, 359
  %2025 = vst.msk [vmem:[%s2024] sm:$0x20] %vm2013, %v2012
  %s2026 = scalar_lea.vmem %s1, 422
  %2027 = vst.msk [vmem:[%s2026] sm:$0x40] %vm2013, %v2012
  %s2028 = scalar_lea.vmem %s1, 485
  %2029 = vst.msk [vmem:[%s2028] sm:$0x80] %vm2013, %v2012
  %s2030 = scalar_lea.vmem %s0, 16
  %v2031 = vld [vmem:[%s2030] sm:$0xff]
  %2032 = vrot.lane.b32.xlu0 %v2031, 80
  %v2033 = vpop.permute.xlu0 %2032
  %vm2034 = vcmask 31744
  %s2035 = scalar_lea.vmem %s1, 524
  %2036 = vst.msk [vmem:[%s2035] sm:$0x1] %vm2034, %v2033
  %s2037 = scalar_lea.vmem %s1, 587
  %2038 = vst.msk [vmem:[%s2037] sm:$0x2] %vm2034, %v2033
  %s2039 = scalar_lea.vmem %s1, 650
  %2040 = vst.msk [vmem:[%s2039] sm:$0x4] %vm2034, %v2033
  %s2041 = scalar_lea.vmem %s1, 713
  %2042 = vst.msk [vmem:[%s2041] sm:$0x8] %vm2034, %v2033
  %s2043 = scalar_lea.vmem %s1, 776
  %2044 = vst.msk [vmem:[%s2043] sm:$0x10] %vm2034, %v2033
  %s2045 = scalar_lea.vmem %s1, 839
  %2046 = vst.msk [vmem:[%s2045] sm:$0x20] %vm2034, %v2033
  %s2047 = scalar_lea.vmem %s1, 902
  %2048 = vst.msk [vmem:[%s2047] sm:$0x40] %vm2034, %v2033
  %s2049 = scalar_lea.vmem %s1, 965
  %2050 = vst.msk [vmem:[%s2049] sm:$0x80] %vm2034, %v2033
  %s2051 = scalar_lea.vmem %s0, 24
  %v2052 = vld [vmem:[%s2051] sm:$0xff]
  %2053 = vrot.lane.b32.xlu0 %v2052, 80
  %v2054 = vpop.permute.xlu0 %2053
  %vm2055 = vcmask 31744
  %s2056 = scalar_lea.vmem %s1, 556
  %2057 = vst.msk [vmem:[%s2056] sm:$0x1] %vm2055, %v2054
  %s2058 = scalar_lea.vmem %s1, 619
  %2059 = vst.msk [vmem:[%s2058] sm:$0x2] %vm2055, %v2054
  %s2060 = scalar_lea.vmem %s1, 682
  %2061 = vst.msk [vmem:[%s2060] sm:$0x4] %vm2055, %v2054
  %s2062 = scalar_lea.vmem %s1, 745
  %2063 = vst.msk [vmem:[%s2062] sm:$0x8] %vm2055, %v2054
  %s2064 = scalar_lea.vmem %s1, 808
  %2065 = vst.msk [vmem:[%s2064] sm:$0x10] %vm2055, %v2054
  %s2066 = scalar_lea.vmem %s1, 871
  %2067 = vst.msk [vmem:[%s2066] sm:$0x20] %vm2055, %v2054
  %s2068 = scalar_lea.vmem %s1, 934
  %2069 = vst.msk [vmem:[%s2068] sm:$0x40] %vm2055, %v2054
  %s2070 = scalar_lea.vmem %s1, 997
  %2071 = vst.msk [vmem:[%s2070] sm:$0x80] %vm2055, %v2054
  %s2072 = scalar_lea.vmem %s0, 32
  %v2073 = vld [vmem:[%s2072] sm:$0xff]
  %2074 = vrot.lane.b32.xlu0 %v2073, 80
  %v2075 = vpop.permute.xlu0 %2074
  %vm2076 = vcmask 31744
  %s2077 = scalar_lea.vmem %s1, 1036
  %2078 = vst.msk [vmem:[%s2077] sm:$0x1] %vm2076, %v2075
  %s2079 = scalar_lea.vmem %s1, 1099
  %2080 = vst.msk [vmem:[%s2079] sm:$0x2] %vm2076, %v2075
  %s2081 = scalar_lea.vmem %s1, 1162
  %2082 = vst.msk [vmem:[%s2081] sm:$0x4] %vm2076, %v2075
  %s2083 = scalar_lea.vmem %s1, 1225
  %2084 = vst.msk [vmem:[%s2083] sm:$0x8] %vm2076, %v2075
  %s2085 = scalar_lea.vmem %s1, 1288
  %2086 = vst.msk [vmem:[%s2085] sm:$0x10] %vm2076, %v2075
  %s2087 = scalar_lea.vmem %s1, 1351
  %2088 = vst.msk [vmem:[%s2087] sm:$0x20] %vm2076, %v2075
  %s2089 = scalar_lea.vmem %s1, 1414
  %2090 = vst.msk [vmem:[%s2089] sm:$0x40] %vm2076, %v2075
  %s2091 = scalar_lea.vmem %s1, 1477
  %2092 = vst.msk [vmem:[%s2091] sm:$0x80] %vm2076, %v2075
  %s2093 = scalar_lea.vmem %s0, 40
  %v2094 = vld [vmem:[%s2093] sm:$0xff]
  %2095 = vrot.lane.b32.xlu0 %v2094, 80
  %v2096 = vpop.permute.xlu0 %2095
  %vm2097 = vcmask 31744
  %s2098 = scalar_lea.vmem %s1, 1068
  %2099 = vst.msk [vmem:[%s2098] sm:$0x1] %vm2097, %v2096
  %s2100 = scalar_lea.vmem %s1, 1131
  %2101 = vst.msk [vmem:[%s2100] sm:$0x2] %vm2097, %v2096
  %s2102 = scalar_lea.vmem %s1, 1194
  %2103 = vst.msk [vmem:[%s2102] sm:$0x4] %vm2097, %v2096
  %s2104 = scalar_lea.vmem %s1, 1257
  %2105 = vst.msk [vmem:[%s2104] sm:$0x8] %vm2097, %v2096
  %s2106 = scalar_lea.vmem %s1, 1320
  %2107 = vst.msk [vmem:[%s2106] sm:$0x10] %vm2097, %v2096
  %s2108 = scalar_lea.vmem %s1, 1383
  %2109 = vst.msk [vmem:[%s2108] sm:$0x20] %vm2097, %v2096
  %s2110 = scalar_lea.vmem %s1, 1446
  %2111 = vst.msk [vmem:[%s2110] sm:$0x40] %vm2097, %v2096
  %s2112 = scalar_lea.vmem %s1, 1509
  %2113 = vst.msk [vmem:[%s2112] sm:$0x80] %vm2097, %v2096
  %s2114 = scalar_lea.vmem %s0, 48
  %v2115 = vld [vmem:[%s2114] sm:$0xff]
  %2116 = vrot.lane.b32.xlu0 %v2115, 80
  %v2117 = vpop.permute.xlu0 %2116
  %vm2118 = vcmask 31744
  %s2119 = scalar_lea.vmem %s1, 1548
  %2120 = vst.msk [vmem:[%s2119] sm:$0x1] %vm2118, %v2117
  %s2121 = scalar_lea.vmem %s1, 1611
  %2122 = vst.msk [vmem:[%s2121] sm:$0x2] %vm2118, %v2117
  %s2123 = scalar_lea.vmem %s1, 1674
  %2124 = vst.msk [vmem:[%s2123] sm:$0x4] %vm2118, %v2117
  %s2125 = scalar_lea.vmem %s1, 1737
  %2126 = vst.msk [vmem:[%s2125] sm:$0x8] %vm2118, %v2117
  %s2127 = scalar_lea.vmem %s1, 1800
  %2128 = vst.msk [vmem:[%s2127] sm:$0x10] %vm2118, %v2117
  %s2129 = scalar_lea.vmem %s1, 1863
  %2130 = vst.msk [vmem:[%s2129] sm:$0x20] %vm2118, %v2117
  %s2131 = scalar_lea.vmem %s1, 1926
  %2132 = vst.msk [vmem:[%s2131] sm:$0x40] %vm2118, %v2117
  %s2133 = scalar_lea.vmem %s1, 1989
  %2134 = vst.msk [vmem:[%s2133] sm:$0x80] %vm2118, %v2117
  %s2135 = scalar_lea.vmem %s0, 56
  %v2136 = vld [vmem:[%s2135] sm:$0xff]
  %2137 = vrot.lane.b32.xlu0 %v2136, 80
  %v2138 = vpop.permute.xlu0 %2137
  %vm2139 = vcmask 31744
  %s2140 = scalar_lea.vmem %s1, 1580
  %2141 = vst.msk [vmem:[%s2140] sm:$0x1] %vm2139, %v2138
  %s2142 = scalar_lea.vmem %s1, 1643
  %2143 = vst.msk [vmem:[%s2142] sm:$0x2] %vm2139, %v2138
  %s2144 = scalar_lea.vmem %s1, 1706
  %2145 = vst.msk [vmem:[%s2144] sm:$0x4] %vm2139, %v2138
  %s2146 = scalar_lea.vmem %s1, 1769
  %2147 = vst.msk [vmem:[%s2146] sm:$0x8] %vm2139, %v2138
  %s2148 = scalar_lea.vmem %s1, 1832
  %2149 = vst.msk [vmem:[%s2148] sm:$0x10] %vm2139, %v2138
  %s2150 = scalar_lea.vmem %s1, 1895
  %2151 = vst.msk [vmem:[%s2150] sm:$0x20] %vm2139, %v2138
  %s2152 = scalar_lea.vmem %s1, 1958
  %2153 = vst.msk [vmem:[%s2152] sm:$0x40] %vm2139, %v2138
  %s2154 = scalar_lea.vmem %s1, 2021
  %2155 = vst.msk [vmem:[%s2154] sm:$0x80] %vm2139, %v2138
  %v2156 = vld [vmem:[%s0] sm:$0xff]
  %2157 = vrot.lane.b32.xlu0 %v2156, 76
  %v2158 = vpop.permute.xlu0 %2157
  %vm2159 = vcmask 31744
  %s2160 = scalar_lea.vmem %s1, 13
  %2161 = vst.msk [vmem:[%s2160] sm:$0x1] %vm2159, %v2158
  %s2162 = scalar_lea.vmem %s1, 76
  %2163 = vst.msk [vmem:[%s2162] sm:$0x2] %vm2159, %v2158
  %s2164 = scalar_lea.vmem %s1, 139
  %2165 = vst.msk [vmem:[%s2164] sm:$0x4] %vm2159, %v2158
  %s2166 = scalar_lea.vmem %s1, 202
  %2167 = vst.msk [vmem:[%s2166] sm:$0x8] %vm2159, %v2158
  %s2168 = scalar_lea.vmem %s1, 265
  %2169 = vst.msk [vmem:[%s2168] sm:$0x10] %vm2159, %v2158
  %s2170 = scalar_lea.vmem %s1, 328
  %2171 = vst.msk [vmem:[%s2170] sm:$0x20] %vm2159, %v2158
  %s2172 = scalar_lea.vmem %s1, 391
  %2173 = vst.msk [vmem:[%s2172] sm:$0x40] %vm2159, %v2158
  %s2174 = scalar_lea.vmem %s1, 454
  %2175 = vst.msk [vmem:[%s2174] sm:$0x80] %vm2159, %v2158
  %s2176 = scalar_lea.vmem %s0, 8
  %v2177 = vld [vmem:[%s2176] sm:$0xff]
  %2178 = vrot.lane.b32.xlu0 %v2177, 76
  %v2179 = vpop.permute.xlu0 %2178
  %vm2180 = vcmask 31744
  %s2181 = scalar_lea.vmem %s1, 45
  %2182 = vst.msk [vmem:[%s2181] sm:$0x1] %vm2180, %v2179
  %s2183 = scalar_lea.vmem %s1, 108
  %2184 = vst.msk [vmem:[%s2183] sm:$0x2] %vm2180, %v2179
  %s2185 = scalar_lea.vmem %s1, 171
  %2186 = vst.msk [vmem:[%s2185] sm:$0x4] %vm2180, %v2179
  %s2187 = scalar_lea.vmem %s1, 234
  %2188 = vst.msk [vmem:[%s2187] sm:$0x8] %vm2180, %v2179
  %s2189 = scalar_lea.vmem %s1, 297
  %2190 = vst.msk [vmem:[%s2189] sm:$0x10] %vm2180, %v2179
  %s2191 = scalar_lea.vmem %s1, 360
  %2192 = vst.msk [vmem:[%s2191] sm:$0x20] %vm2180, %v2179
  %s2193 = scalar_lea.vmem %s1, 423
  %2194 = vst.msk [vmem:[%s2193] sm:$0x40] %vm2180, %v2179
  %s2195 = scalar_lea.vmem %s1, 486
  %2196 = vst.msk [vmem:[%s2195] sm:$0x80] %vm2180, %v2179
  %s2197 = scalar_lea.vmem %s0, 16
  %v2198 = vld [vmem:[%s2197] sm:$0xff]
  %2199 = vrot.lane.b32.xlu0 %v2198, 76
  %v2200 = vpop.permute.xlu0 %2199
  %vm2201 = vcmask 31744
  %s2202 = scalar_lea.vmem %s1, 525
  %2203 = vst.msk [vmem:[%s2202] sm:$0x1] %vm2201, %v2200
  %s2204 = scalar_lea.vmem %s1, 588
  %2205 = vst.msk [vmem:[%s2204] sm:$0x2] %vm2201, %v2200
  %s2206 = scalar_lea.vmem %s1, 651
  %2207 = vst.msk [vmem:[%s2206] sm:$0x4] %vm2201, %v2200
  %s2208 = scalar_lea.vmem %s1, 714
  %2209 = vst.msk [vmem:[%s2208] sm:$0x8] %vm2201, %v2200
  %s2210 = scalar_lea.vmem %s1, 777
  %2211 = vst.msk [vmem:[%s2210] sm:$0x10] %vm2201, %v2200
  %s2212 = scalar_lea.vmem %s1, 840
  %2213 = vst.msk [vmem:[%s2212] sm:$0x20] %vm2201, %v2200
  %s2214 = scalar_lea.vmem %s1, 903
  %2215 = vst.msk [vmem:[%s2214] sm:$0x40] %vm2201, %v2200
  %s2216 = scalar_lea.vmem %s1, 966
  %2217 = vst.msk [vmem:[%s2216] sm:$0x80] %vm2201, %v2200
  %s2218 = scalar_lea.vmem %s0, 24
  %v2219 = vld [vmem:[%s2218] sm:$0xff]
  %2220 = vrot.lane.b32.xlu0 %v2219, 76
  %v2221 = vpop.permute.xlu0 %2220
  %vm2222 = vcmask 31744
  %s2223 = scalar_lea.vmem %s1, 557
  %2224 = vst.msk [vmem:[%s2223] sm:$0x1] %vm2222, %v2221
  %s2225 = scalar_lea.vmem %s1, 620
  %2226 = vst.msk [vmem:[%s2225] sm:$0x2] %vm2222, %v2221
  %s2227 = scalar_lea.vmem %s1, 683
  %2228 = vst.msk [vmem:[%s2227] sm:$0x4] %vm2222, %v2221
  %s2229 = scalar_lea.vmem %s1, 746
  %2230 = vst.msk [vmem:[%s2229] sm:$0x8] %vm2222, %v2221
  %s2231 = scalar_lea.vmem %s1, 809
  %2232 = vst.msk [vmem:[%s2231] sm:$0x10] %vm2222, %v2221
  %s2233 = scalar_lea.vmem %s1, 872
  %2234 = vst.msk [vmem:[%s2233] sm:$0x20] %vm2222, %v2221
  %s2235 = scalar_lea.vmem %s1, 935
  %2236 = vst.msk [vmem:[%s2235] sm:$0x40] %vm2222, %v2221
  %s2237 = scalar_lea.vmem %s1, 998
  %2238 = vst.msk [vmem:[%s2237] sm:$0x80] %vm2222, %v2221
  %s2239 = scalar_lea.vmem %s0, 32
  %v2240 = vld [vmem:[%s2239] sm:$0xff]
  %2241 = vrot.lane.b32.xlu0 %v2240, 76
  %v2242 = vpop.permute.xlu0 %2241
  %vm2243 = vcmask 31744
  %s2244 = scalar_lea.vmem %s1, 1037
  %2245 = vst.msk [vmem:[%s2244] sm:$0x1] %vm2243, %v2242
  %s2246 = scalar_lea.vmem %s1, 1100
  %2247 = vst.msk [vmem:[%s2246] sm:$0x2] %vm2243, %v2242
  %s2248 = scalar_lea.vmem %s1, 1163
  %2249 = vst.msk [vmem:[%s2248] sm:$0x4] %vm2243, %v2242
  %s2250 = scalar_lea.vmem %s1, 1226
  %2251 = vst.msk [vmem:[%s2250] sm:$0x8] %vm2243, %v2242
  %s2252 = scalar_lea.vmem %s1, 1289
  %2253 = vst.msk [vmem:[%s2252] sm:$0x10] %vm2243, %v2242
  %s2254 = scalar_lea.vmem %s1, 1352
  %2255 = vst.msk [vmem:[%s2254] sm:$0x20] %vm2243, %v2242
  %s2256 = scalar_lea.vmem %s1, 1415
  %2257 = vst.msk [vmem:[%s2256] sm:$0x40] %vm2243, %v2242
  %s2258 = scalar_lea.vmem %s1, 1478
  %2259 = vst.msk [vmem:[%s2258] sm:$0x80] %vm2243, %v2242
  %s2260 = scalar_lea.vmem %s0, 40
  %v2261 = vld [vmem:[%s2260] sm:$0xff]
  %2262 = vrot.lane.b32.xlu0 %v2261, 76
  %v2263 = vpop.permute.xlu0 %2262
  %vm2264 = vcmask 31744
  %s2265 = scalar_lea.vmem %s1, 1069
  %2266 = vst.msk [vmem:[%s2265] sm:$0x1] %vm2264, %v2263
  %s2267 = scalar_lea.vmem %s1, 1132
  %2268 = vst.msk [vmem:[%s2267] sm:$0x2] %vm2264, %v2263
  %s2269 = scalar_lea.vmem %s1, 1195
  %2270 = vst.msk [vmem:[%s2269] sm:$0x4] %vm2264, %v2263
  %s2271 = scalar_lea.vmem %s1, 1258
  %2272 = vst.msk [vmem:[%s2271] sm:$0x8] %vm2264, %v2263
  %s2273 = scalar_lea.vmem %s1, 1321
  %2274 = vst.msk [vmem:[%s2273] sm:$0x10] %vm2264, %v2263
  %s2275 = scalar_lea.vmem %s1, 1384
  %2276 = vst.msk [vmem:[%s2275] sm:$0x20] %vm2264, %v2263
  %s2277 = scalar_lea.vmem %s1, 1447
  %2278 = vst.msk [vmem:[%s2277] sm:$0x40] %vm2264, %v2263
  %s2279 = scalar_lea.vmem %s1, 1510
  %2280 = vst.msk [vmem:[%s2279] sm:$0x80] %vm2264, %v2263
  %s2281 = scalar_lea.vmem %s0, 48
  %v2282 = vld [vmem:[%s2281] sm:$0xff]
  %2283 = vrot.lane.b32.xlu0 %v2282, 76
  %v2284 = vpop.permute.xlu0 %2283
  %vm2285 = vcmask 31744
  %s2286 = scalar_lea.vmem %s1, 1549
  %2287 = vst.msk [vmem:[%s2286] sm:$0x1] %vm2285, %v2284
  %s2288 = scalar_lea.vmem %s1, 1612
  %2289 = vst.msk [vmem:[%s2288] sm:$0x2] %vm2285, %v2284
  %s2290 = scalar_lea.vmem %s1, 1675
  %2291 = vst.msk [vmem:[%s2290] sm:$0x4] %vm2285, %v2284
  %s2292 = scalar_lea.vmem %s1, 1738
  %2293 = vst.msk [vmem:[%s2292] sm:$0x8] %vm2285, %v2284
  %s2294 = scalar_lea.vmem %s1, 1801
  %2295 = vst.msk [vmem:[%s2294] sm:$0x10] %vm2285, %v2284
  %s2296 = scalar_lea.vmem %s1, 1864
  %2297 = vst.msk [vmem:[%s2296] sm:$0x20] %vm2285, %v2284
  %s2298 = scalar_lea.vmem %s1, 1927
  %2299 = vst.msk [vmem:[%s2298] sm:$0x40] %vm2285, %v2284
  %s2300 = scalar_lea.vmem %s1, 1990
  %2301 = vst.msk [vmem:[%s2300] sm:$0x80] %vm2285, %v2284
  %s2302 = scalar_lea.vmem %s0, 56
  %v2303 = vld [vmem:[%s2302] sm:$0xff]
  %2304 = vrot.lane.b32.xlu0 %v2303, 76
  %v2305 = vpop.permute.xlu0 %2304
  %vm2306 = vcmask 31744
  %s2307 = scalar_lea.vmem %s1, 1581
  %2308 = vst.msk [vmem:[%s2307] sm:$0x1] %vm2306, %v2305
  %s2309 = scalar_lea.vmem %s1, 1644
  %2310 = vst.msk [vmem:[%s2309] sm:$0x2] %vm2306, %v2305
  %s2311 = scalar_lea.vmem %s1, 1707
  %2312 = vst.msk [vmem:[%s2311] sm:$0x4] %vm2306, %v2305
  %s2313 = scalar_lea.vmem %s1, 1770
  %2314 = vst.msk [vmem:[%s2313] sm:$0x8] %vm2306, %v2305
  %s2315 = scalar_lea.vmem %s1, 1833
  %2316 = vst.msk [vmem:[%s2315] sm:$0x10] %vm2306, %v2305
  %s2317 = scalar_lea.vmem %s1, 1896
  %2318 = vst.msk [vmem:[%s2317] sm:$0x20] %vm2306, %v2305
  %s2319 = scalar_lea.vmem %s1, 1959
  %2320 = vst.msk [vmem:[%s2319] sm:$0x40] %vm2306, %v2305
  %s2321 = scalar_lea.vmem %s1, 2022
  %2322 = vst.msk [vmem:[%s2321] sm:$0x80] %vm2306, %v2305
  %v2323 = vld [vmem:[%s0] sm:$0xff]
  %2324 = vrot.lane.b32.xlu0 %v2323, 72
  %v2325 = vpop.permute.xlu0 %2324
  %vm2326 = vcmask 31744
  %s2327 = scalar_lea.vmem %s1, 14
  %2328 = vst.msk [vmem:[%s2327] sm:$0x1] %vm2326, %v2325
  %s2329 = scalar_lea.vmem %s1, 77
  %2330 = vst.msk [vmem:[%s2329] sm:$0x2] %vm2326, %v2325
  %s2331 = scalar_lea.vmem %s1, 140
  %2332 = vst.msk [vmem:[%s2331] sm:$0x4] %vm2326, %v2325
  %s2333 = scalar_lea.vmem %s1, 203
  %2334 = vst.msk [vmem:[%s2333] sm:$0x8] %vm2326, %v2325
  %s2335 = scalar_lea.vmem %s1, 266
  %2336 = vst.msk [vmem:[%s2335] sm:$0x10] %vm2326, %v2325
  %s2337 = scalar_lea.vmem %s1, 329
  %2338 = vst.msk [vmem:[%s2337] sm:$0x20] %vm2326, %v2325
  %s2339 = scalar_lea.vmem %s1, 392
  %2340 = vst.msk [vmem:[%s2339] sm:$0x40] %vm2326, %v2325
  %s2341 = scalar_lea.vmem %s1, 455
  %2342 = vst.msk [vmem:[%s2341] sm:$0x80] %vm2326, %v2325
  %s2343 = scalar_lea.vmem %s0, 8
  %v2344 = vld [vmem:[%s2343] sm:$0xff]
  %2345 = vrot.lane.b32.xlu0 %v2344, 72
  %v2346 = vpop.permute.xlu0 %2345
  %vm2347 = vcmask 31744
  %s2348 = scalar_lea.vmem %s1, 46
  %2349 = vst.msk [vmem:[%s2348] sm:$0x1] %vm2347, %v2346
  %s2350 = scalar_lea.vmem %s1, 109
  %2351 = vst.msk [vmem:[%s2350] sm:$0x2] %vm2347, %v2346
  %s2352 = scalar_lea.vmem %s1, 172
  %2353 = vst.msk [vmem:[%s2352] sm:$0x4] %vm2347, %v2346
  %s2354 = scalar_lea.vmem %s1, 235
  %2355 = vst.msk [vmem:[%s2354] sm:$0x8] %vm2347, %v2346
  %s2356 = scalar_lea.vmem %s1, 298
  %2357 = vst.msk [vmem:[%s2356] sm:$0x10] %vm2347, %v2346
  %s2358 = scalar_lea.vmem %s1, 361
  %2359 = vst.msk [vmem:[%s2358] sm:$0x20] %vm2347, %v2346
  %s2360 = scalar_lea.vmem %s1, 424
  %2361 = vst.msk [vmem:[%s2360] sm:$0x40] %vm2347, %v2346
  %s2362 = scalar_lea.vmem %s1, 487
  %2363 = vst.msk [vmem:[%s2362] sm:$0x80] %vm2347, %v2346
  %s2364 = scalar_lea.vmem %s0, 16
  %v2365 = vld [vmem:[%s2364] sm:$0xff]
  %2366 = vrot.lane.b32.xlu0 %v2365, 72
  %v2367 = vpop.permute.xlu0 %2366
  %vm2368 = vcmask 31744
  %s2369 = scalar_lea.vmem %s1, 526
  %2370 = vst.msk [vmem:[%s2369] sm:$0x1] %vm2368, %v2367
  %s2371 = scalar_lea.vmem %s1, 589
  %2372 = vst.msk [vmem:[%s2371] sm:$0x2] %vm2368, %v2367
  %s2373 = scalar_lea.vmem %s1, 652
  %2374 = vst.msk [vmem:[%s2373] sm:$0x4] %vm2368, %v2367
  %s2375 = scalar_lea.vmem %s1, 715
  %2376 = vst.msk [vmem:[%s2375] sm:$0x8] %vm2368, %v2367
  %s2377 = scalar_lea.vmem %s1, 778
  %2378 = vst.msk [vmem:[%s2377] sm:$0x10] %vm2368, %v2367
  %s2379 = scalar_lea.vmem %s1, 841
  %2380 = vst.msk [vmem:[%s2379] sm:$0x20] %vm2368, %v2367
  %s2381 = scalar_lea.vmem %s1, 904
  %2382 = vst.msk [vmem:[%s2381] sm:$0x40] %vm2368, %v2367
  %s2383 = scalar_lea.vmem %s1, 967
  %2384 = vst.msk [vmem:[%s2383] sm:$0x80] %vm2368, %v2367
  %s2385 = scalar_lea.vmem %s0, 24
  %v2386 = vld [vmem:[%s2385] sm:$0xff]
  %2387 = vrot.lane.b32.xlu0 %v2386, 72
  %v2388 = vpop.permute.xlu0 %2387
  %vm2389 = vcmask 31744
  %s2390 = scalar_lea.vmem %s1, 558
  %2391 = vst.msk [vmem:[%s2390] sm:$0x1] %vm2389, %v2388
  %s2392 = scalar_lea.vmem %s1, 621
  %2393 = vst.msk [vmem:[%s2392] sm:$0x2] %vm2389, %v2388
  %s2394 = scalar_lea.vmem %s1, 684
  %2395 = vst.msk [vmem:[%s2394] sm:$0x4] %vm2389, %v2388
  %s2396 = scalar_lea.vmem %s1, 747
  %2397 = vst.msk [vmem:[%s2396] sm:$0x8] %vm2389, %v2388
  %s2398 = scalar_lea.vmem %s1, 810
  %2399 = vst.msk [vmem:[%s2398] sm:$0x10] %vm2389, %v2388
  %s2400 = scalar_lea.vmem %s1, 873
  %2401 = vst.msk [vmem:[%s2400] sm:$0x20] %vm2389, %v2388
  %s2402 = scalar_lea.vmem %s1, 936
  %2403 = vst.msk [vmem:[%s2402] sm:$0x40] %vm2389, %v2388
  %s2404 = scalar_lea.vmem %s1, 999
  %2405 = vst.msk [vmem:[%s2404] sm:$0x80] %vm2389, %v2388
  %s2406 = scalar_lea.vmem %s0, 32
  %v2407 = vld [vmem:[%s2406] sm:$0xff]
  %2408 = vrot.lane.b32.xlu0 %v2407, 72
  %v2409 = vpop.permute.xlu0 %2408
  %vm2410 = vcmask 31744
  %s2411 = scalar_lea.vmem %s1, 1038
  %2412 = vst.msk [vmem:[%s2411] sm:$0x1] %vm2410, %v2409
  %s2413 = scalar_lea.vmem %s1, 1101
  %2414 = vst.msk [vmem:[%s2413] sm:$0x2] %vm2410, %v2409
  %s2415 = scalar_lea.vmem %s1, 1164
  %2416 = vst.msk [vmem:[%s2415] sm:$0x4] %vm2410, %v2409
  %s2417 = scalar_lea.vmem %s1, 1227
  %2418 = vst.msk [vmem:[%s2417] sm:$0x8] %vm2410, %v2409
  %s2419 = scalar_lea.vmem %s1, 1290
  %2420 = vst.msk [vmem:[%s2419] sm:$0x10] %vm2410, %v2409
  %s2421 = scalar_lea.vmem %s1, 1353
  %2422 = vst.msk [vmem:[%s2421] sm:$0x20] %vm2410, %v2409
  %s2423 = scalar_lea.vmem %s1, 1416
  %2424 = vst.msk [vmem:[%s2423] sm:$0x40] %vm2410, %v2409
  %s2425 = scalar_lea.vmem %s1, 1479
  %2426 = vst.msk [vmem:[%s2425] sm:$0x80] %vm2410, %v2409
  %s2427 = scalar_lea.vmem %s0, 40
  %v2428 = vld [vmem:[%s2427] sm:$0xff]
  %2429 = vrot.lane.b32.xlu0 %v2428, 72
  %v2430 = vpop.permute.xlu0 %2429
  %vm2431 = vcmask 31744
  %s2432 = scalar_lea.vmem %s1, 1070
  %2433 = vst.msk [vmem:[%s2432] sm:$0x1] %vm2431, %v2430
  %s2434 = scalar_lea.vmem %s1, 1133
  %2435 = vst.msk [vmem:[%s2434] sm:$0x2] %vm2431, %v2430
  %s2436 = scalar_lea.vmem %s1, 1196
  %2437 = vst.msk [vmem:[%s2436] sm:$0x4] %vm2431, %v2430
  %s2438 = scalar_lea.vmem %s1, 1259
  %2439 = vst.msk [vmem:[%s2438] sm:$0x8] %vm2431, %v2430
  %s2440 = scalar_lea.vmem %s1, 1322
  %2441 = vst.msk [vmem:[%s2440] sm:$0x10] %vm2431, %v2430
  %s2442 = scalar_lea.vmem %s1, 1385
  %2443 = vst.msk [vmem:[%s2442] sm:$0x20] %vm2431, %v2430
  %s2444 = scalar_lea.vmem %s1, 1448
  %2445 = vst.msk [vmem:[%s2444] sm:$0x40] %vm2431, %v2430
  %s2446 = scalar_lea.vmem %s1, 1511
  %2447 = vst.msk [vmem:[%s2446] sm:$0x80] %vm2431, %v2430
  %s2448 = scalar_lea.vmem %s0, 48
  %v2449 = vld [vmem:[%s2448] sm:$0xff]
  %2450 = vrot.lane.b32.xlu0 %v2449, 72
  %v2451 = vpop.permute.xlu0 %2450
  %vm2452 = vcmask 31744
  %s2453 = scalar_lea.vmem %s1, 1550
  %2454 = vst.msk [vmem:[%s2453] sm:$0x1] %vm2452, %v2451
  %s2455 = scalar_lea.vmem %s1, 1613
  %2456 = vst.msk [vmem:[%s2455] sm:$0x2] %vm2452, %v2451
  %s2457 = scalar_lea.vmem %s1, 1676
  %2458 = vst.msk [vmem:[%s2457] sm:$0x4] %vm2452, %v2451
  %s2459 = scalar_lea.vmem %s1, 1739
  %2460 = vst.msk [vmem:[%s2459] sm:$0x8] %vm2452, %v2451
  %s2461 = scalar_lea.vmem %s1, 1802
  %2462 = vst.msk [vmem:[%s2461] sm:$0x10] %vm2452, %v2451
  %s2463 = scalar_lea.vmem %s1, 1865
  %2464 = vst.msk [vmem:[%s2463] sm:$0x20] %vm2452, %v2451
  %s2465 = scalar_lea.vmem %s1, 1928
  %2466 = vst.msk [vmem:[%s2465] sm:$0x40] %vm2452, %v2451
  %s2467 = scalar_lea.vmem %s1, 1991
  %2468 = vst.msk [vmem:[%s2467] sm:$0x80] %vm2452, %v2451
  %s2469 = scalar_lea.vmem %s0, 56
  %v2470 = vld [vmem:[%s2469] sm:$0xff]
  %2471 = vrot.lane.b32.xlu0 %v2470, 72
  %v2472 = vpop.permute.xlu0 %2471
  %vm2473 = vcmask 31744
  %s2474 = scalar_lea.vmem %s1, 1582
  %2475 = vst.msk [vmem:[%s2474] sm:$0x1] %vm2473, %v2472
  %s2476 = scalar_lea.vmem %s1, 1645
  %2477 = vst.msk [vmem:[%s2476] sm:$0x2] %vm2473, %v2472
  %s2478 = scalar_lea.vmem %s1, 1708
  %2479 = vst.msk [vmem:[%s2478] sm:$0x4] %vm2473, %v2472
  %s2480 = scalar_lea.vmem %s1, 1771
  %2481 = vst.msk [vmem:[%s2480] sm:$0x8] %vm2473, %v2472
  %s2482 = scalar_lea.vmem %s1, 1834
  %2483 = vst.msk [vmem:[%s2482] sm:$0x10] %vm2473, %v2472
  %s2484 = scalar_lea.vmem %s1, 1897
  %2485 = vst.msk [vmem:[%s2484] sm:$0x20] %vm2473, %v2472
  %s2486 = scalar_lea.vmem %s1, 1960
  %2487 = vst.msk [vmem:[%s2486] sm:$0x40] %vm2473, %v2472
  %s2488 = scalar_lea.vmem %s1, 2023
  %2489 = vst.msk [vmem:[%s2488] sm:$0x80] %vm2473, %v2472
  %v2490 = vld [vmem:[%s0] sm:$0xff]
  %2491 = vrot.lane.b32.xlu0 %v2490, 68
  %v2492 = vpop.permute.xlu0 %2491
  %vm2493 = vcmask 31744
  %s2494 = scalar_lea.vmem %s1, 15
  %2495 = vst.msk [vmem:[%s2494] sm:$0x1] %vm2493, %v2492
  %s2496 = scalar_lea.vmem %s1, 78
  %2497 = vst.msk [vmem:[%s2496] sm:$0x2] %vm2493, %v2492
  %s2498 = scalar_lea.vmem %s1, 141
  %2499 = vst.msk [vmem:[%s2498] sm:$0x4] %vm2493, %v2492
  %s2500 = scalar_lea.vmem %s1, 204
  %2501 = vst.msk [vmem:[%s2500] sm:$0x8] %vm2493, %v2492
  %s2502 = scalar_lea.vmem %s1, 267
  %2503 = vst.msk [vmem:[%s2502] sm:$0x10] %vm2493, %v2492
  %s2504 = scalar_lea.vmem %s1, 330
  %2505 = vst.msk [vmem:[%s2504] sm:$0x20] %vm2493, %v2492
  %s2506 = scalar_lea.vmem %s1, 393
  %2507 = vst.msk [vmem:[%s2506] sm:$0x40] %vm2493, %v2492
  %s2508 = scalar_lea.vmem %s1, 456
  %2509 = vst.msk [vmem:[%s2508] sm:$0x80] %vm2493, %v2492
  %s2510 = scalar_lea.vmem %s0, 8
  %v2511 = vld [vmem:[%s2510] sm:$0xff]
  %2512 = vrot.lane.b32.xlu0 %v2511, 68
  %v2513 = vpop.permute.xlu0 %2512
  %vm2514 = vcmask 31744
  %s2515 = scalar_lea.vmem %s1, 47
  %2516 = vst.msk [vmem:[%s2515] sm:$0x1] %vm2514, %v2513
  %s2517 = scalar_lea.vmem %s1, 110
  %2518 = vst.msk [vmem:[%s2517] sm:$0x2] %vm2514, %v2513
  %s2519 = scalar_lea.vmem %s1, 173
  %2520 = vst.msk [vmem:[%s2519] sm:$0x4] %vm2514, %v2513
  %s2521 = scalar_lea.vmem %s1, 236
  %2522 = vst.msk [vmem:[%s2521] sm:$0x8] %vm2514, %v2513
  %s2523 = scalar_lea.vmem %s1, 299
  %2524 = vst.msk [vmem:[%s2523] sm:$0x10] %vm2514, %v2513
  %s2525 = scalar_lea.vmem %s1, 362
  %2526 = vst.msk [vmem:[%s2525] sm:$0x20] %vm2514, %v2513
  %s2527 = scalar_lea.vmem %s1, 425
  %2528 = vst.msk [vmem:[%s2527] sm:$0x40] %vm2514, %v2513
  %s2529 = scalar_lea.vmem %s1, 488
  %2530 = vst.msk [vmem:[%s2529] sm:$0x80] %vm2514, %v2513
  %s2531 = scalar_lea.vmem %s0, 16
  %v2532 = vld [vmem:[%s2531] sm:$0xff]
  %2533 = vrot.lane.b32.xlu0 %v2532, 68
  %v2534 = vpop.permute.xlu0 %2533
  %vm2535 = vcmask 31744
  %s2536 = scalar_lea.vmem %s1, 527
  %2537 = vst.msk [vmem:[%s2536] sm:$0x1] %vm2535, %v2534
  %s2538 = scalar_lea.vmem %s1, 590
  %2539 = vst.msk [vmem:[%s2538] sm:$0x2] %vm2535, %v2534
  %s2540 = scalar_lea.vmem %s1, 653
  %2541 = vst.msk [vmem:[%s2540] sm:$0x4] %vm2535, %v2534
  %s2542 = scalar_lea.vmem %s1, 716
  %2543 = vst.msk [vmem:[%s2542] sm:$0x8] %vm2535, %v2534
  %s2544 = scalar_lea.vmem %s1, 779
  %2545 = vst.msk [vmem:[%s2544] sm:$0x10] %vm2535, %v2534
  %s2546 = scalar_lea.vmem %s1, 842
  %2547 = vst.msk [vmem:[%s2546] sm:$0x20] %vm2535, %v2534
  %s2548 = scalar_lea.vmem %s1, 905
  %2549 = vst.msk [vmem:[%s2548] sm:$0x40] %vm2535, %v2534
  %s2550 = scalar_lea.vmem %s1, 968
  %2551 = vst.msk [vmem:[%s2550] sm:$0x80] %vm2535, %v2534
  %s2552 = scalar_lea.vmem %s0, 24
  %v2553 = vld [vmem:[%s2552] sm:$0xff]
  %2554 = vrot.lane.b32.xlu0 %v2553, 68
  %v2555 = vpop.permute.xlu0 %2554
  %vm2556 = vcmask 31744
  %s2557 = scalar_lea.vmem %s1, 559
  %2558 = vst.msk [vmem:[%s2557] sm:$0x1] %vm2556, %v2555
  %s2559 = scalar_lea.vmem %s1, 622
  %2560 = vst.msk [vmem:[%s2559] sm:$0x2] %vm2556, %v2555
  %s2561 = scalar_lea.vmem %s1, 685
  %2562 = vst.msk [vmem:[%s2561] sm:$0x4] %vm2556, %v2555
  %s2563 = scalar_lea.vmem %s1, 748
  %2564 = vst.msk [vmem:[%s2563] sm:$0x8] %vm2556, %v2555
  %s2565 = scalar_lea.vmem %s1, 811
  %2566 = vst.msk [vmem:[%s2565] sm:$0x10] %vm2556, %v2555
  %s2567 = scalar_lea.vmem %s1, 874
  %2568 = vst.msk [vmem:[%s2567] sm:$0x20] %vm2556, %v2555
  %s2569 = scalar_lea.vmem %s1, 937
  %2570 = vst.msk [vmem:[%s2569] sm:$0x40] %vm2556, %v2555
  %s2571 = scalar_lea.vmem %s1, 1000
  %2572 = vst.msk [vmem:[%s2571] sm:$0x80] %vm2556, %v2555
  %s2573 = scalar_lea.vmem %s0, 32
  %v2574 = vld [vmem:[%s2573] sm:$0xff]
  %2575 = vrot.lane.b32.xlu0 %v2574, 68
  %v2576 = vpop.permute.xlu0 %2575
  %vm2577 = vcmask 31744
  %s2578 = scalar_lea.vmem %s1, 1039
  %2579 = vst.msk [vmem:[%s2578] sm:$0x1] %vm2577, %v2576
  %s2580 = scalar_lea.vmem %s1, 1102
  %2581 = vst.msk [vmem:[%s2580] sm:$0x2] %vm2577, %v2576
  %s2582 = scalar_lea.vmem %s1, 1165
  %2583 = vst.msk [vmem:[%s2582] sm:$0x4] %vm2577, %v2576
  %s2584 = scalar_lea.vmem %s1, 1228
  %2585 = vst.msk [vmem:[%s2584] sm:$0x8] %vm2577, %v2576
  %s2586 = scalar_lea.vmem %s1, 1291
  %2587 = vst.msk [vmem:[%s2586] sm:$0x10] %vm2577, %v2576
  %s2588 = scalar_lea.vmem %s1, 1354
  %2589 = vst.msk [vmem:[%s2588] sm:$0x20] %vm2577, %v2576
  %s2590 = scalar_lea.vmem %s1, 1417
  %2591 = vst.msk [vmem:[%s2590] sm:$0x40] %vm2577, %v2576
  %s2592 = scalar_lea.vmem %s1, 1480
  %2593 = vst.msk [vmem:[%s2592] sm:$0x80] %vm2577, %v2576
  %s2594 = scalar_lea.vmem %s0, 40
  %v2595 = vld [vmem:[%s2594] sm:$0xff]
  %2596 = vrot.lane.b32.xlu0 %v2595, 68
  %v2597 = vpop.permute.xlu0 %2596
  %vm2598 = vcmask 31744
  %s2599 = scalar_lea.vmem %s1, 1071
  %2600 = vst.msk [vmem:[%s2599] sm:$0x1] %vm2598, %v2597
  %s2601 = scalar_lea.vmem %s1, 1134
  %2602 = vst.msk [vmem:[%s2601] sm:$0x2] %vm2598, %v2597
  %s2603 = scalar_lea.vmem %s1, 1197
  %2604 = vst.msk [vmem:[%s2603] sm:$0x4] %vm2598, %v2597
  %s2605 = scalar_lea.vmem %s1, 1260
  %2606 = vst.msk [vmem:[%s2605] sm:$0x8] %vm2598, %v2597
  %s2607 = scalar_lea.vmem %s1, 1323
  %2608 = vst.msk [vmem:[%s2607] sm:$0x10] %vm2598, %v2597
  %s2609 = scalar_lea.vmem %s1, 1386
  %2610 = vst.msk [vmem:[%s2609] sm:$0x20] %vm2598, %v2597
  %s2611 = scalar_lea.vmem %s1, 1449
  %2612 = vst.msk [vmem:[%s2611] sm:$0x40] %vm2598, %v2597
  %s2613 = scalar_lea.vmem %s1, 1512
  %2614 = vst.msk [vmem:[%s2613] sm:$0x80] %vm2598, %v2597
  %s2615 = scalar_lea.vmem %s0, 48
  %v2616 = vld [vmem:[%s2615] sm:$0xff]
  %2617 = vrot.lane.b32.xlu0 %v2616, 68
  %v2618 = vpop.permute.xlu0 %2617
  %vm2619 = vcmask 31744
  %s2620 = scalar_lea.vmem %s1, 1551
  %2621 = vst.msk [vmem:[%s2620] sm:$0x1] %vm2619, %v2618
  %s2622 = scalar_lea.vmem %s1, 1614
  %2623 = vst.msk [vmem:[%s2622] sm:$0x2] %vm2619, %v2618
  %s2624 = scalar_lea.vmem %s1, 1677
  %2625 = vst.msk [vmem:[%s2624] sm:$0x4] %vm2619, %v2618
  %s2626 = scalar_lea.vmem %s1, 1740
  %2627 = vst.msk [vmem:[%s2626] sm:$0x8] %vm2619, %v2618
  %s2628 = scalar_lea.vmem %s1, 1803
  %2629 = vst.msk [vmem:[%s2628] sm:$0x10] %vm2619, %v2618
  %s2630 = scalar_lea.vmem %s1, 1866
  %2631 = vst.msk [vmem:[%s2630] sm:$0x20] %vm2619, %v2618
  %s2632 = scalar_lea.vmem %s1, 1929
  %2633 = vst.msk [vmem:[%s2632] sm:$0x40] %vm2619, %v2618
  %s2634 = scalar_lea.vmem %s1, 1992
  %2635 = vst.msk [vmem:[%s2634] sm:$0x80] %vm2619, %v2618
  %s2636 = scalar_lea.vmem %s0, 56
  %v2637 = vld [vmem:[%s2636] sm:$0xff]
  %2638 = vrot.lane.b32.xlu0 %v2637, 68
  %v2639 = vpop.permute.xlu0 %2638
  %vm2640 = vcmask 31744
  %s2641 = scalar_lea.vmem %s1, 1583
  %2642 = vst.msk [vmem:[%s2641] sm:$0x1] %vm2640, %v2639
  %s2643 = scalar_lea.vmem %s1, 1646
  %2644 = vst.msk [vmem:[%s2643] sm:$0x2] %vm2640, %v2639
  %s2645 = scalar_lea.vmem %s1, 1709
  %2646 = vst.msk [vmem:[%s2645] sm:$0x4] %vm2640, %v2639
  %s2647 = scalar_lea.vmem %s1, 1772
  %2648 = vst.msk [vmem:[%s2647] sm:$0x8] %vm2640, %v2639
  %s2649 = scalar_lea.vmem %s1, 1835
  %2650 = vst.msk [vmem:[%s2649] sm:$0x10] %vm2640, %v2639
  %s2651 = scalar_lea.vmem %s1, 1898
  %2652 = vst.msk [vmem:[%s2651] sm:$0x20] %vm2640, %v2639
  %s2653 = scalar_lea.vmem %s1, 1961
  %2654 = vst.msk [vmem:[%s2653] sm:$0x40] %vm2640, %v2639
  %s2655 = scalar_lea.vmem %s1, 2024
  %2656 = vst.msk [vmem:[%s2655] sm:$0x80] %vm2640, %v2639
  %v2657 = vld [vmem:[%s0] sm:$0xff]
  %2658 = vrot.lane.b32.xlu0 %v2657, 64
  %v2659 = vpop.permute.xlu0 %2658
  %vm2660 = vcmask 31744
  %s2661 = scalar_lea.vmem %s1, 16
  %2662 = vst.msk [vmem:[%s2661] sm:$0x1] %vm2660, %v2659
  %s2663 = scalar_lea.vmem %s1, 79
  %2664 = vst.msk [vmem:[%s2663] sm:$0x2] %vm2660, %v2659
  %s2665 = scalar_lea.vmem %s1, 142
  %2666 = vst.msk [vmem:[%s2665] sm:$0x4] %vm2660, %v2659
  %s2667 = scalar_lea.vmem %s1, 205
  %2668 = vst.msk [vmem:[%s2667] sm:$0x8] %vm2660, %v2659
  %s2669 = scalar_lea.vmem %s1, 268
  %2670 = vst.msk [vmem:[%s2669] sm:$0x10] %vm2660, %v2659
  %s2671 = scalar_lea.vmem %s1, 331
  %2672 = vst.msk [vmem:[%s2671] sm:$0x20] %vm2660, %v2659
  %s2673 = scalar_lea.vmem %s1, 394
  %2674 = vst.msk [vmem:[%s2673] sm:$0x40] %vm2660, %v2659
  %s2675 = scalar_lea.vmem %s1, 457
  %2676 = vst.msk [vmem:[%s2675] sm:$0x80] %vm2660, %v2659
  %s2677 = scalar_lea.vmem %s0, 8
  %v2678 = vld [vmem:[%s2677] sm:$0xff]
  %2679 = vrot.lane.b32.xlu0 %v2678, 64
  %v2680 = vpop.permute.xlu0 %2679
  %vm2681 = vcmask 31744
  %s2682 = scalar_lea.vmem %s1, 48
  %2683 = vst.msk [vmem:[%s2682] sm:$0x1] %vm2681, %v2680
  %s2684 = scalar_lea.vmem %s1, 111
  %2685 = vst.msk [vmem:[%s2684] sm:$0x2] %vm2681, %v2680
  %s2686 = scalar_lea.vmem %s1, 174
  %2687 = vst.msk [vmem:[%s2686] sm:$0x4] %vm2681, %v2680
  %s2688 = scalar_lea.vmem %s1, 237
  %2689 = vst.msk [vmem:[%s2688] sm:$0x8] %vm2681, %v2680
  %s2690 = scalar_lea.vmem %s1, 300
  %2691 = vst.msk [vmem:[%s2690] sm:$0x10] %vm2681, %v2680
  %s2692 = scalar_lea.vmem %s1, 363
  %2693 = vst.msk [vmem:[%s2692] sm:$0x20] %vm2681, %v2680
  %s2694 = scalar_lea.vmem %s1, 426
  %2695 = vst.msk [vmem:[%s2694] sm:$0x40] %vm2681, %v2680
  %s2696 = scalar_lea.vmem %s1, 489
  %2697 = vst.msk [vmem:[%s2696] sm:$0x80] %vm2681, %v2680
  %s2698 = scalar_lea.vmem %s0, 16
  %v2699 = vld [vmem:[%s2698] sm:$0xff]
  %2700 = vrot.lane.b32.xlu0 %v2699, 64
  %v2701 = vpop.permute.xlu0 %2700
  %vm2702 = vcmask 31744
  %s2703 = scalar_lea.vmem %s1, 528
  %2704 = vst.msk [vmem:[%s2703] sm:$0x1] %vm2702, %v2701
  %s2705 = scalar_lea.vmem %s1, 591
  %2706 = vst.msk [vmem:[%s2705] sm:$0x2] %vm2702, %v2701
  %s2707 = scalar_lea.vmem %s1, 654
  %2708 = vst.msk [vmem:[%s2707] sm:$0x4] %vm2702, %v2701
  %s2709 = scalar_lea.vmem %s1, 717
  %2710 = vst.msk [vmem:[%s2709] sm:$0x8] %vm2702, %v2701
  %s2711 = scalar_lea.vmem %s1, 780
  %2712 = vst.msk [vmem:[%s2711] sm:$0x10] %vm2702, %v2701
  %s2713 = scalar_lea.vmem %s1, 843
  %2714 = vst.msk [vmem:[%s2713] sm:$0x20] %vm2702, %v2701
  %s2715 = scalar_lea.vmem %s1, 906
  %2716 = vst.msk [vmem:[%s2715] sm:$0x40] %vm2702, %v2701
  %s2717 = scalar_lea.vmem %s1, 969
  %2718 = vst.msk [vmem:[%s2717] sm:$0x80] %vm2702, %v2701
  %s2719 = scalar_lea.vmem %s0, 24
  %v2720 = vld [vmem:[%s2719] sm:$0xff]
  %2721 = vrot.lane.b32.xlu0 %v2720, 64
  %v2722 = vpop.permute.xlu0 %2721
  %vm2723 = vcmask 31744
  %s2724 = scalar_lea.vmem %s1, 560
  %2725 = vst.msk [vmem:[%s2724] sm:$0x1] %vm2723, %v2722
  %s2726 = scalar_lea.vmem %s1, 623
  %2727 = vst.msk [vmem:[%s2726] sm:$0x2] %vm2723, %v2722
  %s2728 = scalar_lea.vmem %s1, 686
  %2729 = vst.msk [vmem:[%s2728] sm:$0x4] %vm2723, %v2722
  %s2730 = scalar_lea.vmem %s1, 749
  %2731 = vst.msk [vmem:[%s2730] sm:$0x8] %vm2723, %v2722
  %s2732 = scalar_lea.vmem %s1, 812
  %2733 = vst.msk [vmem:[%s2732] sm:$0x10] %vm2723, %v2722
  %s2734 = scalar_lea.vmem %s1, 875
  %2735 = vst.msk [vmem:[%s2734] sm:$0x20] %vm2723, %v2722
  %s2736 = scalar_lea.vmem %s1, 938
  %2737 = vst.msk [vmem:[%s2736] sm:$0x40] %vm2723, %v2722
  %s2738 = scalar_lea.vmem %s1, 1001
  %2739 = vst.msk [vmem:[%s2738] sm:$0x80] %vm2723, %v2722
  %s2740 = scalar_lea.vmem %s0, 32
  %v2741 = vld [vmem:[%s2740] sm:$0xff]
  %2742 = vrot.lane.b32.xlu0 %v2741, 64
  %v2743 = vpop.permute.xlu0 %2742
  %vm2744 = vcmask 31744
  %s2745 = scalar_lea.vmem %s1, 1040
  %2746 = vst.msk [vmem:[%s2745] sm:$0x1] %vm2744, %v2743
  %s2747 = scalar_lea.vmem %s1, 1103
  %2748 = vst.msk [vmem:[%s2747] sm:$0x2] %vm2744, %v2743
  %s2749 = scalar_lea.vmem %s1, 1166
  %2750 = vst.msk [vmem:[%s2749] sm:$0x4] %vm2744, %v2743
  %s2751 = scalar_lea.vmem %s1, 1229
  %2752 = vst.msk [vmem:[%s2751] sm:$0x8] %vm2744, %v2743
  %s2753 = scalar_lea.vmem %s1, 1292
  %2754 = vst.msk [vmem:[%s2753] sm:$0x10] %vm2744, %v2743
  %s2755 = scalar_lea.vmem %s1, 1355
  %2756 = vst.msk [vmem:[%s2755] sm:$0x20] %vm2744, %v2743
  %s2757 = scalar_lea.vmem %s1, 1418
  %2758 = vst.msk [vmem:[%s2757] sm:$0x40] %vm2744, %v2743
  %s2759 = scalar_lea.vmem %s1, 1481
  %2760 = vst.msk [vmem:[%s2759] sm:$0x80] %vm2744, %v2743
  %s2761 = scalar_lea.vmem %s0, 40
  %v2762 = vld [vmem:[%s2761] sm:$0xff]
  %2763 = vrot.lane.b32.xlu0 %v2762, 64
  %v2764 = vpop.permute.xlu0 %2763
  %vm2765 = vcmask 31744
  %s2766 = scalar_lea.vmem %s1, 1072
  %2767 = vst.msk [vmem:[%s2766] sm:$0x1] %vm2765, %v2764
  %s2768 = scalar_lea.vmem %s1, 1135
  %2769 = vst.msk [vmem:[%s2768] sm:$0x2] %vm2765, %v2764
  %s2770 = scalar_lea.vmem %s1, 1198
  %2771 = vst.msk [vmem:[%s2770] sm:$0x4] %vm2765, %v2764
  %s2772 = scalar_lea.vmem %s1, 1261
  %2773 = vst.msk [vmem:[%s2772] sm:$0x8] %vm2765, %v2764
  %s2774 = scalar_lea.vmem %s1, 1324
  %2775 = vst.msk [vmem:[%s2774] sm:$0x10] %vm2765, %v2764
  %s2776 = scalar_lea.vmem %s1, 1387
  %2777 = vst.msk [vmem:[%s2776] sm:$0x20] %vm2765, %v2764
  %s2778 = scalar_lea.vmem %s1, 1450
  %2779 = vst.msk [vmem:[%s2778] sm:$0x40] %vm2765, %v2764
  %s2780 = scalar_lea.vmem %s1, 1513
  %2781 = vst.msk [vmem:[%s2780] sm:$0x80] %vm2765, %v2764
  %s2782 = scalar_lea.vmem %s0, 48
  %v2783 = vld [vmem:[%s2782] sm:$0xff]
  %2784 = vrot.lane.b32.xlu0 %v2783, 64
  %v2785 = vpop.permute.xlu0 %2784
  %vm2786 = vcmask 31744
  %s2787 = scalar_lea.vmem %s1, 1552
  %2788 = vst.msk [vmem:[%s2787] sm:$0x1] %vm2786, %v2785
  %s2789 = scalar_lea.vmem %s1, 1615
  %2790 = vst.msk [vmem:[%s2789] sm:$0x2] %vm2786, %v2785
  %s2791 = scalar_lea.vmem %s1, 1678
  %2792 = vst.msk [vmem:[%s2791] sm:$0x4] %vm2786, %v2785
  %s2793 = scalar_lea.vmem %s1, 1741
  %2794 = vst.msk [vmem:[%s2793] sm:$0x8] %vm2786, %v2785
  %s2795 = scalar_lea.vmem %s1, 1804
  %2796 = vst.msk [vmem:[%s2795] sm:$0x10] %vm2786, %v2785
  %s2797 = scalar_lea.vmem %s1, 1867
  %2798 = vst.msk [vmem:[%s2797] sm:$0x20] %vm2786, %v2785
  %s2799 = scalar_lea.vmem %s1, 1930
  %2800 = vst.msk [vmem:[%s2799] sm:$0x40] %vm2786, %v2785
  %s2801 = scalar_lea.vmem %s1, 1993
  %2802 = vst.msk [vmem:[%s2801] sm:$0x80] %vm2786, %v2785
  %s2803 = scalar_lea.vmem %s0, 56
  %v2804 = vld [vmem:[%s2803] sm:$0xff]
  %2805 = vrot.lane.b32.xlu0 %v2804, 64
  %v2806 = vpop.permute.xlu0 %2805
  %vm2807 = vcmask 31744
  %s2808 = scalar_lea.vmem %s1, 1584
  %2809 = vst.msk [vmem:[%s2808] sm:$0x1] %vm2807, %v2806
  %s2810 = scalar_lea.vmem %s1, 1647
  %2811 = vst.msk [vmem:[%s2810] sm:$0x2] %vm2807, %v2806
  %s2812 = scalar_lea.vmem %s1, 1710
  %2813 = vst.msk [vmem:[%s2812] sm:$0x4] %vm2807, %v2806
  %s2814 = scalar_lea.vmem %s1, 1773
  %2815 = vst.msk [vmem:[%s2814] sm:$0x8] %vm2807, %v2806
  %s2816 = scalar_lea.vmem %s1, 1836
  %2817 = vst.msk [vmem:[%s2816] sm:$0x10] %vm2807, %v2806
  %s2818 = scalar_lea.vmem %s1, 1899
  %2819 = vst.msk [vmem:[%s2818] sm:$0x20] %vm2807, %v2806
  %s2820 = scalar_lea.vmem %s1, 1962
  %2821 = vst.msk [vmem:[%s2820] sm:$0x40] %vm2807, %v2806
  %s2822 = scalar_lea.vmem %s1, 2025
  %2823 = vst.msk [vmem:[%s2822] sm:$0x80] %vm2807, %v2806
  %v2824 = vld [vmem:[%s0] sm:$0xff]
  %2825 = vrot.lane.b32.xlu0 %v2824, 60
  %v2826 = vpop.permute.xlu0 %2825
  %vm2827 = vcmask 31744
  %s2828 = scalar_lea.vmem %s1, 17
  %2829 = vst.msk [vmem:[%s2828] sm:$0x1] %vm2827, %v2826
  %s2830 = scalar_lea.vmem %s1, 80
  %2831 = vst.msk [vmem:[%s2830] sm:$0x2] %vm2827, %v2826
  %s2832 = scalar_lea.vmem %s1, 143
  %2833 = vst.msk [vmem:[%s2832] sm:$0x4] %vm2827, %v2826
  %s2834 = scalar_lea.vmem %s1, 206
  %2835 = vst.msk [vmem:[%s2834] sm:$0x8] %vm2827, %v2826
  %s2836 = scalar_lea.vmem %s1, 269
  %2837 = vst.msk [vmem:[%s2836] sm:$0x10] %vm2827, %v2826
  %s2838 = scalar_lea.vmem %s1, 332
  %2839 = vst.msk [vmem:[%s2838] sm:$0x20] %vm2827, %v2826
  %s2840 = scalar_lea.vmem %s1, 395
  %2841 = vst.msk [vmem:[%s2840] sm:$0x40] %vm2827, %v2826
  %s2842 = scalar_lea.vmem %s1, 458
  %2843 = vst.msk [vmem:[%s2842] sm:$0x80] %vm2827, %v2826
  %s2844 = scalar_lea.vmem %s0, 8
  %v2845 = vld [vmem:[%s2844] sm:$0xff]
  %2846 = vrot.lane.b32.xlu0 %v2845, 60
  %v2847 = vpop.permute.xlu0 %2846
  %vm2848 = vcmask 31744
  %s2849 = scalar_lea.vmem %s1, 49
  %2850 = vst.msk [vmem:[%s2849] sm:$0x1] %vm2848, %v2847
  %s2851 = scalar_lea.vmem %s1, 112
  %2852 = vst.msk [vmem:[%s2851] sm:$0x2] %vm2848, %v2847
  %s2853 = scalar_lea.vmem %s1, 175
  %2854 = vst.msk [vmem:[%s2853] sm:$0x4] %vm2848, %v2847
  %s2855 = scalar_lea.vmem %s1, 238
  %2856 = vst.msk [vmem:[%s2855] sm:$0x8] %vm2848, %v2847
  %s2857 = scalar_lea.vmem %s1, 301
  %2858 = vst.msk [vmem:[%s2857] sm:$0x10] %vm2848, %v2847
  %s2859 = scalar_lea.vmem %s1, 364
  %2860 = vst.msk [vmem:[%s2859] sm:$0x20] %vm2848, %v2847
  %s2861 = scalar_lea.vmem %s1, 427
  %2862 = vst.msk [vmem:[%s2861] sm:$0x40] %vm2848, %v2847
  %s2863 = scalar_lea.vmem %s1, 490
  %2864 = vst.msk [vmem:[%s2863] sm:$0x80] %vm2848, %v2847
  %s2865 = scalar_lea.vmem %s0, 16
  %v2866 = vld [vmem:[%s2865] sm:$0xff]
  %2867 = vrot.lane.b32.xlu0 %v2866, 60
  %v2868 = vpop.permute.xlu0 %2867
  %vm2869 = vcmask 31744
  %s2870 = scalar_lea.vmem %s1, 529
  %2871 = vst.msk [vmem:[%s2870] sm:$0x1] %vm2869, %v2868
  %s2872 = scalar_lea.vmem %s1, 592
  %2873 = vst.msk [vmem:[%s2872] sm:$0x2] %vm2869, %v2868
  %s2874 = scalar_lea.vmem %s1, 655
  %2875 = vst.msk [vmem:[%s2874] sm:$0x4] %vm2869, %v2868
  %s2876 = scalar_lea.vmem %s1, 718
  %2877 = vst.msk [vmem:[%s2876] sm:$0x8] %vm2869, %v2868
  %s2878 = scalar_lea.vmem %s1, 781
  %2879 = vst.msk [vmem:[%s2878] sm:$0x10] %vm2869, %v2868
  %s2880 = scalar_lea.vmem %s1, 844
  %2881 = vst.msk [vmem:[%s2880] sm:$0x20] %vm2869, %v2868
  %s2882 = scalar_lea.vmem %s1, 907
  %2883 = vst.msk [vmem:[%s2882] sm:$0x40] %vm2869, %v2868
  %s2884 = scalar_lea.vmem %s1, 970
  %2885 = vst.msk [vmem:[%s2884] sm:$0x80] %vm2869, %v2868
  %s2886 = scalar_lea.vmem %s0, 24
  %v2887 = vld [vmem:[%s2886] sm:$0xff]
  %2888 = vrot.lane.b32.xlu0 %v2887, 60
  %v2889 = vpop.permute.xlu0 %2888
  %vm2890 = vcmask 31744
  %s2891 = scalar_lea.vmem %s1, 561
  %2892 = vst.msk [vmem:[%s2891] sm:$0x1] %vm2890, %v2889
  %s2893 = scalar_lea.vmem %s1, 624
  %2894 = vst.msk [vmem:[%s2893] sm:$0x2] %vm2890, %v2889
  %s2895 = scalar_lea.vmem %s1, 687
  %2896 = vst.msk [vmem:[%s2895] sm:$0x4] %vm2890, %v2889
  %s2897 = scalar_lea.vmem %s1, 750
  %2898 = vst.msk [vmem:[%s2897] sm:$0x8] %vm2890, %v2889
  %s2899 = scalar_lea.vmem %s1, 813
  %2900 = vst.msk [vmem:[%s2899] sm:$0x10] %vm2890, %v2889
  %s2901 = scalar_lea.vmem %s1, 876
  %2902 = vst.msk [vmem:[%s2901] sm:$0x20] %vm2890, %v2889
  %s2903 = scalar_lea.vmem %s1, 939
  %2904 = vst.msk [vmem:[%s2903] sm:$0x40] %vm2890, %v2889
  %s2905 = scalar_lea.vmem %s1, 1002
  %2906 = vst.msk [vmem:[%s2905] sm:$0x80] %vm2890, %v2889
  %s2907 = scalar_lea.vmem %s0, 32
  %v2908 = vld [vmem:[%s2907] sm:$0xff]
  %2909 = vrot.lane.b32.xlu0 %v2908, 60
  %v2910 = vpop.permute.xlu0 %2909
  %vm2911 = vcmask 31744
  %s2912 = scalar_lea.vmem %s1, 1041
  %2913 = vst.msk [vmem:[%s2912] sm:$0x1] %vm2911, %v2910
  %s2914 = scalar_lea.vmem %s1, 1104
  %2915 = vst.msk [vmem:[%s2914] sm:$0x2] %vm2911, %v2910
  %s2916 = scalar_lea.vmem %s1, 1167
  %2917 = vst.msk [vmem:[%s2916] sm:$0x4] %vm2911, %v2910
  %s2918 = scalar_lea.vmem %s1, 1230
  %2919 = vst.msk [vmem:[%s2918] sm:$0x8] %vm2911, %v2910
  %s2920 = scalar_lea.vmem %s1, 1293
  %2921 = vst.msk [vmem:[%s2920] sm:$0x10] %vm2911, %v2910
  %s2922 = scalar_lea.vmem %s1, 1356
  %2923 = vst.msk [vmem:[%s2922] sm:$0x20] %vm2911, %v2910
  %s2924 = scalar_lea.vmem %s1, 1419
  %2925 = vst.msk [vmem:[%s2924] sm:$0x40] %vm2911, %v2910
  %s2926 = scalar_lea.vmem %s1, 1482
  %2927 = vst.msk [vmem:[%s2926] sm:$0x80] %vm2911, %v2910
  %s2928 = scalar_lea.vmem %s0, 40
  %v2929 = vld [vmem:[%s2928] sm:$0xff]
  %2930 = vrot.lane.b32.xlu0 %v2929, 60
  %v2931 = vpop.permute.xlu0 %2930
  %vm2932 = vcmask 31744
  %s2933 = scalar_lea.vmem %s1, 1073
  %2934 = vst.msk [vmem:[%s2933] sm:$0x1] %vm2932, %v2931
  %s2935 = scalar_lea.vmem %s1, 1136
  %2936 = vst.msk [vmem:[%s2935] sm:$0x2] %vm2932, %v2931
  %s2937 = scalar_lea.vmem %s1, 1199
  %2938 = vst.msk [vmem:[%s2937] sm:$0x4] %vm2932, %v2931
  %s2939 = scalar_lea.vmem %s1, 1262
  %2940 = vst.msk [vmem:[%s2939] sm:$0x8] %vm2932, %v2931
  %s2941 = scalar_lea.vmem %s1, 1325
  %2942 = vst.msk [vmem:[%s2941] sm:$0x10] %vm2932, %v2931
  %s2943 = scalar_lea.vmem %s1, 1388
  %2944 = vst.msk [vmem:[%s2943] sm:$0x20] %vm2932, %v2931
  %s2945 = scalar_lea.vmem %s1, 1451
  %2946 = vst.msk [vmem:[%s2945] sm:$0x40] %vm2932, %v2931
  %s2947 = scalar_lea.vmem %s1, 1514
  %2948 = vst.msk [vmem:[%s2947] sm:$0x80] %vm2932, %v2931
  %s2949 = scalar_lea.vmem %s0, 48
  %v2950 = vld [vmem:[%s2949] sm:$0xff]
  %2951 = vrot.lane.b32.xlu0 %v2950, 60
  %v2952 = vpop.permute.xlu0 %2951
  %vm2953 = vcmask 31744
  %s2954 = scalar_lea.vmem %s1, 1553
  %2955 = vst.msk [vmem:[%s2954] sm:$0x1] %vm2953, %v2952
  %s2956 = scalar_lea.vmem %s1, 1616
  %2957 = vst.msk [vmem:[%s2956] sm:$0x2] %vm2953, %v2952
  %s2958 = scalar_lea.vmem %s1, 1679
  %2959 = vst.msk [vmem:[%s2958] sm:$0x4] %vm2953, %v2952
  %s2960 = scalar_lea.vmem %s1, 1742
  %2961 = vst.msk [vmem:[%s2960] sm:$0x8] %vm2953, %v2952
  %s2962 = scalar_lea.vmem %s1, 1805
  %2963 = vst.msk [vmem:[%s2962] sm:$0x10] %vm2953, %v2952
  %s2964 = scalar_lea.vmem %s1, 1868
  %2965 = vst.msk [vmem:[%s2964] sm:$0x20] %vm2953, %v2952
  %s2966 = scalar_lea.vmem %s1, 1931
  %2967 = vst.msk [vmem:[%s2966] sm:$0x40] %vm2953, %v2952
  %s2968 = scalar_lea.vmem %s1, 1994
  %2969 = vst.msk [vmem:[%s2968] sm:$0x80] %vm2953, %v2952
  %s2970 = scalar_lea.vmem %s0, 56
  %v2971 = vld [vmem:[%s2970] sm:$0xff]
  %2972 = vrot.lane.b32.xlu0 %v2971, 60
  %v2973 = vpop.permute.xlu0 %2972
  %vm2974 = vcmask 31744
  %s2975 = scalar_lea.vmem %s1, 1585
  %2976 = vst.msk [vmem:[%s2975] sm:$0x1] %vm2974, %v2973
  %s2977 = scalar_lea.vmem %s1, 1648
  %2978 = vst.msk [vmem:[%s2977] sm:$0x2] %vm2974, %v2973
  %s2979 = scalar_lea.vmem %s1, 1711
  %2980 = vst.msk [vmem:[%s2979] sm:$0x4] %vm2974, %v2973
  %s2981 = scalar_lea.vmem %s1, 1774
  %2982 = vst.msk [vmem:[%s2981] sm:$0x8] %vm2974, %v2973
  %s2983 = scalar_lea.vmem %s1, 1837
  %2984 = vst.msk [vmem:[%s2983] sm:$0x10] %vm2974, %v2973
  %s2985 = scalar_lea.vmem %s1, 1900
  %2986 = vst.msk [vmem:[%s2985] sm:$0x20] %vm2974, %v2973
  %s2987 = scalar_lea.vmem %s1, 1963
  %2988 = vst.msk [vmem:[%s2987] sm:$0x40] %vm2974, %v2973
  %s2989 = scalar_lea.vmem %s1, 2026
  %2990 = vst.msk [vmem:[%s2989] sm:$0x80] %vm2974, %v2973
  %v2991 = vld [vmem:[%s0] sm:$0xff]
  %2992 = vrot.lane.b32.xlu0 %v2991, 56
  %v2993 = vpop.permute.xlu0 %2992
  %vm2994 = vcmask 31744
  %s2995 = scalar_lea.vmem %s1, 18
  %2996 = vst.msk [vmem:[%s2995] sm:$0x1] %vm2994, %v2993
  %s2997 = scalar_lea.vmem %s1, 81
  %2998 = vst.msk [vmem:[%s2997] sm:$0x2] %vm2994, %v2993
  %s2999 = scalar_lea.vmem %s1, 144
  %3000 = vst.msk [vmem:[%s2999] sm:$0x4] %vm2994, %v2993
  %s3001 = scalar_lea.vmem %s1, 207
  %3002 = vst.msk [vmem:[%s3001] sm:$0x8] %vm2994, %v2993
  %s3003 = scalar_lea.vmem %s1, 270
  %3004 = vst.msk [vmem:[%s3003] sm:$0x10] %vm2994, %v2993
  %s3005 = scalar_lea.vmem %s1, 333
  %3006 = vst.msk [vmem:[%s3005] sm:$0x20] %vm2994, %v2993
  %s3007 = scalar_lea.vmem %s1, 396
  %3008 = vst.msk [vmem:[%s3007] sm:$0x40] %vm2994, %v2993
  %s3009 = scalar_lea.vmem %s1, 459
  %3010 = vst.msk [vmem:[%s3009] sm:$0x80] %vm2994, %v2993
  %s3011 = scalar_lea.vmem %s0, 8
  %v3012 = vld [vmem:[%s3011] sm:$0xff]
  %3013 = vrot.lane.b32.xlu0 %v3012, 56
  %v3014 = vpop.permute.xlu0 %3013
  %vm3015 = vcmask 31744
  %s3016 = scalar_lea.vmem %s1, 50
  %3017 = vst.msk [vmem:[%s3016] sm:$0x1] %vm3015, %v3014
  %s3018 = scalar_lea.vmem %s1, 113
  %3019 = vst.msk [vmem:[%s3018] sm:$0x2] %vm3015, %v3014
  %s3020 = scalar_lea.vmem %s1, 176
  %3021 = vst.msk [vmem:[%s3020] sm:$0x4] %vm3015, %v3014
  %s3022 = scalar_lea.vmem %s1, 239
  %3023 = vst.msk [vmem:[%s3022] sm:$0x8] %vm3015, %v3014
  %s3024 = scalar_lea.vmem %s1, 302
  %3025 = vst.msk [vmem:[%s3024] sm:$0x10] %vm3015, %v3014
  %s3026 = scalar_lea.vmem %s1, 365
  %3027 = vst.msk [vmem:[%s3026] sm:$0x20] %vm3015, %v3014
  %s3028 = scalar_lea.vmem %s1, 428
  %3029 = vst.msk [vmem:[%s3028] sm:$0x40] %vm3015, %v3014
  %s3030 = scalar_lea.vmem %s1, 491
  %3031 = vst.msk [vmem:[%s3030] sm:$0x80] %vm3015, %v3014
  %s3032 = scalar_lea.vmem %s0, 16
  %v3033 = vld [vmem:[%s3032] sm:$0xff]
  %3034 = vrot.lane.b32.xlu0 %v3033, 56
  %v3035 = vpop.permute.xlu0 %3034
  %vm3036 = vcmask 31744
  %s3037 = scalar_lea.vmem %s1, 530
  %3038 = vst.msk [vmem:[%s3037] sm:$0x1] %vm3036, %v3035
  %s3039 = scalar_lea.vmem %s1, 593
  %3040 = vst.msk [vmem:[%s3039] sm:$0x2] %vm3036, %v3035
  %s3041 = scalar_lea.vmem %s1, 656
  %3042 = vst.msk [vmem:[%s3041] sm:$0x4] %vm3036, %v3035
  %s3043 = scalar_lea.vmem %s1, 719
  %3044 = vst.msk [vmem:[%s3043] sm:$0x8] %vm3036, %v3035
  %s3045 = scalar_lea.vmem %s1, 782
  %3046 = vst.msk [vmem:[%s3045] sm:$0x10] %vm3036, %v3035
  %s3047 = scalar_lea.vmem %s1, 845
  %3048 = vst.msk [vmem:[%s3047] sm:$0x20] %vm3036, %v3035
  %s3049 = scalar_lea.vmem %s1, 908
  %3050 = vst.msk [vmem:[%s3049] sm:$0x40] %vm3036, %v3035
  %s3051 = scalar_lea.vmem %s1, 971
  %3052 = vst.msk [vmem:[%s3051] sm:$0x80] %vm3036, %v3035
  %s3053 = scalar_lea.vmem %s0, 24
  %v3054 = vld [vmem:[%s3053] sm:$0xff]
  %3055 = vrot.lane.b32.xlu0 %v3054, 56
  %v3056 = vpop.permute.xlu0 %3055
  %vm3057 = vcmask 31744
  %s3058 = scalar_lea.vmem %s1, 562
  %3059 = vst.msk [vmem:[%s3058] sm:$0x1] %vm3057, %v3056
  %s3060 = scalar_lea.vmem %s1, 625
  %3061 = vst.msk [vmem:[%s3060] sm:$0x2] %vm3057, %v3056
  %s3062 = scalar_lea.vmem %s1, 688
  %3063 = vst.msk [vmem:[%s3062] sm:$0x4] %vm3057, %v3056
  %s3064 = scalar_lea.vmem %s1, 751
  %3065 = vst.msk [vmem:[%s3064] sm:$0x8] %vm3057, %v3056
  %s3066 = scalar_lea.vmem %s1, 814
  %3067 = vst.msk [vmem:[%s3066] sm:$0x10] %vm3057, %v3056
  %s3068 = scalar_lea.vmem %s1, 877
  %3069 = vst.msk [vmem:[%s3068] sm:$0x20] %vm3057, %v3056
  %s3070 = scalar_lea.vmem %s1, 940
  %3071 = vst.msk [vmem:[%s3070] sm:$0x40] %vm3057, %v3056
  %s3072 = scalar_lea.vmem %s1, 1003
  %3073 = vst.msk [vmem:[%s3072] sm:$0x80] %vm3057, %v3056
  %s3074 = scalar_lea.vmem %s0, 32
  %v3075 = vld [vmem:[%s3074] sm:$0xff]
  %3076 = vrot.lane.b32.xlu0 %v3075, 56
  %v3077 = vpop.permute.xlu0 %3076
  %vm3078 = vcmask 31744
  %s3079 = scalar_lea.vmem %s1, 1042
  %3080 = vst.msk [vmem:[%s3079] sm:$0x1] %vm3078, %v3077
  %s3081 = scalar_lea.vmem %s1, 1105
  %3082 = vst.msk [vmem:[%s3081] sm:$0x2] %vm3078, %v3077
  %s3083 = scalar_lea.vmem %s1, 1168
  %3084 = vst.msk [vmem:[%s3083] sm:$0x4] %vm3078, %v3077
  %s3085 = scalar_lea.vmem %s1, 1231
  %3086 = vst.msk [vmem:[%s3085] sm:$0x8] %vm3078, %v3077
  %s3087 = scalar_lea.vmem %s1, 1294
  %3088 = vst.msk [vmem:[%s3087] sm:$0x10] %vm3078, %v3077
  %s3089 = scalar_lea.vmem %s1, 1357
  %3090 = vst.msk [vmem:[%s3089] sm:$0x20] %vm3078, %v3077
  %s3091 = scalar_lea.vmem %s1, 1420
  %3092 = vst.msk [vmem:[%s3091] sm:$0x40] %vm3078, %v3077
  %s3093 = scalar_lea.vmem %s1, 1483
  %3094 = vst.msk [vmem:[%s3093] sm:$0x80] %vm3078, %v3077
  %s3095 = scalar_lea.vmem %s0, 40
  %v3096 = vld [vmem:[%s3095] sm:$0xff]
  %3097 = vrot.lane.b32.xlu0 %v3096, 56
  %v3098 = vpop.permute.xlu0 %3097
  %vm3099 = vcmask 31744
  %s3100 = scalar_lea.vmem %s1, 1074
  %3101 = vst.msk [vmem:[%s3100] sm:$0x1] %vm3099, %v3098
  %s3102 = scalar_lea.vmem %s1, 1137
  %3103 = vst.msk [vmem:[%s3102] sm:$0x2] %vm3099, %v3098
  %s3104 = scalar_lea.vmem %s1, 1200
  %3105 = vst.msk [vmem:[%s3104] sm:$0x4] %vm3099, %v3098
  %s3106 = scalar_lea.vmem %s1, 1263
  %3107 = vst.msk [vmem:[%s3106] sm:$0x8] %vm3099, %v3098
  %s3108 = scalar_lea.vmem %s1, 1326
  %3109 = vst.msk [vmem:[%s3108] sm:$0x10] %vm3099, %v3098
  %s3110 = scalar_lea.vmem %s1, 1389
  %3111 = vst.msk [vmem:[%s3110] sm:$0x20] %vm3099, %v3098
  %s3112 = scalar_lea.vmem %s1, 1452
  %3113 = vst.msk [vmem:[%s3112] sm:$0x40] %vm3099, %v3098
  %s3114 = scalar_lea.vmem %s1, 1515
  %3115 = vst.msk [vmem:[%s3114] sm:$0x80] %vm3099, %v3098
  %s3116 = scalar_lea.vmem %s0, 48
  %v3117 = vld [vmem:[%s3116] sm:$0xff]
  %3118 = vrot.lane.b32.xlu0 %v3117, 56
  %v3119 = vpop.permute.xlu0 %3118
  %vm3120 = vcmask 31744
  %s3121 = scalar_lea.vmem %s1, 1554
  %3122 = vst.msk [vmem:[%s3121] sm:$0x1] %vm3120, %v3119
  %s3123 = scalar_lea.vmem %s1, 1617
  %3124 = vst.msk [vmem:[%s3123] sm:$0x2] %vm3120, %v3119
  %s3125 = scalar_lea.vmem %s1, 1680
  %3126 = vst.msk [vmem:[%s3125] sm:$0x4] %vm3120, %v3119
  %s3127 = scalar_lea.vmem %s1, 1743
  %3128 = vst.msk [vmem:[%s3127] sm:$0x8] %vm3120, %v3119
  %s3129 = scalar_lea.vmem %s1, 1806
  %3130 = vst.msk [vmem:[%s3129] sm:$0x10] %vm3120, %v3119
  %s3131 = scalar_lea.vmem %s1, 1869
  %3132 = vst.msk [vmem:[%s3131] sm:$0x20] %vm3120, %v3119
  %s3133 = scalar_lea.vmem %s1, 1932
  %3134 = vst.msk [vmem:[%s3133] sm:$0x40] %vm3120, %v3119
  %s3135 = scalar_lea.vmem %s1, 1995
  %3136 = vst.msk [vmem:[%s3135] sm:$0x80] %vm3120, %v3119
  %s3137 = scalar_lea.vmem %s0, 56
  %v3138 = vld [vmem:[%s3137] sm:$0xff]
  %3139 = vrot.lane.b32.xlu0 %v3138, 56
  %v3140 = vpop.permute.xlu0 %3139
  %vm3141 = vcmask 31744
  %s3142 = scalar_lea.vmem %s1, 1586
  %3143 = vst.msk [vmem:[%s3142] sm:$0x1] %vm3141, %v3140
  %s3144 = scalar_lea.vmem %s1, 1649
  %3145 = vst.msk [vmem:[%s3144] sm:$0x2] %vm3141, %v3140
  %s3146 = scalar_lea.vmem %s1, 1712
  %3147 = vst.msk [vmem:[%s3146] sm:$0x4] %vm3141, %v3140
  %s3148 = scalar_lea.vmem %s1, 1775
  %3149 = vst.msk [vmem:[%s3148] sm:$0x8] %vm3141, %v3140
  %s3150 = scalar_lea.vmem %s1, 1838
  %3151 = vst.msk [vmem:[%s3150] sm:$0x10] %vm3141, %v3140
  %s3152 = scalar_lea.vmem %s1, 1901
  %3153 = vst.msk [vmem:[%s3152] sm:$0x20] %vm3141, %v3140
  %s3154 = scalar_lea.vmem %s1, 1964
  %3155 = vst.msk [vmem:[%s3154] sm:$0x40] %vm3141, %v3140
  %s3156 = scalar_lea.vmem %s1, 2027
  %3157 = vst.msk [vmem:[%s3156] sm:$0x80] %vm3141, %v3140
  %v3158 = vld [vmem:[%s0] sm:$0xff]
  %3159 = vrot.lane.b32.xlu0 %v3158, 52
  %v3160 = vpop.permute.xlu0 %3159
  %vm3161 = vcmask 31744
  %s3162 = scalar_lea.vmem %s1, 19
  %3163 = vst.msk [vmem:[%s3162] sm:$0x1] %vm3161, %v3160
  %s3164 = scalar_lea.vmem %s1, 82
  %3165 = vst.msk [vmem:[%s3164] sm:$0x2] %vm3161, %v3160
  %s3166 = scalar_lea.vmem %s1, 145
  %3167 = vst.msk [vmem:[%s3166] sm:$0x4] %vm3161, %v3160
  %s3168 = scalar_lea.vmem %s1, 208
  %3169 = vst.msk [vmem:[%s3168] sm:$0x8] %vm3161, %v3160
  %s3170 = scalar_lea.vmem %s1, 271
  %3171 = vst.msk [vmem:[%s3170] sm:$0x10] %vm3161, %v3160
  %s3172 = scalar_lea.vmem %s1, 334
  %3173 = vst.msk [vmem:[%s3172] sm:$0x20] %vm3161, %v3160
  %s3174 = scalar_lea.vmem %s1, 397
  %3175 = vst.msk [vmem:[%s3174] sm:$0x40] %vm3161, %v3160
  %s3176 = scalar_lea.vmem %s1, 460
  %3177 = vst.msk [vmem:[%s3176] sm:$0x80] %vm3161, %v3160
  %s3178 = scalar_lea.vmem %s0, 8
  %v3179 = vld [vmem:[%s3178] sm:$0xff]
  %3180 = vrot.lane.b32.xlu0 %v3179, 52
  %v3181 = vpop.permute.xlu0 %3180
  %vm3182 = vcmask 31744
  %s3183 = scalar_lea.vmem %s1, 51
  %3184 = vst.msk [vmem:[%s3183] sm:$0x1] %vm3182, %v3181
  %s3185 = scalar_lea.vmem %s1, 114
  %3186 = vst.msk [vmem:[%s3185] sm:$0x2] %vm3182, %v3181
  %s3187 = scalar_lea.vmem %s1, 177
  %3188 = vst.msk [vmem:[%s3187] sm:$0x4] %vm3182, %v3181
  %s3189 = scalar_lea.vmem %s1, 240
  %3190 = vst.msk [vmem:[%s3189] sm:$0x8] %vm3182, %v3181
  %s3191 = scalar_lea.vmem %s1, 303
  %3192 = vst.msk [vmem:[%s3191] sm:$0x10] %vm3182, %v3181
  %s3193 = scalar_lea.vmem %s1, 366
  %3194 = vst.msk [vmem:[%s3193] sm:$0x20] %vm3182, %v3181
  %s3195 = scalar_lea.vmem %s1, 429
  %3196 = vst.msk [vmem:[%s3195] sm:$0x40] %vm3182, %v3181
  %s3197 = scalar_lea.vmem %s1, 492
  %3198 = vst.msk [vmem:[%s3197] sm:$0x80] %vm3182, %v3181
  %s3199 = scalar_lea.vmem %s0, 16
  %v3200 = vld [vmem:[%s3199] sm:$0xff]
  %3201 = vrot.lane.b32.xlu0 %v3200, 52
  %v3202 = vpop.permute.xlu0 %3201
  %vm3203 = vcmask 31744
  %s3204 = scalar_lea.vmem %s1, 531
  %3205 = vst.msk [vmem:[%s3204] sm:$0x1] %vm3203, %v3202
  %s3206 = scalar_lea.vmem %s1, 594
  %3207 = vst.msk [vmem:[%s3206] sm:$0x2] %vm3203, %v3202
  %s3208 = scalar_lea.vmem %s1, 657
  %3209 = vst.msk [vmem:[%s3208] sm:$0x4] %vm3203, %v3202
  %s3210 = scalar_lea.vmem %s1, 720
  %3211 = vst.msk [vmem:[%s3210] sm:$0x8] %vm3203, %v3202
  %s3212 = scalar_lea.vmem %s1, 783
  %3213 = vst.msk [vmem:[%s3212] sm:$0x10] %vm3203, %v3202
  %s3214 = scalar_lea.vmem %s1, 846
  %3215 = vst.msk [vmem:[%s3214] sm:$0x20] %vm3203, %v3202
  %s3216 = scalar_lea.vmem %s1, 909
  %3217 = vst.msk [vmem:[%s3216] sm:$0x40] %vm3203, %v3202
  %s3218 = scalar_lea.vmem %s1, 972
  %3219 = vst.msk [vmem:[%s3218] sm:$0x80] %vm3203, %v3202
  %s3220 = scalar_lea.vmem %s0, 24
  %v3221 = vld [vmem:[%s3220] sm:$0xff]
  %3222 = vrot.lane.b32.xlu0 %v3221, 52
  %v3223 = vpop.permute.xlu0 %3222
  %vm3224 = vcmask 31744
  %s3225 = scalar_lea.vmem %s1, 563
  %3226 = vst.msk [vmem:[%s3225] sm:$0x1] %vm3224, %v3223
  %s3227 = scalar_lea.vmem %s1, 626
  %3228 = vst.msk [vmem:[%s3227] sm:$0x2] %vm3224, %v3223
  %s3229 = scalar_lea.vmem %s1, 689
  %3230 = vst.msk [vmem:[%s3229] sm:$0x4] %vm3224, %v3223
  %s3231 = scalar_lea.vmem %s1, 752
  %3232 = vst.msk [vmem:[%s3231] sm:$0x8] %vm3224, %v3223
  %s3233 = scalar_lea.vmem %s1, 815
  %3234 = vst.msk [vmem:[%s3233] sm:$0x10] %vm3224, %v3223
  %s3235 = scalar_lea.vmem %s1, 878
  %3236 = vst.msk [vmem:[%s3235] sm:$0x20] %vm3224, %v3223
  %s3237 = scalar_lea.vmem %s1, 941
  %3238 = vst.msk [vmem:[%s3237] sm:$0x40] %vm3224, %v3223
  %s3239 = scalar_lea.vmem %s1, 1004
  %3240 = vst.msk [vmem:[%s3239] sm:$0x80] %vm3224, %v3223
  %s3241 = scalar_lea.vmem %s0, 32
  %v3242 = vld [vmem:[%s3241] sm:$0xff]
  %3243 = vrot.lane.b32.xlu0 %v3242, 52
  %v3244 = vpop.permute.xlu0 %3243
  %vm3245 = vcmask 31744
  %s3246 = scalar_lea.vmem %s1, 1043
  %3247 = vst.msk [vmem:[%s3246] sm:$0x1] %vm3245, %v3244
  %s3248 = scalar_lea.vmem %s1, 1106
  %3249 = vst.msk [vmem:[%s3248] sm:$0x2] %vm3245, %v3244
  %s3250 = scalar_lea.vmem %s1, 1169
  %3251 = vst.msk [vmem:[%s3250] sm:$0x4] %vm3245, %v3244
  %s3252 = scalar_lea.vmem %s1, 1232
  %3253 = vst.msk [vmem:[%s3252] sm:$0x8] %vm3245, %v3244
  %s3254 = scalar_lea.vmem %s1, 1295
  %3255 = vst.msk [vmem:[%s3254] sm:$0x10] %vm3245, %v3244
  %s3256 = scalar_lea.vmem %s1, 1358
  %3257 = vst.msk [vmem:[%s3256] sm:$0x20] %vm3245, %v3244
  %s3258 = scalar_lea.vmem %s1, 1421
  %3259 = vst.msk [vmem:[%s3258] sm:$0x40] %vm3245, %v3244
  %s3260 = scalar_lea.vmem %s1, 1484
  %3261 = vst.msk [vmem:[%s3260] sm:$0x80] %vm3245, %v3244
  %s3262 = scalar_lea.vmem %s0, 40
  %v3263 = vld [vmem:[%s3262] sm:$0xff]
  %3264 = vrot.lane.b32.xlu0 %v3263, 52
  %v3265 = vpop.permute.xlu0 %3264
  %vm3266 = vcmask 31744
  %s3267 = scalar_lea.vmem %s1, 1075
  %3268 = vst.msk [vmem:[%s3267] sm:$0x1] %vm3266, %v3265
  %s3269 = scalar_lea.vmem %s1, 1138
  %3270 = vst.msk [vmem:[%s3269] sm:$0x2] %vm3266, %v3265
  %s3271 = scalar_lea.vmem %s1, 1201
  %3272 = vst.msk [vmem:[%s3271] sm:$0x4] %vm3266, %v3265
  %s3273 = scalar_lea.vmem %s1, 1264
  %3274 = vst.msk [vmem:[%s3273] sm:$0x8] %vm3266, %v3265
  %s3275 = scalar_lea.vmem %s1, 1327
  %3276 = vst.msk [vmem:[%s3275] sm:$0x10] %vm3266, %v3265
  %s3277 = scalar_lea.vmem %s1, 1390
  %3278 = vst.msk [vmem:[%s3277] sm:$0x20] %vm3266, %v3265
  %s3279 = scalar_lea.vmem %s1, 1453
  %3280 = vst.msk [vmem:[%s3279] sm:$0x40] %vm3266, %v3265
  %s3281 = scalar_lea.vmem %s1, 1516
  %3282 = vst.msk [vmem:[%s3281] sm:$0x80] %vm3266, %v3265
  %s3283 = scalar_lea.vmem %s0, 48
  %v3284 = vld [vmem:[%s3283] sm:$0xff]
  %3285 = vrot.lane.b32.xlu0 %v3284, 52
  %v3286 = vpop.permute.xlu0 %3285
  %vm3287 = vcmask 31744
  %s3288 = scalar_lea.vmem %s1, 1555
  %3289 = vst.msk [vmem:[%s3288] sm:$0x1] %vm3287, %v3286
  %s3290 = scalar_lea.vmem %s1, 1618
  %3291 = vst.msk [vmem:[%s3290] sm:$0x2] %vm3287, %v3286
  %s3292 = scalar_lea.vmem %s1, 1681
  %3293 = vst.msk [vmem:[%s3292] sm:$0x4] %vm3287, %v3286
  %s3294 = scalar_lea.vmem %s1, 1744
  %3295 = vst.msk [vmem:[%s3294] sm:$0x8] %vm3287, %v3286
  %s3296 = scalar_lea.vmem %s1, 1807
  %3297 = vst.msk [vmem:[%s3296] sm:$0x10] %vm3287, %v3286
  %s3298 = scalar_lea.vmem %s1, 1870
  %3299 = vst.msk [vmem:[%s3298] sm:$0x20] %vm3287, %v3286
  %s3300 = scalar_lea.vmem %s1, 1933
  %3301 = vst.msk [vmem:[%s3300] sm:$0x40] %vm3287, %v3286
  %s3302 = scalar_lea.vmem %s1, 1996
  %3303 = vst.msk [vmem:[%s3302] sm:$0x80] %vm3287, %v3286
  %s3304 = scalar_lea.vmem %s0, 56
  %v3305 = vld [vmem:[%s3304] sm:$0xff]
  %3306 = vrot.lane.b32.xlu0 %v3305, 52
  %v3307 = vpop.permute.xlu0 %3306
  %vm3308 = vcmask 31744
  %s3309 = scalar_lea.vmem %s1, 1587
  %3310 = vst.msk [vmem:[%s3309] sm:$0x1] %vm3308, %v3307
  %s3311 = scalar_lea.vmem %s1, 1650
  %3312 = vst.msk [vmem:[%s3311] sm:$0x2] %vm3308, %v3307
  %s3313 = scalar_lea.vmem %s1, 1713
  %3314 = vst.msk [vmem:[%s3313] sm:$0x4] %vm3308, %v3307
  %s3315 = scalar_lea.vmem %s1, 1776
  %3316 = vst.msk [vmem:[%s3315] sm:$0x8] %vm3308, %v3307
  %s3317 = scalar_lea.vmem %s1, 1839
  %3318 = vst.msk [vmem:[%s3317] sm:$0x10] %vm3308, %v3307
  %s3319 = scalar_lea.vmem %s1, 1902
  %3320 = vst.msk [vmem:[%s3319] sm:$0x20] %vm3308, %v3307
  %s3321 = scalar_lea.vmem %s1, 1965
  %3322 = vst.msk [vmem:[%s3321] sm:$0x40] %vm3308, %v3307
  %s3323 = scalar_lea.vmem %s1, 2028
  %3324 = vst.msk [vmem:[%s3323] sm:$0x80] %vm3308, %v3307
  %v3325 = vld [vmem:[%s0] sm:$0xff]
  %3326 = vrot.lane.b32.xlu0 %v3325, 48
  %v3327 = vpop.permute.xlu0 %3326
  %vm3328 = vcmask 31744
  %s3329 = scalar_lea.vmem %s1, 20
  %3330 = vst.msk [vmem:[%s3329] sm:$0x1] %vm3328, %v3327
  %s3331 = scalar_lea.vmem %s1, 83
  %3332 = vst.msk [vmem:[%s3331] sm:$0x2] %vm3328, %v3327
  %s3333 = scalar_lea.vmem %s1, 146
  %3334 = vst.msk [vmem:[%s3333] sm:$0x4] %vm3328, %v3327
  %s3335 = scalar_lea.vmem %s1, 209
  %3336 = vst.msk [vmem:[%s3335] sm:$0x8] %vm3328, %v3327
  %s3337 = scalar_lea.vmem %s1, 272
  %3338 = vst.msk [vmem:[%s3337] sm:$0x10] %vm3328, %v3327
  %s3339 = scalar_lea.vmem %s1, 335
  %3340 = vst.msk [vmem:[%s3339] sm:$0x20] %vm3328, %v3327
  %s3341 = scalar_lea.vmem %s1, 398
  %3342 = vst.msk [vmem:[%s3341] sm:$0x40] %vm3328, %v3327
  %s3343 = scalar_lea.vmem %s1, 461
  %3344 = vst.msk [vmem:[%s3343] sm:$0x80] %vm3328, %v3327
  %s3345 = scalar_lea.vmem %s0, 8
  %v3346 = vld [vmem:[%s3345] sm:$0xff]
  %3347 = vrot.lane.b32.xlu0 %v3346, 48
  %v3348 = vpop.permute.xlu0 %3347
  %vm3349 = vcmask 31744
  %s3350 = scalar_lea.vmem %s1, 52
  %3351 = vst.msk [vmem:[%s3350] sm:$0x1] %vm3349, %v3348
  %s3352 = scalar_lea.vmem %s1, 115
  %3353 = vst.msk [vmem:[%s3352] sm:$0x2] %vm3349, %v3348
  %s3354 = scalar_lea.vmem %s1, 178
  %3355 = vst.msk [vmem:[%s3354] sm:$0x4] %vm3349, %v3348
  %s3356 = scalar_lea.vmem %s1, 241
  %3357 = vst.msk [vmem:[%s3356] sm:$0x8] %vm3349, %v3348
  %s3358 = scalar_lea.vmem %s1, 304
  %3359 = vst.msk [vmem:[%s3358] sm:$0x10] %vm3349, %v3348
  %s3360 = scalar_lea.vmem %s1, 367
  %3361 = vst.msk [vmem:[%s3360] sm:$0x20] %vm3349, %v3348
  %s3362 = scalar_lea.vmem %s1, 430
  %3363 = vst.msk [vmem:[%s3362] sm:$0x40] %vm3349, %v3348
  %s3364 = scalar_lea.vmem %s1, 493
  %3365 = vst.msk [vmem:[%s3364] sm:$0x80] %vm3349, %v3348
  %s3366 = scalar_lea.vmem %s0, 16
  %v3367 = vld [vmem:[%s3366] sm:$0xff]
  %3368 = vrot.lane.b32.xlu0 %v3367, 48
  %v3369 = vpop.permute.xlu0 %3368
  %vm3370 = vcmask 31744
  %s3371 = scalar_lea.vmem %s1, 532
  %3372 = vst.msk [vmem:[%s3371] sm:$0x1] %vm3370, %v3369
  %s3373 = scalar_lea.vmem %s1, 595
  %3374 = vst.msk [vmem:[%s3373] sm:$0x2] %vm3370, %v3369
  %s3375 = scalar_lea.vmem %s1, 658
  %3376 = vst.msk [vmem:[%s3375] sm:$0x4] %vm3370, %v3369
  %s3377 = scalar_lea.vmem %s1, 721
  %3378 = vst.msk [vmem:[%s3377] sm:$0x8] %vm3370, %v3369
  %s3379 = scalar_lea.vmem %s1, 784
  %3380 = vst.msk [vmem:[%s3379] sm:$0x10] %vm3370, %v3369
  %s3381 = scalar_lea.vmem %s1, 847
  %3382 = vst.msk [vmem:[%s3381] sm:$0x20] %vm3370, %v3369
  %s3383 = scalar_lea.vmem %s1, 910
  %3384 = vst.msk [vmem:[%s3383] sm:$0x40] %vm3370, %v3369
  %s3385 = scalar_lea.vmem %s1, 973
  %3386 = vst.msk [vmem:[%s3385] sm:$0x80] %vm3370, %v3369
  %s3387 = scalar_lea.vmem %s0, 24
  %v3388 = vld [vmem:[%s3387] sm:$0xff]
  %3389 = vrot.lane.b32.xlu0 %v3388, 48
  %v3390 = vpop.permute.xlu0 %3389
  %vm3391 = vcmask 31744
  %s3392 = scalar_lea.vmem %s1, 564
  %3393 = vst.msk [vmem:[%s3392] sm:$0x1] %vm3391, %v3390
  %s3394 = scalar_lea.vmem %s1, 627
  %3395 = vst.msk [vmem:[%s3394] sm:$0x2] %vm3391, %v3390
  %s3396 = scalar_lea.vmem %s1, 690
  %3397 = vst.msk [vmem:[%s3396] sm:$0x4] %vm3391, %v3390
  %s3398 = scalar_lea.vmem %s1, 753
  %3399 = vst.msk [vmem:[%s3398] sm:$0x8] %vm3391, %v3390
  %s3400 = scalar_lea.vmem %s1, 816
  %3401 = vst.msk [vmem:[%s3400] sm:$0x10] %vm3391, %v3390
  %s3402 = scalar_lea.vmem %s1, 879
  %3403 = vst.msk [vmem:[%s3402] sm:$0x20] %vm3391, %v3390
  %s3404 = scalar_lea.vmem %s1, 942
  %3405 = vst.msk [vmem:[%s3404] sm:$0x40] %vm3391, %v3390
  %s3406 = scalar_lea.vmem %s1, 1005
  %3407 = vst.msk [vmem:[%s3406] sm:$0x80] %vm3391, %v3390
  %s3408 = scalar_lea.vmem %s0, 32
  %v3409 = vld [vmem:[%s3408] sm:$0xff]
  %3410 = vrot.lane.b32.xlu0 %v3409, 48
  %v3411 = vpop.permute.xlu0 %3410
  %vm3412 = vcmask 31744
  %s3413 = scalar_lea.vmem %s1, 1044
  %3414 = vst.msk [vmem:[%s3413] sm:$0x1] %vm3412, %v3411
  %s3415 = scalar_lea.vmem %s1, 1107
  %3416 = vst.msk [vmem:[%s3415] sm:$0x2] %vm3412, %v3411
  %s3417 = scalar_lea.vmem %s1, 1170
  %3418 = vst.msk [vmem:[%s3417] sm:$0x4] %vm3412, %v3411
  %s3419 = scalar_lea.vmem %s1, 1233
  %3420 = vst.msk [vmem:[%s3419] sm:$0x8] %vm3412, %v3411
  %s3421 = scalar_lea.vmem %s1, 1296
  %3422 = vst.msk [vmem:[%s3421] sm:$0x10] %vm3412, %v3411
  %s3423 = scalar_lea.vmem %s1, 1359
  %3424 = vst.msk [vmem:[%s3423] sm:$0x20] %vm3412, %v3411
  %s3425 = scalar_lea.vmem %s1, 1422
  %3426 = vst.msk [vmem:[%s3425] sm:$0x40] %vm3412, %v3411
  %s3427 = scalar_lea.vmem %s1, 1485
  %3428 = vst.msk [vmem:[%s3427] sm:$0x80] %vm3412, %v3411
  %s3429 = scalar_lea.vmem %s0, 40
  %v3430 = vld [vmem:[%s3429] sm:$0xff]
  %3431 = vrot.lane.b32.xlu0 %v3430, 48
  %v3432 = vpop.permute.xlu0 %3431
  %vm3433 = vcmask 31744
  %s3434 = scalar_lea.vmem %s1, 1076
  %3435 = vst.msk [vmem:[%s3434] sm:$0x1] %vm3433, %v3432
  %s3436 = scalar_lea.vmem %s1, 1139
  %3437 = vst.msk [vmem:[%s3436] sm:$0x2] %vm3433, %v3432
  %s3438 = scalar_lea.vmem %s1, 1202
  %3439 = vst.msk [vmem:[%s3438] sm:$0x4] %vm3433, %v3432
  %s3440 = scalar_lea.vmem %s1, 1265
  %3441 = vst.msk [vmem:[%s3440] sm:$0x8] %vm3433, %v3432
  %s3442 = scalar_lea.vmem %s1, 1328
  %3443 = vst.msk [vmem:[%s3442] sm:$0x10] %vm3433, %v3432
  %s3444 = scalar_lea.vmem %s1, 1391
  %3445 = vst.msk [vmem:[%s3444] sm:$0x20] %vm3433, %v3432
  %s3446 = scalar_lea.vmem %s1, 1454
  %3447 = vst.msk [vmem:[%s3446] sm:$0x40] %vm3433, %v3432
  %s3448 = scalar_lea.vmem %s1, 1517
  %3449 = vst.msk [vmem:[%s3448] sm:$0x80] %vm3433, %v3432
  %s3450 = scalar_lea.vmem %s0, 48
  %v3451 = vld [vmem:[%s3450] sm:$0xff]
  %3452 = vrot.lane.b32.xlu0 %v3451, 48
  %v3453 = vpop.permute.xlu0 %3452
  %vm3454 = vcmask 31744
  %s3455 = scalar_lea.vmem %s1, 1556
  %3456 = vst.msk [vmem:[%s3455] sm:$0x1] %vm3454, %v3453
  %s3457 = scalar_lea.vmem %s1, 1619
  %3458 = vst.msk [vmem:[%s3457] sm:$0x2] %vm3454, %v3453
  %s3459 = scalar_lea.vmem %s1, 1682
  %3460 = vst.msk [vmem:[%s3459] sm:$0x4] %vm3454, %v3453
  %s3461 = scalar_lea.vmem %s1, 1745
  %3462 = vst.msk [vmem:[%s3461] sm:$0x8] %vm3454, %v3453
  %s3463 = scalar_lea.vmem %s1, 1808
  %3464 = vst.msk [vmem:[%s3463] sm:$0x10] %vm3454, %v3453
  %s3465 = scalar_lea.vmem %s1, 1871
  %3466 = vst.msk [vmem:[%s3465] sm:$0x20] %vm3454, %v3453
  %s3467 = scalar_lea.vmem %s1, 1934
  %3468 = vst.msk [vmem:[%s3467] sm:$0x40] %vm3454, %v3453
  %s3469 = scalar_lea.vmem %s1, 1997
  %3470 = vst.msk [vmem:[%s3469] sm:$0x80] %vm3454, %v3453
  %s3471 = scalar_lea.vmem %s0, 56
  %v3472 = vld [vmem:[%s3471] sm:$0xff]
  %3473 = vrot.lane.b32.xlu0 %v3472, 48
  %v3474 = vpop.permute.xlu0 %3473
  %vm3475 = vcmask 31744
  %s3476 = scalar_lea.vmem %s1, 1588
  %3477 = vst.msk [vmem:[%s3476] sm:$0x1] %vm3475, %v3474
  %s3478 = scalar_lea.vmem %s1, 1651
  %3479 = vst.msk [vmem:[%s3478] sm:$0x2] %vm3475, %v3474
  %s3480 = scalar_lea.vmem %s1, 1714
  %3481 = vst.msk [vmem:[%s3480] sm:$0x4] %vm3475, %v3474
  %s3482 = scalar_lea.vmem %s1, 1777
  %3483 = vst.msk [vmem:[%s3482] sm:$0x8] %vm3475, %v3474
  %s3484 = scalar_lea.vmem %s1, 1840
  %3485 = vst.msk [vmem:[%s3484] sm:$0x10] %vm3475, %v3474
  %s3486 = scalar_lea.vmem %s1, 1903
  %3487 = vst.msk [vmem:[%s3486] sm:$0x20] %vm3475, %v3474
  %s3488 = scalar_lea.vmem %s1, 1966
  %3489 = vst.msk [vmem:[%s3488] sm:$0x40] %vm3475, %v3474
  %s3490 = scalar_lea.vmem %s1, 2029
  %3491 = vst.msk [vmem:[%s3490] sm:$0x80] %vm3475, %v3474
  %v3492 = vld [vmem:[%s0] sm:$0xff]
  %3493 = vrot.lane.b32.xlu0 %v3492, 44
  %v3494 = vpop.permute.xlu0 %3493
  %vm3495 = vcmask 31744
  %s3496 = scalar_lea.vmem %s1, 21
  %3497 = vst.msk [vmem:[%s3496] sm:$0x1] %vm3495, %v3494
  %s3498 = scalar_lea.vmem %s1, 84
  %3499 = vst.msk [vmem:[%s3498] sm:$0x2] %vm3495, %v3494
  %s3500 = scalar_lea.vmem %s1, 147
  %3501 = vst.msk [vmem:[%s3500] sm:$0x4] %vm3495, %v3494
  %s3502 = scalar_lea.vmem %s1, 210
  %3503 = vst.msk [vmem:[%s3502] sm:$0x8] %vm3495, %v3494
  %s3504 = scalar_lea.vmem %s1, 273
  %3505 = vst.msk [vmem:[%s3504] sm:$0x10] %vm3495, %v3494
  %s3506 = scalar_lea.vmem %s1, 336
  %3507 = vst.msk [vmem:[%s3506] sm:$0x20] %vm3495, %v3494
  %s3508 = scalar_lea.vmem %s1, 399
  %3509 = vst.msk [vmem:[%s3508] sm:$0x40] %vm3495, %v3494
  %s3510 = scalar_lea.vmem %s1, 462
  %3511 = vst.msk [vmem:[%s3510] sm:$0x80] %vm3495, %v3494
  %s3512 = scalar_lea.vmem %s0, 8
  %v3513 = vld [vmem:[%s3512] sm:$0xff]
  %3514 = vrot.lane.b32.xlu0 %v3513, 44
  %v3515 = vpop.permute.xlu0 %3514
  %vm3516 = vcmask 31744
  %s3517 = scalar_lea.vmem %s1, 53
  %3518 = vst.msk [vmem:[%s3517] sm:$0x1] %vm3516, %v3515
  %s3519 = scalar_lea.vmem %s1, 116
  %3520 = vst.msk [vmem:[%s3519] sm:$0x2] %vm3516, %v3515
  %s3521 = scalar_lea.vmem %s1, 179
  %3522 = vst.msk [vmem:[%s3521] sm:$0x4] %vm3516, %v3515
  %s3523 = scalar_lea.vmem %s1, 242
  %3524 = vst.msk [vmem:[%s3523] sm:$0x8] %vm3516, %v3515
  %s3525 = scalar_lea.vmem %s1, 305
  %3526 = vst.msk [vmem:[%s3525] sm:$0x10] %vm3516, %v3515
  %s3527 = scalar_lea.vmem %s1, 368
  %3528 = vst.msk [vmem:[%s3527] sm:$0x20] %vm3516, %v3515
  %s3529 = scalar_lea.vmem %s1, 431
  %3530 = vst.msk [vmem:[%s3529] sm:$0x40] %vm3516, %v3515
  %s3531 = scalar_lea.vmem %s1, 494
  %3532 = vst.msk [vmem:[%s3531] sm:$0x80] %vm3516, %v3515
  %s3533 = scalar_lea.vmem %s0, 16
  %v3534 = vld [vmem:[%s3533] sm:$0xff]
  %3535 = vrot.lane.b32.xlu0 %v3534, 44
  %v3536 = vpop.permute.xlu0 %3535
  %vm3537 = vcmask 31744
  %s3538 = scalar_lea.vmem %s1, 533
  %3539 = vst.msk [vmem:[%s3538] sm:$0x1] %vm3537, %v3536
  %s3540 = scalar_lea.vmem %s1, 596
  %3541 = vst.msk [vmem:[%s3540] sm:$0x2] %vm3537, %v3536
  %s3542 = scalar_lea.vmem %s1, 659
  %3543 = vst.msk [vmem:[%s3542] sm:$0x4] %vm3537, %v3536
  %s3544 = scalar_lea.vmem %s1, 722
  %3545 = vst.msk [vmem:[%s3544] sm:$0x8] %vm3537, %v3536
  %s3546 = scalar_lea.vmem %s1, 785
  %3547 = vst.msk [vmem:[%s3546] sm:$0x10] %vm3537, %v3536
  %s3548 = scalar_lea.vmem %s1, 848
  %3549 = vst.msk [vmem:[%s3548] sm:$0x20] %vm3537, %v3536
  %s3550 = scalar_lea.vmem %s1, 911
  %3551 = vst.msk [vmem:[%s3550] sm:$0x40] %vm3537, %v3536
  %s3552 = scalar_lea.vmem %s1, 974
  %3553 = vst.msk [vmem:[%s3552] sm:$0x80] %vm3537, %v3536
  %s3554 = scalar_lea.vmem %s0, 24
  %v3555 = vld [vmem:[%s3554] sm:$0xff]
  %3556 = vrot.lane.b32.xlu0 %v3555, 44
  %v3557 = vpop.permute.xlu0 %3556
  %vm3558 = vcmask 31744
  %s3559 = scalar_lea.vmem %s1, 565
  %3560 = vst.msk [vmem:[%s3559] sm:$0x1] %vm3558, %v3557
  %s3561 = scalar_lea.vmem %s1, 628
  %3562 = vst.msk [vmem:[%s3561] sm:$0x2] %vm3558, %v3557
  %s3563 = scalar_lea.vmem %s1, 691
  %3564 = vst.msk [vmem:[%s3563] sm:$0x4] %vm3558, %v3557
  %s3565 = scalar_lea.vmem %s1, 754
  %3566 = vst.msk [vmem:[%s3565] sm:$0x8] %vm3558, %v3557
  %s3567 = scalar_lea.vmem %s1, 817
  %3568 = vst.msk [vmem:[%s3567] sm:$0x10] %vm3558, %v3557
  %s3569 = scalar_lea.vmem %s1, 880
  %3570 = vst.msk [vmem:[%s3569] sm:$0x20] %vm3558, %v3557
  %s3571 = scalar_lea.vmem %s1, 943
  %3572 = vst.msk [vmem:[%s3571] sm:$0x40] %vm3558, %v3557
  %s3573 = scalar_lea.vmem %s1, 1006
  %3574 = vst.msk [vmem:[%s3573] sm:$0x80] %vm3558, %v3557
  %s3575 = scalar_lea.vmem %s0, 32
  %v3576 = vld [vmem:[%s3575] sm:$0xff]
  %3577 = vrot.lane.b32.xlu0 %v3576, 44
  %v3578 = vpop.permute.xlu0 %3577
  %vm3579 = vcmask 31744
  %s3580 = scalar_lea.vmem %s1, 1045
  %3581 = vst.msk [vmem:[%s3580] sm:$0x1] %vm3579, %v3578
  %s3582 = scalar_lea.vmem %s1, 1108
  %3583 = vst.msk [vmem:[%s3582] sm:$0x2] %vm3579, %v3578
  %s3584 = scalar_lea.vmem %s1, 1171
  %3585 = vst.msk [vmem:[%s3584] sm:$0x4] %vm3579, %v3578
  %s3586 = scalar_lea.vmem %s1, 1234
  %3587 = vst.msk [vmem:[%s3586] sm:$0x8] %vm3579, %v3578
  %s3588 = scalar_lea.vmem %s1, 1297
  %3589 = vst.msk [vmem:[%s3588] sm:$0x10] %vm3579, %v3578
  %s3590 = scalar_lea.vmem %s1, 1360
  %3591 = vst.msk [vmem:[%s3590] sm:$0x20] %vm3579, %v3578
  %s3592 = scalar_lea.vmem %s1, 1423
  %3593 = vst.msk [vmem:[%s3592] sm:$0x40] %vm3579, %v3578
  %s3594 = scalar_lea.vmem %s1, 1486
  %3595 = vst.msk [vmem:[%s3594] sm:$0x80] %vm3579, %v3578
  %s3596 = scalar_lea.vmem %s0, 40
  %v3597 = vld [vmem:[%s3596] sm:$0xff]
  %3598 = vrot.lane.b32.xlu0 %v3597, 44
  %v3599 = vpop.permute.xlu0 %3598
  %vm3600 = vcmask 31744
  %s3601 = scalar_lea.vmem %s1, 1077
  %3602 = vst.msk [vmem:[%s3601] sm:$0x1] %vm3600, %v3599
  %s3603 = scalar_lea.vmem %s1, 1140
  %3604 = vst.msk [vmem:[%s3603] sm:$0x2] %vm3600, %v3599
  %s3605 = scalar_lea.vmem %s1, 1203
  %3606 = vst.msk [vmem:[%s3605] sm:$0x4] %vm3600, %v3599
  %s3607 = scalar_lea.vmem %s1, 1266
  %3608 = vst.msk [vmem:[%s3607] sm:$0x8] %vm3600, %v3599
  %s3609 = scalar_lea.vmem %s1, 1329
  %3610 = vst.msk [vmem:[%s3609] sm:$0x10] %vm3600, %v3599
  %s3611 = scalar_lea.vmem %s1, 1392
  %3612 = vst.msk [vmem:[%s3611] sm:$0x20] %vm3600, %v3599
  %s3613 = scalar_lea.vmem %s1, 1455
  %3614 = vst.msk [vmem:[%s3613] sm:$0x40] %vm3600, %v3599
  %s3615 = scalar_lea.vmem %s1, 1518
  %3616 = vst.msk [vmem:[%s3615] sm:$0x80] %vm3600, %v3599
  %s3617 = scalar_lea.vmem %s0, 48
  %v3618 = vld [vmem:[%s3617] sm:$0xff]
  %3619 = vrot.lane.b32.xlu0 %v3618, 44
  %v3620 = vpop.permute.xlu0 %3619
  %vm3621 = vcmask 31744
  %s3622 = scalar_lea.vmem %s1, 1557
  %3623 = vst.msk [vmem:[%s3622] sm:$0x1] %vm3621, %v3620
  %s3624 = scalar_lea.vmem %s1, 1620
  %3625 = vst.msk [vmem:[%s3624] sm:$0x2] %vm3621, %v3620
  %s3626 = scalar_lea.vmem %s1, 1683
  %3627 = vst.msk [vmem:[%s3626] sm:$0x4] %vm3621, %v3620
  %s3628 = scalar_lea.vmem %s1, 1746
  %3629 = vst.msk [vmem:[%s3628] sm:$0x8] %vm3621, %v3620
  %s3630 = scalar_lea.vmem %s1, 1809
  %3631 = vst.msk [vmem:[%s3630] sm:$0x10] %vm3621, %v3620
  %s3632 = scalar_lea.vmem %s1, 1872
  %3633 = vst.msk [vmem:[%s3632] sm:$0x20] %vm3621, %v3620
  %s3634 = scalar_lea.vmem %s1, 1935
  %3635 = vst.msk [vmem:[%s3634] sm:$0x40] %vm3621, %v3620
  %s3636 = scalar_lea.vmem %s1, 1998
  %3637 = vst.msk [vmem:[%s3636] sm:$0x80] %vm3621, %v3620
  %s3638 = scalar_lea.vmem %s0, 56
  %v3639 = vld [vmem:[%s3638] sm:$0xff]
  %3640 = vrot.lane.b32.xlu0 %v3639, 44
  %v3641 = vpop.permute.xlu0 %3640
  %vm3642 = vcmask 31744
  %s3643 = scalar_lea.vmem %s1, 1589
  %3644 = vst.msk [vmem:[%s3643] sm:$0x1] %vm3642, %v3641
  %s3645 = scalar_lea.vmem %s1, 1652
  %3646 = vst.msk [vmem:[%s3645] sm:$0x2] %vm3642, %v3641
  %s3647 = scalar_lea.vmem %s1, 1715
  %3648 = vst.msk [vmem:[%s3647] sm:$0x4] %vm3642, %v3641
  %s3649 = scalar_lea.vmem %s1, 1778
  %3650 = vst.msk [vmem:[%s3649] sm:$0x8] %vm3642, %v3641
  %s3651 = scalar_lea.vmem %s1, 1841
  %3652 = vst.msk [vmem:[%s3651] sm:$0x10] %vm3642, %v3641
  %s3653 = scalar_lea.vmem %s1, 1904
  %3654 = vst.msk [vmem:[%s3653] sm:$0x20] %vm3642, %v3641
  %s3655 = scalar_lea.vmem %s1, 1967
  %3656 = vst.msk [vmem:[%s3655] sm:$0x40] %vm3642, %v3641
  %s3657 = scalar_lea.vmem %s1, 2030
  %3658 = vst.msk [vmem:[%s3657] sm:$0x80] %vm3642, %v3641
  %v3659 = vld [vmem:[%s0] sm:$0xff]
  %3660 = vrot.lane.b32.xlu0 %v3659, 40
  %v3661 = vpop.permute.xlu0 %3660
  %vm3662 = vcmask 31744
  %s3663 = scalar_lea.vmem %s1, 22
  %3664 = vst.msk [vmem:[%s3663] sm:$0x1] %vm3662, %v3661
  %s3665 = scalar_lea.vmem %s1, 85
  %3666 = vst.msk [vmem:[%s3665] sm:$0x2] %vm3662, %v3661
  %s3667 = scalar_lea.vmem %s1, 148
  %3668 = vst.msk [vmem:[%s3667] sm:$0x4] %vm3662, %v3661
  %s3669 = scalar_lea.vmem %s1, 211
  %3670 = vst.msk [vmem:[%s3669] sm:$0x8] %vm3662, %v3661
  %s3671 = scalar_lea.vmem %s1, 274
  %3672 = vst.msk [vmem:[%s3671] sm:$0x10] %vm3662, %v3661
  %s3673 = scalar_lea.vmem %s1, 337
  %3674 = vst.msk [vmem:[%s3673] sm:$0x20] %vm3662, %v3661
  %s3675 = scalar_lea.vmem %s1, 400
  %3676 = vst.msk [vmem:[%s3675] sm:$0x40] %vm3662, %v3661
  %s3677 = scalar_lea.vmem %s1, 463
  %3678 = vst.msk [vmem:[%s3677] sm:$0x80] %vm3662, %v3661
  %s3679 = scalar_lea.vmem %s0, 8
  %v3680 = vld [vmem:[%s3679] sm:$0xff]
  %3681 = vrot.lane.b32.xlu0 %v3680, 40
  %v3682 = vpop.permute.xlu0 %3681
  %vm3683 = vcmask 31744
  %s3684 = scalar_lea.vmem %s1, 54
  %3685 = vst.msk [vmem:[%s3684] sm:$0x1] %vm3683, %v3682
  %s3686 = scalar_lea.vmem %s1, 117
  %3687 = vst.msk [vmem:[%s3686] sm:$0x2] %vm3683, %v3682
  %s3688 = scalar_lea.vmem %s1, 180
  %3689 = vst.msk [vmem:[%s3688] sm:$0x4] %vm3683, %v3682
  %s3690 = scalar_lea.vmem %s1, 243
  %3691 = vst.msk [vmem:[%s3690] sm:$0x8] %vm3683, %v3682
  %s3692 = scalar_lea.vmem %s1, 306
  %3693 = vst.msk [vmem:[%s3692] sm:$0x10] %vm3683, %v3682
  %s3694 = scalar_lea.vmem %s1, 369
  %3695 = vst.msk [vmem:[%s3694] sm:$0x20] %vm3683, %v3682
  %s3696 = scalar_lea.vmem %s1, 432
  %3697 = vst.msk [vmem:[%s3696] sm:$0x40] %vm3683, %v3682
  %s3698 = scalar_lea.vmem %s1, 495
  %3699 = vst.msk [vmem:[%s3698] sm:$0x80] %vm3683, %v3682
  %s3700 = scalar_lea.vmem %s0, 16
  %v3701 = vld [vmem:[%s3700] sm:$0xff]
  %3702 = vrot.lane.b32.xlu0 %v3701, 40
  %v3703 = vpop.permute.xlu0 %3702
  %vm3704 = vcmask 31744
  %s3705 = scalar_lea.vmem %s1, 534
  %3706 = vst.msk [vmem:[%s3705] sm:$0x1] %vm3704, %v3703
  %s3707 = scalar_lea.vmem %s1, 597
  %3708 = vst.msk [vmem:[%s3707] sm:$0x2] %vm3704, %v3703
  %s3709 = scalar_lea.vmem %s1, 660
  %3710 = vst.msk [vmem:[%s3709] sm:$0x4] %vm3704, %v3703
  %s3711 = scalar_lea.vmem %s1, 723
  %3712 = vst.msk [vmem:[%s3711] sm:$0x8] %vm3704, %v3703
  %s3713 = scalar_lea.vmem %s1, 786
  %3714 = vst.msk [vmem:[%s3713] sm:$0x10] %vm3704, %v3703
  %s3715 = scalar_lea.vmem %s1, 849
  %3716 = vst.msk [vmem:[%s3715] sm:$0x20] %vm3704, %v3703
  %s3717 = scalar_lea.vmem %s1, 912
  %3718 = vst.msk [vmem:[%s3717] sm:$0x40] %vm3704, %v3703
  %s3719 = scalar_lea.vmem %s1, 975
  %3720 = vst.msk [vmem:[%s3719] sm:$0x80] %vm3704, %v3703
  %s3721 = scalar_lea.vmem %s0, 24
  %v3722 = vld [vmem:[%s3721] sm:$0xff]
  %3723 = vrot.lane.b32.xlu0 %v3722, 40
  %v3724 = vpop.permute.xlu0 %3723
  %vm3725 = vcmask 31744
  %s3726 = scalar_lea.vmem %s1, 566
  %3727 = vst.msk [vmem:[%s3726] sm:$0x1] %vm3725, %v3724
  %s3728 = scalar_lea.vmem %s1, 629
  %3729 = vst.msk [vmem:[%s3728] sm:$0x2] %vm3725, %v3724
  %s3730 = scalar_lea.vmem %s1, 692
  %3731 = vst.msk [vmem:[%s3730] sm:$0x4] %vm3725, %v3724
  %s3732 = scalar_lea.vmem %s1, 755
  %3733 = vst.msk [vmem:[%s3732] sm:$0x8] %vm3725, %v3724
  %s3734 = scalar_lea.vmem %s1, 818
  %3735 = vst.msk [vmem:[%s3734] sm:$0x10] %vm3725, %v3724
  %s3736 = scalar_lea.vmem %s1, 881
  %3737 = vst.msk [vmem:[%s3736] sm:$0x20] %vm3725, %v3724
  %s3738 = scalar_lea.vmem %s1, 944
  %3739 = vst.msk [vmem:[%s3738] sm:$0x40] %vm3725, %v3724
  %s3740 = scalar_lea.vmem %s1, 1007
  %3741 = vst.msk [vmem:[%s3740] sm:$0x80] %vm3725, %v3724
  %s3742 = scalar_lea.vmem %s0, 32
  %v3743 = vld [vmem:[%s3742] sm:$0xff]
  %3744 = vrot.lane.b32.xlu0 %v3743, 40
  %v3745 = vpop.permute.xlu0 %3744
  %vm3746 = vcmask 31744
  %s3747 = scalar_lea.vmem %s1, 1046
  %3748 = vst.msk [vmem:[%s3747] sm:$0x1] %vm3746, %v3745
  %s3749 = scalar_lea.vmem %s1, 1109
  %3750 = vst.msk [vmem:[%s3749] sm:$0x2] %vm3746, %v3745
  %s3751 = scalar_lea.vmem %s1, 1172
  %3752 = vst.msk [vmem:[%s3751] sm:$0x4] %vm3746, %v3745
  %s3753 = scalar_lea.vmem %s1, 1235
  %3754 = vst.msk [vmem:[%s3753] sm:$0x8] %vm3746, %v3745
  %s3755 = scalar_lea.vmem %s1, 1298
  %3756 = vst.msk [vmem:[%s3755] sm:$0x10] %vm3746, %v3745
  %s3757 = scalar_lea.vmem %s1, 1361
  %3758 = vst.msk [vmem:[%s3757] sm:$0x20] %vm3746, %v3745
  %s3759 = scalar_lea.vmem %s1, 1424
  %3760 = vst.msk [vmem:[%s3759] sm:$0x40] %vm3746, %v3745
  %s3761 = scalar_lea.vmem %s1, 1487
  %3762 = vst.msk [vmem:[%s3761] sm:$0x80] %vm3746, %v3745
  %s3763 = scalar_lea.vmem %s0, 40
  %v3764 = vld [vmem:[%s3763] sm:$0xff]
  %3765 = vrot.lane.b32.xlu0 %v3764, 40
  %v3766 = vpop.permute.xlu0 %3765
  %vm3767 = vcmask 31744
  %s3768 = scalar_lea.vmem %s1, 1078
  %3769 = vst.msk [vmem:[%s3768] sm:$0x1] %vm3767, %v3766
  %s3770 = scalar_lea.vmem %s1, 1141
  %3771 = vst.msk [vmem:[%s3770] sm:$0x2] %vm3767, %v3766
  %s3772 = scalar_lea.vmem %s1, 1204
  %3773 = vst.msk [vmem:[%s3772] sm:$0x4] %vm3767, %v3766
  %s3774 = scalar_lea.vmem %s1, 1267
  %3775 = vst.msk [vmem:[%s3774] sm:$0x8] %vm3767, %v3766
  %s3776 = scalar_lea.vmem %s1, 1330
  %3777 = vst.msk [vmem:[%s3776] sm:$0x10] %vm3767, %v3766
  %s3778 = scalar_lea.vmem %s1, 1393
  %3779 = vst.msk [vmem:[%s3778] sm:$0x20] %vm3767, %v3766
  %s3780 = scalar_lea.vmem %s1, 1456
  %3781 = vst.msk [vmem:[%s3780] sm:$0x40] %vm3767, %v3766
  %s3782 = scalar_lea.vmem %s1, 1519
  %3783 = vst.msk [vmem:[%s3782] sm:$0x80] %vm3767, %v3766
  %s3784 = scalar_lea.vmem %s0, 48
  %v3785 = vld [vmem:[%s3784] sm:$0xff]
  %3786 = vrot.lane.b32.xlu0 %v3785, 40
  %v3787 = vpop.permute.xlu0 %3786
  %vm3788 = vcmask 31744
  %s3789 = scalar_lea.vmem %s1, 1558
  %3790 = vst.msk [vmem:[%s3789] sm:$0x1] %vm3788, %v3787
  %s3791 = scalar_lea.vmem %s1, 1621
  %3792 = vst.msk [vmem:[%s3791] sm:$0x2] %vm3788, %v3787
  %s3793 = scalar_lea.vmem %s1, 1684
  %3794 = vst.msk [vmem:[%s3793] sm:$0x4] %vm3788, %v3787
  %s3795 = scalar_lea.vmem %s1, 1747
  %3796 = vst.msk [vmem:[%s3795] sm:$0x8] %vm3788, %v3787
  %s3797 = scalar_lea.vmem %s1, 1810
  %3798 = vst.msk [vmem:[%s3797] sm:$0x10] %vm3788, %v3787
  %s3799 = scalar_lea.vmem %s1, 1873
  %3800 = vst.msk [vmem:[%s3799] sm:$0x20] %vm3788, %v3787
  %s3801 = scalar_lea.vmem %s1, 1936
  %3802 = vst.msk [vmem:[%s3801] sm:$0x40] %vm3788, %v3787
  %s3803 = scalar_lea.vmem %s1, 1999
  %3804 = vst.msk [vmem:[%s3803] sm:$0x80] %vm3788, %v3787
  %s3805 = scalar_lea.vmem %s0, 56
  %v3806 = vld [vmem:[%s3805] sm:$0xff]
  %3807 = vrot.lane.b32.xlu0 %v3806, 40
  %v3808 = vpop.permute.xlu0 %3807
  %vm3809 = vcmask 31744
  %s3810 = scalar_lea.vmem %s1, 1590
  %3811 = vst.msk [vmem:[%s3810] sm:$0x1] %vm3809, %v3808
  %s3812 = scalar_lea.vmem %s1, 1653
  %3813 = vst.msk [vmem:[%s3812] sm:$0x2] %vm3809, %v3808
  %s3814 = scalar_lea.vmem %s1, 1716
  %3815 = vst.msk [vmem:[%s3814] sm:$0x4] %vm3809, %v3808
  %s3816 = scalar_lea.vmem %s1, 1779
  %3817 = vst.msk [vmem:[%s3816] sm:$0x8] %vm3809, %v3808
  %s3818 = scalar_lea.vmem %s1, 1842
  %3819 = vst.msk [vmem:[%s3818] sm:$0x10] %vm3809, %v3808
  %s3820 = scalar_lea.vmem %s1, 1905
  %3821 = vst.msk [vmem:[%s3820] sm:$0x20] %vm3809, %v3808
  %s3822 = scalar_lea.vmem %s1, 1968
  %3823 = vst.msk [vmem:[%s3822] sm:$0x40] %vm3809, %v3808
  %s3824 = scalar_lea.vmem %s1, 2031
  %3825 = vst.msk [vmem:[%s3824] sm:$0x80] %vm3809, %v3808
  %v3826 = vld [vmem:[%s0] sm:$0xff]
  %3827 = vrot.lane.b32.xlu0 %v3826, 36
  %v3828 = vpop.permute.xlu0 %3827
  %vm3829 = vcmask 31744
  %s3830 = scalar_lea.vmem %s1, 23
  %3831 = vst.msk [vmem:[%s3830] sm:$0x1] %vm3829, %v3828
  %s3832 = scalar_lea.vmem %s1, 86
  %3833 = vst.msk [vmem:[%s3832] sm:$0x2] %vm3829, %v3828
  %s3834 = scalar_lea.vmem %s1, 149
  %3835 = vst.msk [vmem:[%s3834] sm:$0x4] %vm3829, %v3828
  %s3836 = scalar_lea.vmem %s1, 212
  %3837 = vst.msk [vmem:[%s3836] sm:$0x8] %vm3829, %v3828
  %s3838 = scalar_lea.vmem %s1, 275
  %3839 = vst.msk [vmem:[%s3838] sm:$0x10] %vm3829, %v3828
  %s3840 = scalar_lea.vmem %s1, 338
  %3841 = vst.msk [vmem:[%s3840] sm:$0x20] %vm3829, %v3828
  %s3842 = scalar_lea.vmem %s1, 401
  %3843 = vst.msk [vmem:[%s3842] sm:$0x40] %vm3829, %v3828
  %s3844 = scalar_lea.vmem %s1, 464
  %3845 = vst.msk [vmem:[%s3844] sm:$0x80] %vm3829, %v3828
  %s3846 = scalar_lea.vmem %s0, 8
  %v3847 = vld [vmem:[%s3846] sm:$0xff]
  %3848 = vrot.lane.b32.xlu0 %v3847, 36
  %v3849 = vpop.permute.xlu0 %3848
  %vm3850 = vcmask 31744
  %s3851 = scalar_lea.vmem %s1, 55
  %3852 = vst.msk [vmem:[%s3851] sm:$0x1] %vm3850, %v3849
  %s3853 = scalar_lea.vmem %s1, 118
  %3854 = vst.msk [vmem:[%s3853] sm:$0x2] %vm3850, %v3849
  %s3855 = scalar_lea.vmem %s1, 181
  %3856 = vst.msk [vmem:[%s3855] sm:$0x4] %vm3850, %v3849
  %s3857 = scalar_lea.vmem %s1, 244
  %3858 = vst.msk [vmem:[%s3857] sm:$0x8] %vm3850, %v3849
  %s3859 = scalar_lea.vmem %s1, 307
  %3860 = vst.msk [vmem:[%s3859] sm:$0x10] %vm3850, %v3849
  %s3861 = scalar_lea.vmem %s1, 370
  %3862 = vst.msk [vmem:[%s3861] sm:$0x20] %vm3850, %v3849
  %s3863 = scalar_lea.vmem %s1, 433
  %3864 = vst.msk [vmem:[%s3863] sm:$0x40] %vm3850, %v3849
  %s3865 = scalar_lea.vmem %s1, 496
  %3866 = vst.msk [vmem:[%s3865] sm:$0x80] %vm3850, %v3849
  %s3867 = scalar_lea.vmem %s0, 16
  %v3868 = vld [vmem:[%s3867] sm:$0xff]
  %3869 = vrot.lane.b32.xlu0 %v3868, 36
  %v3870 = vpop.permute.xlu0 %3869
  %vm3871 = vcmask 31744
  %s3872 = scalar_lea.vmem %s1, 535
  %3873 = vst.msk [vmem:[%s3872] sm:$0x1] %vm3871, %v3870
  %s3874 = scalar_lea.vmem %s1, 598
  %3875 = vst.msk [vmem:[%s3874] sm:$0x2] %vm3871, %v3870
  %s3876 = scalar_lea.vmem %s1, 661
  %3877 = vst.msk [vmem:[%s3876] sm:$0x4] %vm3871, %v3870
  %s3878 = scalar_lea.vmem %s1, 724
  %3879 = vst.msk [vmem:[%s3878] sm:$0x8] %vm3871, %v3870
  %s3880 = scalar_lea.vmem %s1, 787
  %3881 = vst.msk [vmem:[%s3880] sm:$0x10] %vm3871, %v3870
  %s3882 = scalar_lea.vmem %s1, 850
  %3883 = vst.msk [vmem:[%s3882] sm:$0x20] %vm3871, %v3870
  %s3884 = scalar_lea.vmem %s1, 913
  %3885 = vst.msk [vmem:[%s3884] sm:$0x40] %vm3871, %v3870
  %s3886 = scalar_lea.vmem %s1, 976
  %3887 = vst.msk [vmem:[%s3886] sm:$0x80] %vm3871, %v3870
  %s3888 = scalar_lea.vmem %s0, 24
  %v3889 = vld [vmem:[%s3888] sm:$0xff]
  %3890 = vrot.lane.b32.xlu0 %v3889, 36
  %v3891 = vpop.permute.xlu0 %3890
  %vm3892 = vcmask 31744
  %s3893 = scalar_lea.vmem %s1, 567
  %3894 = vst.msk [vmem:[%s3893] sm:$0x1] %vm3892, %v3891
  %s3895 = scalar_lea.vmem %s1, 630
  %3896 = vst.msk [vmem:[%s3895] sm:$0x2] %vm3892, %v3891
  %s3897 = scalar_lea.vmem %s1, 693
  %3898 = vst.msk [vmem:[%s3897] sm:$0x4] %vm3892, %v3891
  %s3899 = scalar_lea.vmem %s1, 756
  %3900 = vst.msk [vmem:[%s3899] sm:$0x8] %vm3892, %v3891
  %s3901 = scalar_lea.vmem %s1, 819
  %3902 = vst.msk [vmem:[%s3901] sm:$0x10] %vm3892, %v3891
  %s3903 = scalar_lea.vmem %s1, 882
  %3904 = vst.msk [vmem:[%s3903] sm:$0x20] %vm3892, %v3891
  %s3905 = scalar_lea.vmem %s1, 945
  %3906 = vst.msk [vmem:[%s3905] sm:$0x40] %vm3892, %v3891
  %s3907 = scalar_lea.vmem %s1, 1008
  %3908 = vst.msk [vmem:[%s3907] sm:$0x80] %vm3892, %v3891
  %s3909 = scalar_lea.vmem %s0, 32
  %v3910 = vld [vmem:[%s3909] sm:$0xff]
  %3911 = vrot.lane.b32.xlu0 %v3910, 36
  %v3912 = vpop.permute.xlu0 %3911
  %vm3913 = vcmask 31744
  %s3914 = scalar_lea.vmem %s1, 1047
  %3915 = vst.msk [vmem:[%s3914] sm:$0x1] %vm3913, %v3912
  %s3916 = scalar_lea.vmem %s1, 1110
  %3917 = vst.msk [vmem:[%s3916] sm:$0x2] %vm3913, %v3912
  %s3918 = scalar_lea.vmem %s1, 1173
  %3919 = vst.msk [vmem:[%s3918] sm:$0x4] %vm3913, %v3912
  %s3920 = scalar_lea.vmem %s1, 1236
  %3921 = vst.msk [vmem:[%s3920] sm:$0x8] %vm3913, %v3912
  %s3922 = scalar_lea.vmem %s1, 1299
  %3923 = vst.msk [vmem:[%s3922] sm:$0x10] %vm3913, %v3912
  %s3924 = scalar_lea.vmem %s1, 1362
  %3925 = vst.msk [vmem:[%s3924] sm:$0x20] %vm3913, %v3912
  %s3926 = scalar_lea.vmem %s1, 1425
  %3927 = vst.msk [vmem:[%s3926] sm:$0x40] %vm3913, %v3912
  %s3928 = scalar_lea.vmem %s1, 1488
  %3929 = vst.msk [vmem:[%s3928] sm:$0x80] %vm3913, %v3912
  %s3930 = scalar_lea.vmem %s0, 40
  %v3931 = vld [vmem:[%s3930] sm:$0xff]
  %3932 = vrot.lane.b32.xlu0 %v3931, 36
  %v3933 = vpop.permute.xlu0 %3932
  %vm3934 = vcmask 31744
  %s3935 = scalar_lea.vmem %s1, 1079
  %3936 = vst.msk [vmem:[%s3935] sm:$0x1] %vm3934, %v3933
  %s3937 = scalar_lea.vmem %s1, 1142
  %3938 = vst.msk [vmem:[%s3937] sm:$0x2] %vm3934, %v3933
  %s3939 = scalar_lea.vmem %s1, 1205
  %3940 = vst.msk [vmem:[%s3939] sm:$0x4] %vm3934, %v3933
  %s3941 = scalar_lea.vmem %s1, 1268
  %3942 = vst.msk [vmem:[%s3941] sm:$0x8] %vm3934, %v3933
  %s3943 = scalar_lea.vmem %s1, 1331
  %3944 = vst.msk [vmem:[%s3943] sm:$0x10] %vm3934, %v3933
  %s3945 = scalar_lea.vmem %s1, 1394
  %3946 = vst.msk [vmem:[%s3945] sm:$0x20] %vm3934, %v3933
  %s3947 = scalar_lea.vmem %s1, 1457
  %3948 = vst.msk [vmem:[%s3947] sm:$0x40] %vm3934, %v3933
  %s3949 = scalar_lea.vmem %s1, 1520
  %3950 = vst.msk [vmem:[%s3949] sm:$0x80] %vm3934, %v3933
  %s3951 = scalar_lea.vmem %s0, 48
  %v3952 = vld [vmem:[%s3951] sm:$0xff]
  %3953 = vrot.lane.b32.xlu0 %v3952, 36
  %v3954 = vpop.permute.xlu0 %3953
  %vm3955 = vcmask 31744
  %s3956 = scalar_lea.vmem %s1, 1559
  %3957 = vst.msk [vmem:[%s3956] sm:$0x1] %vm3955, %v3954
  %s3958 = scalar_lea.vmem %s1, 1622
  %3959 = vst.msk [vmem:[%s3958] sm:$0x2] %vm3955, %v3954
  %s3960 = scalar_lea.vmem %s1, 1685
  %3961 = vst.msk [vmem:[%s3960] sm:$0x4] %vm3955, %v3954
  %s3962 = scalar_lea.vmem %s1, 1748
  %3963 = vst.msk [vmem:[%s3962] sm:$0x8] %vm3955, %v3954
  %s3964 = scalar_lea.vmem %s1, 1811
  %3965 = vst.msk [vmem:[%s3964] sm:$0x10] %vm3955, %v3954
  %s3966 = scalar_lea.vmem %s1, 1874
  %3967 = vst.msk [vmem:[%s3966] sm:$0x20] %vm3955, %v3954
  %s3968 = scalar_lea.vmem %s1, 1937
  %3969 = vst.msk [vmem:[%s3968] sm:$0x40] %vm3955, %v3954
  %s3970 = scalar_lea.vmem %s1, 2000
  %3971 = vst.msk [vmem:[%s3970] sm:$0x80] %vm3955, %v3954
  %s3972 = scalar_lea.vmem %s0, 56
  %v3973 = vld [vmem:[%s3972] sm:$0xff]
  %3974 = vrot.lane.b32.xlu0 %v3973, 36
  %v3975 = vpop.permute.xlu0 %3974
  %vm3976 = vcmask 31744
  %s3977 = scalar_lea.vmem %s1, 1591
  %3978 = vst.msk [vmem:[%s3977] sm:$0x1] %vm3976, %v3975
  %s3979 = scalar_lea.vmem %s1, 1654
  %3980 = vst.msk [vmem:[%s3979] sm:$0x2] %vm3976, %v3975
  %s3981 = scalar_lea.vmem %s1, 1717
  %3982 = vst.msk [vmem:[%s3981] sm:$0x4] %vm3976, %v3975
  %s3983 = scalar_lea.vmem %s1, 1780
  %3984 = vst.msk [vmem:[%s3983] sm:$0x8] %vm3976, %v3975
  %s3985 = scalar_lea.vmem %s1, 1843
  %3986 = vst.msk [vmem:[%s3985] sm:$0x10] %vm3976, %v3975
  %s3987 = scalar_lea.vmem %s1, 1906
  %3988 = vst.msk [vmem:[%s3987] sm:$0x20] %vm3976, %v3975
  %s3989 = scalar_lea.vmem %s1, 1969
  %3990 = vst.msk [vmem:[%s3989] sm:$0x40] %vm3976, %v3975
  %s3991 = scalar_lea.vmem %s1, 2032
  %3992 = vst.msk [vmem:[%s3991] sm:$0x80] %vm3976, %v3975
  %v3993 = vld [vmem:[%s0] sm:$0xff]
  %3994 = vrot.lane.b32.xlu0 %v3993, 32
  %v3995 = vpop.permute.xlu0 %3994
  %vm3996 = vcmask 31744
  %s3997 = scalar_lea.vmem %s1, 24
  %3998 = vst.msk [vmem:[%s3997] sm:$0x1] %vm3996, %v3995
  %s3999 = scalar_lea.vmem %s1, 87
  %4000 = vst.msk [vmem:[%s3999] sm:$0x2] %vm3996, %v3995
  %s4001 = scalar_lea.vmem %s1, 150
  %4002 = vst.msk [vmem:[%s4001] sm:$0x4] %vm3996, %v3995
  %s4003 = scalar_lea.vmem %s1, 213
  %4004 = vst.msk [vmem:[%s4003] sm:$0x8] %vm3996, %v3995
  %s4005 = scalar_lea.vmem %s1, 276
  %4006 = vst.msk [vmem:[%s4005] sm:$0x10] %vm3996, %v3995
  %s4007 = scalar_lea.vmem %s1, 339
  %4008 = vst.msk [vmem:[%s4007] sm:$0x20] %vm3996, %v3995
  %s4009 = scalar_lea.vmem %s1, 402
  %4010 = vst.msk [vmem:[%s4009] sm:$0x40] %vm3996, %v3995
  %s4011 = scalar_lea.vmem %s1, 465
  %4012 = vst.msk [vmem:[%s4011] sm:$0x80] %vm3996, %v3995
  %s4013 = scalar_lea.vmem %s0, 8
  %v4014 = vld [vmem:[%s4013] sm:$0xff]
  %4015 = vrot.lane.b32.xlu0 %v4014, 32
  %v4016 = vpop.permute.xlu0 %4015
  %vm4017 = vcmask 31744
  %s4018 = scalar_lea.vmem %s1, 56
  %4019 = vst.msk [vmem:[%s4018] sm:$0x1] %vm4017, %v4016
  %s4020 = scalar_lea.vmem %s1, 119
  %4021 = vst.msk [vmem:[%s4020] sm:$0x2] %vm4017, %v4016
  %s4022 = scalar_lea.vmem %s1, 182
  %4023 = vst.msk [vmem:[%s4022] sm:$0x4] %vm4017, %v4016
  %s4024 = scalar_lea.vmem %s1, 245
  %4025 = vst.msk [vmem:[%s4024] sm:$0x8] %vm4017, %v4016
  %s4026 = scalar_lea.vmem %s1, 308
  %4027 = vst.msk [vmem:[%s4026] sm:$0x10] %vm4017, %v4016
  %s4028 = scalar_lea.vmem %s1, 371
  %4029 = vst.msk [vmem:[%s4028] sm:$0x20] %vm4017, %v4016
  %s4030 = scalar_lea.vmem %s1, 434
  %4031 = vst.msk [vmem:[%s4030] sm:$0x40] %vm4017, %v4016
  %s4032 = scalar_lea.vmem %s1, 497
  %4033 = vst.msk [vmem:[%s4032] sm:$0x80] %vm4017, %v4016
  %s4034 = scalar_lea.vmem %s0, 16
  %v4035 = vld [vmem:[%s4034] sm:$0xff]
  %4036 = vrot.lane.b32.xlu0 %v4035, 32
  %v4037 = vpop.permute.xlu0 %4036
  %vm4038 = vcmask 31744
  %s4039 = scalar_lea.vmem %s1, 536
  %4040 = vst.msk [vmem:[%s4039] sm:$0x1] %vm4038, %v4037
  %s4041 = scalar_lea.vmem %s1, 599
  %4042 = vst.msk [vmem:[%s4041] sm:$0x2] %vm4038, %v4037
  %s4043 = scalar_lea.vmem %s1, 662
  %4044 = vst.msk [vmem:[%s4043] sm:$0x4] %vm4038, %v4037
  %s4045 = scalar_lea.vmem %s1, 725
  %4046 = vst.msk [vmem:[%s4045] sm:$0x8] %vm4038, %v4037
  %s4047 = scalar_lea.vmem %s1, 788
  %4048 = vst.msk [vmem:[%s4047] sm:$0x10] %vm4038, %v4037
  %s4049 = scalar_lea.vmem %s1, 851
  %4050 = vst.msk [vmem:[%s4049] sm:$0x20] %vm4038, %v4037
  %s4051 = scalar_lea.vmem %s1, 914
  %4052 = vst.msk [vmem:[%s4051] sm:$0x40] %vm4038, %v4037
  %s4053 = scalar_lea.vmem %s1, 977
  %4054 = vst.msk [vmem:[%s4053] sm:$0x80] %vm4038, %v4037
  %s4055 = scalar_lea.vmem %s0, 24
  %v4056 = vld [vmem:[%s4055] sm:$0xff]
  %4057 = vrot.lane.b32.xlu0 %v4056, 32
  %v4058 = vpop.permute.xlu0 %4057
  %vm4059 = vcmask 31744
  %s4060 = scalar_lea.vmem %s1, 568
  %4061 = vst.msk [vmem:[%s4060] sm:$0x1] %vm4059, %v4058
  %s4062 = scalar_lea.vmem %s1, 631
  %4063 = vst.msk [vmem:[%s4062] sm:$0x2] %vm4059, %v4058
  %s4064 = scalar_lea.vmem %s1, 694
  %4065 = vst.msk [vmem:[%s4064] sm:$0x4] %vm4059, %v4058
  %s4066 = scalar_lea.vmem %s1, 757
  %4067 = vst.msk [vmem:[%s4066] sm:$0x8] %vm4059, %v4058
  %s4068 = scalar_lea.vmem %s1, 820
  %4069 = vst.msk [vmem:[%s4068] sm:$0x10] %vm4059, %v4058
  %s4070 = scalar_lea.vmem %s1, 883
  %4071 = vst.msk [vmem:[%s4070] sm:$0x20] %vm4059, %v4058
  %s4072 = scalar_lea.vmem %s1, 946
  %4073 = vst.msk [vmem:[%s4072] sm:$0x40] %vm4059, %v4058
  %s4074 = scalar_lea.vmem %s1, 1009
  %4075 = vst.msk [vmem:[%s4074] sm:$0x80] %vm4059, %v4058
  %s4076 = scalar_lea.vmem %s0, 32
  %v4077 = vld [vmem:[%s4076] sm:$0xff]
  %4078 = vrot.lane.b32.xlu0 %v4077, 32
  %v4079 = vpop.permute.xlu0 %4078
  %vm4080 = vcmask 31744
  %s4081 = scalar_lea.vmem %s1, 1048
  %4082 = vst.msk [vmem:[%s4081] sm:$0x1] %vm4080, %v4079
  %s4083 = scalar_lea.vmem %s1, 1111
  %4084 = vst.msk [vmem:[%s4083] sm:$0x2] %vm4080, %v4079
  %s4085 = scalar_lea.vmem %s1, 1174
  %4086 = vst.msk [vmem:[%s4085] sm:$0x4] %vm4080, %v4079
  %s4087 = scalar_lea.vmem %s1, 1237
  %4088 = vst.msk [vmem:[%s4087] sm:$0x8] %vm4080, %v4079
  %s4089 = scalar_lea.vmem %s1, 1300
  %4090 = vst.msk [vmem:[%s4089] sm:$0x10] %vm4080, %v4079
  %s4091 = scalar_lea.vmem %s1, 1363
  %4092 = vst.msk [vmem:[%s4091] sm:$0x20] %vm4080, %v4079
  %s4093 = scalar_lea.vmem %s1, 1426
  %4094 = vst.msk [vmem:[%s4093] sm:$0x40] %vm4080, %v4079
  %s4095 = scalar_lea.vmem %s1, 1489
  %4096 = vst.msk [vmem:[%s4095] sm:$0x80] %vm4080, %v4079
  %s4097 = scalar_lea.vmem %s0, 40
  %v4098 = vld [vmem:[%s4097] sm:$0xff]
  %4099 = vrot.lane.b32.xlu0 %v4098, 32
  %v4100 = vpop.permute.xlu0 %4099
  %vm4101 = vcmask 31744
  %s4102 = scalar_lea.vmem %s1, 1080
  %4103 = vst.msk [vmem:[%s4102] sm:$0x1] %vm4101, %v4100
  %s4104 = scalar_lea.vmem %s1, 1143
  %4105 = vst.msk [vmem:[%s4104] sm:$0x2] %vm4101, %v4100
  %s4106 = scalar_lea.vmem %s1, 1206
  %4107 = vst.msk [vmem:[%s4106] sm:$0x4] %vm4101, %v4100
  %s4108 = scalar_lea.vmem %s1, 1269
  %4109 = vst.msk [vmem:[%s4108] sm:$0x8] %vm4101, %v4100
  %s4110 = scalar_lea.vmem %s1, 1332
  %4111 = vst.msk [vmem:[%s4110] sm:$0x10] %vm4101, %v4100
  %s4112 = scalar_lea.vmem %s1, 1395
  %4113 = vst.msk [vmem:[%s4112] sm:$0x20] %vm4101, %v4100
  %s4114 = scalar_lea.vmem %s1, 1458
  %4115 = vst.msk [vmem:[%s4114] sm:$0x40] %vm4101, %v4100
  %s4116 = scalar_lea.vmem %s1, 1521
  %4117 = vst.msk [vmem:[%s4116] sm:$0x80] %vm4101, %v4100
  %s4118 = scalar_lea.vmem %s0, 48
  %v4119 = vld [vmem:[%s4118] sm:$0xff]
  %4120 = vrot.lane.b32.xlu0 %v4119, 32
  %v4121 = vpop.permute.xlu0 %4120
  %vm4122 = vcmask 31744
  %s4123 = scalar_lea.vmem %s1, 1560
  %4124 = vst.msk [vmem:[%s4123] sm:$0x1] %vm4122, %v4121
  %s4125 = scalar_lea.vmem %s1, 1623
  %4126 = vst.msk [vmem:[%s4125] sm:$0x2] %vm4122, %v4121
  %s4127 = scalar_lea.vmem %s1, 1686
  %4128 = vst.msk [vmem:[%s4127] sm:$0x4] %vm4122, %v4121
  %s4129 = scalar_lea.vmem %s1, 1749
  %4130 = vst.msk [vmem:[%s4129] sm:$0x8] %vm4122, %v4121
  %s4131 = scalar_lea.vmem %s1, 1812
  %4132 = vst.msk [vmem:[%s4131] sm:$0x10] %vm4122, %v4121
  %s4133 = scalar_lea.vmem %s1, 1875
  %4134 = vst.msk [vmem:[%s4133] sm:$0x20] %vm4122, %v4121
  %s4135 = scalar_lea.vmem %s1, 1938
  %4136 = vst.msk [vmem:[%s4135] sm:$0x40] %vm4122, %v4121
  %s4137 = scalar_lea.vmem %s1, 2001
  %4138 = vst.msk [vmem:[%s4137] sm:$0x80] %vm4122, %v4121
  %s4139 = scalar_lea.vmem %s0, 56
  %v4140 = vld [vmem:[%s4139] sm:$0xff]
  %4141 = vrot.lane.b32.xlu0 %v4140, 32
  %v4142 = vpop.permute.xlu0 %4141
  %vm4143 = vcmask 31744
  %s4144 = scalar_lea.vmem %s1, 1592
  %4145 = vst.msk [vmem:[%s4144] sm:$0x1] %vm4143, %v4142
  %s4146 = scalar_lea.vmem %s1, 1655
  %4147 = vst.msk [vmem:[%s4146] sm:$0x2] %vm4143, %v4142
  %s4148 = scalar_lea.vmem %s1, 1718
  %4149 = vst.msk [vmem:[%s4148] sm:$0x4] %vm4143, %v4142
  %s4150 = scalar_lea.vmem %s1, 1781
  %4151 = vst.msk [vmem:[%s4150] sm:$0x8] %vm4143, %v4142
  %s4152 = scalar_lea.vmem %s1, 1844
  %4153 = vst.msk [vmem:[%s4152] sm:$0x10] %vm4143, %v4142
  %s4154 = scalar_lea.vmem %s1, 1907
  %4155 = vst.msk [vmem:[%s4154] sm:$0x20] %vm4143, %v4142
  %s4156 = scalar_lea.vmem %s1, 1970
  %4157 = vst.msk [vmem:[%s4156] sm:$0x40] %vm4143, %v4142
  %s4158 = scalar_lea.vmem %s1, 2033
  %4159 = vst.msk [vmem:[%s4158] sm:$0x80] %vm4143, %v4142
  %v4160 = vld [vmem:[%s0] sm:$0xff]
  %4161 = vrot.lane.b32.xlu0 %v4160, 28
  %v4162 = vpop.permute.xlu0 %4161
  %vm4163 = vcmask 31744
  %s4164 = scalar_lea.vmem %s1, 25
  %4165 = vst.msk [vmem:[%s4164] sm:$0x1] %vm4163, %v4162
  %s4166 = scalar_lea.vmem %s1, 88
  %4167 = vst.msk [vmem:[%s4166] sm:$0x2] %vm4163, %v4162
  %s4168 = scalar_lea.vmem %s1, 151
  %4169 = vst.msk [vmem:[%s4168] sm:$0x4] %vm4163, %v4162
  %s4170 = scalar_lea.vmem %s1, 214
  %4171 = vst.msk [vmem:[%s4170] sm:$0x8] %vm4163, %v4162
  %s4172 = scalar_lea.vmem %s1, 277
  %4173 = vst.msk [vmem:[%s4172] sm:$0x10] %vm4163, %v4162
  %s4174 = scalar_lea.vmem %s1, 340
  %4175 = vst.msk [vmem:[%s4174] sm:$0x20] %vm4163, %v4162
  %s4176 = scalar_lea.vmem %s1, 403
  %4177 = vst.msk [vmem:[%s4176] sm:$0x40] %vm4163, %v4162
  %s4178 = scalar_lea.vmem %s1, 466
  %4179 = vst.msk [vmem:[%s4178] sm:$0x80] %vm4163, %v4162
  %s4180 = scalar_lea.vmem %s0, 8
  %v4181 = vld [vmem:[%s4180] sm:$0xff]
  %4182 = vrot.lane.b32.xlu0 %v4181, 28
  %v4183 = vpop.permute.xlu0 %4182
  %vm4184 = vcmask 31744
  %s4185 = scalar_lea.vmem %s1, 57
  %4186 = vst.msk [vmem:[%s4185] sm:$0x1] %vm4184, %v4183
  %s4187 = scalar_lea.vmem %s1, 120
  %4188 = vst.msk [vmem:[%s4187] sm:$0x2] %vm4184, %v4183
  %s4189 = scalar_lea.vmem %s1, 183
  %4190 = vst.msk [vmem:[%s4189] sm:$0x4] %vm4184, %v4183
  %s4191 = scalar_lea.vmem %s1, 246
  %4192 = vst.msk [vmem:[%s4191] sm:$0x8] %vm4184, %v4183
  %s4193 = scalar_lea.vmem %s1, 309
  %4194 = vst.msk [vmem:[%s4193] sm:$0x10] %vm4184, %v4183
  %s4195 = scalar_lea.vmem %s1, 372
  %4196 = vst.msk [vmem:[%s4195] sm:$0x20] %vm4184, %v4183
  %s4197 = scalar_lea.vmem %s1, 435
  %4198 = vst.msk [vmem:[%s4197] sm:$0x40] %vm4184, %v4183
  %s4199 = scalar_lea.vmem %s1, 498
  %4200 = vst.msk [vmem:[%s4199] sm:$0x80] %vm4184, %v4183
  %s4201 = scalar_lea.vmem %s0, 16
  %v4202 = vld [vmem:[%s4201] sm:$0xff]
  %4203 = vrot.lane.b32.xlu0 %v4202, 28
  %v4204 = vpop.permute.xlu0 %4203
  %vm4205 = vcmask 31744
  %s4206 = scalar_lea.vmem %s1, 537
  %4207 = vst.msk [vmem:[%s4206] sm:$0x1] %vm4205, %v4204
  %s4208 = scalar_lea.vmem %s1, 600
  %4209 = vst.msk [vmem:[%s4208] sm:$0x2] %vm4205, %v4204
  %s4210 = scalar_lea.vmem %s1, 663
  %4211 = vst.msk [vmem:[%s4210] sm:$0x4] %vm4205, %v4204
  %s4212 = scalar_lea.vmem %s1, 726
  %4213 = vst.msk [vmem:[%s4212] sm:$0x8] %vm4205, %v4204
  %s4214 = scalar_lea.vmem %s1, 789
  %4215 = vst.msk [vmem:[%s4214] sm:$0x10] %vm4205, %v4204
  %s4216 = scalar_lea.vmem %s1, 852
  %4217 = vst.msk [vmem:[%s4216] sm:$0x20] %vm4205, %v4204
  %s4218 = scalar_lea.vmem %s1, 915
  %4219 = vst.msk [vmem:[%s4218] sm:$0x40] %vm4205, %v4204
  %s4220 = scalar_lea.vmem %s1, 978
  %4221 = vst.msk [vmem:[%s4220] sm:$0x80] %vm4205, %v4204
  %s4222 = scalar_lea.vmem %s0, 24
  %v4223 = vld [vmem:[%s4222] sm:$0xff]
  %4224 = vrot.lane.b32.xlu0 %v4223, 28
  %v4225 = vpop.permute.xlu0 %4224
  %vm4226 = vcmask 31744
  %s4227 = scalar_lea.vmem %s1, 569
  %4228 = vst.msk [vmem:[%s4227] sm:$0x1] %vm4226, %v4225
  %s4229 = scalar_lea.vmem %s1, 632
  %4230 = vst.msk [vmem:[%s4229] sm:$0x2] %vm4226, %v4225
  %s4231 = scalar_lea.vmem %s1, 695
  %4232 = vst.msk [vmem:[%s4231] sm:$0x4] %vm4226, %v4225
  %s4233 = scalar_lea.vmem %s1, 758
  %4234 = vst.msk [vmem:[%s4233] sm:$0x8] %vm4226, %v4225
  %s4235 = scalar_lea.vmem %s1, 821
  %4236 = vst.msk [vmem:[%s4235] sm:$0x10] %vm4226, %v4225
  %s4237 = scalar_lea.vmem %s1, 884
  %4238 = vst.msk [vmem:[%s4237] sm:$0x20] %vm4226, %v4225
  %s4239 = scalar_lea.vmem %s1, 947
  %4240 = vst.msk [vmem:[%s4239] sm:$0x40] %vm4226, %v4225
  %s4241 = scalar_lea.vmem %s1, 1010
  %4242 = vst.msk [vmem:[%s4241] sm:$0x80] %vm4226, %v4225
  %s4243 = scalar_lea.vmem %s0, 32
  %v4244 = vld [vmem:[%s4243] sm:$0xff]
  %4245 = vrot.lane.b32.xlu0 %v4244, 28
  %v4246 = vpop.permute.xlu0 %4245
  %vm4247 = vcmask 31744
  %s4248 = scalar_lea.vmem %s1, 1049
  %4249 = vst.msk [vmem:[%s4248] sm:$0x1] %vm4247, %v4246
  %s4250 = scalar_lea.vmem %s1, 1112
  %4251 = vst.msk [vmem:[%s4250] sm:$0x2] %vm4247, %v4246
  %s4252 = scalar_lea.vmem %s1, 1175
  %4253 = vst.msk [vmem:[%s4252] sm:$0x4] %vm4247, %v4246
  %s4254 = scalar_lea.vmem %s1, 1238
  %4255 = vst.msk [vmem:[%s4254] sm:$0x8] %vm4247, %v4246
  %s4256 = scalar_lea.vmem %s1, 1301
  %4257 = vst.msk [vmem:[%s4256] sm:$0x10] %vm4247, %v4246
  %s4258 = scalar_lea.vmem %s1, 1364
  %4259 = vst.msk [vmem:[%s4258] sm:$0x20] %vm4247, %v4246
  %s4260 = scalar_lea.vmem %s1, 1427
  %4261 = vst.msk [vmem:[%s4260] sm:$0x40] %vm4247, %v4246
  %s4262 = scalar_lea.vmem %s1, 1490
  %4263 = vst.msk [vmem:[%s4262] sm:$0x80] %vm4247, %v4246
  %s4264 = scalar_lea.vmem %s0, 40
  %v4265 = vld [vmem:[%s4264] sm:$0xff]
  %4266 = vrot.lane.b32.xlu0 %v4265, 28
  %v4267 = vpop.permute.xlu0 %4266
  %vm4268 = vcmask 31744
  %s4269 = scalar_lea.vmem %s1, 1081
  %4270 = vst.msk [vmem:[%s4269] sm:$0x1] %vm4268, %v4267
  %s4271 = scalar_lea.vmem %s1, 1144
  %4272 = vst.msk [vmem:[%s4271] sm:$0x2] %vm4268, %v4267
  %s4273 = scalar_lea.vmem %s1, 1207
  %4274 = vst.msk [vmem:[%s4273] sm:$0x4] %vm4268, %v4267
  %s4275 = scalar_lea.vmem %s1, 1270
  %4276 = vst.msk [vmem:[%s4275] sm:$0x8] %vm4268, %v4267
  %s4277 = scalar_lea.vmem %s1, 1333
  %4278 = vst.msk [vmem:[%s4277] sm:$0x10] %vm4268, %v4267
  %s4279 = scalar_lea.vmem %s1, 1396
  %4280 = vst.msk [vmem:[%s4279] sm:$0x20] %vm4268, %v4267
  %s4281 = scalar_lea.vmem %s1, 1459
  %4282 = vst.msk [vmem:[%s4281] sm:$0x40] %vm4268, %v4267
  %s4283 = scalar_lea.vmem %s1, 1522
  %4284 = vst.msk [vmem:[%s4283] sm:$0x80] %vm4268, %v4267
  %s4285 = scalar_lea.vmem %s0, 48
  %v4286 = vld [vmem:[%s4285] sm:$0xff]
  %4287 = vrot.lane.b32.xlu0 %v4286, 28
  %v4288 = vpop.permute.xlu0 %4287
  %vm4289 = vcmask 31744
  %s4290 = scalar_lea.vmem %s1, 1561
  %4291 = vst.msk [vmem:[%s4290] sm:$0x1] %vm4289, %v4288
  %s4292 = scalar_lea.vmem %s1, 1624
  %4293 = vst.msk [vmem:[%s4292] sm:$0x2] %vm4289, %v4288
  %s4294 = scalar_lea.vmem %s1, 1687
  %4295 = vst.msk [vmem:[%s4294] sm:$0x4] %vm4289, %v4288
  %s4296 = scalar_lea.vmem %s1, 1750
  %4297 = vst.msk [vmem:[%s4296] sm:$0x8] %vm4289, %v4288
  %s4298 = scalar_lea.vmem %s1, 1813
  %4299 = vst.msk [vmem:[%s4298] sm:$0x10] %vm4289, %v4288
  %s4300 = scalar_lea.vmem %s1, 1876
  %4301 = vst.msk [vmem:[%s4300] sm:$0x20] %vm4289, %v4288
  %s4302 = scalar_lea.vmem %s1, 1939
  %4303 = vst.msk [vmem:[%s4302] sm:$0x40] %vm4289, %v4288
  %s4304 = scalar_lea.vmem %s1, 2002
  %4305 = vst.msk [vmem:[%s4304] sm:$0x80] %vm4289, %v4288
  %s4306 = scalar_lea.vmem %s0, 56
  %v4307 = vld [vmem:[%s4306] sm:$0xff]
  %4308 = vrot.lane.b32.xlu0 %v4307, 28
  %v4309 = vpop.permute.xlu0 %4308
  %vm4310 = vcmask 31744
  %s4311 = scalar_lea.vmem %s1, 1593
  %4312 = vst.msk [vmem:[%s4311] sm:$0x1] %vm4310, %v4309
  %s4313 = scalar_lea.vmem %s1, 1656
  %4314 = vst.msk [vmem:[%s4313] sm:$0x2] %vm4310, %v4309
  %s4315 = scalar_lea.vmem %s1, 1719
  %4316 = vst.msk [vmem:[%s4315] sm:$0x4] %vm4310, %v4309
  %s4317 = scalar_lea.vmem %s1, 1782
  %4318 = vst.msk [vmem:[%s4317] sm:$0x8] %vm4310, %v4309
  %s4319 = scalar_lea.vmem %s1, 1845
  %4320 = vst.msk [vmem:[%s4319] sm:$0x10] %vm4310, %v4309
  %s4321 = scalar_lea.vmem %s1, 1908
  %4322 = vst.msk [vmem:[%s4321] sm:$0x20] %vm4310, %v4309
  %s4323 = scalar_lea.vmem %s1, 1971
  %4324 = vst.msk [vmem:[%s4323] sm:$0x40] %vm4310, %v4309
  %s4325 = scalar_lea.vmem %s1, 2034
  %4326 = vst.msk [vmem:[%s4325] sm:$0x80] %vm4310, %v4309
  %v4327 = vld [vmem:[%s0] sm:$0xff]
  %4328 = vrot.lane.b32.xlu0 %v4327, 24
  %v4329 = vpop.permute.xlu0 %4328
  %vm4330 = vcmask 31744
  %s4331 = scalar_lea.vmem %s1, 26
  %4332 = vst.msk [vmem:[%s4331] sm:$0x1] %vm4330, %v4329
  %s4333 = scalar_lea.vmem %s1, 89
  %4334 = vst.msk [vmem:[%s4333] sm:$0x2] %vm4330, %v4329
  %s4335 = scalar_lea.vmem %s1, 152
  %4336 = vst.msk [vmem:[%s4335] sm:$0x4] %vm4330, %v4329
  %s4337 = scalar_lea.vmem %s1, 215
  %4338 = vst.msk [vmem:[%s4337] sm:$0x8] %vm4330, %v4329
  %s4339 = scalar_lea.vmem %s1, 278
  %4340 = vst.msk [vmem:[%s4339] sm:$0x10] %vm4330, %v4329
  %s4341 = scalar_lea.vmem %s1, 341
  %4342 = vst.msk [vmem:[%s4341] sm:$0x20] %vm4330, %v4329
  %s4343 = scalar_lea.vmem %s1, 404
  %4344 = vst.msk [vmem:[%s4343] sm:$0x40] %vm4330, %v4329
  %s4345 = scalar_lea.vmem %s1, 467
  %4346 = vst.msk [vmem:[%s4345] sm:$0x80] %vm4330, %v4329
  %s4347 = scalar_lea.vmem %s0, 8
  %v4348 = vld [vmem:[%s4347] sm:$0xff]
  %4349 = vrot.lane.b32.xlu0 %v4348, 24
  %v4350 = vpop.permute.xlu0 %4349
  %vm4351 = vcmask 31744
  %s4352 = scalar_lea.vmem %s1, 58
  %4353 = vst.msk [vmem:[%s4352] sm:$0x1] %vm4351, %v4350
  %s4354 = scalar_lea.vmem %s1, 121
  %4355 = vst.msk [vmem:[%s4354] sm:$0x2] %vm4351, %v4350
  %s4356 = scalar_lea.vmem %s1, 184
  %4357 = vst.msk [vmem:[%s4356] sm:$0x4] %vm4351, %v4350
  %s4358 = scalar_lea.vmem %s1, 247
  %4359 = vst.msk [vmem:[%s4358] sm:$0x8] %vm4351, %v4350
  %s4360 = scalar_lea.vmem %s1, 310
  %4361 = vst.msk [vmem:[%s4360] sm:$0x10] %vm4351, %v4350
  %s4362 = scalar_lea.vmem %s1, 373
  %4363 = vst.msk [vmem:[%s4362] sm:$0x20] %vm4351, %v4350
  %s4364 = scalar_lea.vmem %s1, 436
  %4365 = vst.msk [vmem:[%s4364] sm:$0x40] %vm4351, %v4350
  %s4366 = scalar_lea.vmem %s1, 499
  %4367 = vst.msk [vmem:[%s4366] sm:$0x80] %vm4351, %v4350
  %s4368 = scalar_lea.vmem %s0, 16
  %v4369 = vld [vmem:[%s4368] sm:$0xff]
  %4370 = vrot.lane.b32.xlu0 %v4369, 24
  %v4371 = vpop.permute.xlu0 %4370
  %vm4372 = vcmask 31744
  %s4373 = scalar_lea.vmem %s1, 538
  %4374 = vst.msk [vmem:[%s4373] sm:$0x1] %vm4372, %v4371
  %s4375 = scalar_lea.vmem %s1, 601
  %4376 = vst.msk [vmem:[%s4375] sm:$0x2] %vm4372, %v4371
  %s4377 = scalar_lea.vmem %s1, 664
  %4378 = vst.msk [vmem:[%s4377] sm:$0x4] %vm4372, %v4371
  %s4379 = scalar_lea.vmem %s1, 727
  %4380 = vst.msk [vmem:[%s4379] sm:$0x8] %vm4372, %v4371
  %s4381 = scalar_lea.vmem %s1, 790
  %4382 = vst.msk [vmem:[%s4381] sm:$0x10] %vm4372, %v4371
  %s4383 = scalar_lea.vmem %s1, 853
  %4384 = vst.msk [vmem:[%s4383] sm:$0x20] %vm4372, %v4371
  %s4385 = scalar_lea.vmem %s1, 916
  %4386 = vst.msk [vmem:[%s4385] sm:$0x40] %vm4372, %v4371
  %s4387 = scalar_lea.vmem %s1, 979
  %4388 = vst.msk [vmem:[%s4387] sm:$0x80] %vm4372, %v4371
  %s4389 = scalar_lea.vmem %s0, 24
  %v4390 = vld [vmem:[%s4389] sm:$0xff]
  %4391 = vrot.lane.b32.xlu0 %v4390, 24
  %v4392 = vpop.permute.xlu0 %4391
  %vm4393 = vcmask 31744
  %s4394 = scalar_lea.vmem %s1, 570
  %4395 = vst.msk [vmem:[%s4394] sm:$0x1] %vm4393, %v4392
  %s4396 = scalar_lea.vmem %s1, 633
  %4397 = vst.msk [vmem:[%s4396] sm:$0x2] %vm4393, %v4392
  %s4398 = scalar_lea.vmem %s1, 696
  %4399 = vst.msk [vmem:[%s4398] sm:$0x4] %vm4393, %v4392
  %s4400 = scalar_lea.vmem %s1, 759
  %4401 = vst.msk [vmem:[%s4400] sm:$0x8] %vm4393, %v4392
  %s4402 = scalar_lea.vmem %s1, 822
  %4403 = vst.msk [vmem:[%s4402] sm:$0x10] %vm4393, %v4392
  %s4404 = scalar_lea.vmem %s1, 885
  %4405 = vst.msk [vmem:[%s4404] sm:$0x20] %vm4393, %v4392
  %s4406 = scalar_lea.vmem %s1, 948
  %4407 = vst.msk [vmem:[%s4406] sm:$0x40] %vm4393, %v4392
  %s4408 = scalar_lea.vmem %s1, 1011
  %4409 = vst.msk [vmem:[%s4408] sm:$0x80] %vm4393, %v4392
  %s4410 = scalar_lea.vmem %s0, 32
  %v4411 = vld [vmem:[%s4410] sm:$0xff]
  %4412 = vrot.lane.b32.xlu0 %v4411, 24
  %v4413 = vpop.permute.xlu0 %4412
  %vm4414 = vcmask 31744
  %s4415 = scalar_lea.vmem %s1, 1050
  %4416 = vst.msk [vmem:[%s4415] sm:$0x1] %vm4414, %v4413
  %s4417 = scalar_lea.vmem %s1, 1113
  %4418 = vst.msk [vmem:[%s4417] sm:$0x2] %vm4414, %v4413
  %s4419 = scalar_lea.vmem %s1, 1176
  %4420 = vst.msk [vmem:[%s4419] sm:$0x4] %vm4414, %v4413
  %s4421 = scalar_lea.vmem %s1, 1239
  %4422 = vst.msk [vmem:[%s4421] sm:$0x8] %vm4414, %v4413
  %s4423 = scalar_lea.vmem %s1, 1302
  %4424 = vst.msk [vmem:[%s4423] sm:$0x10] %vm4414, %v4413
  %s4425 = scalar_lea.vmem %s1, 1365
  %4426 = vst.msk [vmem:[%s4425] sm:$0x20] %vm4414, %v4413
  %s4427 = scalar_lea.vmem %s1, 1428
  %4428 = vst.msk [vmem:[%s4427] sm:$0x40] %vm4414, %v4413
  %s4429 = scalar_lea.vmem %s1, 1491
  %4430 = vst.msk [vmem:[%s4429] sm:$0x80] %vm4414, %v4413
  %s4431 = scalar_lea.vmem %s0, 40
  %v4432 = vld [vmem:[%s4431] sm:$0xff]
  %4433 = vrot.lane.b32.xlu0 %v4432, 24
  %v4434 = vpop.permute.xlu0 %4433
  %vm4435 = vcmask 31744
  %s4436 = scalar_lea.vmem %s1, 1082
  %4437 = vst.msk [vmem:[%s4436] sm:$0x1] %vm4435, %v4434
  %s4438 = scalar_lea.vmem %s1, 1145
  %4439 = vst.msk [vmem:[%s4438] sm:$0x2] %vm4435, %v4434
  %s4440 = scalar_lea.vmem %s1, 1208
  %4441 = vst.msk [vmem:[%s4440] sm:$0x4] %vm4435, %v4434
  %s4442 = scalar_lea.vmem %s1, 1271
  %4443 = vst.msk [vmem:[%s4442] sm:$0x8] %vm4435, %v4434
  %s4444 = scalar_lea.vmem %s1, 1334
  %4445 = vst.msk [vmem:[%s4444] sm:$0x10] %vm4435, %v4434
  %s4446 = scalar_lea.vmem %s1, 1397
  %4447 = vst.msk [vmem:[%s4446] sm:$0x20] %vm4435, %v4434
  %s4448 = scalar_lea.vmem %s1, 1460
  %4449 = vst.msk [vmem:[%s4448] sm:$0x40] %vm4435, %v4434
  %s4450 = scalar_lea.vmem %s1, 1523
  %4451 = vst.msk [vmem:[%s4450] sm:$0x80] %vm4435, %v4434
  %s4452 = scalar_lea.vmem %s0, 48
  %v4453 = vld [vmem:[%s4452] sm:$0xff]
  %4454 = vrot.lane.b32.xlu0 %v4453, 24
  %v4455 = vpop.permute.xlu0 %4454
  %vm4456 = vcmask 31744
  %s4457 = scalar_lea.vmem %s1, 1562
  %4458 = vst.msk [vmem:[%s4457] sm:$0x1] %vm4456, %v4455
  %s4459 = scalar_lea.vmem %s1, 1625
  %4460 = vst.msk [vmem:[%s4459] sm:$0x2] %vm4456, %v4455
  %s4461 = scalar_lea.vmem %s1, 1688
  %4462 = vst.msk [vmem:[%s4461] sm:$0x4] %vm4456, %v4455
  %s4463 = scalar_lea.vmem %s1, 1751
  %4464 = vst.msk [vmem:[%s4463] sm:$0x8] %vm4456, %v4455
  %s4465 = scalar_lea.vmem %s1, 1814
  %4466 = vst.msk [vmem:[%s4465] sm:$0x10] %vm4456, %v4455
  %s4467 = scalar_lea.vmem %s1, 1877
  %4468 = vst.msk [vmem:[%s4467] sm:$0x20] %vm4456, %v4455
  %s4469 = scalar_lea.vmem %s1, 1940
  %4470 = vst.msk [vmem:[%s4469] sm:$0x40] %vm4456, %v4455
  %s4471 = scalar_lea.vmem %s1, 2003
  %4472 = vst.msk [vmem:[%s4471] sm:$0x80] %vm4456, %v4455
  %s4473 = scalar_lea.vmem %s0, 56
  %v4474 = vld [vmem:[%s4473] sm:$0xff]
  %4475 = vrot.lane.b32.xlu0 %v4474, 24
  %v4476 = vpop.permute.xlu0 %4475
  %vm4477 = vcmask 31744
  %s4478 = scalar_lea.vmem %s1, 1594
  %4479 = vst.msk [vmem:[%s4478] sm:$0x1] %vm4477, %v4476
  %s4480 = scalar_lea.vmem %s1, 1657
  %4481 = vst.msk [vmem:[%s4480] sm:$0x2] %vm4477, %v4476
  %s4482 = scalar_lea.vmem %s1, 1720
  %4483 = vst.msk [vmem:[%s4482] sm:$0x4] %vm4477, %v4476
  %s4484 = scalar_lea.vmem %s1, 1783
  %4485 = vst.msk [vmem:[%s4484] sm:$0x8] %vm4477, %v4476
  %s4486 = scalar_lea.vmem %s1, 1846
  %4487 = vst.msk [vmem:[%s4486] sm:$0x10] %vm4477, %v4476
  %s4488 = scalar_lea.vmem %s1, 1909
  %4489 = vst.msk [vmem:[%s4488] sm:$0x20] %vm4477, %v4476
  %s4490 = scalar_lea.vmem %s1, 1972
  %4491 = vst.msk [vmem:[%s4490] sm:$0x40] %vm4477, %v4476
  %s4492 = scalar_lea.vmem %s1, 2035
  %4493 = vst.msk [vmem:[%s4492] sm:$0x80] %vm4477, %v4476
  %v4494 = vld [vmem:[%s0] sm:$0xff]
  %4495 = vrot.lane.b32.xlu0 %v4494, 20
  %v4496 = vpop.permute.xlu0 %4495
  %vm4497 = vcmask 31744
  %s4498 = scalar_lea.vmem %s1, 27
  %4499 = vst.msk [vmem:[%s4498] sm:$0x1] %vm4497, %v4496
  %s4500 = scalar_lea.vmem %s1, 90
  %4501 = vst.msk [vmem:[%s4500] sm:$0x2] %vm4497, %v4496
  %s4502 = scalar_lea.vmem %s1, 153
  %4503 = vst.msk [vmem:[%s4502] sm:$0x4] %vm4497, %v4496
  %s4504 = scalar_lea.vmem %s1, 216
  %4505 = vst.msk [vmem:[%s4504] sm:$0x8] %vm4497, %v4496
  %s4506 = scalar_lea.vmem %s1, 279
  %4507 = vst.msk [vmem:[%s4506] sm:$0x10] %vm4497, %v4496
  %s4508 = scalar_lea.vmem %s1, 342
  %4509 = vst.msk [vmem:[%s4508] sm:$0x20] %vm4497, %v4496
  %s4510 = scalar_lea.vmem %s1, 405
  %4511 = vst.msk [vmem:[%s4510] sm:$0x40] %vm4497, %v4496
  %s4512 = scalar_lea.vmem %s1, 468
  %4513 = vst.msk [vmem:[%s4512] sm:$0x80] %vm4497, %v4496
  %s4514 = scalar_lea.vmem %s0, 8
  %v4515 = vld [vmem:[%s4514] sm:$0xff]
  %4516 = vrot.lane.b32.xlu0 %v4515, 20
  %v4517 = vpop.permute.xlu0 %4516
  %vm4518 = vcmask 31744
  %s4519 = scalar_lea.vmem %s1, 59
  %4520 = vst.msk [vmem:[%s4519] sm:$0x1] %vm4518, %v4517
  %s4521 = scalar_lea.vmem %s1, 122
  %4522 = vst.msk [vmem:[%s4521] sm:$0x2] %vm4518, %v4517
  %s4523 = scalar_lea.vmem %s1, 185
  %4524 = vst.msk [vmem:[%s4523] sm:$0x4] %vm4518, %v4517
  %s4525 = scalar_lea.vmem %s1, 248
  %4526 = vst.msk [vmem:[%s4525] sm:$0x8] %vm4518, %v4517
  %s4527 = scalar_lea.vmem %s1, 311
  %4528 = vst.msk [vmem:[%s4527] sm:$0x10] %vm4518, %v4517
  %s4529 = scalar_lea.vmem %s1, 374
  %4530 = vst.msk [vmem:[%s4529] sm:$0x20] %vm4518, %v4517
  %s4531 = scalar_lea.vmem %s1, 437
  %4532 = vst.msk [vmem:[%s4531] sm:$0x40] %vm4518, %v4517
  %s4533 = scalar_lea.vmem %s1, 500
  %4534 = vst.msk [vmem:[%s4533] sm:$0x80] %vm4518, %v4517
  %s4535 = scalar_lea.vmem %s0, 16
  %v4536 = vld [vmem:[%s4535] sm:$0xff]
  %4537 = vrot.lane.b32.xlu0 %v4536, 20
  %v4538 = vpop.permute.xlu0 %4537
  %vm4539 = vcmask 31744
  %s4540 = scalar_lea.vmem %s1, 539
  %4541 = vst.msk [vmem:[%s4540] sm:$0x1] %vm4539, %v4538
  %s4542 = scalar_lea.vmem %s1, 602
  %4543 = vst.msk [vmem:[%s4542] sm:$0x2] %vm4539, %v4538
  %s4544 = scalar_lea.vmem %s1, 665
  %4545 = vst.msk [vmem:[%s4544] sm:$0x4] %vm4539, %v4538
  %s4546 = scalar_lea.vmem %s1, 728
  %4547 = vst.msk [vmem:[%s4546] sm:$0x8] %vm4539, %v4538
  %s4548 = scalar_lea.vmem %s1, 791
  %4549 = vst.msk [vmem:[%s4548] sm:$0x10] %vm4539, %v4538
  %s4550 = scalar_lea.vmem %s1, 854
  %4551 = vst.msk [vmem:[%s4550] sm:$0x20] %vm4539, %v4538
  %s4552 = scalar_lea.vmem %s1, 917
  %4553 = vst.msk [vmem:[%s4552] sm:$0x40] %vm4539, %v4538
  %s4554 = scalar_lea.vmem %s1, 980
  %4555 = vst.msk [vmem:[%s4554] sm:$0x80] %vm4539, %v4538
  %s4556 = scalar_lea.vmem %s0, 24
  %v4557 = vld [vmem:[%s4556] sm:$0xff]
  %4558 = vrot.lane.b32.xlu0 %v4557, 20
  %v4559 = vpop.permute.xlu0 %4558
  %vm4560 = vcmask 31744
  %s4561 = scalar_lea.vmem %s1, 571
  %4562 = vst.msk [vmem:[%s4561] sm:$0x1] %vm4560, %v4559
  %s4563 = scalar_lea.vmem %s1, 634
  %4564 = vst.msk [vmem:[%s4563] sm:$0x2] %vm4560, %v4559
  %s4565 = scalar_lea.vmem %s1, 697
  %4566 = vst.msk [vmem:[%s4565] sm:$0x4] %vm4560, %v4559
  %s4567 = scalar_lea.vmem %s1, 760
  %4568 = vst.msk [vmem:[%s4567] sm:$0x8] %vm4560, %v4559
  %s4569 = scalar_lea.vmem %s1, 823
  %4570 = vst.msk [vmem:[%s4569] sm:$0x10] %vm4560, %v4559
  %s4571 = scalar_lea.vmem %s1, 886
  %4572 = vst.msk [vmem:[%s4571] sm:$0x20] %vm4560, %v4559
  %s4573 = scalar_lea.vmem %s1, 949
  %4574 = vst.msk [vmem:[%s4573] sm:$0x40] %vm4560, %v4559
  %s4575 = scalar_lea.vmem %s1, 1012
  %4576 = vst.msk [vmem:[%s4575] sm:$0x80] %vm4560, %v4559
  %s4577 = scalar_lea.vmem %s0, 32
  %v4578 = vld [vmem:[%s4577] sm:$0xff]
  %4579 = vrot.lane.b32.xlu0 %v4578, 20
  %v4580 = vpop.permute.xlu0 %4579
  %vm4581 = vcmask 31744
  %s4582 = scalar_lea.vmem %s1, 1051
  %4583 = vst.msk [vmem:[%s4582] sm:$0x1] %vm4581, %v4580
  %s4584 = scalar_lea.vmem %s1, 1114
  %4585 = vst.msk [vmem:[%s4584] sm:$0x2] %vm4581, %v4580
  %s4586 = scalar_lea.vmem %s1, 1177
  %4587 = vst.msk [vmem:[%s4586] sm:$0x4] %vm4581, %v4580
  %s4588 = scalar_lea.vmem %s1, 1240
  %4589 = vst.msk [vmem:[%s4588] sm:$0x8] %vm4581, %v4580
  %s4590 = scalar_lea.vmem %s1, 1303
  %4591 = vst.msk [vmem:[%s4590] sm:$0x10] %vm4581, %v4580
  %s4592 = scalar_lea.vmem %s1, 1366
  %4593 = vst.msk [vmem:[%s4592] sm:$0x20] %vm4581, %v4580
  %s4594 = scalar_lea.vmem %s1, 1429
  %4595 = vst.msk [vmem:[%s4594] sm:$0x40] %vm4581, %v4580
  %s4596 = scalar_lea.vmem %s1, 1492
  %4597 = vst.msk [vmem:[%s4596] sm:$0x80] %vm4581, %v4580
  %s4598 = scalar_lea.vmem %s0, 40
  %v4599 = vld [vmem:[%s4598] sm:$0xff]
  %4600 = vrot.lane.b32.xlu0 %v4599, 20
  %v4601 = vpop.permute.xlu0 %4600
  %vm4602 = vcmask 31744
  %s4603 = scalar_lea.vmem %s1, 1083
  %4604 = vst.msk [vmem:[%s4603] sm:$0x1] %vm4602, %v4601
  %s4605 = scalar_lea.vmem %s1, 1146
  %4606 = vst.msk [vmem:[%s4605] sm:$0x2] %vm4602, %v4601
  %s4607 = scalar_lea.vmem %s1, 1209
  %4608 = vst.msk [vmem:[%s4607] sm:$0x4] %vm4602, %v4601
  %s4609 = scalar_lea.vmem %s1, 1272
  %4610 = vst.msk [vmem:[%s4609] sm:$0x8] %vm4602, %v4601
  %s4611 = scalar_lea.vmem %s1, 1335
  %4612 = vst.msk [vmem:[%s4611] sm:$0x10] %vm4602, %v4601
  %s4613 = scalar_lea.vmem %s1, 1398
  %4614 = vst.msk [vmem:[%s4613] sm:$0x20] %vm4602, %v4601
  %s4615 = scalar_lea.vmem %s1, 1461
  %4616 = vst.msk [vmem:[%s4615] sm:$0x40] %vm4602, %v4601
  %s4617 = scalar_lea.vmem %s1, 1524
  %4618 = vst.msk [vmem:[%s4617] sm:$0x80] %vm4602, %v4601
  %s4619 = scalar_lea.vmem %s0, 48
  %v4620 = vld [vmem:[%s4619] sm:$0xff]
  %4621 = vrot.lane.b32.xlu0 %v4620, 20
  %v4622 = vpop.permute.xlu0 %4621
  %vm4623 = vcmask 31744
  %s4624 = scalar_lea.vmem %s1, 1563
  %4625 = vst.msk [vmem:[%s4624] sm:$0x1] %vm4623, %v4622
  %s4626 = scalar_lea.vmem %s1, 1626
  %4627 = vst.msk [vmem:[%s4626] sm:$0x2] %vm4623, %v4622
  %s4628 = scalar_lea.vmem %s1, 1689
  %4629 = vst.msk [vmem:[%s4628] sm:$0x4] %vm4623, %v4622
  %s4630 = scalar_lea.vmem %s1, 1752
  %4631 = vst.msk [vmem:[%s4630] sm:$0x8] %vm4623, %v4622
  %s4632 = scalar_lea.vmem %s1, 1815
  %4633 = vst.msk [vmem:[%s4632] sm:$0x10] %vm4623, %v4622
  %s4634 = scalar_lea.vmem %s1, 1878
  %4635 = vst.msk [vmem:[%s4634] sm:$0x20] %vm4623, %v4622
  %s4636 = scalar_lea.vmem %s1, 1941
  %4637 = vst.msk [vmem:[%s4636] sm:$0x40] %vm4623, %v4622
  %s4638 = scalar_lea.vmem %s1, 2004
  %4639 = vst.msk [vmem:[%s4638] sm:$0x80] %vm4623, %v4622
  %s4640 = scalar_lea.vmem %s0, 56
  %v4641 = vld [vmem:[%s4640] sm:$0xff]
  %4642 = vrot.lane.b32.xlu0 %v4641, 20
  %v4643 = vpop.permute.xlu0 %4642
  %vm4644 = vcmask 31744
  %s4645 = scalar_lea.vmem %s1, 1595
  %4646 = vst.msk [vmem:[%s4645] sm:$0x1] %vm4644, %v4643
  %s4647 = scalar_lea.vmem %s1, 1658
  %4648 = vst.msk [vmem:[%s4647] sm:$0x2] %vm4644, %v4643
  %s4649 = scalar_lea.vmem %s1, 1721
  %4650 = vst.msk [vmem:[%s4649] sm:$0x4] %vm4644, %v4643
  %s4651 = scalar_lea.vmem %s1, 1784
  %4652 = vst.msk [vmem:[%s4651] sm:$0x8] %vm4644, %v4643
  %s4653 = scalar_lea.vmem %s1, 1847
  %4654 = vst.msk [vmem:[%s4653] sm:$0x10] %vm4644, %v4643
  %s4655 = scalar_lea.vmem %s1, 1910
  %4656 = vst.msk [vmem:[%s4655] sm:$0x20] %vm4644, %v4643
  %s4657 = scalar_lea.vmem %s1, 1973
  %4658 = vst.msk [vmem:[%s4657] sm:$0x40] %vm4644, %v4643
  %s4659 = scalar_lea.vmem %s1, 2036
  %4660 = vst.msk [vmem:[%s4659] sm:$0x80] %vm4644, %v4643
  %v4661 = vld [vmem:[%s0] sm:$0xff]
  %4662 = vrot.lane.b32.xlu0 %v4661, 16
  %v4663 = vpop.permute.xlu0 %4662
  %vm4664 = vcmask 31744
  %s4665 = scalar_lea.vmem %s1, 28
  %4666 = vst.msk [vmem:[%s4665] sm:$0x1] %vm4664, %v4663
  %s4667 = scalar_lea.vmem %s1, 91
  %4668 = vst.msk [vmem:[%s4667] sm:$0x2] %vm4664, %v4663
  %s4669 = scalar_lea.vmem %s1, 154
  %4670 = vst.msk [vmem:[%s4669] sm:$0x4] %vm4664, %v4663
  %s4671 = scalar_lea.vmem %s1, 217
  %4672 = vst.msk [vmem:[%s4671] sm:$0x8] %vm4664, %v4663
  %s4673 = scalar_lea.vmem %s1, 280
  %4674 = vst.msk [vmem:[%s4673] sm:$0x10] %vm4664, %v4663
  %s4675 = scalar_lea.vmem %s1, 343
  %4676 = vst.msk [vmem:[%s4675] sm:$0x20] %vm4664, %v4663
  %s4677 = scalar_lea.vmem %s1, 406
  %4678 = vst.msk [vmem:[%s4677] sm:$0x40] %vm4664, %v4663
  %s4679 = scalar_lea.vmem %s1, 469
  %4680 = vst.msk [vmem:[%s4679] sm:$0x80] %vm4664, %v4663
  %s4681 = scalar_lea.vmem %s0, 8
  %v4682 = vld [vmem:[%s4681] sm:$0xff]
  %4683 = vrot.lane.b32.xlu0 %v4682, 16
  %v4684 = vpop.permute.xlu0 %4683
  %vm4685 = vcmask 31744
  %s4686 = scalar_lea.vmem %s1, 60
  %4687 = vst.msk [vmem:[%s4686] sm:$0x1] %vm4685, %v4684
  %s4688 = scalar_lea.vmem %s1, 123
  %4689 = vst.msk [vmem:[%s4688] sm:$0x2] %vm4685, %v4684
  %s4690 = scalar_lea.vmem %s1, 186
  %4691 = vst.msk [vmem:[%s4690] sm:$0x4] %vm4685, %v4684
  %s4692 = scalar_lea.vmem %s1, 249
  %4693 = vst.msk [vmem:[%s4692] sm:$0x8] %vm4685, %v4684
  %s4694 = scalar_lea.vmem %s1, 312
  %4695 = vst.msk [vmem:[%s4694] sm:$0x10] %vm4685, %v4684
  %s4696 = scalar_lea.vmem %s1, 375
  %4697 = vst.msk [vmem:[%s4696] sm:$0x20] %vm4685, %v4684
  %s4698 = scalar_lea.vmem %s1, 438
  %4699 = vst.msk [vmem:[%s4698] sm:$0x40] %vm4685, %v4684
  %s4700 = scalar_lea.vmem %s1, 501
  %4701 = vst.msk [vmem:[%s4700] sm:$0x80] %vm4685, %v4684
  %s4702 = scalar_lea.vmem %s0, 16
  %v4703 = vld [vmem:[%s4702] sm:$0xff]
  %4704 = vrot.lane.b32.xlu0 %v4703, 16
  %v4705 = vpop.permute.xlu0 %4704
  %vm4706 = vcmask 31744
  %s4707 = scalar_lea.vmem %s1, 540
  %4708 = vst.msk [vmem:[%s4707] sm:$0x1] %vm4706, %v4705
  %s4709 = scalar_lea.vmem %s1, 603
  %4710 = vst.msk [vmem:[%s4709] sm:$0x2] %vm4706, %v4705
  %s4711 = scalar_lea.vmem %s1, 666
  %4712 = vst.msk [vmem:[%s4711] sm:$0x4] %vm4706, %v4705
  %s4713 = scalar_lea.vmem %s1, 729
  %4714 = vst.msk [vmem:[%s4713] sm:$0x8] %vm4706, %v4705
  %s4715 = scalar_lea.vmem %s1, 792
  %4716 = vst.msk [vmem:[%s4715] sm:$0x10] %vm4706, %v4705
  %s4717 = scalar_lea.vmem %s1, 855
  %4718 = vst.msk [vmem:[%s4717] sm:$0x20] %vm4706, %v4705
  %s4719 = scalar_lea.vmem %s1, 918
  %4720 = vst.msk [vmem:[%s4719] sm:$0x40] %vm4706, %v4705
  %s4721 = scalar_lea.vmem %s1, 981
  %4722 = vst.msk [vmem:[%s4721] sm:$0x80] %vm4706, %v4705
  %s4723 = scalar_lea.vmem %s0, 24
  %v4724 = vld [vmem:[%s4723] sm:$0xff]
  %4725 = vrot.lane.b32.xlu0 %v4724, 16
  %v4726 = vpop.permute.xlu0 %4725
  %vm4727 = vcmask 31744
  %s4728 = scalar_lea.vmem %s1, 572
  %4729 = vst.msk [vmem:[%s4728] sm:$0x1] %vm4727, %v4726
  %s4730 = scalar_lea.vmem %s1, 635
  %4731 = vst.msk [vmem:[%s4730] sm:$0x2] %vm4727, %v4726
  %s4732 = scalar_lea.vmem %s1, 698
  %4733 = vst.msk [vmem:[%s4732] sm:$0x4] %vm4727, %v4726
  %s4734 = scalar_lea.vmem %s1, 761
  %4735 = vst.msk [vmem:[%s4734] sm:$0x8] %vm4727, %v4726
  %s4736 = scalar_lea.vmem %s1, 824
  %4737 = vst.msk [vmem:[%s4736] sm:$0x10] %vm4727, %v4726
  %s4738 = scalar_lea.vmem %s1, 887
  %4739 = vst.msk [vmem:[%s4738] sm:$0x20] %vm4727, %v4726
  %s4740 = scalar_lea.vmem %s1, 950
  %4741 = vst.msk [vmem:[%s4740] sm:$0x40] %vm4727, %v4726
  %s4742 = scalar_lea.vmem %s1, 1013
  %4743 = vst.msk [vmem:[%s4742] sm:$0x80] %vm4727, %v4726
  %s4744 = scalar_lea.vmem %s0, 32
  %v4745 = vld [vmem:[%s4744] sm:$0xff]
  %4746 = vrot.lane.b32.xlu0 %v4745, 16
  %v4747 = vpop.permute.xlu0 %4746
  %vm4748 = vcmask 31744
  %s4749 = scalar_lea.vmem %s1, 1052
  %4750 = vst.msk [vmem:[%s4749] sm:$0x1] %vm4748, %v4747
  %s4751 = scalar_lea.vmem %s1, 1115
  %4752 = vst.msk [vmem:[%s4751] sm:$0x2] %vm4748, %v4747
  %s4753 = scalar_lea.vmem %s1, 1178
  %4754 = vst.msk [vmem:[%s4753] sm:$0x4] %vm4748, %v4747
  %s4755 = scalar_lea.vmem %s1, 1241
  %4756 = vst.msk [vmem:[%s4755] sm:$0x8] %vm4748, %v4747
  %s4757 = scalar_lea.vmem %s1, 1304
  %4758 = vst.msk [vmem:[%s4757] sm:$0x10] %vm4748, %v4747
  %s4759 = scalar_lea.vmem %s1, 1367
  %4760 = vst.msk [vmem:[%s4759] sm:$0x20] %vm4748, %v4747
  %s4761 = scalar_lea.vmem %s1, 1430
  %4762 = vst.msk [vmem:[%s4761] sm:$0x40] %vm4748, %v4747
  %s4763 = scalar_lea.vmem %s1, 1493
  %4764 = vst.msk [vmem:[%s4763] sm:$0x80] %vm4748, %v4747
  %s4765 = scalar_lea.vmem %s0, 40
  %v4766 = vld [vmem:[%s4765] sm:$0xff]
  %4767 = vrot.lane.b32.xlu0 %v4766, 16
  %v4768 = vpop.permute.xlu0 %4767
  %vm4769 = vcmask 31744
  %s4770 = scalar_lea.vmem %s1, 1084
  %4771 = vst.msk [vmem:[%s4770] sm:$0x1] %vm4769, %v4768
  %s4772 = scalar_lea.vmem %s1, 1147
  %4773 = vst.msk [vmem:[%s4772] sm:$0x2] %vm4769, %v4768
  %s4774 = scalar_lea.vmem %s1, 1210
  %4775 = vst.msk [vmem:[%s4774] sm:$0x4] %vm4769, %v4768
  %s4776 = scalar_lea.vmem %s1, 1273
  %4777 = vst.msk [vmem:[%s4776] sm:$0x8] %vm4769, %v4768
  %s4778 = scalar_lea.vmem %s1, 1336
  %4779 = vst.msk [vmem:[%s4778] sm:$0x10] %vm4769, %v4768
  %s4780 = scalar_lea.vmem %s1, 1399
  %4781 = vst.msk [vmem:[%s4780] sm:$0x20] %vm4769, %v4768
  %s4782 = scalar_lea.vmem %s1, 1462
  %4783 = vst.msk [vmem:[%s4782] sm:$0x40] %vm4769, %v4768
  %s4784 = scalar_lea.vmem %s1, 1525
  %4785 = vst.msk [vmem:[%s4784] sm:$0x80] %vm4769, %v4768
  %s4786 = scalar_lea.vmem %s0, 48
  %v4787 = vld [vmem:[%s4786] sm:$0xff]
  %4788 = vrot.lane.b32.xlu0 %v4787, 16
  %v4789 = vpop.permute.xlu0 %4788
  %vm4790 = vcmask 31744
  %s4791 = scalar_lea.vmem %s1, 1564
  %4792 = vst.msk [vmem:[%s4791] sm:$0x1] %vm4790, %v4789
  %s4793 = scalar_lea.vmem %s1, 1627
  %4794 = vst.msk [vmem:[%s4793] sm:$0x2] %vm4790, %v4789
  %s4795 = scalar_lea.vmem %s1, 1690
  %4796 = vst.msk [vmem:[%s4795] sm:$0x4] %vm4790, %v4789
  %s4797 = scalar_lea.vmem %s1, 1753
  %4798 = vst.msk [vmem:[%s4797] sm:$0x8] %vm4790, %v4789
  %s4799 = scalar_lea.vmem %s1, 1816
  %4800 = vst.msk [vmem:[%s4799] sm:$0x10] %vm4790, %v4789
  %s4801 = scalar_lea.vmem %s1, 1879
  %4802 = vst.msk [vmem:[%s4801] sm:$0x20] %vm4790, %v4789
  %s4803 = scalar_lea.vmem %s1, 1942
  %4804 = vst.msk [vmem:[%s4803] sm:$0x40] %vm4790, %v4789
  %s4805 = scalar_lea.vmem %s1, 2005
  %4806 = vst.msk [vmem:[%s4805] sm:$0x80] %vm4790, %v4789
  %s4807 = scalar_lea.vmem %s0, 56
  %v4808 = vld [vmem:[%s4807] sm:$0xff]
  %4809 = vrot.lane.b32.xlu0 %v4808, 16
  %v4810 = vpop.permute.xlu0 %4809
  %vm4811 = vcmask 31744
  %s4812 = scalar_lea.vmem %s1, 1596
  %4813 = vst.msk [vmem:[%s4812] sm:$0x1] %vm4811, %v4810
  %s4814 = scalar_lea.vmem %s1, 1659
  %4815 = vst.msk [vmem:[%s4814] sm:$0x2] %vm4811, %v4810
  %s4816 = scalar_lea.vmem %s1, 1722
  %4817 = vst.msk [vmem:[%s4816] sm:$0x4] %vm4811, %v4810
  %s4818 = scalar_lea.vmem %s1, 1785
  %4819 = vst.msk [vmem:[%s4818] sm:$0x8] %vm4811, %v4810
  %s4820 = scalar_lea.vmem %s1, 1848
  %4821 = vst.msk [vmem:[%s4820] sm:$0x10] %vm4811, %v4810
  %s4822 = scalar_lea.vmem %s1, 1911
  %4823 = vst.msk [vmem:[%s4822] sm:$0x20] %vm4811, %v4810
  %s4824 = scalar_lea.vmem %s1, 1974
  %4825 = vst.msk [vmem:[%s4824] sm:$0x40] %vm4811, %v4810
  %s4826 = scalar_lea.vmem %s1, 2037
  %4827 = vst.msk [vmem:[%s4826] sm:$0x80] %vm4811, %v4810
  %v4828 = vld [vmem:[%s0] sm:$0xff]
  %4829 = vrot.lane.b32.xlu0 %v4828, 12
  %v4830 = vpop.permute.xlu0 %4829
  %vm4831 = vcmask 31744
  %s4832 = scalar_lea.vmem %s1, 29
  %4833 = vst.msk [vmem:[%s4832] sm:$0x1] %vm4831, %v4830
  %s4834 = scalar_lea.vmem %s1, 92
  %4835 = vst.msk [vmem:[%s4834] sm:$0x2] %vm4831, %v4830
  %s4836 = scalar_lea.vmem %s1, 155
  %4837 = vst.msk [vmem:[%s4836] sm:$0x4] %vm4831, %v4830
  %s4838 = scalar_lea.vmem %s1, 218
  %4839 = vst.msk [vmem:[%s4838] sm:$0x8] %vm4831, %v4830
  %s4840 = scalar_lea.vmem %s1, 281
  %4841 = vst.msk [vmem:[%s4840] sm:$0x10] %vm4831, %v4830
  %s4842 = scalar_lea.vmem %s1, 344
  %4843 = vst.msk [vmem:[%s4842] sm:$0x20] %vm4831, %v4830
  %s4844 = scalar_lea.vmem %s1, 407
  %4845 = vst.msk [vmem:[%s4844] sm:$0x40] %vm4831, %v4830
  %s4846 = scalar_lea.vmem %s1, 470
  %4847 = vst.msk [vmem:[%s4846] sm:$0x80] %vm4831, %v4830
  %s4848 = scalar_lea.vmem %s0, 8
  %v4849 = vld [vmem:[%s4848] sm:$0xff]
  %4850 = vrot.lane.b32.xlu0 %v4849, 12
  %v4851 = vpop.permute.xlu0 %4850
  %vm4852 = vcmask 31744
  %s4853 = scalar_lea.vmem %s1, 61
  %4854 = vst.msk [vmem:[%s4853] sm:$0x1] %vm4852, %v4851
  %s4855 = scalar_lea.vmem %s1, 124
  %4856 = vst.msk [vmem:[%s4855] sm:$0x2] %vm4852, %v4851
  %s4857 = scalar_lea.vmem %s1, 187
  %4858 = vst.msk [vmem:[%s4857] sm:$0x4] %vm4852, %v4851
  %s4859 = scalar_lea.vmem %s1, 250
  %4860 = vst.msk [vmem:[%s4859] sm:$0x8] %vm4852, %v4851
  %s4861 = scalar_lea.vmem %s1, 313
  %4862 = vst.msk [vmem:[%s4861] sm:$0x10] %vm4852, %v4851
  %s4863 = scalar_lea.vmem %s1, 376
  %4864 = vst.msk [vmem:[%s4863] sm:$0x20] %vm4852, %v4851
  %s4865 = scalar_lea.vmem %s1, 439
  %4866 = vst.msk [vmem:[%s4865] sm:$0x40] %vm4852, %v4851
  %s4867 = scalar_lea.vmem %s1, 502
  %4868 = vst.msk [vmem:[%s4867] sm:$0x80] %vm4852, %v4851
  %s4869 = scalar_lea.vmem %s0, 16
  %v4870 = vld [vmem:[%s4869] sm:$0xff]
  %4871 = vrot.lane.b32.xlu0 %v4870, 12
  %v4872 = vpop.permute.xlu0 %4871
  %vm4873 = vcmask 31744
  %s4874 = scalar_lea.vmem %s1, 541
  %4875 = vst.msk [vmem:[%s4874] sm:$0x1] %vm4873, %v4872
  %s4876 = scalar_lea.vmem %s1, 604
  %4877 = vst.msk [vmem:[%s4876] sm:$0x2] %vm4873, %v4872
  %s4878 = scalar_lea.vmem %s1, 667
  %4879 = vst.msk [vmem:[%s4878] sm:$0x4] %vm4873, %v4872
  %s4880 = scalar_lea.vmem %s1, 730
  %4881 = vst.msk [vmem:[%s4880] sm:$0x8] %vm4873, %v4872
  %s4882 = scalar_lea.vmem %s1, 793
  %4883 = vst.msk [vmem:[%s4882] sm:$0x10] %vm4873, %v4872
  %s4884 = scalar_lea.vmem %s1, 856
  %4885 = vst.msk [vmem:[%s4884] sm:$0x20] %vm4873, %v4872
  %s4886 = scalar_lea.vmem %s1, 919
  %4887 = vst.msk [vmem:[%s4886] sm:$0x40] %vm4873, %v4872
  %s4888 = scalar_lea.vmem %s1, 982
  %4889 = vst.msk [vmem:[%s4888] sm:$0x80] %vm4873, %v4872
  %s4890 = scalar_lea.vmem %s0, 24
  %v4891 = vld [vmem:[%s4890] sm:$0xff]
  %4892 = vrot.lane.b32.xlu0 %v4891, 12
  %v4893 = vpop.permute.xlu0 %4892
  %vm4894 = vcmask 31744
  %s4895 = scalar_lea.vmem %s1, 573
  %4896 = vst.msk [vmem:[%s4895] sm:$0x1] %vm4894, %v4893
  %s4897 = scalar_lea.vmem %s1, 636
  %4898 = vst.msk [vmem:[%s4897] sm:$0x2] %vm4894, %v4893
  %s4899 = scalar_lea.vmem %s1, 699
  %4900 = vst.msk [vmem:[%s4899] sm:$0x4] %vm4894, %v4893
  %s4901 = scalar_lea.vmem %s1, 762
  %4902 = vst.msk [vmem:[%s4901] sm:$0x8] %vm4894, %v4893
  %s4903 = scalar_lea.vmem %s1, 825
  %4904 = vst.msk [vmem:[%s4903] sm:$0x10] %vm4894, %v4893
  %s4905 = scalar_lea.vmem %s1, 888
  %4906 = vst.msk [vmem:[%s4905] sm:$0x20] %vm4894, %v4893
  %s4907 = scalar_lea.vmem %s1, 951
  %4908 = vst.msk [vmem:[%s4907] sm:$0x40] %vm4894, %v4893
  %s4909 = scalar_lea.vmem %s1, 1014
  %4910 = vst.msk [vmem:[%s4909] sm:$0x80] %vm4894, %v4893
  %s4911 = scalar_lea.vmem %s0, 32
  %v4912 = vld [vmem:[%s4911] sm:$0xff]
  %4913 = vrot.lane.b32.xlu0 %v4912, 12
  %v4914 = vpop.permute.xlu0 %4913
  %vm4915 = vcmask 31744
  %s4916 = scalar_lea.vmem %s1, 1053
  %4917 = vst.msk [vmem:[%s4916] sm:$0x1] %vm4915, %v4914
  %s4918 = scalar_lea.vmem %s1, 1116
  %4919 = vst.msk [vmem:[%s4918] sm:$0x2] %vm4915, %v4914
  %s4920 = scalar_lea.vmem %s1, 1179
  %4921 = vst.msk [vmem:[%s4920] sm:$0x4] %vm4915, %v4914
  %s4922 = scalar_lea.vmem %s1, 1242
  %4923 = vst.msk [vmem:[%s4922] sm:$0x8] %vm4915, %v4914
  %s4924 = scalar_lea.vmem %s1, 1305
  %4925 = vst.msk [vmem:[%s4924] sm:$0x10] %vm4915, %v4914
  %s4926 = scalar_lea.vmem %s1, 1368
  %4927 = vst.msk [vmem:[%s4926] sm:$0x20] %vm4915, %v4914
  %s4928 = scalar_lea.vmem %s1, 1431
  %4929 = vst.msk [vmem:[%s4928] sm:$0x40] %vm4915, %v4914
  %s4930 = scalar_lea.vmem %s1, 1494
  %4931 = vst.msk [vmem:[%s4930] sm:$0x80] %vm4915, %v4914
  %s4932 = scalar_lea.vmem %s0, 40
  %v4933 = vld [vmem:[%s4932] sm:$0xff]
  %4934 = vrot.lane.b32.xlu0 %v4933, 12
  %v4935 = vpop.permute.xlu0 %4934
  %vm4936 = vcmask 31744
  %s4937 = scalar_lea.vmem %s1, 1085
  %4938 = vst.msk [vmem:[%s4937] sm:$0x1] %vm4936, %v4935
  %s4939 = scalar_lea.vmem %s1, 1148
  %4940 = vst.msk [vmem:[%s4939] sm:$0x2] %vm4936, %v4935
  %s4941 = scalar_lea.vmem %s1, 1211
  %4942 = vst.msk [vmem:[%s4941] sm:$0x4] %vm4936, %v4935
  %s4943 = scalar_lea.vmem %s1, 1274
  %4944 = vst.msk [vmem:[%s4943] sm:$0x8] %vm4936, %v4935
  %s4945 = scalar_lea.vmem %s1, 1337
  %4946 = vst.msk [vmem:[%s4945] sm:$0x10] %vm4936, %v4935
  %s4947 = scalar_lea.vmem %s1, 1400
  %4948 = vst.msk [vmem:[%s4947] sm:$0x20] %vm4936, %v4935
  %s4949 = scalar_lea.vmem %s1, 1463
  %4950 = vst.msk [vmem:[%s4949] sm:$0x40] %vm4936, %v4935
  %s4951 = scalar_lea.vmem %s1, 1526
  %4952 = vst.msk [vmem:[%s4951] sm:$0x80] %vm4936, %v4935
  %s4953 = scalar_lea.vmem %s0, 48
  %v4954 = vld [vmem:[%s4953] sm:$0xff]
  %4955 = vrot.lane.b32.xlu0 %v4954, 12
  %v4956 = vpop.permute.xlu0 %4955
  %vm4957 = vcmask 31744
  %s4958 = scalar_lea.vmem %s1, 1565
  %4959 = vst.msk [vmem:[%s4958] sm:$0x1] %vm4957, %v4956
  %s4960 = scalar_lea.vmem %s1, 1628
  %4961 = vst.msk [vmem:[%s4960] sm:$0x2] %vm4957, %v4956
  %s4962 = scalar_lea.vmem %s1, 1691
  %4963 = vst.msk [vmem:[%s4962] sm:$0x4] %vm4957, %v4956
  %s4964 = scalar_lea.vmem %s1, 1754
  %4965 = vst.msk [vmem:[%s4964] sm:$0x8] %vm4957, %v4956
  %s4966 = scalar_lea.vmem %s1, 1817
  %4967 = vst.msk [vmem:[%s4966] sm:$0x10] %vm4957, %v4956
  %s4968 = scalar_lea.vmem %s1, 1880
  %4969 = vst.msk [vmem:[%s4968] sm:$0x20] %vm4957, %v4956
  %s4970 = scalar_lea.vmem %s1, 1943
  %4971 = vst.msk [vmem:[%s4970] sm:$0x40] %vm4957, %v4956
  %s4972 = scalar_lea.vmem %s1, 2006
  %4973 = vst.msk [vmem:[%s4972] sm:$0x80] %vm4957, %v4956
  %s4974 = scalar_lea.vmem %s0, 56
  %v4975 = vld [vmem:[%s4974] sm:$0xff]
  %4976 = vrot.lane.b32.xlu0 %v4975, 12
  %v4977 = vpop.permute.xlu0 %4976
  %vm4978 = vcmask 31744
  %s4979 = scalar_lea.vmem %s1, 1597
  %4980 = vst.msk [vmem:[%s4979] sm:$0x1] %vm4978, %v4977
  %s4981 = scalar_lea.vmem %s1, 1660
  %4982 = vst.msk [vmem:[%s4981] sm:$0x2] %vm4978, %v4977
  %s4983 = scalar_lea.vmem %s1, 1723
  %4984 = vst.msk [vmem:[%s4983] sm:$0x4] %vm4978, %v4977
  %s4985 = scalar_lea.vmem %s1, 1786
  %4986 = vst.msk [vmem:[%s4985] sm:$0x8] %vm4978, %v4977
  %s4987 = scalar_lea.vmem %s1, 1849
  %4988 = vst.msk [vmem:[%s4987] sm:$0x10] %vm4978, %v4977
  %s4989 = scalar_lea.vmem %s1, 1912
  %4990 = vst.msk [vmem:[%s4989] sm:$0x20] %vm4978, %v4977
  %s4991 = scalar_lea.vmem %s1, 1975
  %4992 = vst.msk [vmem:[%s4991] sm:$0x40] %vm4978, %v4977
  %s4993 = scalar_lea.vmem %s1, 2038
  %4994 = vst.msk [vmem:[%s4993] sm:$0x80] %vm4978, %v4977
  %v4995 = vld [vmem:[%s0] sm:$0xff]
  %4996 = vrot.lane.b32.xlu0 %v4995, 8
  %v4997 = vpop.permute.xlu0 %4996
  %vm4998 = vcmask 31744
  %s4999 = scalar_lea.vmem %s1, 30
  %5000 = vst.msk [vmem:[%s4999] sm:$0x1] %vm4998, %v4997
  %s5001 = scalar_lea.vmem %s1, 93
  %5002 = vst.msk [vmem:[%s5001] sm:$0x2] %vm4998, %v4997
  %s5003 = scalar_lea.vmem %s1, 156
  %5004 = vst.msk [vmem:[%s5003] sm:$0x4] %vm4998, %v4997
  %s5005 = scalar_lea.vmem %s1, 219
  %5006 = vst.msk [vmem:[%s5005] sm:$0x8] %vm4998, %v4997
  %s5007 = scalar_lea.vmem %s1, 282
  %5008 = vst.msk [vmem:[%s5007] sm:$0x10] %vm4998, %v4997
  %s5009 = scalar_lea.vmem %s1, 345
  %5010 = vst.msk [vmem:[%s5009] sm:$0x20] %vm4998, %v4997
  %s5011 = scalar_lea.vmem %s1, 408
  %5012 = vst.msk [vmem:[%s5011] sm:$0x40] %vm4998, %v4997
  %s5013 = scalar_lea.vmem %s1, 471
  %5014 = vst.msk [vmem:[%s5013] sm:$0x80] %vm4998, %v4997
  %s5015 = scalar_lea.vmem %s0, 8
  %v5016 = vld [vmem:[%s5015] sm:$0xff]
  %5017 = vrot.lane.b32.xlu0 %v5016, 8
  %v5018 = vpop.permute.xlu0 %5017
  %vm5019 = vcmask 31744
  %s5020 = scalar_lea.vmem %s1, 62
  %5021 = vst.msk [vmem:[%s5020] sm:$0x1] %vm5019, %v5018
  %s5022 = scalar_lea.vmem %s1, 125
  %5023 = vst.msk [vmem:[%s5022] sm:$0x2] %vm5019, %v5018
  %s5024 = scalar_lea.vmem %s1, 188
  %5025 = vst.msk [vmem:[%s5024] sm:$0x4] %vm5019, %v5018
  %s5026 = scalar_lea.vmem %s1, 251
  %5027 = vst.msk [vmem:[%s5026] sm:$0x8] %vm5019, %v5018
  %s5028 = scalar_lea.vmem %s1, 314
  %5029 = vst.msk [vmem:[%s5028] sm:$0x10] %vm5019, %v5018
  %s5030 = scalar_lea.vmem %s1, 377
  %5031 = vst.msk [vmem:[%s5030] sm:$0x20] %vm5019, %v5018
  %s5032 = scalar_lea.vmem %s1, 440
  %5033 = vst.msk [vmem:[%s5032] sm:$0x40] %vm5019, %v5018
  %s5034 = scalar_lea.vmem %s1, 503
  %5035 = vst.msk [vmem:[%s5034] sm:$0x80] %vm5019, %v5018
  %s5036 = scalar_lea.vmem %s0, 16
  %v5037 = vld [vmem:[%s5036] sm:$0xff]
  %5038 = vrot.lane.b32.xlu0 %v5037, 8
  %v5039 = vpop.permute.xlu0 %5038
  %vm5040 = vcmask 31744
  %s5041 = scalar_lea.vmem %s1, 542
  %5042 = vst.msk [vmem:[%s5041] sm:$0x1] %vm5040, %v5039
  %s5043 = scalar_lea.vmem %s1, 605
  %5044 = vst.msk [vmem:[%s5043] sm:$0x2] %vm5040, %v5039
  %s5045 = scalar_lea.vmem %s1, 668
  %5046 = vst.msk [vmem:[%s5045] sm:$0x4] %vm5040, %v5039
  %s5047 = scalar_lea.vmem %s1, 731
  %5048 = vst.msk [vmem:[%s5047] sm:$0x8] %vm5040, %v5039
  %s5049 = scalar_lea.vmem %s1, 794
  %5050 = vst.msk [vmem:[%s5049] sm:$0x10] %vm5040, %v5039
  %s5051 = scalar_lea.vmem %s1, 857
  %5052 = vst.msk [vmem:[%s5051] sm:$0x20] %vm5040, %v5039
  %s5053 = scalar_lea.vmem %s1, 920
  %5054 = vst.msk [vmem:[%s5053] sm:$0x40] %vm5040, %v5039
  %s5055 = scalar_lea.vmem %s1, 983
  %5056 = vst.msk [vmem:[%s5055] sm:$0x80] %vm5040, %v5039
  %s5057 = scalar_lea.vmem %s0, 24
  %v5058 = vld [vmem:[%s5057] sm:$0xff]
  %5059 = vrot.lane.b32.xlu0 %v5058, 8
  %v5060 = vpop.permute.xlu0 %5059
  %vm5061 = vcmask 31744
  %s5062 = scalar_lea.vmem %s1, 574
  %5063 = vst.msk [vmem:[%s5062] sm:$0x1] %vm5061, %v5060
  %s5064 = scalar_lea.vmem %s1, 637
  %5065 = vst.msk [vmem:[%s5064] sm:$0x2] %vm5061, %v5060
  %s5066 = scalar_lea.vmem %s1, 700
  %5067 = vst.msk [vmem:[%s5066] sm:$0x4] %vm5061, %v5060
  %s5068 = scalar_lea.vmem %s1, 763
  %5069 = vst.msk [vmem:[%s5068] sm:$0x8] %vm5061, %v5060
  %s5070 = scalar_lea.vmem %s1, 826
  %5071 = vst.msk [vmem:[%s5070] sm:$0x10] %vm5061, %v5060
  %s5072 = scalar_lea.vmem %s1, 889
  %5073 = vst.msk [vmem:[%s5072] sm:$0x20] %vm5061, %v5060
  %s5074 = scalar_lea.vmem %s1, 952
  %5075 = vst.msk [vmem:[%s5074] sm:$0x40] %vm5061, %v5060
  %s5076 = scalar_lea.vmem %s1, 1015
  %5077 = vst.msk [vmem:[%s5076] sm:$0x80] %vm5061, %v5060
  %s5078 = scalar_lea.vmem %s0, 32
  %v5079 = vld [vmem:[%s5078] sm:$0xff]
  %5080 = vrot.lane.b32.xlu0 %v5079, 8
  %v5081 = vpop.permute.xlu0 %5080
  %vm5082 = vcmask 31744
  %s5083 = scalar_lea.vmem %s1, 1054
  %5084 = vst.msk [vmem:[%s5083] sm:$0x1] %vm5082, %v5081
  %s5085 = scalar_lea.vmem %s1, 1117
  %5086 = vst.msk [vmem:[%s5085] sm:$0x2] %vm5082, %v5081
  %s5087 = scalar_lea.vmem %s1, 1180
  %5088 = vst.msk [vmem:[%s5087] sm:$0x4] %vm5082, %v5081
  %s5089 = scalar_lea.vmem %s1, 1243
  %5090 = vst.msk [vmem:[%s5089] sm:$0x8] %vm5082, %v5081
  %s5091 = scalar_lea.vmem %s1, 1306
  %5092 = vst.msk [vmem:[%s5091] sm:$0x10] %vm5082, %v5081
  %s5093 = scalar_lea.vmem %s1, 1369
  %5094 = vst.msk [vmem:[%s5093] sm:$0x20] %vm5082, %v5081
  %s5095 = scalar_lea.vmem %s1, 1432
  %5096 = vst.msk [vmem:[%s5095] sm:$0x40] %vm5082, %v5081
  %s5097 = scalar_lea.vmem %s1, 1495
  %5098 = vst.msk [vmem:[%s5097] sm:$0x80] %vm5082, %v5081
  %s5099 = scalar_lea.vmem %s0, 40
  %v5100 = vld [vmem:[%s5099] sm:$0xff]
  %5101 = vrot.lane.b32.xlu0 %v5100, 8
  %v5102 = vpop.permute.xlu0 %5101
  %vm5103 = vcmask 31744
  %s5104 = scalar_lea.vmem %s1, 1086
  %5105 = vst.msk [vmem:[%s5104] sm:$0x1] %vm5103, %v5102
  %s5106 = scalar_lea.vmem %s1, 1149
  %5107 = vst.msk [vmem:[%s5106] sm:$0x2] %vm5103, %v5102
  %s5108 = scalar_lea.vmem %s1, 1212
  %5109 = vst.msk [vmem:[%s5108] sm:$0x4] %vm5103, %v5102
  %s5110 = scalar_lea.vmem %s1, 1275
  %5111 = vst.msk [vmem:[%s5110] sm:$0x8] %vm5103, %v5102
  %s5112 = scalar_lea.vmem %s1, 1338
  %5113 = vst.msk [vmem:[%s5112] sm:$0x10] %vm5103, %v5102
  %s5114 = scalar_lea.vmem %s1, 1401
  %5115 = vst.msk [vmem:[%s5114] sm:$0x20] %vm5103, %v5102
  %s5116 = scalar_lea.vmem %s1, 1464
  %5117 = vst.msk [vmem:[%s5116] sm:$0x40] %vm5103, %v5102
  %s5118 = scalar_lea.vmem %s1, 1527
  %5119 = vst.msk [vmem:[%s5118] sm:$0x80] %vm5103, %v5102
  %s5120 = scalar_lea.vmem %s0, 48
  %v5121 = vld [vmem:[%s5120] sm:$0xff]
  %5122 = vrot.lane.b32.xlu0 %v5121, 8
  %v5123 = vpop.permute.xlu0 %5122
  %vm5124 = vcmask 31744
  %s5125 = scalar_lea.vmem %s1, 1566
  %5126 = vst.msk [vmem:[%s5125] sm:$0x1] %vm5124, %v5123
  %s5127 = scalar_lea.vmem %s1, 1629
  %5128 = vst.msk [vmem:[%s5127] sm:$0x2] %vm5124, %v5123
  %s5129 = scalar_lea.vmem %s1, 1692
  %5130 = vst.msk [vmem:[%s5129] sm:$0x4] %vm5124, %v5123
  %s5131 = scalar_lea.vmem %s1, 1755
  %5132 = vst.msk [vmem:[%s5131] sm:$0x8] %vm5124, %v5123
  %s5133 = scalar_lea.vmem %s1, 1818
  %5134 = vst.msk [vmem:[%s5133] sm:$0x10] %vm5124, %v5123
  %s5135 = scalar_lea.vmem %s1, 1881
  %5136 = vst.msk [vmem:[%s5135] sm:$0x20] %vm5124, %v5123
  %s5137 = scalar_lea.vmem %s1, 1944
  %5138 = vst.msk [vmem:[%s5137] sm:$0x40] %vm5124, %v5123
  %s5139 = scalar_lea.vmem %s1, 2007
  %5140 = vst.msk [vmem:[%s5139] sm:$0x80] %vm5124, %v5123
  %s5141 = scalar_lea.vmem %s0, 56
  %v5142 = vld [vmem:[%s5141] sm:$0xff]
  %5143 = vrot.lane.b32.xlu0 %v5142, 8
  %v5144 = vpop.permute.xlu0 %5143
  %vm5145 = vcmask 31744
  %s5146 = scalar_lea.vmem %s1, 1598
  %5147 = vst.msk [vmem:[%s5146] sm:$0x1] %vm5145, %v5144
  %s5148 = scalar_lea.vmem %s1, 1661
  %5149 = vst.msk [vmem:[%s5148] sm:$0x2] %vm5145, %v5144
  %s5150 = scalar_lea.vmem %s1, 1724
  %5151 = vst.msk [vmem:[%s5150] sm:$0x4] %vm5145, %v5144
  %s5152 = scalar_lea.vmem %s1, 1787
  %5153 = vst.msk [vmem:[%s5152] sm:$0x8] %vm5145, %v5144
  %s5154 = scalar_lea.vmem %s1, 1850
  %5155 = vst.msk [vmem:[%s5154] sm:$0x10] %vm5145, %v5144
  %s5156 = scalar_lea.vmem %s1, 1913
  %5157 = vst.msk [vmem:[%s5156] sm:$0x20] %vm5145, %v5144
  %s5158 = scalar_lea.vmem %s1, 1976
  %5159 = vst.msk [vmem:[%s5158] sm:$0x40] %vm5145, %v5144
  %s5160 = scalar_lea.vmem %s1, 2039
  %5161 = vst.msk [vmem:[%s5160] sm:$0x80] %vm5145, %v5144
  %v5162 = vld [vmem:[%s0] sm:$0xff]
  %5163 = vrot.lane.b32.xlu0 %v5162, 4
  %v5164 = vpop.permute.xlu0 %5163
  %vm5165 = vcmask 31744
  %s5166 = scalar_lea.vmem %s1, 31
  %5167 = vst.msk [vmem:[%s5166] sm:$0x1] %vm5165, %v5164
  %s5168 = scalar_lea.vmem %s1, 94
  %5169 = vst.msk [vmem:[%s5168] sm:$0x2] %vm5165, %v5164
  %s5170 = scalar_lea.vmem %s1, 157
  %5171 = vst.msk [vmem:[%s5170] sm:$0x4] %vm5165, %v5164
  %s5172 = scalar_lea.vmem %s1, 220
  %5173 = vst.msk [vmem:[%s5172] sm:$0x8] %vm5165, %v5164
  %s5174 = scalar_lea.vmem %s1, 283
  %5175 = vst.msk [vmem:[%s5174] sm:$0x10] %vm5165, %v5164
  %s5176 = scalar_lea.vmem %s1, 346
  %5177 = vst.msk [vmem:[%s5176] sm:$0x20] %vm5165, %v5164
  %s5178 = scalar_lea.vmem %s1, 409
  %5179 = vst.msk [vmem:[%s5178] sm:$0x40] %vm5165, %v5164
  %s5180 = scalar_lea.vmem %s1, 472
  %5181 = vst.msk [vmem:[%s5180] sm:$0x80] %vm5165, %v5164
  %s5182 = scalar_lea.vmem %s0, 8
  %v5183 = vld [vmem:[%s5182] sm:$0xff]
  %5184 = vrot.lane.b32.xlu0 %v5183, 4
  %v5185 = vpop.permute.xlu0 %5184
  %vm5186 = vcmask 31744
  %s5187 = scalar_lea.vmem %s1, 63
  %5188 = vst.msk [vmem:[%s5187] sm:$0x1] %vm5186, %v5185
  %s5189 = scalar_lea.vmem %s1, 126
  %5190 = vst.msk [vmem:[%s5189] sm:$0x2] %vm5186, %v5185
  %s5191 = scalar_lea.vmem %s1, 189
  %5192 = vst.msk [vmem:[%s5191] sm:$0x4] %vm5186, %v5185
  %s5193 = scalar_lea.vmem %s1, 252
  %5194 = vst.msk [vmem:[%s5193] sm:$0x8] %vm5186, %v5185
  %s5195 = scalar_lea.vmem %s1, 315
  %5196 = vst.msk [vmem:[%s5195] sm:$0x10] %vm5186, %v5185
  %s5197 = scalar_lea.vmem %s1, 378
  %5198 = vst.msk [vmem:[%s5197] sm:$0x20] %vm5186, %v5185
  %s5199 = scalar_lea.vmem %s1, 441
  %5200 = vst.msk [vmem:[%s5199] sm:$0x40] %vm5186, %v5185
  %s5201 = scalar_lea.vmem %s1, 504
  %5202 = vst.msk [vmem:[%s5201] sm:$0x80] %vm5186, %v5185
  %s5203 = scalar_lea.vmem %s0, 16
  %v5204 = vld [vmem:[%s5203] sm:$0xff]
  %5205 = vrot.lane.b32.xlu0 %v5204, 4
  %v5206 = vpop.permute.xlu0 %5205
  %vm5207 = vcmask 31744
  %s5208 = scalar_lea.vmem %s1, 543
  %5209 = vst.msk [vmem:[%s5208] sm:$0x1] %vm5207, %v5206
  %s5210 = scalar_lea.vmem %s1, 606
  %5211 = vst.msk [vmem:[%s5210] sm:$0x2] %vm5207, %v5206
  %s5212 = scalar_lea.vmem %s1, 669
  %5213 = vst.msk [vmem:[%s5212] sm:$0x4] %vm5207, %v5206
  %s5214 = scalar_lea.vmem %s1, 732
  %5215 = vst.msk [vmem:[%s5214] sm:$0x8] %vm5207, %v5206
  %s5216 = scalar_lea.vmem %s1, 795
  %5217 = vst.msk [vmem:[%s5216] sm:$0x10] %vm5207, %v5206
  %s5218 = scalar_lea.vmem %s1, 858
  %5219 = vst.msk [vmem:[%s5218] sm:$0x20] %vm5207, %v5206
  %s5220 = scalar_lea.vmem %s1, 921
  %5221 = vst.msk [vmem:[%s5220] sm:$0x40] %vm5207, %v5206
  %s5222 = scalar_lea.vmem %s1, 984
  %5223 = vst.msk [vmem:[%s5222] sm:$0x80] %vm5207, %v5206
  %s5224 = scalar_lea.vmem %s0, 24
  %v5225 = vld [vmem:[%s5224] sm:$0xff]
  %5226 = vrot.lane.b32.xlu0 %v5225, 4
  %v5227 = vpop.permute.xlu0 %5226
  %vm5228 = vcmask 31744
  %s5229 = scalar_lea.vmem %s1, 575
  %5230 = vst.msk [vmem:[%s5229] sm:$0x1] %vm5228, %v5227
  %s5231 = scalar_lea.vmem %s1, 638
  %5232 = vst.msk [vmem:[%s5231] sm:$0x2] %vm5228, %v5227
  %s5233 = scalar_lea.vmem %s1, 701
  %5234 = vst.msk [vmem:[%s5233] sm:$0x4] %vm5228, %v5227
  %s5235 = scalar_lea.vmem %s1, 764
  %5236 = vst.msk [vmem:[%s5235] sm:$0x8] %vm5228, %v5227
  %s5237 = scalar_lea.vmem %s1, 827
  %5238 = vst.msk [vmem:[%s5237] sm:$0x10] %vm5228, %v5227
  %s5239 = scalar_lea.vmem %s1, 890
  %5240 = vst.msk [vmem:[%s5239] sm:$0x20] %vm5228, %v5227
  %s5241 = scalar_lea.vmem %s1, 953
  %5242 = vst.msk [vmem:[%s5241] sm:$0x40] %vm5228, %v5227
  %s5243 = scalar_lea.vmem %s1, 1016
  %5244 = vst.msk [vmem:[%s5243] sm:$0x80] %vm5228, %v5227
  %s5245 = scalar_lea.vmem %s0, 32
  %v5246 = vld [vmem:[%s5245] sm:$0xff]
  %5247 = vrot.lane.b32.xlu0 %v5246, 4
  %v5248 = vpop.permute.xlu0 %5247
  %vm5249 = vcmask 31744
  %s5250 = scalar_lea.vmem %s1, 1055
  %5251 = vst.msk [vmem:[%s5250] sm:$0x1] %vm5249, %v5248
  %s5252 = scalar_lea.vmem %s1, 1118
  %5253 = vst.msk [vmem:[%s5252] sm:$0x2] %vm5249, %v5248
  %s5254 = scalar_lea.vmem %s1, 1181
  %5255 = vst.msk [vmem:[%s5254] sm:$0x4] %vm5249, %v5248
  %s5256 = scalar_lea.vmem %s1, 1244
  %5257 = vst.msk [vmem:[%s5256] sm:$0x8] %vm5249, %v5248
  %s5258 = scalar_lea.vmem %s1, 1307
  %5259 = vst.msk [vmem:[%s5258] sm:$0x10] %vm5249, %v5248
  %s5260 = scalar_lea.vmem %s1, 1370
  %5261 = vst.msk [vmem:[%s5260] sm:$0x20] %vm5249, %v5248
  %s5262 = scalar_lea.vmem %s1, 1433
  %5263 = vst.msk [vmem:[%s5262] sm:$0x40] %vm5249, %v5248
  %s5264 = scalar_lea.vmem %s1, 1496
  %5265 = vst.msk [vmem:[%s5264] sm:$0x80] %vm5249, %v5248
  %s5266 = scalar_lea.vmem %s0, 40
  %v5267 = vld [vmem:[%s5266] sm:$0xff]
  %5268 = vrot.lane.b32.xlu0 %v5267, 4
  %v5269 = vpop.permute.xlu0 %5268
  %vm5270 = vcmask 31744
  %s5271 = scalar_lea.vmem %s1, 1087
  %5272 = vst.msk [vmem:[%s5271] sm:$0x1] %vm5270, %v5269
  %s5273 = scalar_lea.vmem %s1, 1150
  %5274 = vst.msk [vmem:[%s5273] sm:$0x2] %vm5270, %v5269
  %s5275 = scalar_lea.vmem %s1, 1213
  %5276 = vst.msk [vmem:[%s5275] sm:$0x4] %vm5270, %v5269
  %s5277 = scalar_lea.vmem %s1, 1276
  %5278 = vst.msk [vmem:[%s5277] sm:$0x8] %vm5270, %v5269
  %s5279 = scalar_lea.vmem %s1, 1339
  %5280 = vst.msk [vmem:[%s5279] sm:$0x10] %vm5270, %v5269
  %s5281 = scalar_lea.vmem %s1, 1402
  %5282 = vst.msk [vmem:[%s5281] sm:$0x20] %vm5270, %v5269
  %s5283 = scalar_lea.vmem %s1, 1465
  %5284 = vst.msk [vmem:[%s5283] sm:$0x40] %vm5270, %v5269
  %s5285 = scalar_lea.vmem %s1, 1528
  %5286 = vst.msk [vmem:[%s5285] sm:$0x80] %vm5270, %v5269
  %s5287 = scalar_lea.vmem %s0, 48
  %v5288 = vld [vmem:[%s5287] sm:$0xff]
  %5289 = vrot.lane.b32.xlu0 %v5288, 4
  %v5290 = vpop.permute.xlu0 %5289
  %vm5291 = vcmask 31744
  %s5292 = scalar_lea.vmem %s1, 1567
  %5293 = vst.msk [vmem:[%s5292] sm:$0x1] %vm5291, %v5290
  %s5294 = scalar_lea.vmem %s1, 1630
  %5295 = vst.msk [vmem:[%s5294] sm:$0x2] %vm5291, %v5290
  %s5296 = scalar_lea.vmem %s1, 1693
  %5297 = vst.msk [vmem:[%s5296] sm:$0x4] %vm5291, %v5290
  %s5298 = scalar_lea.vmem %s1, 1756
  %5299 = vst.msk [vmem:[%s5298] sm:$0x8] %vm5291, %v5290
  %s5300 = scalar_lea.vmem %s1, 1819
  %5301 = vst.msk [vmem:[%s5300] sm:$0x10] %vm5291, %v5290
  %s5302 = scalar_lea.vmem %s1, 1882
  %5303 = vst.msk [vmem:[%s5302] sm:$0x20] %vm5291, %v5290
  %s5304 = scalar_lea.vmem %s1, 1945
  %5305 = vst.msk [vmem:[%s5304] sm:$0x40] %vm5291, %v5290
  %s5306 = scalar_lea.vmem %s1, 2008
  %5307 = vst.msk [vmem:[%s5306] sm:$0x80] %vm5291, %v5290
  %s5308 = scalar_lea.vmem %s0, 56
  %v5309 = vld [vmem:[%s5308] sm:$0xff]
  %5310 = vrot.lane.b32.xlu0 %v5309, 4
  %v5311 = vpop.permute.xlu0 %5310
  %vm5312 = vcmask 31744
  %s5313 = scalar_lea.vmem %s1, 1599
  %5314 = vst.msk [vmem:[%s5313] sm:$0x1] %vm5312, %v5311
  %s5315 = scalar_lea.vmem %s1, 1662
  %5316 = vst.msk [vmem:[%s5315] sm:$0x2] %vm5312, %v5311
  %s5317 = scalar_lea.vmem %s1, 1725
  %5318 = vst.msk [vmem:[%s5317] sm:$0x4] %vm5312, %v5311
  %s5319 = scalar_lea.vmem %s1, 1788
  %5320 = vst.msk [vmem:[%s5319] sm:$0x8] %vm5312, %v5311
  %s5321 = scalar_lea.vmem %s1, 1851
  %5322 = vst.msk [vmem:[%s5321] sm:$0x10] %vm5312, %v5311
  %s5323 = scalar_lea.vmem %s1, 1914
  %5324 = vst.msk [vmem:[%s5323] sm:$0x20] %vm5312, %v5311
  %s5325 = scalar_lea.vmem %s1, 1977
  %5326 = vst.msk [vmem:[%s5325] sm:$0x40] %vm5312, %v5311
  %s5327 = scalar_lea.vmem %s1, 2040
  %5328 = vst.msk [vmem:[%s5327] sm:$0x80] %vm5312, %v5311

// kernel: _lambda_.1
$region0: #{_lambda_.1}
  #allocation0 [shape = 'u32[]', space=smem, size = 0x4, offset = 0x4, fixed_abs, tag = 'smem constant byte address 0x4 - core index']
  #allocation1 [shape = 'u32[144,128]{1,0:T(1,128)}', space=vmem, size = 0x12000, scoped, tag = 'internal scratch']
  %s0 = inlined_call_operand.vmem [shape: f32[5,2,16,256], index: 0, kind: input, shape index: {}]
  %s1 = inlined_call_operand.vmem [shape: f32[5,16,32], index: 1, kind: input, shape index: {}]
  %s2 = inlined_call_operand.vmem [shape: bf16[5,256,32], index: 2, kind: input, shape index: {}]
  %s3 = inlined_call_operand.vmem [shape: f32[5,1,32], index: 3, kind: input, shape index: {}]
  %s4 = inlined_call_operand.vmem [shape: bf16[5,2,32,96], index: 4, kind: input, shape index: {}]
  %s5 = inlined_call_operand.vmem [shape: f32[5,2,1,96], index: 5, kind: input, shape index: {}]
  %s6 = inlined_call_operand.vmem [shape: bf16[5,2,32,32], index: 6, kind: input, shape index: {}]
  %s7 = inlined_call_operand.vmem [shape: f32[5,2,1,32], index: 7, kind: input, shape index: {}]
  %s8 = inlined_call_operand.vmem [shape: bf16[5,2,32,128], index: 8, kind: input, shape index: {}]
  %s9 = inlined_call_operand.vmem [shape: f32[5,2,1,128], index: 9, kind: input, shape index: {}]
  %s10 = inlined_call_operand.vmem [shape: bf16[5,2,128,32], index: 10, kind: input, shape index: {}]
  %s11 = inlined_call_operand.vmem [shape: f32[5,2,1,32], index: 11, kind: input, shape index: {}]
  %s12 = inlined_call_operand.vmem [shape: f32[5,2,1,32], index: 12, kind: input, shape index: {}]
  %s13 = inlined_call_operand.vmem [shape: f32[5,2,1,32], index: 13, kind: input, shape index: {}]
  %s14 = inlined_call_operand.vmem [shape: f32[5,2,1,32], index: 14, kind: input, shape index: {}]
  %s15 = inlined_call_operand.vmem [shape: f32[5,2,1,32], index: 15, kind: input, shape index: {}]
  %s16 = inlined_call_operand.vmem [shape: bf16[5,32,256], index: 16, kind: input, shape index: {}]
  %s17 = inlined_call_operand.vmem [shape: f32[5,1,256], index: 17, kind: input, shape index: {}]
  %s18 = inlined_call_operand.vmem [shape: f32[5,2,16,256], index: 18, kind: output, shape index: {}]
  %s19 = sld [smem:[#allocation0]]
  $region105: #{_lambda_.1} parent=0
    _
  %s21 = ssub.s32 1, %s19
  %s22 = scalar_select 0, %s21, %s19
  loop: start=0, step=1, limit=7
  $region2: #{_lambda_.1} parent=0 // loop_pre_header
    _
  $region3: #{_lambda_.1} parent=0 // loop_header
    %s24 = sphi 0, %s28
    %p25 = scmp.ge.s32.totalorder %s24, 7
    %s31 = sphi 0, %s43
    %s32 = sphi 0, %s39
    %s33 = sphi 0, %s31
    %s34 = sphi 0, %s32
    %s35 = sphi 0, %s33
    %s36 = sphi 0, %s34
    %s48 = sphi 0, %s50
    %s51 = sphi 0, %s48
    %s52 = sphi 0, %s51
    %s68 = sphi 0, %s52
    %s74 = sphi 0, %s76
    %s77 = sphi 0, %s74
    %s78 = sphi 0, %s77
    %s94 = sphi 0, %s78
    %s100 = sphi 0, %s102
    %s103 = sphi 0, %s100
    %s104 = sphi 0, %s103
    %s120 = sphi 0, %s104
    %s126 = sphi 0, %s128
    %s129 = sphi 0, %s126
    %s130 = sphi 0, %s129
    %s146 = sphi 0, %s130
    %s152 = sphi 0, %s154
    %s155 = sphi 0, %s152
    %s156 = sphi 0, %s155
    %s172 = sphi 0, %s156
    %s178 = sphi 0, %s180
    %s181 = sphi 0, %s178
    %s182 = sphi 0, %s181
    %s198 = sphi 0, %s182
    %s204 = sphi 0, %s206
    %s207 = sphi 0, %s204
    %s208 = sphi 0, %s207
    %s224 = sphi 0, %s208
    %s230 = sphi 0, %s232
    %s233 = sphi 0, %s230
    %s234 = sphi 0, %s233
    %s250 = sphi 0, %s234
    %s256 = sphi 0, %s258
    %s259 = sphi 0, %s256
    %s260 = sphi 0, %s259
    %s276 = sphi 0, %s260
    %s282 = sphi 0, %s284
    %s285 = sphi 0, %s282
    %s286 = sphi 0, %s285
    %s302 = sphi 0, %s286
    %s308 = sphi 0, %s310
    %s311 = sphi 0, %s308
    %s312 = sphi 0, %s311
    %s328 = sphi 0, %s312
    %s334 = sphi 0, %s336
    %s337 = sphi 0, %s334
    %s338 = sphi 0, %s337
    %s354 = sphi 0, %s338
    %s360 = sphi 0, %s362
    %s363 = sphi 0, %s360
    %s364 = sphi 0, %s363
    %s380 = sphi 0, %s364
    %s386 = sphi 0, %s388
    %s389 = sphi 0, %s386
    %s390 = sphi 0, %s389
    %s406 = sphi 0, %s390
    %s412 = sphi 0, %s414
    %s415 = sphi 0, %s412
    %s416 = sphi 0, %s415
    %s432 = sphi 0, %s416
    %s438 = sphi 0, %s440
    %s441 = sphi 0, %s438
    %s442 = sphi 0, %s441
    %s458 = sphi 0, %s442
    %s464 = sphi 0, %s466
    %s467 = sphi 0, %s464
    %s468 = sphi 0, %s467
    %s484 = sphi 0, %s468
    %s490 = sphi 0, %s492
    %s493 = sphi 0, %s490
    %s494 = sphi 0, %s493
    %s510 = sphi 0, %s494
    %s518 = sphi 0, %s520
    %s521 = sphi 0, %s518
    %s522 = sphi 0, %s521
    %s538 = sphi 0, %s522
  $region4: #{_lambda_.1} parent=0 // loop_header_branch
    %27 = sbr.rel (%p25) target = $region8
  $region5: #{_lambda_.1} parent=0 // loop_body
    %s29 = ssub.s32 %s24, 1
    %s30 = ssub.s32 %s24, 2
    %s37 = sadd.s32 1, %s32
    %p38 = scmp.ge.s32.totalorder %s37, 1
    %s39 = scalar_select %p38, 0, %s37
    %s40 = sadd.s32 1, %s31
    %s41 = scalar_select %p38, %s40, %s31
    %p42 = scmp.ge.s32.totalorder %s41, 5
    %s43 = scalar_select %p42, 0, %s41
    %s44 = ssub.s32 %s31, %s43
    %s45 = ssub.s32 %s32, %s39
    %s46 = sor.u32 %s44, %s45
    %p47 = scmp.eq.s32.totalorder %s46, 0
    %s49 = sadd.s32 %s48, 1
    %s50 = scalar_select %p47, %s48, %s49
    %p53 = pneg %p47
    %p54 = scmp.eq.s32.totalorder %s24, 4
    %p55 = por %p53, %p54
    %p56 = scmp.ne.s32.totalorder %s48, %s51
    %p57 = scmp.eq.s32.totalorder %s24, 0
    %p58 = por %p56, %p57
    %p59 = scmp.ne.s32.totalorder %s48, %s51
    %p60 = scmp.eq.s32.totalorder %s29, 4
    %p61 = por %p59, %p60
    %p62 = scmp.ne.s32.totalorder %s51, %s52
    %p63 = scmp.eq.s32.totalorder %s29, 0
    %p64 = por %p62, %p63
    %p65 = scmp.ne.s32.totalorder %s51, %s52
    %p66 = scmp.eq.s32.totalorder %s30, 4
    %p67 = por %p65, %p66
    %p69 = scmp.ne.s32.totalorder %s52, %s68
    %p70 = scmp.eq.s32.totalorder %s30, 0
    %p71 = por %p69, %p70
    %s72 = ssub.s32 %s31, %s43
    %p73 = scmp.eq.s32.totalorder %s72, 0
    %s75 = sadd.s32 %s74, 1
    %s76 = scalar_select %p73, %s74, %s75
    %p79 = pneg %p73
    %p80 = scmp.eq.s32.totalorder %s24, 4
    %p81 = por %p79, %p80
    %p82 = scmp.ne.s32.totalorder %s74, %s77
    %p83 = scmp.eq.s32.totalorder %s24, 0
    %p84 = por %p82, %p83
    %p85 = scmp.ne.s32.totalorder %s74, %s77
    %p86 = scmp.eq.s32.totalorder %s29, 4
    %p87 = por %p85, %p86
    %p88 = scmp.ne.s32.totalorder %s77, %s78
    %p89 = scmp.eq.s32.totalorder %s29, 0
    %p90 = por %p88, %p89
    %p91 = scmp.ne.s32.totalorder %s77, %s78
    %p92 = scmp.eq.s32.totalorder %s30, 4
    %p93 = por %p91, %p92
    %p95 = scmp.ne.s32.totalorder %s78, %s94
    %p96 = scmp.eq.s32.totalorder %s30, 0
    %p97 = por %p95, %p96
    %s98 = ssub.s32 %s31, %s43
    %p99 = scmp.eq.s32.totalorder %s98, 0
    %s101 = sadd.s32 %s100, 1
    %s102 = scalar_select %p99, %s100, %s101
    %p105 = pneg %p99
    %p106 = scmp.eq.s32.totalorder %s24, 4
    %p107 = por %p105, %p106
    %p108 = scmp.ne.s32.totalorder %s100, %s103
    %p109 = scmp.eq.s32.totalorder %s24, 0
    %p110 = por %p108, %p109
    %p111 = scmp.ne.s32.totalorder %s100, %s103
    %p112 = scmp.eq.s32.totalorder %s29, 4
    %p113 = por %p111, %p112
    %p114 = scmp.ne.s32.totalorder %s103, %s104
    %p115 = scmp.eq.s32.totalorder %s29, 0
    %p116 = por %p114, %p115
    %p117 = scmp.ne.s32.totalorder %s103, %s104
    %p118 = scmp.eq.s32.totalorder %s30, 4
    %p119 = por %p117, %p118
    %p121 = scmp.ne.s32.totalorder %s104, %s120
    %p122 = scmp.eq.s32.totalorder %s30, 0
    %p123 = por %p121, %p122
    %s124 = ssub.s32 %s31, %s43
    %p125 = scmp.eq.s32.totalorder %s124, 0
    %s127 = sadd.s32 %s126, 1
    %s128 = scalar_select %p125, %s126, %s127
    %p131 = pneg %p125
    %p132 = scmp.eq.s32.totalorder %s24, 4
    %p133 = por %p131, %p132
    %p134 = scmp.ne.s32.totalorder %s126, %s129
    %p135 = scmp.eq.s32.totalorder %s24, 0
    %p136 = por %p134, %p135
    %p137 = scmp.ne.s32.totalorder %s126, %s129
    %p138 = scmp.eq.s32.totalorder %s29, 4
    %p139 = por %p137, %p138
    %p140 = scmp.ne.s32.totalorder %s129, %s130
    %p141 = scmp.eq.s32.totalorder %s29, 0
    %p142 = por %p140, %p141
    %p143 = scmp.ne.s32.totalorder %s129, %s130
    %p144 = scmp.eq.s32.totalorder %s30, 4
    %p145 = por %p143, %p144
    %p147 = scmp.ne.s32.totalorder %s130, %s146
    %p148 = scmp.eq.s32.totalorder %s30, 0
    %p149 = por %p147, %p148
    %s150 = ssub.s32 %s31, %s43
    %p151 = scmp.eq.s32.totalorder %s150, 0
    %s153 = sadd.s32 %s152, 1
    %s154 = scalar_select %p151, %s152, %s153
    %p157 = pneg %p151
    %p158 = scmp.eq.s32.totalorder %s24, 4
    %p159 = por %p157, %p158
    %p160 = scmp.ne.s32.totalorder %s152, %s155
    %p161 = scmp.eq.s32.totalorder %s24, 0
    %p162 = por %p160, %p161
    %p163 = scmp.ne.s32.totalorder %s152, %s155
    %p164 = scmp.eq.s32.totalorder %s29, 4
    %p165 = por %p163, %p164
    %p166 = scmp.ne.s32.totalorder %s155, %s156
    %p167 = scmp.eq.s32.totalorder %s29, 0
    %p168 = por %p166, %p167
    %p169 = scmp.ne.s32.totalorder %s155, %s156
    %p170 = scmp.eq.s32.totalorder %s30, 4
    %p171 = por %p169, %p170
    %p173 = scmp.ne.s32.totalorder %s156, %s172
    %p174 = scmp.eq.s32.totalorder %s30, 0
    %p175 = por %p173, %p174
    %s176 = ssub.s32 %s31, %s43
    %p177 = scmp.eq.s32.totalorder %s176, 0
    %s179 = sadd.s32 %s178, 1
    %s180 = scalar_select %p177, %s178, %s179
    %p183 = pneg %p177
    %p184 = scmp.eq.s32.totalorder %s24, 4
    %p185 = por %p183, %p184
    %p186 = scmp.ne.s32.totalorder %s178, %s181
    %p187 = scmp.eq.s32.totalorder %s24, 0
    %p188 = por %p186, %p187
    %p189 = scmp.ne.s32.totalorder %s178, %s181
    %p190 = scmp.eq.s32.totalorder %s29, 4
    %p191 = por %p189, %p190
    %p192 = scmp.ne.s32.totalorder %s181, %s182
    %p193 = scmp.eq.s32.totalorder %s29, 0
    %p194 = por %p192, %p193
    %p195 = scmp.ne.s32.totalorder %s181, %s182
    %p196 = scmp.eq.s32.totalorder %s30, 4
    %p197 = por %p195, %p196
    %p199 = scmp.ne.s32.totalorder %s182, %s198
    %p200 = scmp.eq.s32.totalorder %s30, 0
    %p201 = por %p199, %p200
    %s202 = ssub.s32 %s31, %s43
    %p203 = scmp.eq.s32.totalorder %s202, 0
    %s205 = sadd.s32 %s204, 1
    %s206 = scalar_select %p203, %s204, %s205
    %p209 = pneg %p203
    %p210 = scmp.eq.s32.totalorder %s24, 4
    %p211 = por %p209, %p210
    %p212 = scmp.ne.s32.totalorder %s204, %s207
    %p213 = scmp.eq.s32.totalorder %s24, 0
    %p214 = por %p212, %p213
    %p215 = scmp.ne.s32.totalorder %s204, %s207
    %p216 = scmp.eq.s32.totalorder %s29, 4
    %p217 = por %p215, %p216
    %p218 = scmp.ne.s32.totalorder %s207, %s208
    %p219 = scmp.eq.s32.totalorder %s29, 0
    %p220 = por %p218, %p219
    %p221 = scmp.ne.s32.totalorder %s207, %s208
    %p222 = scmp.eq.s32.totalorder %s30, 4
    %p223 = por %p221, %p222
    %p225 = scmp.ne.s32.totalorder %s208, %s224
    %p226 = scmp.eq.s32.totalorder %s30, 0
    %p227 = por %p225, %p226
    %s228 = ssub.s32 %s31, %s43
    %p229 = scmp.eq.s32.totalorder %s228, 0
    %s231 = sadd.s32 %s230, 1
    %s232 = scalar_select %p229, %s230, %s231
    %p235 = pneg %p229
    %p236 = scmp.eq.s32.totalorder %s24, 4
    %p237 = por %p235, %p236
    %p238 = scmp.ne.s32.totalorder %s230, %s233
    %p239 = scmp.eq.s32.totalorder %s24, 0
    %p240 = por %p238, %p239
    %p241 = scmp.ne.s32.totalorder %s230, %s233
    %p242 = scmp.eq.s32.totalorder %s29, 4
    %p243 = por %p241, %p242
    %p244 = scmp.ne.s32.totalorder %s233, %s234
    %p245 = scmp.eq.s32.totalorder %s29, 0
    %p246 = por %p244, %p245
    %p247 = scmp.ne.s32.totalorder %s233, %s234
    %p248 = scmp.eq.s32.totalorder %s30, 4
    %p249 = por %p247, %p248
    %p251 = scmp.ne.s32.totalorder %s234, %s250
    %p252 = scmp.eq.s32.totalorder %s30, 0
    %p253 = por %p251, %p252
    %s254 = ssub.s32 %s31, %s43
    %p255 = scmp.eq.s32.totalorder %s254, 0
    %s257 = sadd.s32 %s256, 1
    %s258 = scalar_select %p255, %s256, %s257
    %p261 = pneg %p255
    %p262 = scmp.eq.s32.totalorder %s24, 4
    %p263 = por %p261, %p262
    %p264 = scmp.ne.s32.totalorder %s256, %s259
    %p265 = scmp.eq.s32.totalorder %s24, 0
    %p266 = por %p264, %p265
    %p267 = scmp.ne.s32.totalorder %s256, %s259
    %p268 = scmp.eq.s32.totalorder %s29, 4
    %p269 = por %p267, %p268
    %p270 = scmp.ne.s32.totalorder %s259, %s260
    %p271 = scmp.eq.s32.totalorder %s29, 0
    %p272 = por %p270, %p271
    %p273 = scmp.ne.s32.totalorder %s259, %s260
    %p274 = scmp.eq.s32.totalorder %s30, 4
    %p275 = por %p273, %p274
    %p277 = scmp.ne.s32.totalorder %s260, %s276
    %p278 = scmp.eq.s32.totalorder %s30, 0
    %p279 = por %p277, %p278
    %s280 = ssub.s32 %s31, %s43
    %p281 = scmp.eq.s32.totalorder %s280, 0
    %s283 = sadd.s32 %s282, 1
    %s284 = scalar_select %p281, %s282, %s283
    %p287 = pneg %p281
    %p288 = scmp.eq.s32.totalorder %s24, 4
    %p289 = por %p287, %p288
    %p290 = scmp.ne.s32.totalorder %s282, %s285
    %p291 = scmp.eq.s32.totalorder %s24, 0
    %p292 = por %p290, %p291
    %p293 = scmp.ne.s32.totalorder %s282, %s285
    %p294 = scmp.eq.s32.totalorder %s29, 4
    %p295 = por %p293, %p294
    %p296 = scmp.ne.s32.totalorder %s285, %s286
    %p297 = scmp.eq.s32.totalorder %s29, 0
    %p298 = por %p296, %p297
    %p299 = scmp.ne.s32.totalorder %s285, %s286
    %p300 = scmp.eq.s32.totalorder %s30, 4
    %p301 = por %p299, %p300
    %p303 = scmp.ne.s32.totalorder %s286, %s302
    %p304 = scmp.eq.s32.totalorder %s30, 0
    %p305 = por %p303, %p304
    %s306 = ssub.s32 %s31, %s43
    %p307 = scmp.eq.s32.totalorder %s306, 0
    %s309 = sadd.s32 %s308, 1
    %s310 = scalar_select %p307, %s308, %s309
    %p313 = pneg %p307
    %p314 = scmp.eq.s32.totalorder %s24, 4
    %p315 = por %p313, %p314
    %p316 = scmp.ne.s32.totalorder %s308, %s311
    %p317 = scmp.eq.s32.totalorder %s24, 0
    %p318 = por %p316, %p317
    %p319 = scmp.ne.s32.totalorder %s308, %s311
    %p320 = scmp.eq.s32.totalorder %s29, 4
    %p321 = por %p319, %p320
    %p322 = scmp.ne.s32.totalorder %s311, %s312
    %p323 = scmp.eq.s32.totalorder %s29, 0
    %p324 = por %p322, %p323
    %p325 = scmp.ne.s32.totalorder %s311, %s312
    %p326 = scmp.eq.s32.totalorder %s30, 4
    %p327 = por %p325, %p326
    %p329 = scmp.ne.s32.totalorder %s312, %s328
    %p330 = scmp.eq.s32.totalorder %s30, 0
    %p331 = por %p329, %p330
    %s332 = ssub.s32 %s31, %s43
    %p333 = scmp.eq.s32.totalorder %s332, 0
    %s335 = sadd.s32 %s334, 1
    %s336 = scalar_select %p333, %s334, %s335
    %p339 = pneg %p333
    %p340 = scmp.eq.s32.totalorder %s24, 4
    %p341 = por %p339, %p340
    %p342 = scmp.ne.s32.totalorder %s334, %s337
    %p343 = scmp.eq.s32.totalorder %s24, 0
    %p344 = por %p342, %p343
    %p345 = scmp.ne.s32.totalorder %s334, %s337
    %p346 = scmp.eq.s32.totalorder %s29, 4
    %p347 = por %p345, %p346
    %p348 = scmp.ne.s32.totalorder %s337, %s338
    %p349 = scmp.eq.s32.totalorder %s29, 0
    %p350 = por %p348, %p349
    %p351 = scmp.ne.s32.totalorder %s337, %s338
    %p352 = scmp.eq.s32.totalorder %s30, 4
    %p353 = por %p351, %p352
    %p355 = scmp.ne.s32.totalorder %s338, %s354
    %p356 = scmp.eq.s32.totalorder %s30, 0
    %p357 = por %p355, %p356
    %s358 = ssub.s32 %s31, %s43
    %p359 = scmp.eq.s32.totalorder %s358, 0
    %s361 = sadd.s32 %s360, 1
    %s362 = scalar_select %p359, %s360, %s361
    %p365 = pneg %p359
    %p366 = scmp.eq.s32.totalorder %s24, 4
    %p367 = por %p365, %p366
    %p368 = scmp.ne.s32.totalorder %s360, %s363
    %p369 = scmp.eq.s32.totalorder %s24, 0
    %p370 = por %p368, %p369
    %p371 = scmp.ne.s32.totalorder %s360, %s363
    %p372 = scmp.eq.s32.totalorder %s29, 4
    %p373 = por %p371, %p372
    %p374 = scmp.ne.s32.totalorder %s363, %s364
    %p375 = scmp.eq.s32.totalorder %s29, 0
    %p376 = por %p374, %p375
    %p377 = scmp.ne.s32.totalorder %s363, %s364
    %p378 = scmp.eq.s32.totalorder %s30, 4
    %p379 = por %p377, %p378
    %p381 = scmp.ne.s32.totalorder %s364, %s380
    %p382 = scmp.eq.s32.totalorder %s30, 0
    %p383 = por %p381, %p382
    %s384 = ssub.s32 %s31, %s43
    %p385 = scmp.eq.s32.totalorder %s384, 0
    %s387 = sadd.s32 %s386, 1
    %s388 = scalar_select %p385, %s386, %s387
    %p391 = pneg %p385
    %p392 = scmp.eq.s32.totalorder %s24, 4
    %p393 = por %p391, %p392
    %p394 = scmp.ne.s32.totalorder %s386, %s389
    %p395 = scmp.eq.s32.totalorder %s24, 0
    %p396 = por %p394, %p395
    %p397 = scmp.ne.s32.totalorder %s386, %s389
    %p398 = scmp.eq.s32.totalorder %s29, 4
    %p399 = por %p397, %p398
    %p400 = scmp.ne.s32.totalorder %s389, %s390
    %p401 = scmp.eq.s32.totalorder %s29, 0
    %p402 = por %p400, %p401
    %p403 = scmp.ne.s32.totalorder %s389, %s390
    %p404 = scmp.eq.s32.totalorder %s30, 4
    %p405 = por %p403, %p404
    %p407 = scmp.ne.s32.totalorder %s390, %s406
    %p408 = scmp.eq.s32.totalorder %s30, 0
    %p409 = por %p407, %p408
    %s410 = ssub.s32 %s31, %s43
    %p411 = scmp.eq.s32.totalorder %s410, 0
    %s413 = sadd.s32 %s412, 1
    %s414 = scalar_select %p411, %s412, %s413
    %p417 = pneg %p411
    %p418 = scmp.eq.s32.totalorder %s24, 4
    %p419 = por %p417, %p418
    %p420 = scmp.ne.s32.totalorder %s412, %s415
    %p421 = scmp.eq.s32.totalorder %s24, 0
    %p422 = por %p420, %p421
    %p423 = scmp.ne.s32.totalorder %s412, %s415
    %p424 = scmp.eq.s32.totalorder %s29, 4
    %p425 = por %p423, %p424
    %p426 = scmp.ne.s32.totalorder %s415, %s416
    %p427 = scmp.eq.s32.totalorder %s29, 0
    %p428 = por %p426, %p427
    %p429 = scmp.ne.s32.totalorder %s415, %s416
    %p430 = scmp.eq.s32.totalorder %s30, 4
    %p431 = por %p429, %p430
    %p433 = scmp.ne.s32.totalorder %s416, %s432
    %p434 = scmp.eq.s32.totalorder %s30, 0
    %p435 = por %p433, %p434
    %s436 = ssub.s32 %s31, %s43
    %p437 = scmp.eq.s32.totalorder %s436, 0
    %s439 = sadd.s32 %s438, 1
    %s440 = scalar_select %p437, %s438, %s439
    %p443 = pneg %p437
    %p444 = scmp.eq.s32.totalorder %s24, 4
    %p445 = por %p443, %p444
    %p446 = scmp.ne.s32.totalorder %s438, %s441
    %p447 = scmp.eq.s32.totalorder %s24, 0
    %p448 = por %p446, %p447
    %p449 = scmp.ne.s32.totalorder %s438, %s441
    %p450 = scmp.eq.s32.totalorder %s29, 4
    %p451 = por %p449, %p450
    %p452 = scmp.ne.s32.totalorder %s441, %s442
    %p453 = scmp.eq.s32.totalorder %s29, 0
    %p454 = por %p452, %p453
    %p455 = scmp.ne.s32.totalorder %s441, %s442
    %p456 = scmp.eq.s32.totalorder %s30, 4
    %p457 = por %p455, %p456
    %p459 = scmp.ne.s32.totalorder %s442, %s458
    %p460 = scmp.eq.s32.totalorder %s30, 0
    %p461 = por %p459, %p460
    %s462 = ssub.s32 %s31, %s43
    %p463 = scmp.eq.s32.totalorder %s462, 0
    %s465 = sadd.s32 %s464, 1
    %s466 = scalar_select %p463, %s464, %s465
    %p469 = pneg %p463
    %p470 = scmp.eq.s32.totalorder %s24, 4
    %p471 = por %p469, %p470
    %p472 = scmp.ne.s32.totalorder %s464, %s467
    %p473 = scmp.eq.s32.totalorder %s24, 0
    %p474 = por %p472, %p473
    %p475 = scmp.ne.s32.totalorder %s464, %s467
    %p476 = scmp.eq.s32.totalorder %s29, 4
    %p477 = por %p475, %p476
    %p478 = scmp.ne.s32.totalorder %s467, %s468
    %p479 = scmp.eq.s32.totalorder %s29, 0
    %p480 = por %p478, %p479
    %p481 = scmp.ne.s32.totalorder %s467, %s468
    %p482 = scmp.eq.s32.totalorder %s30, 4
    %p483 = por %p481, %p482
    %p485 = scmp.ne.s32.totalorder %s468, %s484
    %p486 = scmp.eq.s32.totalorder %s30, 0
    %p487 = por %p485, %p486
    %s488 = ssub.s32 %s31, %s43
    %p489 = scmp.eq.s32.totalorder %s488, 0
    %s491 = sadd.s32 %s490, 1
    %s492 = scalar_select %p489, %s490, %s491
    %p495 = pneg %p489
    %p496 = scmp.eq.s32.totalorder %s24, 4
    %p497 = por %p495, %p496
    %p498 = scmp.ne.s32.totalorder %s490, %s493
    %p499 = scmp.eq.s32.totalorder %s24, 0
    %p500 = por %p498, %p499
    %p501 = scmp.ne.s32.totalorder %s490, %s493
    %p502 = scmp.eq.s32.totalorder %s29, 4
    %p503 = por %p501, %p502
    %p504 = scmp.ne.s32.totalorder %s493, %s494
    %p505 = scmp.eq.s32.totalorder %s29, 0
    %p506 = por %p504, %p505
    %p507 = scmp.ne.s32.totalorder %s493, %s494
    %p508 = scmp.eq.s32.totalorder %s30, 4
    %p509 = por %p507, %p508
    %p511 = scmp.ne.s32.totalorder %s494, %s510
    %p512 = scmp.eq.s32.totalorder %s30, 0
    %p513 = por %p511, %p512
    %s514 = ssub.s32 %s31, %s43
    %s515 = ssub.s32 %s32, %s39
    %s516 = sor.u32 %s514, %s515
    %p517 = scmp.eq.s32.totalorder %s516, 0
    %s519 = sadd.s32 %s518, 1
    %s520 = scalar_select %p517, %s518, %s519
    %p523 = pneg %p517
    %p524 = scmp.eq.s32.totalorder %s24, 4
    %p525 = por %p523, %p524
    %p526 = scmp.ne.s32.totalorder %s518, %s521
    %p527 = scmp.eq.s32.totalorder %s24, 0
    %p528 = por %p526, %p527
    %p529 = scmp.ne.s32.totalorder %s518, %s521
    %p530 = scmp.eq.s32.totalorder %s29, 4
    %p531 = por %p529, %p530
    %p532 = scmp.ne.s32.totalorder %s521, %s522
    %p533 = scmp.eq.s32.totalorder %s29, 0
    %p534 = por %p532, %p533
    %p535 = scmp.ne.s32.totalorder %s521, %s522
    %p536 = scmp.eq.s32.totalorder %s30, 4
    %p537 = por %p535, %p536
    %p539 = scmp.ne.s32.totalorder %s522, %s538
    %p540 = scmp.eq.s32.totalorder %s30, 0
    %p541 = por %p539, %p540
    %p542 = scmp.le.s32.totalorder 1, %s24
    %p543 = scmp.lt.s32.totalorder %s24, 6
    %p544 = pnand %p542, %p543
    %p545 = pneg %p544
    // Predicated region
    $region9: #{_lambda_.1} parent=5 // pred_check
      _
    $region10: #{_lambda_.1} parent=5 // pred_check_branch
      %547 = sbr.rel (%p544) target = $region12
    $region11: #{_lambda_.1} parent=5 // pred_region
      %s548 = ssub.s32 %s24, 1
    $region12: #{_lambda_.1} parent=5 // pred_fallthru
      _
    %p549 = scmp.lt.s32.totalorder %s24, 5
    // Predicated region
    $region13: #{_lambda_.1} parent=5 // pred_check
      %p550 = pneg %p549
    $region14: #{_lambda_.1} parent=5 // pred_check_branch
      %552 = sbr.rel (%p550) target = $region16
    $region15: #{_lambda_.1} parent=5 // pred_region
      // Predicated region
      $region17: #{_lambda_.1} parent=15 // pred_check
        %p553 = pneg %p58
      $region18: #{_lambda_.1} parent=15 // pred_check_branch
        %555 = sbr.rel (%p553) target = $region20
      $region19: #{_lambda_.1} parent=15 // pred_region
        %s556 = smul.u32 2, %s32
        %p557 = scmp.lt.s32.totalorder %s31, 4
        %s558 = scalar_select %p557, %s31, 4
        %p559 = scmp.lt.s32.totalorder %s556, 1
        %s560 = scalar_select %p559, %s556, 1
        %s561 = smul.addr %s560, 4
        %s562 = smul.addr %s558, 8
        %s563 = sadd.s32 %s561, %s562
        %s564 = smul.addr %s563, 8
        %s565 = scalar_lea.vmem %s0, %s564
        %s566 = smul.u32 2, %s32
      $region20: #{_lambda_.1} parent=15 // pred_fallthru
        _
      // Predicated region
      $region21: #{_lambda_.1} parent=15 // pred_check
        %p567 = pneg %p84
      $region22: #{_lambda_.1} parent=15 // pred_check_branch
        %569 = sbr.rel (%p567) target = $region24
      $region23: #{_lambda_.1} parent=15 // pred_region
        %p570 = scmp.lt.s32.totalorder %s31, 4
        %s571 = scalar_select %p570, %s31, 4
        %s572 = smul.addr %s571, 2
        %s573 = smul.addr %s572, 8
        %s574 = scalar_lea.vmem %s1, %s573
      $region24: #{_lambda_.1} parent=15 // pred_fallthru
        _
      // Predicated region
      $region25: #{_lambda_.1} parent=15 // pred_check
        %p575 = pneg %p110
      $region26: #{_lambda_.1} parent=15 // pred_check_branch
        %577 = sbr.rel (%p575) target = $region28
      $region27: #{_lambda_.1} parent=15 // pred_region
        %p578 = scmp.lt.s32.totalorder %s31, 4
        %s579 = scalar_select %p578, %s31, 4
        %s580 = smul.addr %s579, 32
        %s581 = smul.addr %s580, 4
        %s582 = scalar_lea.vmem %s2, %s581
      $region28: #{_lambda_.1} parent=15 // pred_fallthru
        _
      // Predicated region
      $region29: #{_lambda_.1} parent=15 // pred_check
        %p583 = pneg %p136
      $region30: #{_lambda_.1} parent=15 // pred_check_branch
        %585 = sbr.rel (%p583) target = $region32
      $region31: #{_lambda_.1} parent=15 // pred_region
        %p586 = scmp.lt.s32.totalorder %s31, 4
        %s587 = scalar_select %p586, %s31, 4
        %s588 = scalar_lea.vmem %s3, %s587
      $region32: #{_lambda_.1} parent=15 // pred_fallthru
        _
      // Predicated region
      $region33: #{_lambda_.1} parent=15 // pred_check
        %p589 = pneg %p162
      $region34: #{_lambda_.1} parent=15 // pred_check_branch
        %591 = sbr.rel (%p589) target = $region36
      $region35: #{_lambda_.1} parent=15 // pred_region
        %p592 = scmp.lt.s32.totalorder %s31, 4
        %s593 = scalar_select %p592, %s31, 4
        %s594 = smul.addr %s593, 8
        %s595 = smul.addr %s594, 4
        %s596 = scalar_lea.vmem %s4, %s595
      $region36: #{_lambda_.1} parent=15 // pred_fallthru
        _
      // Predicated region
      $region37: #{_lambda_.1} parent=15 // pred_check
        %p597 = pneg %p188
      $region38: #{_lambda_.1} parent=15 // pred_check_branch
        %599 = sbr.rel (%p597) target = $region40
      $region39: #{_lambda_.1} parent=15 // pred_region
        %p600 = scmp.lt.s32.totalorder %s31, 4
        %s601 = scalar_select %p600, %s31, 4
        %s602 = smul.addr %s601, 2
        %s603 = scalar_lea.vmem %s5, %s602
      $region40: #{_lambda_.1} parent=15 // pred_fallthru
        _
      // Predicated region
      $region41: #{_lambda_.1} parent=15 // pred_check
        %p604 = pneg %p214
      $region42: #{_lambda_.1} parent=15 // pred_check_branch
        %606 = sbr.rel (%p604) target = $region44
      $region43: #{_lambda_.1} parent=15 // pred_region
        %p607 = scmp.lt.s32.totalorder %s31, 4
        %s608 = scalar_select %p607, %s31, 4
        %s609 = smul.addr %s608, 8
        %s610 = smul.addr %s609, 4
        %s611 = scalar_lea.vmem %s6, %s610
      $region44: #{_lambda_.1} parent=15 // pred_fallthru
        _
      // Predicated region
      $region45: #{_lambda_.1} parent=15 // pred_check
        %p612 = pneg %p240
      $region46: #{_lambda_.1} parent=15 // pred_check_branch
        %614 = sbr.rel (%p612) target = $region48
      $region47: #{_lambda_.1} parent=15 // pred_region
        %p615 = scmp.lt.s32.totalorder %s31, 4
        %s616 = scalar_select %p615, %s31, 4
        %s617 = smul.addr %s616, 2
        %s618 = scalar_lea.vmem %s7, %s617
      $region48: #{_lambda_.1} parent=15 // pred_fallthru
        _
      // Predicated region
      $region49: #{_lambda_.1} parent=15 // pred_check
        %p619 = pneg %p266
      $region50: #{_lambda_.1} parent=15 // pred_check_branch
        %621 = sbr.rel (%p619) target = $region52
      $region51: #{_lambda_.1} parent=15 // pred_region
        %p622 = scmp.lt.s32.totalorder %s31, 4
        %s623 = scalar_select %p622, %s31, 4
        %s624 = smul.addr %s623, 8
        %s625 = smul.addr %s624, 4
        %s626 = scalar_lea.vmem %s8, %s625
      $region52: #{_lambda_.1} parent=15 // pred_fallthru
        _
      // Predicated region
      $region53: #{_lambda_.1} parent=15 // pred_check
        %p627 = pneg %p292
      $region54: #{_lambda_.1} parent=15 // pred_check_branch
        %629 = sbr.rel (%p627) target = $region56
      $region55: #{_lambda_.1} parent=15 // pred_region
        %p630 = scmp.lt.s32.totalorder %s31, 4
        %s631 = scalar_select %p630, %s31, 4
        %s632 = smul.addr %s631, 2
        %s633 = scalar_lea.vmem %s9, %s632
      $region56: #{_lambda_.1} parent=15 // pred_fallthru
        _
      // Predicated region
      $region57: #{_lambda_.1} parent=15 // pred_check
        %p634 = pneg %p318
      $region58: #{_lambda_.1} parent=15 // pred_check_branch
        %636 = sbr.rel (%p634) target = $region60
      $region59: #{_lambda_.1} parent=15 // pred_region
        %p637 = scmp.lt.s32.totalorder %s31, 4
        %s638 = scalar_select %p637, %s31, 4
        %s639 = smul.addr %s638, 32
        %s640 = smul.addr %s639, 4
        %s641 = scalar_lea.vmem %s10, %s640
      $region60: #{_lambda_.1} parent=15 // pred_fallthru
        _
      // Predicated region
      $region61: #{_lambda_.1} parent=15 // pred_check
        %p642 = pneg %p344
      $region62: #{_lambda_.1} parent=15 // pred_check_branch
        %644 = sbr.rel (%p642) target = $region64
      $region63: #{_lambda_.1} parent=15 // pred_region
        %p645 = scmp.lt.s32.totalorder %s31, 4
        %s646 = scalar_select %p645, %s31, 4
        %s647 = smul.addr %s646, 2
        %s648 = scalar_lea.vmem %s11, %s647
      $region64: #{_lambda_.1} parent=15 // pred_fallthru
        _
      // Predicated region
      $region65: #{_lambda_.1} parent=15 // pred_check
        %p649 = pneg %p370
      $region66: #{_lambda_.1} parent=15 // pred_check_branch
        %651 = sbr.rel (%p649) target = $region68
      $region67: #{_lambda_.1} parent=15 // pred_region
        %p652 = scmp.lt.s32.totalorder %s31, 4
        %s653 = scalar_select %p652, %s31, 4
        %s654 = smul.addr %s653, 2
        %s655 = scalar_lea.vmem %s12, %s654
      $region68: #{_lambda_.1} parent=15 // pred_fallthru
        _
      // Predicated region
      $region69: #{_lambda_.1} parent=15 // pred_check
        %p656 = pneg %p396
      $region70: #{_lambda_.1} parent=15 // pred_check_branch
        %658 = sbr.rel (%p656) target = $region72
      $region71: #{_lambda_.1} parent=15 // pred_region
        %p659 = scmp.lt.s32.totalorder %s31, 4
        %s660 = scalar_select %p659, %s31, 4
        %s661 = smul.addr %s660, 2
        %s662 = scalar_lea.vmem %s13, %s661
      $region72: #{_lambda_.1} parent=15 // pred_fallthru
        _
      // Predicated region
      $region73: #{_lambda_.1} parent=15 // pred_check
        %p663 = pneg %p422
      $region74: #{_lambda_.1} parent=15 // pred_check_branch
        %665 = sbr.rel (%p663) target = $region76
      $region75: #{_lambda_.1} parent=15 // pred_region
        %p666 = scmp.lt.s32.totalorder %s31, 4
        %s667 = scalar_select %p666, %s31, 4
        %s668 = smul.addr %s667, 2
        %s669 = scalar_lea.vmem %s14, %s668
      $region76: #{_lambda_.1} parent=15 // pred_fallthru
        _
      // Predicated region
      $region77: #{_lambda_.1} parent=15 // pred_check
        %p670 = pneg %p448
      $region78: #{_lambda_.1} parent=15 // pred_check_branch
        %672 = sbr.rel (%p670) target = $region80
      $region79: #{_lambda_.1} parent=15 // pred_region
        %p673 = scmp.lt.s32.totalorder %s31, 4
        %s674 = scalar_select %p673, %s31, 4
        %s675 = smul.addr %s674, 2
        %s676 = scalar_lea.vmem %s15, %s675
      $region80: #{_lambda_.1} parent=15 // pred_fallthru
        _
      // Predicated region
      $region81: #{_lambda_.1} parent=15 // pred_check
        %p677 = pneg %p474
      $region82: #{_lambda_.1} parent=15 // pred_check_branch
        %679 = sbr.rel (%p677) target = $region84
      $region83: #{_lambda_.1} parent=15 // pred_region
        %p680 = scmp.lt.s32.totalorder %s31, 4
        %s681 = scalar_select %p680, %s31, 4
        %s682 = smul.addr %s681, 8
        %s683 = smul.addr %s682, 4
        %s684 = scalar_lea.vmem %s16, %s683
      $region84: #{_lambda_.1} parent=15 // pred_fallthru
        _
      // Predicated region
      $region85: #{_lambda_.1} parent=15 // pred_check
        %p685 = pneg %p500
      $region86: #{_lambda_.1} parent=15 // pred_check_branch
        %687 = sbr.rel (%p685) target = $region88
      $region87: #{_lambda_.1} parent=15 // pred_region
        %p688 = scmp.lt.s32.totalorder %s31, 4
        %s689 = scalar_select %p688, %s31, 4
        %s690 = smul.addr %s689, 2
        %s691 = scalar_lea.vmem %s17, %s690
      $region88: #{_lambda_.1} parent=15 // pred_fallthru
        _
    $region16: #{_lambda_.1} parent=5 // pred_fallthru
      _
    %p692 = scmp.le.s32.totalorder 1, %s24
    %p693 = scmp.lt.s32.totalorder %s24, 6
    %p694 = pnand %p692, %p693
    %p695 = pneg %p694
    // Predicated region
    $region89: #{_lambda_.1} parent=5 // pred_check
      _
    $region90: #{_lambda_.1} parent=5 // pred_check_branch
      %697 = sbr.rel (%p694) target = $region92
    $region91: #{_lambda_.1} parent=5 // pred_region
      %s698 = ssub.s32 %s24, 1
      %s699 = smul.u32 2, %s34
      %p700 = scmp.lt.s32.totalorder %s33, 4
      %s701 = scalar_select %p700, %s33, 4
      %p702 = scmp.lt.s32.totalorder %s699, 1
      %s703 = scalar_select %p702, %s699, 1
      %s704 = smul.addr %s703, 4
      %s705 = smul.addr %s701, 8
      %s706 = sadd.s32 %s704, %s705
      %s707 = smul.addr %s706, 8
      %s708 = scalar_lea.vmem %s0, %s707
      %p709 = pneg %p64
      %p710 = pneg %p61
      %p711 = scmp.lt.s32.totalorder %s33, 4
      %s712 = scalar_select %p711, %s33, 4
      %s713 = smul.addr %s712, 2
      %s714 = smul.addr %s713, 8
      %s715 = scalar_lea.vmem %s1, %s714
      %p716 = pneg %p90
      %p717 = pneg %p87
      %p718 = scmp.lt.s32.totalorder %s33, 4
      %s719 = scalar_select %p718, %s33, 4
      %s720 = smul.addr %s719, 32
      %s721 = smul.addr %s720, 4
      %s722 = scalar_lea.vmem %s2, %s721
      %p723 = pneg %p116
      %p724 = pneg %p113
      %p725 = scmp.lt.s32.totalorder %s33, 4
      %s726 = scalar_select %p725, %s33, 4
      %s727 = scalar_lea.vmem %s3, %s726
      %p728 = pneg %p142
      %p729 = pneg %p139
      %p730 = scmp.lt.s32.totalorder %s33, 4
      %s731 = scalar_select %p730, %s33, 4
      %s732 = smul.addr %s731, 8
      %s733 = smul.addr %s732, 4
      %s734 = scalar_lea.vmem %s4, %s733
      %p735 = pneg %p168
      %p736 = pneg %p165
      %p737 = scmp.lt.s32.totalorder %s33, 4
      %s738 = scalar_select %p737, %s33, 4
      %s739 = smul.addr %s738, 2
      %s740 = scalar_lea.vmem %s5, %s739
      %p741 = pneg %p194
      %p742 = pneg %p191
      %p743 = scmp.lt.s32.totalorder %s33, 4
      %s744 = scalar_select %p743, %s33, 4
      %s745 = smul.addr %s744, 8
      %s746 = smul.addr %s745, 4
      %s747 = scalar_lea.vmem %s6, %s746
      %p748 = pneg %p220
      %p749 = pneg %p217
      %p750 = scmp.lt.s32.totalorder %s33, 4
      %s751 = scalar_select %p750, %s33, 4
      %s752 = smul.addr %s751, 2
      %s753 = scalar_lea.vmem %s7, %s752
      %p754 = pneg %p246
      %p755 = pneg %p243
      %p756 = scmp.lt.s32.totalorder %s33, 4
      %s757 = scalar_select %p756, %s33, 4
      %s758 = smul.addr %s757, 8
      %s759 = smul.addr %s758, 4
      %s760 = scalar_lea.vmem %s8, %s759
      %p761 = pneg %p272
      %p762 = pneg %p269
      %p763 = scmp.lt.s32.totalorder %s33, 4
      %s764 = scalar_select %p763, %s33, 4
      %s765 = smul.addr %s764, 2
      %s766 = scalar_lea.vmem %s9, %s765
      %p767 = pneg %p298
      %p768 = pneg %p295
      %p769 = scmp.lt.s32.totalorder %s33, 4
      %s770 = scalar_select %p769, %s33, 4
      %s771 = smul.addr %s770, 32
      %s772 = smul.addr %s771, 4
      %s773 = scalar_lea.vmem %s10, %s772
      %p774 = pneg %p324
      %p775 = pneg %p321
      %p776 = scmp.lt.s32.totalorder %s33, 4
      %s777 = scalar_select %p776, %s33, 4
      %s778 = smul.addr %s777, 2
      %s779 = scalar_lea.vmem %s11, %s778
      %p780 = pneg %p350
      %p781 = pneg %p347
      %p782 = scmp.lt.s32.totalorder %s33, 4
      %s783 = scalar_select %p782, %s33, 4
      %s784 = smul.addr %s783, 2
      %s785 = scalar_lea.vmem %s12, %s784
      %p786 = pneg %p376
      %p787 = pneg %p373
      %p788 = scmp.lt.s32.totalorder %s33, 4
      %s789 = scalar_select %p788, %s33, 4
      %s790 = smul.addr %s789, 2
      %s791 = scalar_lea.vmem %s13, %s790
      %p792 = pneg %p402
      %p793 = pneg %p399
      %p794 = scmp.lt.s32.totalorder %s33, 4
      %s795 = scalar_select %p794, %s33, 4
      %s796 = smul.addr %s795, 2
      %s797 = scalar_lea.vmem %s14, %s796
      %p798 = pneg %p428
      %p799 = pneg %p425
      %p800 = scmp.lt.s32.totalorder %s33, 4
      %s801 = scalar_select %p800, %s33, 4
      %s802 = smul.addr %s801, 2
      %s803 = scalar_lea.vmem %s15, %s802
      %p804 = pneg %p454
      %p805 = pneg %p451
      %p806 = scmp.lt.s32.totalorder %s33, 4
      %s807 = scalar_select %p806, %s33, 4
      %s808 = smul.addr %s807, 8
      %s809 = smul.addr %s808, 4
      %s810 = scalar_lea.vmem %s16, %s809
      %p811 = pneg %p480
      %p812 = pneg %p477
      %p813 = scmp.lt.s32.totalorder %s33, 4
      %s814 = scalar_select %p813, %s33, 4
      %s815 = smul.addr %s814, 2
      %s816 = scalar_lea.vmem %s17, %s815
      %p817 = pneg %p506
      %p818 = pneg %p503
      %p819 = pneg %p534
      %p820 = pneg %p531
      %s821 = smul.u32 2, %s34
      %p822 = scmp.lt.s32.totalorder %s33, 4
      %s823 = scalar_select %p822, %s33, 4
      %p824 = scmp.lt.s32.totalorder %s821, 1
      %s825 = scalar_select %p824, %s821, 1
      %s826 = smul.addr %s825, 4
      %s827 = smul.addr %s823, 8
      %s828 = sadd.s32 %s826, %s827
      %s829 = smul.addr %s828, 8
      %s830 = scalar_lea.vmem %s18, %s829
      %s831 = smul.u32 2, %s34
      %p832 = scmp.lt.s32.totalorder %s33, 4
      %s833 = scalar_select %p832, %s33, 4
      %p834 = scmp.lt.s32.totalorder %s831, 1
      %s835 = scalar_select %p834, %s831, 1
      %s836 = smul.addr %s835, 4
      %s837 = smul.addr %s833, 8
      %s838 = sadd.s32 %s836, %s837
      %s839 = smul.addr %s838, 8
      %s840 = scalar_lea.vmem %s0, %s839
      %s841 = smul.u32 2, %s34
      %p842 = scmp.lt.s32.totalorder %s33, 4
      %s843 = scalar_select %p842, %s33, 4
      %s844 = smul.addr %s843, 2
      %s845 = smul.addr %s844, 8
      %s846 = scalar_lea.vmem %s1, %s845
      %p847 = scmp.lt.s32.totalorder %s33, 4
      %s848 = scalar_select %p847, %s33, 4
      %s849 = smul.addr %s848, 32
      %s850 = smul.addr %s849, 4
      %s851 = scalar_lea.vmem %s2, %s850
      %p852 = scmp.lt.s32.totalorder %s33, 4
      %s853 = scalar_select %p852, %s33, 4
      %s854 = scalar_lea.vmem %s3, %s853
      %p855 = scmp.lt.s32.totalorder %s33, 4
      %s856 = scalar_select %p855, %s33, 4
      %s857 = smul.addr %s856, 8
      %s858 = smul.addr %s857, 4
      %s859 = scalar_lea.vmem %s4, %s858
      %p860 = scmp.lt.s32.totalorder %s33, 4
      %s861 = scalar_select %p860, %s33, 4
      %s862 = smul.addr %s861, 2
      %s863 = scalar_lea.vmem %s5, %s862
      %p864 = scmp.lt.s32.totalorder %s33, 4
      %s865 = scalar_select %p864, %s33, 4
      %s866 = smul.addr %s865, 8
      %s867 = smul.addr %s866, 4
      %s868 = scalar_lea.vmem %s6, %s867
      %p869 = scmp.lt.s32.totalorder %s33, 4
      %s870 = scalar_select %p869, %s33, 4
      %s871 = smul.addr %s870, 2
      %s872 = scalar_lea.vmem %s7, %s871
      %p873 = scmp.lt.s32.totalorder %s33, 4
      %s874 = scalar_select %p873, %s33, 4
      %s875 = smul.addr %s874, 8
      %s876 = smul.addr %s875, 4
      %s877 = scalar_lea.vmem %s8, %s876
      %p878 = scmp.lt.s32.totalorder %s33, 4
      %s879 = scalar_select %p878, %s33, 4
      %s880 = smul.addr %s879, 2
      %s881 = scalar_lea.vmem %s9, %s880
      %p882 = scmp.lt.s32.totalorder %s33, 4
      %s883 = scalar_select %p882, %s33, 4
      %s884 = smul.addr %s883, 32
      %s885 = smul.addr %s884, 4
      %s886 = scalar_lea.vmem %s10, %s885
      %p887 = scmp.lt.s32.totalorder %s33, 4
      %s888 = scalar_select %p887, %s33, 4
      %s889 = smul.addr %s888, 2
      %s890 = scalar_lea.vmem %s11, %s889
      %p891 = scmp.lt.s32.totalorder %s33, 4
      %s892 = scalar_select %p891, %s33, 4
      %s893 = smul.addr %s892, 2
      %s894 = scalar_lea.vmem %s12, %s893
      %p895 = scmp.lt.s32.totalorder %s33, 4
      %s896 = scalar_select %p895, %s33, 4
      %s897 = smul.addr %s896, 2
      %s898 = scalar_lea.vmem %s13, %s897
      %p899 = scmp.lt.s32.totalorder %s33, 4
      %s900 = scalar_select %p899, %s33, 4
      %s901 = smul.addr %s900, 2
      %s902 = scalar_lea.vmem %s14, %s901
      %p903 = scmp.lt.s32.totalorder %s33, 4
      %s904 = scalar_select %p903, %s33, 4
      %s905 = smul.addr %s904, 2
      %s906 = scalar_lea.vmem %s15, %s905
      %p907 = scmp.lt.s32.totalorder %s33, 4
      %s908 = scalar_select %p907, %s33, 4
      %s909 = smul.addr %s908, 8
      %s910 = smul.addr %s909, 4
      %s911 = scalar_lea.vmem %s16, %s910
      %p912 = scmp.lt.s32.totalorder %s33, 4
      %s913 = scalar_select %p912, %s33, 4
      %s914 = smul.addr %s913, 2
      %s915 = scalar_lea.vmem %s17, %s914
      %s916 = smul.u32 2, %s34
      %p917 = scmp.lt.s32.totalorder %s33, 4
      %s918 = scalar_select %p917, %s33, 4
      %p919 = scmp.lt.s32.totalorder %s916, 1
      %s920 = scalar_select %p919, %s916, 1
      %s921 = smul.addr %s920, 4
      %s922 = smul.addr %s918, 8
      %s923 = sadd.s32 %s921, %s922
      %s924 = smul.addr %s923, 8
      %s925 = scalar_lea.vmem %s18, %s924
      %s926 = smul.u32 2, %s34
      %v928 = vld [vmem:[%s846] sm:$0xff]
      %v929 = vld [vmem:[%s846 + $0x8] sm:$0xff]
      %v930 = vld [vmem:[%s851] sm:$0xf]
      %v931 = vld [vmem:[%s851 + $0x4] sm:$0xf]
      %v932 = vld [vmem:[%s851 + $0x8] sm:$0xf]
      %v933 = vld [vmem:[%s851 + $0xc] sm:$0xf]
      %v934 = vld [vmem:[%s851 + $0x10] sm:$0xf]
      %v935 = vld [vmem:[%s851 + $0x14] sm:$0xf]
      %v936 = vld [vmem:[%s851 + $0x18] sm:$0xf]
      %v937 = vld [vmem:[%s851 + $0x1c] sm:$0xf]
      %v938 = vld [vmem:[%s851 + $0x20] sm:$0xf]
      %v939 = vld [vmem:[%s851 + $0x24] sm:$0xf]
      %v940 = vld [vmem:[%s851 + $0x28] sm:$0xf]
      %v941 = vld [vmem:[%s851 + $0x2c] sm:$0xf]
      %v942 = vld [vmem:[%s851 + $0x30] sm:$0xf]
      %v943 = vld [vmem:[%s851 + $0x34] sm:$0xf]
      %v944 = vld [vmem:[%s851 + $0x38] sm:$0xf]
      %v945 = vld [vmem:[%s851 + $0x3c] sm:$0xf]
      %v946 = vld [vmem:[%s851 + $0x40] sm:$0xf]
      %v947 = vld [vmem:[%s851 + $0x44] sm:$0xf]
      %v948 = vld [vmem:[%s851 + $0x48] sm:$0xf]
      %v949 = vld [vmem:[%s851 + $0x4c] sm:$0xf]
      %v950 = vld [vmem:[%s851 + $0x50] sm:$0xf]
      %v951 = vld [vmem:[%s851 + $0x54] sm:$0xf]
      %v952 = vld [vmem:[%s851 + $0x58] sm:$0xf]
      %v953 = vld [vmem:[%s851 + $0x5c] sm:$0xf]
      %v954 = vld [vmem:[%s851 + $0x60] sm:$0xf]
      %v955 = vld [vmem:[%s851 + $0x64] sm:$0xf]
      %v956 = vld [vmem:[%s851 + $0x68] sm:$0xf]
      %v957 = vld [vmem:[%s851 + $0x6c] sm:$0xf]
      %v958 = vld [vmem:[%s851 + $0x70] sm:$0xf]
      %v959 = vld [vmem:[%s851 + $0x74] sm:$0xf]
      %v960 = vld [vmem:[%s851 + $0x78] sm:$0xf]
      %v961 = vld [vmem:[%s851 + $0x7c] sm:$0xf]
      %v962 = vld [vmem:[%s854] sm:$0x1]
      %v963 = vld [vmem:[%s859] sm:$0xf]
      %v964 = vld [vmem:[%s859 + $0x4] sm:$0xf]
      %v965 = vld [vmem:[%s859 + $0x8] sm:$0xf]
      %v966 = vld [vmem:[%s859 + $0xc] sm:$0xf]
      %v967 = vld [vmem:[%s859 + $0x10] sm:$0xf]
      %v968 = vld [vmem:[%s859 + $0x14] sm:$0xf]
      %v969 = vld [vmem:[%s859 + $0x18] sm:$0xf]
      %v970 = vld [vmem:[%s859 + $0x1c] sm:$0xf]
      %v971 = vld [vmem:[%s863] sm:$0x1]
      %v972 = vld [vmem:[%s863 + $0x1] sm:$0x1]
      %v973 = vld [vmem:[%s868] sm:$0xf]
      %v974 = vld [vmem:[%s868 + $0x4] sm:$0xf]
      %v975 = vld [vmem:[%s868 + $0x8] sm:$0xf]
      %v976 = vld [vmem:[%s868 + $0xc] sm:$0xf]
      %v977 = vld [vmem:[%s868 + $0x10] sm:$0xf]
      %v978 = vld [vmem:[%s868 + $0x14] sm:$0xf]
      %v979 = vld [vmem:[%s868 + $0x18] sm:$0xf]
      %v980 = vld [vmem:[%s868 + $0x1c] sm:$0xf]
      %v981 = vld [vmem:[%s872] sm:$0x1]
      %v982 = vld [vmem:[%s872 + $0x1] sm:$0x1]
      %v983 = vld [vmem:[%s877] sm:$0xf]
      %v984 = vld [vmem:[%s877 + $0x4] sm:$0xf]
      %v985 = vld [vmem:[%s877 + $0x8] sm:$0xf]
      %v986 = vld [vmem:[%s877 + $0xc] sm:$0xf]
      %v987 = vld [vmem:[%s877 + $0x10] sm:$0xf]
      %v988 = vld [vmem:[%s877 + $0x14] sm:$0xf]
      %v989 = vld [vmem:[%s877 + $0x18] sm:$0xf]
      %v990 = vld [vmem:[%s877 + $0x1c] sm:$0xf]
      %v991 = vld [vmem:[%s881] sm:$0x1]
      %v992 = vld [vmem:[%s881 + $0x1] sm:$0x1]
      %v993 = vld [vmem:[%s886] sm:$0xf]
      %v994 = vld [vmem:[%s886 + $0x4] sm:$0xf]
      %v995 = vld [vmem:[%s886 + $0x8] sm:$0xf]
      %v996 = vld [vmem:[%s886 + $0xc] sm:$0xf]
      %v997 = vld [vmem:[%s886 + $0x10] sm:$0xf]
      %v998 = vld [vmem:[%s886 + $0x14] sm:$0xf]
      %v999 = vld [vmem:[%s886 + $0x18] sm:$0xf]
      %v1000 = vld [vmem:[%s886 + $0x1c] sm:$0xf]
      %v1001 = vld [vmem:[%s886 + $0x20] sm:$0xf]
      %v1002 = vld [vmem:[%s886 + $0x24] sm:$0xf]
      %v1003 = vld [vmem:[%s886 + $0x28] sm:$0xf]
      %v1004 = vld [vmem:[%s886 + $0x2c] sm:$0xf]
      %v1005 = vld [vmem:[%s886 + $0x30] sm:$0xf]
      %v1006 = vld [vmem:[%s886 + $0x34] sm:$0xf]
      %v1007 = vld [vmem:[%s886 + $0x38] sm:$0xf]
      %v1008 = vld [vmem:[%s886 + $0x3c] sm:$0xf]
      %v1009 = vld [vmem:[%s886 + $0x40] sm:$0xf]
      %v1010 = vld [vmem:[%s886 + $0x44] sm:$0xf]
      %v1011 = vld [vmem:[%s886 + $0x48] sm:$0xf]
      %v1012 = vld [vmem:[%s886 + $0x4c] sm:$0xf]
      %v1013 = vld [vmem:[%s886 + $0x50] sm:$0xf]
      %v1014 = vld [vmem:[%s886 + $0x54] sm:$0xf]
      %v1015 = vld [vmem:[%s886 + $0x58] sm:$0xf]
      %v1016 = vld [vmem:[%s886 + $0x5c] sm:$0xf]
      %v1017 = vld [vmem:[%s886 + $0x60] sm:$0xf]
      %v1018 = vld [vmem:[%s886 + $0x64] sm:$0xf]
      %v1019 = vld [vmem:[%s886 + $0x68] sm:$0xf]
      %v1020 = vld [vmem:[%s886 + $0x6c] sm:$0xf]
      %v1021 = vld [vmem:[%s886 + $0x70] sm:$0xf]
      %v1022 = vld [vmem:[%s886 + $0x74] sm:$0xf]
      %v1023 = vld [vmem:[%s886 + $0x78] sm:$0xf]
      %v1024 = vld [vmem:[%s886 + $0x7c] sm:$0xf]
      %v1025 = vld [vmem:[%s890] sm:$0x1]
      %v1026 = vld [vmem:[%s890 + $0x1] sm:$0x1]
      %v1027 = vld [vmem:[%s894] sm:$0x1]
      %v1028 = vld [vmem:[%s894 + $0x1] sm:$0x1]
      %v1029 = vld [vmem:[%s898] sm:$0x1]
      %v1030 = vld [vmem:[%s898 + $0x1] sm:$0x1]
      %v1031 = vld [vmem:[%s902] sm:$0x1]
      %v1032 = vld [vmem:[%s902 + $0x1] sm:$0x1]
      %v1033 = vld [vmem:[%s906] sm:$0x1]
      %v1034 = vld [vmem:[%s906 + $0x1] sm:$0x1]
      %v1035 = vld [vmem:[%s911] sm:$0xff]
      %v1036 = vld [vmem:[%s911 + $0x8] sm:$0xff]
      %v1037 = vld [vmem:[%s911 + $0x10] sm:$0xff]
      %v1038 = vld [vmem:[%s911 + $0x18] sm:$0xff]
      %v1039 = vld [vmem:[%s915] sm:$0x3]
      %v1040 = vld [vmem:[%s840] sm:$0xff]
      %v1041 = vld [vmem:[%s840 + $0x8] sm:$0xff]
      %v1042 = vld [vmem:[%s840 + $0x10] sm:$0xff]
      %v1043 = vld [vmem:[%s840 + $0x18] sm:$0xff]
      %v1044 = vld [vmem:[%s840 + $0x20] sm:$0xff]
      %v1045 = vld [vmem:[%s840 + $0x28] sm:$0xff]
      %v1046 = vld [vmem:[%s840 + $0x30] sm:$0xff]
      %v1047 = vld [vmem:[%s840 + $0x38] sm:$0xff]
      %v1048 = vpack.c.bf16 %v1042, %v1040
      %v1049 = vpack.c.bf16 %v1043, %v1041
      %v1050 = vpack.c.bf16 %v1046, %v1044
      %v1051 = vpack.c.bf16 %v1047, %v1045
      %v1053 = vlaneseq
      %v1054 = vshrl.u32 %v1053, 7
      %v1055 = vsub.s32 0, %v1054
      %v1056 = vrot.slane %v962, %v1055
      %v1090 = vunpack.c.l.b16 %v930
      %v1091 = vunpack.c.l.b16 %v931
      %v1092 = vunpack.c.l.b16 %v932
      %v1093 = vunpack.c.l.b16 %v933
      %v1094 = vunpack.c.l.b16 %v934
      %v1095 = vunpack.c.l.b16 %v935
      %v1096 = vunpack.c.l.b16 %v936
      %v1097 = vunpack.c.l.b16 %v937
      %v1098 = vunpack.c.l.b16 %v938
      %v1099 = vunpack.c.l.b16 %v939
      %v1100 = vunpack.c.l.b16 %v940
      %v1101 = vunpack.c.l.b16 %v941
      %v1102 = vunpack.c.l.b16 %v942
      %v1103 = vunpack.c.l.b16 %v943
      %v1104 = vunpack.c.l.b16 %v944
      %v1105 = vunpack.c.l.b16 %v945
      %v1106 = vunpack.c.l.b16 %v946
      %v1107 = vunpack.c.l.b16 %v947
      %v1108 = vunpack.c.l.b16 %v948
      %v1109 = vunpack.c.l.b16 %v949
      %v1110 = vunpack.c.l.b16 %v950
      %v1111 = vunpack.c.l.b16 %v951
      %v1112 = vunpack.c.l.b16 %v952
      %v1113 = vunpack.c.l.b16 %v953
      %v1114 = vunpack.c.l.b16 %v954
      %v1115 = vunpack.c.l.b16 %v955
      %v1116 = vunpack.c.l.b16 %v956
      %v1117 = vunpack.c.l.b16 %v957
      %v1118 = vunpack.c.l.b16 %v958
      %v1119 = vunpack.c.l.b16 %v959
      %v1120 = vunpack.c.l.b16 %v960
      %v1121 = vunpack.c.l.b16 %v961
      %v1122 = vpack.c.b16 %v1091, %v1090
      %v1123 = vpack.c.b16 %v1093, %v1092
      %v1124 = vpack.c.b16 %v1095, %v1094
      %v1125 = vpack.c.b16 %v1097, %v1096
      %v1126 = vpack.c.b16 %v1099, %v1098
      %v1127 = vpack.c.b16 %v1101, %v1100
      %v1128 = vpack.c.b16 %v1103, %v1102
      %v1129 = vpack.c.b16 %v1105, %v1104
      %v1130 = vpack.c.b16 %v1107, %v1106
      %v1131 = vpack.c.b16 %v1109, %v1108
      %v1132 = vpack.c.b16 %v1111, %v1110
      %v1133 = vpack.c.b16 %v1113, %v1112
      %v1134 = vpack.c.b16 %v1115, %v1114
      %v1135 = vpack.c.b16 %v1117, %v1116
      %v1136 = vpack.c.b16 %v1119, %v1118
      %v1137 = vpack.c.b16 %v1121, %v1120
      %1154 = vmatprep.subr.bf16.mxu0 0
      %1155 = vmatpush1.bf16.msra.mxu0 %v1122
      %1156 = vmatprep.subr.bf16.mxu0 0
      %1157 = vmatpush1.bf16.msra.mxu0 %v1123
      %1158 = vmatprep.subr.bf16.mxu0 0
      %1159 = vmatpush1.bf16.msra.mxu0 %v1124
      %1160 = vmatprep.subr.bf16.mxu0 0
      %1161 = vmatpush1.bf16.msra.mxu0 %v1125
      %1162 = vmatprep.subr.bf16.mxu0 0
      %1163 = vmatpush1.bf16.msra.mxu0 %v1126
      %1164 = vmatprep.subr.bf16.mxu0 0
      %1165 = vmatpush1.bf16.msra.mxu0 %v1127
      %1166 = vmatprep.subr.bf16.mxu0 0
      %1167 = vmatpush1.bf16.msra.mxu0 %v1128
      %1168 = vmatprep.subr.bf16.mxu0 0
      %1169 = vmatpush1.bf16.msra.mxu0 %v1129
      %1170 = vmatprep.subr.bf16.mxu0 0
      %1171 = vmatpush1.bf16.msra.mxu0 %v1130
      %1172 = vmatprep.subr.bf16.mxu0 0
      %1173 = vmatpush1.bf16.msra.mxu0 %v1131
      %1174 = vmatprep.subr.bf16.mxu0 0
      %1175 = vmatpush1.bf16.msra.mxu0 %v1132
      %1176 = vmatprep.subr.bf16.mxu0 0
      %1177 = vmatpush1.bf16.msra.mxu0 %v1133
      %1178 = vmatprep.subr.bf16.mxu0 0
      %1179 = vmatpush1.bf16.msra.mxu0 %v1134
      %1180 = vmatprep.subr.bf16.mxu0 0
      %1181 = vmatpush1.bf16.msra.mxu0 %v1135
      %1182 = vmatprep.subr.bf16.mxu0 0
      %1183 = vmatpush1.bf16.msra.mxu0 %v1136
      %1184 = vmatprep.subr.bf16.mxu0 0
      %1185 = vmatpush1.bf16.msra.mxu0 %v1137
      %1186 = vmatprep.mubr.bf16.mxu0 %v1049
      %1187 = vmatmul.mubr.bf16.gmra.mrb[0].mxu0 %v1048
      %v1188 = vpop.f32.mrb[0].mxu0
      %v1189 = vadd.f32 %v1056, %v1188
      %v1190 = vpop.f32.mrb[0].mxu0
      %v1191 = vpop.f32.mrb[0].mxu0
      %v1192 = vadd.f32 %v1056, %v1191
      %v1193 = vpop.f32.mrb[0].mxu0
      %1194 = vmatprep.mubr.bf16.mxu0 %v1051
      %1195 = vmatmul.mubr.bf16.gmra.mrb[0].mxu0 %v1050
      %v1196 = vpop.f32.mrb[0].mxu0
      %v1197 = vadd.f32 %v1056, %v1196
      %v1198 = vpop.f32.mrb[0].mxu0
      %v1199 = vpop.f32.mrb[0].mxu0
      %v1200 = vadd.f32 %v1056, %v1199
      %v1201 = vpop.f32.mrb[0].mxu0
      %1202 = vdwg.mxu0
      %v1203 = vadd.f32 %v1189, %v928
      %v1204 = vadd.f32 %v1192, %v929
      %v1205 = vadd.f32 %v1197, %v928
      %v1206 = vadd.f32 %v1200, %v929
      %v1207 = vpack.c.bf16 %v1204, %v1203
      %v1208 = vpack.c.bf16 %v1206, %v1205
      %v1210 = vlaneseq
      %v1211 = vshrl.u32 %v1210, 7
      %v1212 = vsub.s32 0, %v1211
      %v1213 = vrot.slane %v971, %v1212
      %v1219 = vunpack.c.l.b16 %v963
      %v1220 = vunpack.c.l.b16 %v964
      %v1221 = vunpack.c.l.b16 %v965
      %v1222 = vunpack.c.l.b16 %v966
      %v1223 = vpack.c.b16 %v1220, %v1219
      %v1224 = vpack.c.b16 %v1222, %v1221
      %vm1227 = vcmask 261120
      %v1229 = vsel %vm1227, %v1207, 0
      %v1232 = vsel %vm1227, %v1208, 0
      %1234 = vmatprep.subr.bf16.mxu0 0
      %1235 = vmatpush1.bf16.msra.mxu0 %v1223
      %1236 = vmatprep.subr.bf16.mxu0 0
      %1237 = vmatpush1.bf16.msra.mxu0 %v1224
      %1238 = vmatprep.subr.bf16.mxu0 0
      %1239 = vmatpush1.bf16.msra.mxu0 0
      %1240 = vmatprep.subr.bf16.mxu0 0
      %1241 = vmatpush1.bf16.msra.mxu0 0
      %1242 = vmatprep.subr.bf16.mxu0 0
      %1243 = vmatpush1.bf16.msra.mxu0 0
      %1244 = vmatprep.subr.bf16.mxu0 0
      %1245 = vmatpush1.bf16.msra.mxu0 0
      %1246 = vmatprep.subr.bf16.mxu0 0
      %1247 = vmatpush1.bf16.msra.mxu0 0
      %1248 = vmatprep.subr.bf16.mxu0 0
      %1249 = vmatpush1.bf16.msra.mxu0 0
      %1250 = vmatprep.subr.bf16.mxu0 0
      %1251 = vmatpush1.bf16.msra.mxu0 0
      %1252 = vmatprep.subr.bf16.mxu0 0
      %1253 = vmatpush1.bf16.msra.mxu0 0
      %1254 = vmatprep.subr.bf16.mxu0 0
      %1255 = vmatpush1.bf16.msra.mxu0 0
      %1256 = vmatprep.subr.bf16.mxu0 0
      %1257 = vmatpush1.bf16.msra.mxu0 0
      %1258 = vmatprep.subr.bf16.mxu0 0
      %1259 = vmatpush1.bf16.msra.mxu0 0
      %1260 = vmatprep.subr.bf16.mxu0 0
      %1261 = vmatpush1.bf16.msra.mxu0 0
      %1262 = vmatprep.subr.bf16.mxu0 0
      %1263 = vmatpush1.bf16.msra.mxu0 0
      %1264 = vmatprep.subr.bf16.mxu0 0
      %1265 = vmatpush1.bf16.msra.mxu0 0
      %1266 = vmatprep.mubr.bf16.mxu0 0
      %1267 = vmatmul.mubr.bf16.gmra.mrb[0].mxu0 %v1229
      %v1268 = vpop.f32.mrb[0].mxu0
      %v1269 = vadd.f32 %v1213, %v1268
      %v1270 = vpop.f32.mrb[0].mxu0
      %v1271 = vpop.f32.mrb[0].mxu0
      %v1272 = vadd.f32 %v1213, %v1271
      %v1273 = vpop.f32.mrb[0].mxu0
      %1274 = vmatprep.mubr.bf16.mxu0 0
      %1275 = vmatmul.mubr.bf16.gmra.mrb[0].mxu0 %v1232
      %v1276 = vpop.f32.mrb[0].mxu0
      %v1277 = vadd.f32 %v1213, %v1276
      %v1278 = vpop.f32.mrb[0].mxu0
      %v1279 = vpop.f32.mrb[0].mxu0
      %v1280 = vadd.f32 %v1213, %v1279
      %v1281 = vpop.f32.mrb[0].mxu0
      %1282 = vdwg.mxu0
      %1287 = vrot.lane.b32.xlu0 %v1269, 120
      %v1288 = vpop.permute.xlu0 %1287
      %1289 = vrot.lane.b32.xlu0 %v1272, 120
      %v1290 = vpop.permute.xlu0 %1289
      %1291 = vrot.lane.b32.xlu0 %v1277, 120
      %v1292 = vpop.permute.xlu0 %1291
      %1293 = vrot.lane.b32.xlu0 %v1280, 120
      %v1294 = vpop.permute.xlu0 %1293
      %1299 = vrot.lane.b32.xlu0 %v1269, 112
      %v1300 = vpop.permute.xlu0 %1299
      %1301 = vrot.lane.b32.xlu0 %v1272, 112
      %v1302 = vpop.permute.xlu0 %1301
      %1303 = vrot.lane.b32.xlu0 %v1277, 112
      %v1304 = vpop.permute.xlu0 %1303
      %1305 = vrot.lane.b32.xlu0 %v1280, 112
      %v1306 = vpop.permute.xlu0 %1305
      %1311 = vrot.lane.b32.xlu0 %v1269, 104
      %v1312 = vpop.permute.xlu0 %1311
      %1313 = vrot.lane.b32.xlu0 %v1272, 104
      %v1314 = vpop.permute.xlu0 %1313
      %1315 = vrot.lane.b32.xlu0 %v1277, 104
      %v1316 = vpop.permute.xlu0 %1315
      %1317 = vrot.lane.b32.xlu0 %v1280, 104
      %v1318 = vpop.permute.xlu0 %1317
      %v1323 = vpack.c.bf16 %v1272, %v1269
      %v1324 = vpack.c.bf16 %v1280, %v1277
      %v1325 = vpack.c.bf16 %v1290, %v1288
      %v1326 = vpack.c.bf16 %v1294, %v1292
      %v1327 = vpack.c.bf16 %v1302, %v1300
      %v1328 = vpack.c.bf16 %v1306, %v1304
      %v1329 = vpack.c.bf16 %v1314, %v1312
      %v1330 = vpack.c.bf16 %v1318, %v1316
      %1332 = vrot.lane.b32.xlu0 %v1323, 96
      %v1333 = vpop.permute.xlu0 %1332
      %vm1334 = vcmask 64512
      %v1336 = vsel %vm1334, %v1323, 0
      %v1339 = vsel %vm1334, %v1333, 0
      %1341 = vmatprep.subr.bf16.mxu0 0
      %1342 = vmatpush1.bf16.xpose.msra.mxu0 %v1339
      %1343 = vmatprep.subr.bf16.mxu0 0
      %1344 = vmatpush1.bf16.xpose.msra.mxu0 0
      %1345 = vmatprep.subr.bf16.mxu0 0
      %1346 = vmatpush1.bf16.xpose.msra.mxu0 0
      %1347 = vmatprep.subr.bf16.mxu0 0
      %1348 = vmatpush1.bf16.xpose.msra.mxu0 0
      %1349 = vmatprep.subr.bf16.mxu0 0
      %1350 = vmatpush1.bf16.xpose.msra.mxu0 0
      %1351 = vmatprep.subr.bf16.mxu0 0
      %1352 = vmatpush1.bf16.xpose.msra.mxu0 0
      %1353 = vmatprep.subr.bf16.mxu0 0
      %1354 = vmatpush1.bf16.xpose.msra.mxu0 0
      %1355 = vmatprep.subr.bf16.mxu0 0
      %1356 = vmatpush1.bf16.xpose.msra.mxu0 0
      %1357 = vmatprep.subr.bf16.mxu0 0
      %1358 = vmatpush1.bf16.xpose.msra.mxu0 0
      %1359 = vmatprep.subr.bf16.mxu0 0
      %1360 = vmatpush1.bf16.xpose.msra.mxu0 0
      %1361 = vmatprep.subr.bf16.mxu0 0
      %1362 = vmatpush1.bf16.xpose.msra.mxu0 0
      %1363 = vmatprep.subr.bf16.mxu0 0
      %1364 = vmatpush1.bf16.xpose.msra.mxu0 0
      %1365 = vmatprep.subr.bf16.mxu0 0
      %1366 = vmatpush1.bf16.xpose.msra.mxu0 0
      %1367 = vmatprep.subr.bf16.mxu0 0
      %1368 = vmatpush1.bf16.xpose.msra.mxu0 0
      %1369 = vmatprep.subr.bf16.mxu0 0
      %1370 = vmatpush1.bf16.xpose.msra.mxu0 0
      %1371 = vmatprep.subr.bf16.mxu0 0
      %1372 = vmatpush1.bf16.xpose.msra.mxu0 0
      %1373 = vmatprep.mubr.bf16.mxu0 0
      %1374 = vmatmul.mubr.bf16.gmra.mrb[0].mxu0 %v1336
      %v1375 = vpop.f32.mrb[0].mxu0
      %v1376 = vadd.f32 0.0, %v1375
      %v1377 = vpop.f32.mrb[0].mxu0
      %v1378 = vpop.f32.mrb[0].mxu0
      %v1379 = vadd.f32 0.0, %v1378
      %v1380 = vpop.f32.mrb[0].mxu0
      %1381 = vdwg.mxu0
      %1383 = vrot.lane.b32.xlu0 %v1324, 96
      %v1384 = vpop.permute.xlu0 %1383
      %v1386 = vsel %vm1334, %v1324, 0
      %v1389 = vsel %vm1334, %v1384, 0
      %1391 = vmatprep.subr.bf16.mxu0 0
      %1392 = vmatpush1.bf16.xpose.msra.mxu0 %v1389
      %1393 = vmatprep.subr.bf16.mxu0 0
      %1394 = vmatpush1.bf16.xpose.msra.mxu0 0
      %1395 = vmatprep.subr.bf16.mxu0 0
      %1396 = vmatpush1.bf16.xpose.msra.mxu0 0
      %1397 = vmatprep.subr.bf16.mxu0 0
      %1398 = vmatpush1.bf16.xpose.msra.mxu0 0
      %1399 = vmatprep.subr.bf16.mxu0 0
      %1400 = vmatpush1.bf16.xpose.msra.mxu0 0
      %1401 = vmatprep.subr.bf16.mxu0 0
      %1402 = vmatpush1.bf16.xpose.msra.mxu0 0
      %1403 = vmatprep.subr.bf16.mxu0 0
      %1404 = vmatpush1.bf16.xpose.msra.mxu0 0
      %1405 = vmatprep.subr.bf16.mxu0 0
      %1406 = vmatpush1.bf16.xpose.msra.mxu0 0
      %1407 = vmatprep.subr.bf16.mxu0 0
      %1408 = vmatpush1.bf16.xpose.msra.mxu0 0
      %1409 = vmatprep.subr.bf16.mxu0 0
      %1410 = vmatpush1.bf16.xpose.msra.mxu0 0
      %1411 = vmatprep.subr.bf16.mxu0 0
      %1412 = vmatpush1.bf16.xpose.msra.mxu0 0
      %1413 = vmatprep.subr.bf16.mxu0 0
      %1414 = vmatpush1.bf16.xpose.msra.mxu0 0
      %1415 = vmatprep.subr.bf16.mxu0 0
      %1416 = vmatpush1.bf16.xpose.msra.mxu0 0
      %1417 = vmatprep.subr.bf16.mxu0 0
      %1418 = vmatpush1.bf16.xpose.msra.mxu0 0
      %1419 = vmatprep.subr.bf16.mxu0 0
      %1420 = vmatpush1.bf16.xpose.msra.mxu0 0
      %1421 = vmatprep.subr.bf16.mxu0 0
      %1422 = vmatpush1.bf16.xpose.msra.mxu0 0
      %1423 = vmatprep.mubr.bf16.mxu0 0
      %1424 = vmatmul.mubr.bf16.gmra.mrb[0].mxu0 %v1386
      %v1425 = vpop.f32.mrb[0].mxu0
      %v1426 = vadd.f32 0.0, %v1425
      %v1427 = vpop.f32.mrb[0].mxu0
      %v1428 = vpop.f32.mrb[0].mxu0
      %v1429 = vadd.f32 0.0, %v1428
      %v1430 = vpop.f32.mrb[0].mxu0
      %1431 = vdwg.mxu0
      %1433 = vrot.lane.b32.xlu0 %v1325, 96
      %v1434 = vpop.permute.xlu0 %1433
      %v1436 = vsel %vm1334, %v1325, 0
      %v1439 = vsel %vm1334, %v1434, 0
      %1441 = vmatprep.subr.bf16.mxu0 0
      %1442 = vmatpush1.bf16.xpose.msra.mxu0 %v1439
      %1443 = vmatprep.subr.bf16.mxu0 0
      %1444 = vmatpush1.bf16.xpose.msra.mxu0 0
      %1445 = vmatprep.subr.bf16.mxu0 0
      %1446 = vmatpush1.bf16.xpose.msra.mxu0 0
      %1447 = vmatprep.subr.bf16.mxu0 0
      %1448 = vmatpush1.bf16.xpose.msra.mxu0 0
      %1449 = vmatprep.subr.bf16.mxu0 0
      %1450 = vmatpush1.bf16.xpose.msra.mxu0 0
      %1451 = vmatprep.subr.bf16.mxu0 0
      %1452 = vmatpush1.bf16.xpose.msra.mxu0 0
      %1453 = vmatprep.subr.bf16.mxu0 0
      %1454 = vmatpush1.bf16.xpose.msra.mxu0 0
      %1455 = vmatprep.subr.bf16.mxu0 0
      %1456 = vmatpush1.bf16.xpose.msra.mxu0 0
      %1457 = vmatprep.subr.bf16.mxu0 0
      %1458 = vmatpush1.bf16.xpose.msra.mxu0 0
      %1459 = vmatprep.subr.bf16.mxu0 0
      %1460 = vmatpush1.bf16.xpose.msra.mxu0 0
      %1461 = vmatprep.subr.bf16.mxu0 0
      %1462 = vmatpush1.bf16.xpose.msra.mxu0 0
      %1463 = vmatprep.subr.bf16.mxu0 0
      %1464 = vmatpush1.bf16.xpose.msra.mxu0 0
      %1465 = vmatprep.subr.bf16.mxu0 0
      %1466 = vmatpush1.bf16.xpose.msra.mxu0 0
      %1467 = vmatprep.subr.bf16.mxu0 0
      %1468 = vmatpush1.bf16.xpose.msra.mxu0 0
      %1469 = vmatprep.subr.bf16.mxu0 0
      %1470 = vmatpush1.bf16.xpose.msra.mxu0 0
      %1471 = vmatprep.subr.bf16.mxu0 0
      %1472 = vmatpush1.bf16.xpose.msra.mxu0 0
      %1473 = vmatprep.mubr.bf16.mxu0 0
      %1474 = vmatmul.mubr.bf16.gmra.mrb[0].mxu0 %v1436
      %v1475 = vpop.f32.mrb[0].mxu0
      %v1476 = vadd.f32 0.0, %v1475
      %v1477 = vpop.f32.mrb[0].mxu0
      %v1478 = vpop.f32.mrb[0].mxu0
      %v1479 = vadd.f32 0.0, %v1478
      %v1480 = vpop.f32.mrb[0].mxu0
      %1481 = vdwg.mxu0
      %1483 = vrot.lane.b32.xlu0 %v1326, 96
      %v1484 = vpop.permute.xlu0 %1483
      %v1486 = vsel %vm1334, %v1326, 0
      %v1489 = vsel %vm1334, %v1484, 0
      %1491 = vmatprep.subr.bf16.mxu0 0
      %1492 = vmatpush1.bf16.xpose.msra.mxu0 %v1489
      %1493 = vmatprep.subr.bf16.mxu0 0
      %1494 = vmatpush1.bf16.xpose.msra.mxu0 0
      %1495 = vmatprep.subr.bf16.mxu0 0
      %1496 = vmatpush1.bf16.xpose.msra.mxu0 0
      %1497 = vmatprep.subr.bf16.mxu0 0
      %1498 = vmatpush1.bf16.xpose.msra.mxu0 0
      %1499 = vmatprep.subr.bf16.mxu0 0
      %1500 = vmatpush1.bf16.xpose.msra.mxu0 0
      %1501 = vmatprep.subr.bf16.mxu0 0
      %1502 = vmatpush1.bf16.xpose.msra.mxu0 0
      %1503 = vmatprep.subr.bf16.mxu0 0
      %1504 = vmatpush1.bf16.xpose.msra.mxu0 0
      %1505 = vmatprep.subr.bf16.mxu0 0
      %1506 = vmatpush1.bf16.xpose.msra.mxu0 0
      %1507 = vmatprep.subr.bf16.mxu0 0
      %1508 = vmatpush1.bf16.xpose.msra.mxu0 0
      %1509 = vmatprep.subr.bf16.mxu0 0
      %1510 = vmatpush1.bf16.xpose.msra.mxu0 0
      %1511 = vmatprep.subr.bf16.mxu0 0
      %1512 = vmatpush1.bf16.xpose.msra.mxu0 0
      %1513 = vmatprep.subr.bf16.mxu0 0
      %1514 = vmatpush1.bf16.xpose.msra.mxu0 0
      %1515 = vmatprep.subr.bf16.mxu0 0
      %1516 = vmatpush1.bf16.xpose.msra.mxu0 0
      %1517 = vmatprep.subr.bf16.mxu0 0
      %1518 = vmatpush1.bf16.xpose.msra.mxu0 0
      %1519 = vmatprep.subr.bf16.mxu0 0
      %1520 = vmatpush1.bf16.xpose.msra.mxu0 0
      %1521 = vmatprep.subr.bf16.mxu0 0
      %1522 = vmatpush1.bf16.xpose.msra.mxu0 0
      %1523 = vmatprep.mubr.bf16.mxu0 0
      %1524 = vmatmul.mubr.bf16.gmra.mrb[0].mxu0 %v1486
      %v1525 = vpop.f32.mrb[0].mxu0
      %v1526 = vadd.f32 0.0, %v1525
      %v1527 = vpop.f32.mrb[0].mxu0
      %v1528 = vpop.f32.mrb[0].mxu0
      %v1529 = vadd.f32 0.0, %v1528
      %v1530 = vpop.f32.mrb[0].mxu0
      %1531 = vdwg.mxu0
      %1533 = vrot.lane.b32.xlu0 %v1327, 96
      %v1534 = vpop.permute.xlu0 %1533
      %v1536 = vsel %vm1334, %v1327, 0
      %v1539 = vsel %vm1334, %v1534, 0
      %1541 = vmatprep.subr.bf16.mxu0 0
      %1542 = vmatpush1.bf16.xpose.msra.mxu0 %v1539
      %1543 = vmatprep.subr.bf16.mxu0 0
      %1544 = vmatpush1.bf16.xpose.msra.mxu0 0
      %1545 = vmatprep.subr.bf16.mxu0 0
      %1546 = vmatpush1.bf16.xpose.msra.mxu0 0
      %1547 = vmatprep.subr.bf16.mxu0 0
      %1548 = vmatpush1.bf16.xpose.msra.mxu0 0
      %1549 = vmatprep.subr.bf16.mxu0 0
      %1550 = vmatpush1.bf16.xpose.msra.mxu0 0
      %1551 = vmatprep.subr.bf16.mxu0 0
      %1552 = vmatpush1.bf16.xpose.msra.mxu0 0
      %1553 = vmatprep.subr.bf16.mxu0 0
      %1554 = vmatpush1.bf16.xpose.msra.mxu0 0
      %1555 = vmatprep.subr.bf16.mxu0 0
      %1556 = vmatpush1.bf16.xpose.msra.mxu0 0
      %1557 = vmatprep.subr.bf16.mxu0 0
      %1558 = vmatpush1.bf16.xpose.msra.mxu0 0
      %1559 = vmatprep.subr.bf16.mxu0 0
      %1560 = vmatpush1.bf16.xpose.msra.mxu0 0
      %1561 = vmatprep.subr.bf16.mxu0 0
      %1562 = vmatpush1.bf16.xpose.msra.mxu0 0
      %1563 = vmatprep.subr.bf16.mxu0 0
      %1564 = vmatpush1.bf16.xpose.msra.mxu0 0
      %1565 = vmatprep.subr.bf16.mxu0 0
      %1566 = vmatpush1.bf16.xpose.msra.mxu0 0
      %1567 = vmatprep.subr.bf16.mxu0 0
      %1568 = vmatpush1.bf16.xpose.msra.mxu0 0
      %1569 = vmatprep.subr.bf16.mxu0 0
      %1570 = vmatpush1.bf16.xpose.msra.mxu0 0
      %1571 = vmatprep.subr.bf16.mxu0 0
      %1572 = vmatpush1.bf16.xpose.msra.mxu0 0
      %1573 = vmatprep.mubr.bf16.mxu0 0
      %1574 = vmatmul.mubr.bf16.gmra.mrb[0].mxu0 %v1536
      %v1575 = vpop.f32.mrb[0].mxu0
      %v1576 = vadd.f32 0.0, %v1575
      %v1577 = vpop.f32.mrb[0].mxu0
      %v1578 = vpop.f32.mrb[0].mxu0
      %v1579 = vadd.f32 0.0, %v1578
      %v1580 = vpop.f32.mrb[0].mxu0
      %1581 = vdwg.mxu0
      %1583 = vrot.lane.b32.xlu0 %v1328, 96
      %v1584 = vpop.permute.xlu0 %1583
      %v1586 = vsel %vm1334, %v1328, 0
      %v1589 = vsel %vm1334, %v1584, 0
      %1591 = vmatprep.subr.bf16.mxu0 0
      %1592 = vmatpush1.bf16.xpose.msra.mxu0 %v1589
      %1593 = vmatprep.subr.bf16.mxu0 0
      %1594 = vmatpush1.bf16.xpose.msra.mxu0 0
      %1595 = vmatprep.subr.bf16.mxu0 0
      %1596 = vmatpush1.bf16.xpose.msra.mxu0 0
      %1597 = vmatprep.subr.bf16.mxu0 0
      %1598 = vmatpush1.bf16.xpose.msra.mxu0 0
      %1599 = vmatprep.subr.bf16.mxu0 0
      %1600 = vmatpush1.bf16.xpose.msra.mxu0 0
      %1601 = vmatprep.subr.bf16.mxu0 0
      %1602 = vmatpush1.bf16.xpose.msra.mxu0 0
      %1603 = vmatprep.subr.bf16.mxu0 0
      %1604 = vmatpush1.bf16.xpose.msra.mxu0 0
      %1605 = vmatprep.subr.bf16.mxu0 0
      %1606 = vmatpush1.bf16.xpose.msra.mxu0 0
      %1607 = vmatprep.subr.bf16.mxu0 0
      %1608 = vmatpush1.bf16.xpose.msra.mxu0 0
      %1609 = vmatprep.subr.bf16.mxu0 0
      %1610 = vmatpush1.bf16.xpose.msra.mxu0 0
      %1611 = vmatprep.subr.bf16.mxu0 0
      %1612 = vmatpush1.bf16.xpose.msra.mxu0 0
      %1613 = vmatprep.subr.bf16.mxu0 0
      %1614 = vmatpush1.bf16.xpose.msra.mxu0 0
      %1615 = vmatprep.subr.bf16.mxu0 0
      %1616 = vmatpush1.bf16.xpose.msra.mxu0 0
      %1617 = vmatprep.subr.bf16.mxu0 0
      %1618 = vmatpush1.bf16.xpose.msra.mxu0 0
      %1619 = vmatprep.subr.bf16.mxu0 0
      %1620 = vmatpush1.bf16.xpose.msra.mxu0 0
      %1621 = vmatprep.subr.bf16.mxu0 0
      %1622 = vmatpush1.bf16.xpose.msra.mxu0 0
      %1623 = vmatprep.mubr.bf16.mxu0 0
      %1624 = vmatmul.mubr.bf16.gmra.mrb[0].mxu0 %v1586
      %v1625 = vpop.f32.mrb[0].mxu0
      %v1626 = vadd.f32 0.0, %v1625
      %v1627 = vpop.f32.mrb[0].mxu0
      %v1628 = vpop.f32.mrb[0].mxu0
      %v1629 = vadd.f32 0.0, %v1628
      %v1630 = vpop.f32.mrb[0].mxu0
      %1631 = vdwg.mxu0
      %1633 = vrot.lane.b32.xlu0 %v1329, 96
      %v1634 = vpop.permute.xlu0 %1633
      %v1636 = vsel %vm1334, %v1329, 0
      %v1639 = vsel %vm1334, %v1634, 0
      %1641 = vmatprep.subr.bf16.mxu0 0
      %1642 = vmatpush1.bf16.xpose.msra.mxu0 %v1639
      %1643 = vmatprep.subr.bf16.mxu0 0
      %1644 = vmatpush1.bf16.xpose.msra.mxu0 0
      %1645 = vmatprep.subr.bf16.mxu0 0
      %1646 = vmatpush1.bf16.xpose.msra.mxu0 0
      %1647 = vmatprep.subr.bf16.mxu0 0
      %1648 = vmatpush1.bf16.xpose.msra.mxu0 0
      %1649 = vmatprep.subr.bf16.mxu0 0
      %1650 = vmatpush1.bf16.xpose.msra.mxu0 0
      %1651 = vmatprep.subr.bf16.mxu0 0
      %1652 = vmatpush1.bf16.xpose.msra.mxu0 0
      %1653 = vmatprep.subr.bf16.mxu0 0
      %1654 = vmatpush1.bf16.xpose.msra.mxu0 0
      %1655 = vmatprep.subr.bf16.mxu0 0
      %1656 = vmatpush1.bf16.xpose.msra.mxu0 0
      %1657 = vmatprep.subr.bf16.mxu0 0
      %1658 = vmatpush1.bf16.xpose.msra.mxu0 0
      %1659 = vmatprep.subr.bf16.mxu0 0
      %1660 = vmatpush1.bf16.xpose.msra.mxu0 0
      %1661 = vmatprep.subr.bf16.mxu0 0
      %1662 = vmatpush1.bf16.xpose.msra.mxu0 0
      %1663 = vmatprep.subr.bf16.mxu0 0
      %1664 = vmatpush1.bf16.xpose.msra.mxu0 0
      %1665 = vmatprep.subr.bf16.mxu0 0
      %1666 = vmatpush1.bf16.xpose.msra.mxu0 0
      %1667 = vmatprep.subr.bf16.mxu0 0
      %1668 = vmatpush1.bf16.xpose.msra.mxu0 0
      %1669 = vmatprep.subr.bf16.mxu0 0
      %1670 = vmatpush1.bf16.xpose.msra.mxu0 0
      %1671 = vmatprep.subr.bf16.mxu0 0
      %1672 = vmatpush1.bf16.xpose.msra.mxu0 0
      %1673 = vmatprep.mubr.bf16.mxu0 0
      %1674 = vmatmul.mubr.bf16.gmra.mrb[0].mxu0 %v1636
      %v1675 = vpop.f32.mrb[0].mxu0
      %v1676 = vadd.f32 0.0, %v1675
      %v1677 = vpop.f32.mrb[0].mxu0
      %v1678 = vpop.f32.mrb[0].mxu0
      %v1679 = vadd.f32 0.0, %v1678
      %v1680 = vpop.f32.mrb[0].mxu0
      %1681 = vdwg.mxu0
      %1683 = vrot.lane.b32.xlu0 %v1330, 96
      %v1684 = vpop.permute.xlu0 %1683
      %v1686 = vsel %vm1334, %v1330, 0
      %v1689 = vsel %vm1334, %v1684, 0
      %1691 = vmatprep.subr.bf16.mxu0 0
      %1692 = vmatpush1.bf16.xpose.msra.mxu0 %v1689
      %1693 = vmatprep.subr.bf16.mxu0 0
      %1694 = vmatpush1.bf16.xpose.msra.mxu0 0
      %1695 = vmatprep.subr.bf16.mxu0 0
      %1696 = vmatpush1.bf16.xpose.msra.mxu0 0
      %1697 = vmatprep.subr.bf16.mxu0 0
      %1698 = vmatpush1.bf16.xpose.msra.mxu0 0
      %1699 = vmatprep.subr.bf16.mxu0 0
      %1700 = vmatpush1.bf16.xpose.msra.mxu0 0
      %1701 = vmatprep.subr.bf16.mxu0 0
      %1702 = vmatpush1.bf16.xpose.msra.mxu0 0
      %1703 = vmatprep.subr.bf16.mxu0 0
      %1704 = vmatpush1.bf16.xpose.msra.mxu0 0
      %1705 = vmatprep.subr.bf16.mxu0 0
      %1706 = vmatpush1.bf16.xpose.msra.mxu0 0
      %1707 = vmatprep.subr.bf16.mxu0 0
      %1708 = vmatpush1.bf16.xpose.msra.mxu0 0
      %1709 = vmatprep.subr.bf16.mxu0 0
      %1710 = vmatpush1.bf16.xpose.msra.mxu0 0
      %1711 = vmatprep.subr.bf16.mxu0 0
      %1712 = vmatpush1.bf16.xpose.msra.mxu0 0
      %1713 = vmatprep.subr.bf16.mxu0 0
      %1714 = vmatpush1.bf16.xpose.msra.mxu0 0
      %1715 = vmatprep.subr.bf16.mxu0 0
      %1716 = vmatpush1.bf16.xpose.msra.mxu0 0
      %1717 = vmatprep.subr.bf16.mxu0 0
      %1718 = vmatpush1.bf16.xpose.msra.mxu0 0
      %1719 = vmatprep.subr.bf16.mxu0 0
      %1720 = vmatpush1.bf16.xpose.msra.mxu0 0
      %1721 = vmatprep.subr.bf16.mxu0 0
      %1722 = vmatpush1.bf16.xpose.msra.mxu0 0
      %1723 = vmatprep.mubr.bf16.mxu0 0
      %1724 = vmatmul.mubr.bf16.gmra.mrb[0].mxu0 %v1686
      %v1725 = vpop.f32.mrb[0].mxu0
      %v1726 = vadd.f32 0.0, %v1725
      %v1727 = vpop.f32.mrb[0].mxu0
      %v1728 = vpop.f32.mrb[0].mxu0
      %v1729 = vadd.f32 0.0, %v1728
      %v1730 = vpop.f32.mrb[0].mxu0
      %1731 = vdwg.mxu0
      %vm1732 = vcmask 130048
      %v1733 = vsel %vm1732, %v1376, -inf
      %1734 = vmax.xlane.f32.xlu0 %v1733
      %v1735 = vpop.xlane.xlu0 %1734
      %v1736 = vsel %vm1732, %v1379, -inf
      %1737 = vmax.xlane.f32.xlu0 %v1736
      %v1738 = vpop.xlane.xlu0 %1737
      %v1739 = vsel %vm1732, %v1426, -inf
      %1740 = vmax.xlane.f32.xlu0 %v1739
      %v1741 = vpop.xlane.xlu0 %1740
      %v1742 = vsel %vm1732, %v1429, -inf
      %1743 = vmax.xlane.f32.xlu0 %v1742
      %v1744 = vpop.xlane.xlu0 %1743
      %v1745 = vsel %vm1732, %v1476, -inf
      %1746 = vmax.xlane.f32.xlu0 %v1745
      %v1747 = vpop.xlane.xlu0 %1746
      %v1748 = vsel %vm1732, %v1479, -inf
      %1749 = vmax.xlane.f32.xlu0 %v1748
      %v1750 = vpop.xlane.xlu0 %1749
      %v1751 = vsel %vm1732, %v1526, -inf
      %1752 = vmax.xlane.f32.xlu0 %v1751
      %v1753 = vpop.xlane.xlu0 %1752
      %v1754 = vsel %vm1732, %v1529, -inf
      %1755 = vmax.xlane.f32.xlu0 %v1754
      %v1756 = vpop.xlane.xlu0 %1755
      %v1757 = vsel %vm1732, %v1576, -inf
      %1758 = vmax.xlane.f32.xlu0 %v1757
      %v1759 = vpop.xlane.xlu0 %1758
      %v1760 = vsel %vm1732, %v1579, -inf
      %1761 = vmax.xlane.f32.xlu0 %v1760
      %v1762 = vpop.xlane.xlu0 %1761
      %v1763 = vsel %vm1732, %v1626, -inf
      %1764 = vmax.xlane.f32.xlu0 %v1763
      %v1765 = vpop.xlane.xlu0 %1764
      %v1766 = vsel %vm1732, %v1629, -inf
      %1767 = vmax.xlane.f32.xlu0 %v1766
      %v1768 = vpop.xlane.xlu0 %1767
      %v1769 = vsel %vm1732, %v1676, -inf
      %1770 = vmax.xlane.f32.xlu0 %v1769
      %v1771 = vpop.xlane.xlu0 %1770
      %v1772 = vsel %vm1732, %v1679, -inf
      %1773 = vmax.xlane.f32.xlu0 %v1772
      %v1774 = vpop.xlane.xlu0 %1773
      %v1775 = vsel %vm1732, %v1726, -inf
      %1776 = vmax.xlane.f32.xlu0 %v1775
      %v1777 = vpop.xlane.xlu0 %1776
      %v1778 = vsel %vm1732, %v1729, -inf
      %1779 = vmax.xlane.f32.xlu0 %v1778
      %v1780 = vpop.xlane.xlu0 %1779
      %v1781 = vsub.f32 %v1376, %v1735
      %v1782 = vsub.f32 %v1379, %v1738
      %v1783 = vsub.f32 %v1426, %v1741
      %v1784 = vsub.f32 %v1429, %v1744
      %v1785 = vsub.f32 %v1476, %v1747
      %v1786 = vsub.f32 %v1479, %v1750
      %v1787 = vsub.f32 %v1526, %v1753
      %v1788 = vsub.f32 %v1529, %v1756
      %v1789 = vsub.f32 %v1576, %v1759
      %v1790 = vsub.f32 %v1579, %v1762
      %v1791 = vsub.f32 %v1626, %v1765
      %v1792 = vsub.f32 %v1629, %v1768
      %v1793 = vsub.f32 %v1676, %v1771
      %v1794 = vsub.f32 %v1679, %v1774
      %v1795 = vsub.f32 %v1726, %v1777
      %v1796 = vsub.f32 %v1729, %v1780
      %v1797 = vmul.f32 %v1781, 1.442695
      %v1798 = vpow.pop %v1797
      %v1799 = vmul.f32 %v1782, 1.442695
      %v1800 = vpow.pop %v1799
      %v1801 = vmul.f32 %v1783, 1.442695
      %v1802 = vpow.pop %v1801
      %v1803 = vmul.f32 %v1784, 1.442695
      %v1804 = vpow.pop %v1803
      %v1805 = vmul.f32 %v1785, 1.442695
      %v1806 = vpow.pop %v1805
      %v1807 = vmul.f32 %v1786, 1.442695
      %v1808 = vpow.pop %v1807
      %v1809 = vmul.f32 %v1787, 1.442695
      %v1810 = vpow.pop %v1809
      %v1811 = vmul.f32 %v1788, 1.442695
      %v1812 = vpow.pop %v1811
      %v1813 = vmul.f32 %v1789, 1.442695
      %v1814 = vpow.pop %v1813
      %v1815 = vmul.f32 %v1790, 1.442695
      %v1816 = vpow.pop %v1815
      %v1817 = vmul.f32 %v1791, 1.442695
      %v1818 = vpow.pop %v1817
      %v1819 = vmul.f32 %v1792, 1.442695
      %v1820 = vpow.pop %v1819
      %v1821 = vmul.f32 %v1793, 1.442695
      %v1822 = vpow.pop %v1821
      %v1823 = vmul.f32 %v1794, 1.442695
      %v1824 = vpow.pop %v1823
      %v1825 = vmul.f32 %v1795, 1.442695
      %v1826 = vpow.pop %v1825
      %v1827 = vmul.f32 %v1796, 1.442695
      %v1828 = vpow.pop %v1827
      %v1829 = vsel %vm1732, %v1798, 0.0
      %1830 = vadd.xlane.f32.xlu0 %v1829
      %v1831 = vpop.xlane.xlu0 %1830
      %v1832 = vsel %vm1732, %v1800, 0.0
      %1833 = vadd.xlane.f32.xlu0 %v1832
      %v1834 = vpop.xlane.xlu0 %1833
      %v1835 = vsel %vm1732, %v1802, 0.0
      %1836 = vadd.xlane.f32.xlu0 %v1835
      %v1837 = vpop.xlane.xlu0 %1836
      %v1838 = vsel %vm1732, %v1804, 0.0
      %1839 = vadd.xlane.f32.xlu0 %v1838
      %v1840 = vpop.xlane.xlu0 %1839
      %v1841 = vsel %vm1732, %v1806, 0.0
      %1842 = vadd.xlane.f32.xlu0 %v1841
      %v1843 = vpop.xlane.xlu0 %1842
      %v1844 = vsel %vm1732, %v1808, 0.0
      %1845 = vadd.xlane.f32.xlu0 %v1844
      %v1846 = vpop.xlane.xlu0 %1845
      %v1847 = vsel %vm1732, %v1810, 0.0
      %1848 = vadd.xlane.f32.xlu0 %v1847
      %v1849 = vpop.xlane.xlu0 %1848
      %v1850 = vsel %vm1732, %v1812, 0.0
      %1851 = vadd.xlane.f32.xlu0 %v1850
      %v1852 = vpop.xlane.xlu0 %1851
      %v1853 = vsel %vm1732, %v1814, 0.0
      %1854 = vadd.xlane.f32.xlu0 %v1853
      %v1855 = vpop.xlane.xlu0 %1854
      %v1856 = vsel %vm1732, %v1816, 0.0
      %1857 = vadd.xlane.f32.xlu0 %v1856
      %v1858 = vpop.xlane.xlu0 %1857
      %v1859 = vsel %vm1732, %v1818, 0.0
      %1860 = vadd.xlane.f32.xlu0 %v1859
      %v1861 = vpop.xlane.xlu0 %1860
      %v1862 = vsel %vm1732, %v1820, 0.0
      %1863 = vadd.xlane.f32.xlu0 %v1862
      %v1864 = vpop.xlane.xlu0 %1863
      %v1865 = vsel %vm1732, %v1822, 0.0
      %1866 = vadd.xlane.f32.xlu0 %v1865
      %v1867 = vpop.xlane.xlu0 %1866
      %v1868 = vsel %vm1732, %v1824, 0.0
      %1869 = vadd.xlane.f32.xlu0 %v1868
      %v1870 = vpop.xlane.xlu0 %1869
      %v1871 = vsel %vm1732, %v1826, 0.0
      %1872 = vadd.xlane.f32.xlu0 %v1871
      %v1873 = vpop.xlane.xlu0 %1872
      %v1874 = vsel %vm1732, %v1828, 0.0
      %1875 = vadd.xlane.f32.xlu0 %v1874
      %v1876 = vpop.xlane.xlu0 %1875
      %v1877 = vrcp.pop %v1831
      %v1878 = vrcp.pop %v1834
      %v1879 = vrcp.pop %v1837
      %v1880 = vrcp.pop %v1840
      %v1881 = vrcp.pop %v1843
      %v1882 = vrcp.pop %v1846
      %v1883 = vrcp.pop %v1849
      %v1884 = vrcp.pop %v1852
      %v1885 = vrcp.pop %v1855
      %v1886 = vrcp.pop %v1858
      %v1887 = vrcp.pop %v1861
      %v1888 = vrcp.pop %v1864
      %v1889 = vrcp.pop %v1867
      %v1890 = vrcp.pop %v1870
      %v1891 = vrcp.pop %v1873
      %v1892 = vrcp.pop %v1876
      %v1893 = vmul.f32 %v1798, %v1877
      %v1894 = vmul.f32 %v1800, %v1878
      %v1895 = vmul.f32 %v1802, %v1879
      %v1896 = vmul.f32 %v1804, %v1880
      %v1897 = vmul.f32 %v1806, %v1881
      %v1898 = vmul.f32 %v1808, %v1882
      %v1899 = vmul.f32 %v1810, %v1883
      %v1900 = vmul.f32 %v1812, %v1884
      %v1901 = vmul.f32 %v1814, %v1885
      %v1902 = vmul.f32 %v1816, %v1886
      %v1903 = vmul.f32 %v1818, %v1887
      %v1904 = vmul.f32 %v1820, %v1888
      %v1905 = vmul.f32 %v1822, %v1889
      %v1906 = vmul.f32 %v1824, %v1890
      %v1907 = vmul.f32 %v1826, %v1891
      %v1908 = vmul.f32 %v1828, %v1892
      %v1909 = vpack.c.bf16 %v1894, %v1893
      %v1910 = vpack.c.bf16 %v1896, %v1895
      %v1911 = vpack.c.bf16 %v1898, %v1897
      %v1912 = vpack.c.bf16 %v1900, %v1899
      %v1913 = vpack.c.bf16 %v1902, %v1901
      %v1914 = vpack.c.bf16 %v1904, %v1903
      %v1915 = vpack.c.bf16 %v1906, %v1905
      %v1916 = vpack.c.bf16 %v1908, %v1907
      %1917 = vrot.lane.b32.xlu0 %v1323, 64
      %v1918 = vpop.permute.xlu0 %1917
      %v1921 = vsel %vm1732, %v1909, 0
      %1923 = vmatprep.subr.bf16.mxu0 0
      %1924 = vmatpush1.bf16.msra.mxu0 %v1918
      %1925 = vmatprep.subr.bf16.mxu0 0
      %1926 = vmatpush1.bf16.msra.mxu0 0
      %1927 = vmatprep.subr.bf16.mxu0 0
      %1928 = vmatpush1.bf16.msra.mxu0 0
      %1929 = vmatprep.subr.bf16.mxu0 0
      %1930 = vmatpush1.bf16.msra.mxu0 0
      %1931 = vmatprep.subr.bf16.mxu0 0
      %1932 = vmatpush1.bf16.msra.mxu0 0
      %1933 = vmatprep.subr.bf16.mxu0 0
      %1934 = vmatpush1.bf16.msra.mxu0 0
      %1935 = vmatprep.subr.bf16.mxu0 0
      %1936 = vmatpush1.bf16.msra.mxu0 0
      %1937 = vmatprep.subr.bf16.mxu0 0
      %1938 = vmatpush1.bf16.msra.mxu0 0
      %1939 = vmatprep.subr.bf16.mxu0 0
      %1940 = vmatpush1.bf16.msra.mxu0 0
      %1941 = vmatprep.subr.bf16.mxu0 0
      %1942 = vmatpush1.bf16.msra.mxu0 0
      %1943 = vmatprep.subr.bf16.mxu0 0
      %1944 = vmatpush1.bf16.msra.mxu0 0
      %1945 = vmatprep.subr.bf16.mxu0 0
      %1946 = vmatpush1.bf16.msra.mxu0 0
      %1947 = vmatprep.subr.bf16.mxu0 0
      %1948 = vmatpush1.bf16.msra.mxu0 0
      %1949 = vmatprep.subr.bf16.mxu0 0
      %1950 = vmatpush1.bf16.msra.mxu0 0
      %1951 = vmatprep.subr.bf16.mxu0 0
      %1952 = vmatpush1.bf16.msra.mxu0 0
      %1953 = vmatprep.subr.bf16.mxu0 0
      %1954 = vmatpush1.bf16.msra.mxu0 0
      %1955 = vmatprep.mubr.bf16.mxu0 0
      %1956 = vmatmul.mubr.bf16.gmra.mrb[0].mxu0 %v1921
      %v1957 = vpop.f32.mrb[0].mxu0
      %v1958 = vadd.f32 0.0, %v1957
      %v1959 = vpop.f32.mrb[0].mxu0
      %v1960 = vpop.f32.mrb[0].mxu0
      %v1961 = vadd.f32 0.0, %v1960
      %v1962 = vpop.f32.mrb[0].mxu0
      %1963 = vdwg.mxu0
      %1964 = vrot.lane.b32.xlu0 %v1324, 64
      %v1965 = vpop.permute.xlu0 %1964
      %v1968 = vsel %vm1732, %v1910, 0
      %1970 = vmatprep.subr.bf16.mxu0 0
      %1971 = vmatpush1.bf16.msra.mxu0 %v1965
      %1972 = vmatprep.subr.bf16.mxu0 0
      %1973 = vmatpush1.bf16.msra.mxu0 0
      %1974 = vmatprep.subr.bf16.mxu0 0
      %1975 = vmatpush1.bf16.msra.mxu0 0
      %1976 = vmatprep.subr.bf16.mxu0 0
      %1977 = vmatpush1.bf16.msra.mxu0 0
      %1978 = vmatprep.subr.bf16.mxu0 0
      %1979 = vmatpush1.bf16.msra.mxu0 0
      %1980 = vmatprep.subr.bf16.mxu0 0
      %1981 = vmatpush1.bf16.msra.mxu0 0
      %1982 = vmatprep.subr.bf16.mxu0 0
      %1983 = vmatpush1.bf16.msra.mxu0 0
      %1984 = vmatprep.subr.bf16.mxu0 0
      %1985 = vmatpush1.bf16.msra.mxu0 0
      %1986 = vmatprep.subr.bf16.mxu0 0
      %1987 = vmatpush1.bf16.msra.mxu0 0
      %1988 = vmatprep.subr.bf16.mxu0 0
      %1989 = vmatpush1.bf16.msra.mxu0 0
      %1990 = vmatprep.subr.bf16.mxu0 0
      %1991 = vmatpush1.bf16.msra.mxu0 0
      %1992 = vmatprep.subr.bf16.mxu0 0
      %1993 = vmatpush1.bf16.msra.mxu0 0
      %1994 = vmatprep.subr.bf16.mxu0 0
      %1995 = vmatpush1.bf16.msra.mxu0 0
      %1996 = vmatprep.subr.bf16.mxu0 0
      %1997 = vmatpush1.bf16.msra.mxu0 0
      %1998 = vmatprep.subr.bf16.mxu0 0
      %1999 = vmatpush1.bf16.msra.mxu0 0
      %2000 = vmatprep.subr.bf16.mxu0 0
      %2001 = vmatpush1.bf16.msra.mxu0 0
      %2002 = vmatprep.mubr.bf16.mxu0 0
      %2003 = vmatmul.mubr.bf16.gmra.mrb[0].mxu0 %v1968
      %v2004 = vpop.f32.mrb[0].mxu0
      %v2005 = vadd.f32 0.0, %v2004
      %v2006 = vpop.f32.mrb[0].mxu0
      %v2007 = vpop.f32.mrb[0].mxu0
      %v2008 = vadd.f32 0.0, %v2007
      %v2009 = vpop.f32.mrb[0].mxu0
      %2010 = vdwg.mxu0
      %2011 = vrot.lane.b32.xlu0 %v1325, 64
      %v2012 = vpop.permute.xlu0 %2011
      %v2015 = vsel %vm1732, %v1911, 0
      %2017 = vmatprep.subr.bf16.mxu0 0
      %2018 = vmatpush1.bf16.msra.mxu0 %v2012
      %2019 = vmatprep.subr.bf16.mxu0 0
      %2020 = vmatpush1.bf16.msra.mxu0 0
      %2021 = vmatprep.subr.bf16.mxu0 0
      %2022 = vmatpush1.bf16.msra.mxu0 0
      %2023 = vmatprep.subr.bf16.mxu0 0
      %2024 = vmatpush1.bf16.msra.mxu0 0
      %2025 = vmatprep.subr.bf16.mxu0 0
      %2026 = vmatpush1.bf16.msra.mxu0 0
      %2027 = vmatprep.subr.bf16.mxu0 0
      %2028 = vmatpush1.bf16.msra.mxu0 0
      %2029 = vmatprep.subr.bf16.mxu0 0
      %2030 = vmatpush1.bf16.msra.mxu0 0
      %2031 = vmatprep.subr.bf16.mxu0 0
      %2032 = vmatpush1.bf16.msra.mxu0 0
      %2033 = vmatprep.subr.bf16.mxu0 0
      %2034 = vmatpush1.bf16.msra.mxu0 0
      %2035 = vmatprep.subr.bf16.mxu0 0
      %2036 = vmatpush1.bf16.msra.mxu0 0
      %2037 = vmatprep.subr.bf16.mxu0 0
      %2038 = vmatpush1.bf16.msra.mxu0 0
      %2039 = vmatprep.subr.bf16.mxu0 0
      %2040 = vmatpush1.bf16.msra.mxu0 0
      %2041 = vmatprep.subr.bf16.mxu0 0
      %2042 = vmatpush1.bf16.msra.mxu0 0
      %2043 = vmatprep.subr.bf16.mxu0 0
      %2044 = vmatpush1.bf16.msra.mxu0 0
      %2045 = vmatprep.subr.bf16.mxu0 0
      %2046 = vmatpush1.bf16.msra.mxu0 0
      %2047 = vmatprep.subr.bf16.mxu0 0
      %2048 = vmatpush1.bf16.msra.mxu0 0
      %2049 = vmatprep.mubr.bf16.mxu0 0
      %2050 = vmatmul.mubr.bf16.gmra.mrb[0].mxu0 %v2015
      %v2051 = vpop.f32.mrb[0].mxu0
      %v2052 = vadd.f32 0.0, %v2051
      %v2053 = vpop.f32.mrb[0].mxu0
      %v2054 = vpop.f32.mrb[0].mxu0
      %v2055 = vadd.f32 0.0, %v2054
      %v2056 = vpop.f32.mrb[0].mxu0
      %2057 = vdwg.mxu0
      %2058 = vrot.lane.b32.xlu0 %v1326, 64
      %v2059 = vpop.permute.xlu0 %2058
      %v2062 = vsel %vm1732, %v1912, 0
      %2064 = vmatprep.subr.bf16.mxu0 0
      %2065 = vmatpush1.bf16.msra.mxu0 %v2059
      %2066 = vmatprep.subr.bf16.mxu0 0
      %2067 = vmatpush1.bf16.msra.mxu0 0
      %2068 = vmatprep.subr.bf16.mxu0 0
      %2069 = vmatpush1.bf16.msra.mxu0 0
      %2070 = vmatprep.subr.bf16.mxu0 0
      %2071 = vmatpush1.bf16.msra.mxu0 0
      %2072 = vmatprep.subr.bf16.mxu0 0
      %2073 = vmatpush1.bf16.msra.mxu0 0
      %2074 = vmatprep.subr.bf16.mxu0 0
      %2075 = vmatpush1.bf16.msra.mxu0 0
      %2076 = vmatprep.subr.bf16.mxu0 0
      %2077 = vmatpush1.bf16.msra.mxu0 0
      %2078 = vmatprep.subr.bf16.mxu0 0
      %2079 = vmatpush1.bf16.msra.mxu0 0
      %2080 = vmatprep.subr.bf16.mxu0 0
      %2081 = vmatpush1.bf16.msra.mxu0 0
      %2082 = vmatprep.subr.bf16.mxu0 0
      %2083 = vmatpush1.bf16.msra.mxu0 0
      %2084 = vmatprep.subr.bf16.mxu0 0
      %2085 = vmatpush1.bf16.msra.mxu0 0
      %2086 = vmatprep.subr.bf16.mxu0 0
      %2087 = vmatpush1.bf16.msra.mxu0 0
      %2088 = vmatprep.subr.bf16.mxu0 0
      %2089 = vmatpush1.bf16.msra.mxu0 0
      %2090 = vmatprep.subr.bf16.mxu0 0
      %2091 = vmatpush1.bf16.msra.mxu0 0
      %2092 = vmatprep.subr.bf16.mxu0 0
      %2093 = vmatpush1.bf16.msra.mxu0 0
      %2094 = vmatprep.subr.bf16.mxu0 0
      %2095 = vmatpush1.bf16.msra.mxu0 0
      %2096 = vmatprep.mubr.bf16.mxu0 0
      %2097 = vmatmul.mubr.bf16.gmra.mrb[0].mxu0 %v2062
      %v2098 = vpop.f32.mrb[0].mxu0
      %v2099 = vadd.f32 0.0, %v2098
      %v2100 = vpop.f32.mrb[0].mxu0
      %v2101 = vpop.f32.mrb[0].mxu0
      %v2102 = vadd.f32 0.0, %v2101
      %v2103 = vpop.f32.mrb[0].mxu0
      %2104 = vdwg.mxu0
      %2105 = vrot.lane.b32.xlu0 %v1327, 64
      %v2106 = vpop.permute.xlu0 %2105
      %v2109 = vsel %vm1732, %v1913, 0
      %2111 = vmatprep.subr.bf16.mxu0 0
      %2112 = vmatpush1.bf16.msra.mxu0 %v2106
      %2113 = vmatprep.subr.bf16.mxu0 0
      %2114 = vmatpush1.bf16.msra.mxu0 0
      %2115 = vmatprep.subr.bf16.mxu0 0
      %2116 = vmatpush1.bf16.msra.mxu0 0
      %2117 = vmatprep.subr.bf16.mxu0 0
      %2118 = vmatpush1.bf16.msra.mxu0 0
      %2119 = vmatprep.subr.bf16.mxu0 0
      %2120 = vmatpush1.bf16.msra.mxu0 0
      %2121 = vmatprep.subr.bf16.mxu0 0
      %2122 = vmatpush1.bf16.msra.mxu0 0
      %2123 = vmatprep.subr.bf16.mxu0 0
      %2124 = vmatpush1.bf16.msra.mxu0 0
      %2125 = vmatprep.subr.bf16.mxu0 0
      %2126 = vmatpush1.bf16.msra.mxu0 0
      %2127 = vmatprep.subr.bf16.mxu0 0
      %2128 = vmatpush1.bf16.msra.mxu0 0
      %2129 = vmatprep.subr.bf16.mxu0 0
      %2130 = vmatpush1.bf16.msra.mxu0 0
      %2131 = vmatprep.subr.bf16.mxu0 0
      %2132 = vmatpush1.bf16.msra.mxu0 0
      %2133 = vmatprep.subr.bf16.mxu0 0
      %2134 = vmatpush1.bf16.msra.mxu0 0
      %2135 = vmatprep.subr.bf16.mxu0 0
      %2136 = vmatpush1.bf16.msra.mxu0 0
      %2137 = vmatprep.subr.bf16.mxu0 0
      %2138 = vmatpush1.bf16.msra.mxu0 0
      %2139 = vmatprep.subr.bf16.mxu0 0
      %2140 = vmatpush1.bf16.msra.mxu0 0
      %2141 = vmatprep.subr.bf16.mxu0 0
      %2142 = vmatpush1.bf16.msra.mxu0 0
      %2143 = vmatprep.mubr.bf16.mxu0 0
      %2144 = vmatmul.mubr.bf16.gmra.mrb[0].mxu0 %v2109
      %v2145 = vpop.f32.mrb[0].mxu0
      %v2146 = vadd.f32 0.0, %v2145
      %v2147 = vpop.f32.mrb[0].mxu0
      %v2148 = vpop.f32.mrb[0].mxu0
      %v2149 = vadd.f32 0.0, %v2148
      %v2150 = vpop.f32.mrb[0].mxu0
      %2151 = vdwg.mxu0
      %2152 = vrot.lane.b32.xlu0 %v1328, 64
      %v2153 = vpop.permute.xlu0 %2152
      %v2156 = vsel %vm1732, %v1914, 0
      %2158 = vmatprep.subr.bf16.mxu0 0
      %2159 = vmatpush1.bf16.msra.mxu0 %v2153
      %2160 = vmatprep.subr.bf16.mxu0 0
      %2161 = vmatpush1.bf16.msra.mxu0 0
      %2162 = vmatprep.subr.bf16.mxu0 0
      %2163 = vmatpush1.bf16.msra.mxu0 0
      %2164 = vmatprep.subr.bf16.mxu0 0
      %2165 = vmatpush1.bf16.msra.mxu0 0
      %2166 = vmatprep.subr.bf16.mxu0 0
      %2167 = vmatpush1.bf16.msra.mxu0 0
      %2168 = vmatprep.subr.bf16.mxu0 0
      %2169 = vmatpush1.bf16.msra.mxu0 0
      %2170 = vmatprep.subr.bf16.mxu0 0
      %2171 = vmatpush1.bf16.msra.mxu0 0
      %2172 = vmatprep.subr.bf16.mxu0 0
      %2173 = vmatpush1.bf16.msra.mxu0 0
      %2174 = vmatprep.subr.bf16.mxu0 0
      %2175 = vmatpush1.bf16.msra.mxu0 0
      %2176 = vmatprep.subr.bf16.mxu0 0
      %2177 = vmatpush1.bf16.msra.mxu0 0
      %2178 = vmatprep.subr.bf16.mxu0 0
      %2179 = vmatpush1.bf16.msra.mxu0 0
      %2180 = vmatprep.subr.bf16.mxu0 0
      %2181 = vmatpush1.bf16.msra.mxu0 0
      %2182 = vmatprep.subr.bf16.mxu0 0
      %2183 = vmatpush1.bf16.msra.mxu0 0
      %2184 = vmatprep.subr.bf16.mxu0 0
      %2185 = vmatpush1.bf16.msra.mxu0 0
      %2186 = vmatprep.subr.bf16.mxu0 0
      %2187 = vmatpush1.bf16.msra.mxu0 0
      %2188 = vmatprep.subr.bf16.mxu0 0
      %2189 = vmatpush1.bf16.msra.mxu0 0
      %2190 = vmatprep.mubr.bf16.mxu0 0
      %2191 = vmatmul.mubr.bf16.gmra.mrb[0].mxu0 %v2156
      %v2192 = vpop.f32.mrb[0].mxu0
      %v2193 = vadd.f32 0.0, %v2192
      %v2194 = vpop.f32.mrb[0].mxu0
      %v2195 = vpop.f32.mrb[0].mxu0
      %v2196 = vadd.f32 0.0, %v2195
      %v2197 = vpop.f32.mrb[0].mxu0
      %2198 = vdwg.mxu0
      %2199 = vrot.lane.b32.xlu0 %v1329, 64
      %v2200 = vpop.permute.xlu0 %2199
      %v2203 = vsel %vm1732, %v1915, 0
      %2205 = vmatprep.subr.bf16.mxu0 0
      %2206 = vmatpush1.bf16.msra.mxu0 %v2200
      %2207 = vmatprep.subr.bf16.mxu0 0
      %2208 = vmatpush1.bf16.msra.mxu0 0
      %2209 = vmatprep.subr.bf16.mxu0 0
      %2210 = vmatpush1.bf16.msra.mxu0 0
      %2211 = vmatprep.subr.bf16.mxu0 0
      %2212 = vmatpush1.bf16.msra.mxu0 0
      %2213 = vmatprep.subr.bf16.mxu0 0
      %2214 = vmatpush1.bf16.msra.mxu0 0
      %2215 = vmatprep.subr.bf16.mxu0 0
      %2216 = vmatpush1.bf16.msra.mxu0 0
      %2217 = vmatprep.subr.bf16.mxu0 0
      %2218 = vmatpush1.bf16.msra.mxu0 0
      %2219 = vmatprep.subr.bf16.mxu0 0
      %2220 = vmatpush1.bf16.msra.mxu0 0
      %2221 = vmatprep.subr.bf16.mxu0 0
      %2222 = vmatpush1.bf16.msra.mxu0 0
      %2223 = vmatprep.subr.bf16.mxu0 0
      %2224 = vmatpush1.bf16.msra.mxu0 0
      %2225 = vmatprep.subr.bf16.mxu0 0
      %2226 = vmatpush1.bf16.msra.mxu0 0
      %2227 = vmatprep.subr.bf16.mxu0 0
      %2228 = vmatpush1.bf16.msra.mxu0 0
      %2229 = vmatprep.subr.bf16.mxu0 0
      %2230 = vmatpush1.bf16.msra.mxu0 0
      %2231 = vmatprep.subr.bf16.mxu0 0
      %2232 = vmatpush1.bf16.msra.mxu0 0
      %2233 = vmatprep.subr.bf16.mxu0 0
      %2234 = vmatpush1.bf16.msra.mxu0 0
      %2235 = vmatprep.subr.bf16.mxu0 0
      %2236 = vmatpush1.bf16.msra.mxu0 0
      %2237 = vmatprep.mubr.bf16.mxu0 0
      %2238 = vmatmul.mubr.bf16.gmra.mrb[0].mxu0 %v2203
      %v2239 = vpop.f32.mrb[0].mxu0
      %v2240 = vadd.f32 0.0, %v2239
      %v2241 = vpop.f32.mrb[0].mxu0
      %v2242 = vpop.f32.mrb[0].mxu0
      %v2243 = vadd.f32 0.0, %v2242
      %v2244 = vpop.f32.mrb[0].mxu0
      %2245 = vdwg.mxu0
      %2246 = vrot.lane.b32.xlu0 %v1330, 64
      %v2247 = vpop.permute.xlu0 %2246
      %v2250 = vsel %vm1732, %v1916, 0
      %2252 = vmatprep.subr.bf16.mxu0 0
      %2253 = vmatpush1.bf16.msra.mxu0 %v2247
      %2254 = vmatprep.subr.bf16.mxu0 0
      %2255 = vmatpush1.bf16.msra.mxu0 0
      %2256 = vmatprep.subr.bf16.mxu0 0
      %2257 = vmatpush1.bf16.msra.mxu0 0
      %2258 = vmatprep.subr.bf16.mxu0 0
      %2259 = vmatpush1.bf16.msra.mxu0 0
      %2260 = vmatprep.subr.bf16.mxu0 0
      %2261 = vmatpush1.bf16.msra.mxu0 0
      %2262 = vmatprep.subr.bf16.mxu0 0
      %2263 = vmatpush1.bf16.msra.mxu0 0
      %2264 = vmatprep.subr.bf16.mxu0 0
      %2265 = vmatpush1.bf16.msra.mxu0 0
      %2266 = vmatprep.subr.bf16.mxu0 0
      %2267 = vmatpush1.bf16.msra.mxu0 0
      %2268 = vmatprep.subr.bf16.mxu0 0
      %2269 = vmatpush1.bf16.msra.mxu0 0
      %2270 = vmatprep.subr.bf16.mxu0 0
      %2271 = vmatpush1.bf16.msra.mxu0 0
      %2272 = vmatprep.subr.bf16.mxu0 0
      %2273 = vmatpush1.bf16.msra.mxu0 0
      %2274 = vmatprep.subr.bf16.mxu0 0
      %2275 = vmatpush1.bf16.msra.mxu0 0
      %2276 = vmatprep.subr.bf16.mxu0 0
      %2277 = vmatpush1.bf16.msra.mxu0 0
      %2278 = vmatprep.subr.bf16.mxu0 0
      %2279 = vmatpush1.bf16.msra.mxu0 0
      %2280 = vmatprep.subr.bf16.mxu0 0
      %2281 = vmatpush1.bf16.msra.mxu0 0
      %2282 = vmatprep.subr.bf16.mxu0 0
      %2283 = vmatpush1.bf16.msra.mxu0 0
      %2284 = vmatprep.mubr.bf16.mxu0 0
      %2285 = vmatmul.mubr.bf16.gmra.mrb[0].mxu0 %v2250
      %v2286 = vpop.f32.mrb[0].mxu0
      %v2287 = vadd.f32 0.0, %v2286
      %v2288 = vpop.f32.mrb[0].mxu0
      %v2289 = vpop.f32.mrb[0].mxu0
      %v2290 = vadd.f32 0.0, %v2289
      %v2291 = vpop.f32.mrb[0].mxu0
      %2292 = vdwg.mxu0
      %v2293 = vpack.c.bf16 %v1961, %v1958
      %v2294 = vpack.c.bf16 %v2008, %v2005
      %v2296 = vsel %vm1334, %v2293, 0
      %v2299 = vsel %vm1334, %v2294, 0
      %vm2301 = vcmask 1043456
      %v2303 = vsel %vm2301, %v973, 0
      %2305 = vmatprep.subr.bf16.mxu0 0
      %2306 = vmatpush1.bf16.msra.mxu0 %v2303
      %2307 = vmatprep.subr.bf16.mxu0 0
      %2308 = vmatpush1.bf16.msra.mxu0 0
      %2309 = vmatprep.subr.bf16.mxu0 0
      %2310 = vmatpush1.bf16.msra.mxu0 0
      %2311 = vmatprep.subr.bf16.mxu0 0
      %2312 = vmatpush1.bf16.msra.mxu0 0
      %2313 = vmatprep.subr.bf16.mxu0 0
      %2314 = vmatpush1.bf16.msra.mxu0 0
      %2315 = vmatprep.subr.bf16.mxu0 0
      %2316 = vmatpush1.bf16.msra.mxu0 0
      %2317 = vmatprep.subr.bf16.mxu0 0
      %2318 = vmatpush1.bf16.msra.mxu0 0
      %2319 = vmatprep.subr.bf16.mxu0 0
      %2320 = vmatpush1.bf16.msra.mxu0 0
      %2321 = vmatprep.subr.bf16.mxu0 0
      %2322 = vmatpush1.bf16.msra.mxu0 0
      %2323 = vmatprep.subr.bf16.mxu0 0
      %2324 = vmatpush1.bf16.msra.mxu0 0
      %2325 = vmatprep.subr.bf16.mxu0 0
      %2326 = vmatpush1.bf16.msra.mxu0 0
      %2327 = vmatprep.subr.bf16.mxu0 0
      %2328 = vmatpush1.bf16.msra.mxu0 0
      %2329 = vmatprep.subr.bf16.mxu0 0
      %2330 = vmatpush1.bf16.msra.mxu0 0
      %2331 = vmatprep.subr.bf16.mxu0 0
      %2332 = vmatpush1.bf16.msra.mxu0 0
      %2333 = vmatprep.subr.bf16.mxu0 0
      %2334 = vmatpush1.bf16.msra.mxu0 0
      %2335 = vmatprep.subr.bf16.mxu0 0
      %2336 = vmatpush1.bf16.msra.mxu0 0
      %2337 = vmatprep.mubr.bf16.mxu0 0
      %2338 = vmatmul.mubr.bf16.gmra.mrb[0].mxu0 %v2296
      %v2339 = vpop.f32.mrb[0].mxu0
      %v2340 = vadd.f32 0.0, %v2339
      %v2341 = vpop.f32.mrb[0].mxu0
      %v2342 = vpop.f32.mrb[0].mxu0
      %v2343 = vadd.f32 0.0, %v2342
      %v2344 = vpop.f32.mrb[0].mxu0
      %2345 = vmatprep.mubr.bf16.mxu0 0
      %2346 = vmatmul.mubr.bf16.gmra.mrb[0].mxu0 %v2299
      %v2347 = vpop.f32.mrb[0].mxu0
      %v2348 = vadd.f32 0.0, %v2347
      %v2349 = vpop.f32.mrb[0].mxu0
      %v2350 = vpop.f32.mrb[0].mxu0
      %v2351 = vadd.f32 0.0, %v2350
      %v2352 = vpop.f32.mrb[0].mxu0
      %2353 = vdwg.mxu0
      %v2355 = vlaneseq
      %v2356 = vshrl.u32 %v2355, 7
      %v2357 = vsub.s32 0, %v2356
      %v2358 = vrot.slane %v981, %v2357
      %v2360 = vadd.f32 %v2358, %v2340
      %v2361 = vadd.f32 %v2358, %v2343
      %v2362 = vadd.f32 %v2358, %v2348
      %v2363 = vadd.f32 %v2358, %v2351
      %v2364 = vpack.c.bf16 %v2055, %v2052
      %v2365 = vpack.c.bf16 %v2102, %v2099
      %v2367 = vsel %vm1334, %v2364, 0
      %v2370 = vsel %vm1334, %v2365, 0
      %v2373 = vsel %vm2301, %v974, 0
      %2375 = vmatprep.subr.bf16.mxu0 0
      %2376 = vmatpush1.bf16.msra.mxu0 %v2373
      %2377 = vmatprep.subr.bf16.mxu0 0
      %2378 = vmatpush1.bf16.msra.mxu0 0
      %2379 = vmatprep.subr.bf16.mxu0 0
      %2380 = vmatpush1.bf16.msra.mxu0 0
      %2381 = vmatprep.subr.bf16.mxu0 0
      %2382 = vmatpush1.bf16.msra.mxu0 0
      %2383 = vmatprep.subr.bf16.mxu0 0
      %2384 = vmatpush1.bf16.msra.mxu0 0
      %2385 = vmatprep.subr.bf16.mxu0 0
      %2386 = vmatpush1.bf16.msra.mxu0 0
      %2387 = vmatprep.subr.bf16.mxu0 0
      %2388 = vmatpush1.bf16.msra.mxu0 0
      %2389 = vmatprep.subr.bf16.mxu0 0
      %2390 = vmatpush1.bf16.msra.mxu0 0
      %2391 = vmatprep.subr.bf16.mxu0 0
      %2392 = vmatpush1.bf16.msra.mxu0 0
      %2393 = vmatprep.subr.bf16.mxu0 0
      %2394 = vmatpush1.bf16.msra.mxu0 0
      %2395 = vmatprep.subr.bf16.mxu0 0
      %2396 = vmatpush1.bf16.msra.mxu0 0
      %2397 = vmatprep.subr.bf16.mxu0 0
      %2398 = vmatpush1.bf16.msra.mxu0 0
      %2399 = vmatprep.subr.bf16.mxu0 0
      %2400 = vmatpush1.bf16.msra.mxu0 0
      %2401 = vmatprep.subr.bf16.mxu0 0
      %2402 = vmatpush1.bf16.msra.mxu0 0
      %2403 = vmatprep.subr.bf16.mxu0 0
      %2404 = vmatpush1.bf16.msra.mxu0 0
      %2405 = vmatprep.subr.bf16.mxu0 0
      %2406 = vmatpush1.bf16.msra.mxu0 0
      %2407 = vmatprep.mubr.bf16.mxu0 0
      %2408 = vmatmul.mubr.bf16.gmra.mrb[0].mxu0 %v2367
      %v2409 = vpop.f32.mrb[0].mxu0
      %v2410 = vadd.f32 0.0, %v2409
      %v2411 = vpop.f32.mrb[0].mxu0
      %v2412 = vpop.f32.mrb[0].mxu0
      %v2413 = vadd.f32 0.0, %v2412
      %v2414 = vpop.f32.mrb[0].mxu0
      %2415 = vmatprep.mubr.bf16.mxu0 0
      %2416 = vmatmul.mubr.bf16.gmra.mrb[0].mxu0 %v2370
      %v2417 = vpop.f32.mrb[0].mxu0
      %v2418 = vadd.f32 0.0, %v2417
      %v2419 = vpop.f32.mrb[0].mxu0
      %v2420 = vpop.f32.mrb[0].mxu0
      %v2421 = vadd.f32 0.0, %v2420
      %v2422 = vpop.f32.mrb[0].mxu0
      %2423 = vdwg.mxu0
      %v2424 = vadd.f32 %v2360, %v2410
      %v2425 = vadd.f32 %v2361, %v2413
      %v2426 = vadd.f32 %v2362, %v2418
      %v2427 = vadd.f32 %v2363, %v2421
      %v2428 = vpack.c.bf16 %v2149, %v2146
      %v2429 = vpack.c.bf16 %v2196, %v2193
      %v2431 = vsel %vm1334, %v2428, 0
      %v2434 = vsel %vm1334, %v2429, 0
      %v2437 = vsel %vm2301, %v975, 0
      %2439 = vmatprep.subr.bf16.mxu0 0
      %2440 = vmatpush1.bf16.msra.mxu0 %v2437
      %2441 = vmatprep.subr.bf16.mxu0 0
      %2442 = vmatpush1.bf16.msra.mxu0 0
      %2443 = vmatprep.subr.bf16.mxu0 0
      %2444 = vmatpush1.bf16.msra.mxu0 0
      %2445 = vmatprep.subr.bf16.mxu0 0
      %2446 = vmatpush1.bf16.msra.mxu0 0
      %2447 = vmatprep.subr.bf16.mxu0 0
      %2448 = vmatpush1.bf16.msra.mxu0 0
      %2449 = vmatprep.subr.bf16.mxu0 0
      %2450 = vmatpush1.bf16.msra.mxu0 0
      %2451 = vmatprep.subr.bf16.mxu0 0
      %2452 = vmatpush1.bf16.msra.mxu0 0
      %2453 = vmatprep.subr.bf16.mxu0 0
      %2454 = vmatpush1.bf16.msra.mxu0 0
      %2455 = vmatprep.subr.bf16.mxu0 0
      %2456 = vmatpush1.bf16.msra.mxu0 0
      %2457 = vmatprep.subr.bf16.mxu0 0
      %2458 = vmatpush1.bf16.msra.mxu0 0
      %2459 = vmatprep.subr.bf16.mxu0 0
      %2460 = vmatpush1.bf16.msra.mxu0 0
      %2461 = vmatprep.subr.bf16.mxu0 0
      %2462 = vmatpush1.bf16.msra.mxu0 0
      %2463 = vmatprep.subr.bf16.mxu0 0
      %2464 = vmatpush1.bf16.msra.mxu0 0
      %2465 = vmatprep.subr.bf16.mxu0 0
      %2466 = vmatpush1.bf16.msra.mxu0 0
      %2467 = vmatprep.subr.bf16.mxu0 0
      %2468 = vmatpush1.bf16.msra.mxu0 0
      %2469 = vmatprep.subr.bf16.mxu0 0
      %2470 = vmatpush1.bf16.msra.mxu0 0
      %2471 = vmatprep.mubr.bf16.mxu0 0
      %2472 = vmatmul.mubr.bf16.gmra.mrb[0].mxu0 %v2431
      %v2473 = vpop.f32.mrb[0].mxu0
      %v2474 = vadd.f32 0.0, %v2473
      %v2475 = vpop.f32.mrb[0].mxu0
      %v2476 = vpop.f32.mrb[0].mxu0
      %v2477 = vadd.f32 0.0, %v2476
      %v2478 = vpop.f32.mrb[0].mxu0
      %2479 = vmatprep.mubr.bf16.mxu0 0
      %2480 = vmatmul.mubr.bf16.gmra.mrb[0].mxu0 %v2434
      %v2481 = vpop.f32.mrb[0].mxu0
      %v2482 = vadd.f32 0.0, %v2481
      %v2483 = vpop.f32.mrb[0].mxu0
      %v2484 = vpop.f32.mrb[0].mxu0
      %v2485 = vadd.f32 0.0, %v2484
      %v2486 = vpop.f32.mrb[0].mxu0
      %2487 = vdwg.mxu0
      %v2488 = vadd.f32 %v2424, %v2474
      %v2489 = vadd.f32 %v2425, %v2477
      %v2490 = vadd.f32 %v2426, %v2482
      %v2491 = vadd.f32 %v2427, %v2485
      %v2492 = vpack.c.bf16 %v2243, %v2240
      %v2493 = vpack.c.bf16 %v2290, %v2287
      %v2495 = vsel %vm1334, %v2492, 0
      %v2498 = vsel %vm1334, %v2493, 0
      %v2501 = vsel %vm2301, %v976, 0
      %2503 = vmatprep.subr.bf16.mxu0 0
      %2504 = vmatpush1.bf16.msra.mxu0 %v2501
      %2505 = vmatprep.subr.bf16.mxu0 0
      %2506 = vmatpush1.bf16.msra.mxu0 0
      %2507 = vmatprep.subr.bf16.mxu0 0
      %2508 = vmatpush1.bf16.msra.mxu0 0
      %2509 = vmatprep.subr.bf16.mxu0 0
      %2510 = vmatpush1.bf16.msra.mxu0 0
      %2511 = vmatprep.subr.bf16.mxu0 0
      %2512 = vmatpush1.bf16.msra.mxu0 0
      %2513 = vmatprep.subr.bf16.mxu0 0
      %2514 = vmatpush1.bf16.msra.mxu0 0
      %2515 = vmatprep.subr.bf16.mxu0 0
      %2516 = vmatpush1.bf16.msra.mxu0 0
      %2517 = vmatprep.subr.bf16.mxu0 0
      %2518 = vmatpush1.bf16.msra.mxu0 0
      %2519 = vmatprep.subr.bf16.mxu0 0
      %2520 = vmatpush1.bf16.msra.mxu0 0
      %2521 = vmatprep.subr.bf16.mxu0 0
      %2522 = vmatpush1.bf16.msra.mxu0 0
      %2523 = vmatprep.subr.bf16.mxu0 0
      %2524 = vmatpush1.bf16.msra.mxu0 0
      %2525 = vmatprep.subr.bf16.mxu0 0
      %2526 = vmatpush1.bf16.msra.mxu0 0
      %2527 = vmatprep.subr.bf16.mxu0 0
      %2528 = vmatpush1.bf16.msra.mxu0 0
      %2529 = vmatprep.subr.bf16.mxu0 0
      %2530 = vmatpush1.bf16.msra.mxu0 0
      %2531 = vmatprep.subr.bf16.mxu0 0
      %2532 = vmatpush1.bf16.msra.mxu0 0
      %2533 = vmatprep.subr.bf16.mxu0 0
      %2534 = vmatpush1.bf16.msra.mxu0 0
      %2535 = vmatprep.mubr.bf16.mxu0 0
      %2536 = vmatmul.mubr.bf16.gmra.mrb[0].mxu0 %v2495
      %v2537 = vpop.f32.mrb[0].mxu0
      %v2538 = vadd.f32 0.0, %v2537
      %v2539 = vpop.f32.mrb[0].mxu0
      %v2540 = vpop.f32.mrb[0].mxu0
      %v2541 = vadd.f32 0.0, %v2540
      %v2542 = vpop.f32.mrb[0].mxu0
      %2543 = vmatprep.mubr.bf16.mxu0 0
      %2544 = vmatmul.mubr.bf16.gmra.mrb[0].mxu0 %v2498
      %v2545 = vpop.f32.mrb[0].mxu0
      %v2546 = vadd.f32 0.0, %v2545
      %v2547 = vpop.f32.mrb[0].mxu0
      %v2548 = vpop.f32.mrb[0].mxu0
      %v2549 = vadd.f32 0.0, %v2548
      %v2550 = vpop.f32.mrb[0].mxu0
      %2551 = vdwg.mxu0
      %v2552 = vadd.f32 %v2488, %v2538
      %v2553 = vadd.f32 %v2489, %v2541
      %v2554 = vadd.f32 %v2490, %v2546
      %v2555 = vadd.f32 %v2491, %v2549
      %v2556 = vadd.f32 %v1203, %v2552
      %v2557 = vadd.f32 %v1204, %v2553
      %v2558 = vadd.f32 %v1205, %v2554
      %v2559 = vadd.f32 %v1206, %v2555
      %v2560 = vsel %vm1227, %v2556, 0.0
      %2561 = vadd.xlane.f32.xlu0 %v2560
      %v2562 = vpop.xlane.xlu0 %2561
      %v2563 = vsel %vm1227, %v2557, 0.0
      %2564 = vadd.xlane.f32.xlu0 %v2563
      %v2565 = vpop.xlane.xlu0 %2564
      %v2566 = vsel %vm1227, %v2558, 0.0
      %2567 = vadd.xlane.f32.xlu0 %v2566
      %v2568 = vpop.xlane.xlu0 %2567
      %v2569 = vsel %vm1227, %v2559, 0.0
      %2570 = vadd.xlane.f32.xlu0 %v2569
      %v2571 = vpop.xlane.xlu0 %2570
      %v2572 = vrcp.pop 32.0
      %v2573 = vmul.f32 %v2562, %v2572
      %v2574 = vmul.f32 %v2565, %v2572
      %v2575 = vmul.f32 %v2568, %v2572
      %v2576 = vmul.f32 %v2571, %v2572
      %v2577 = vsub.f32 %v2556, %v2573
      %v2578 = vsub.f32 %v2557, %v2574
      %v2579 = vsub.f32 %v2558, %v2575
      %v2580 = vsub.f32 %v2559, %v2576
      %v2581 = vmul.f32 %v2577, %v2577
      %v2582 = vmul.f32 %v2578, %v2578
      %v2583 = vmul.f32 %v2579, %v2579
      %v2584 = vmul.f32 %v2580, %v2580
      %v2585 = vsel %vm1227, %v2581, 0.0
      %2586 = vadd.xlane.f32.xlu0 %v2585
      %v2587 = vpop.xlane.xlu0 %2586
      %v2588 = vsel %vm1227, %v2582, 0.0
      %2589 = vadd.xlane.f32.xlu0 %v2588
      %v2590 = vpop.xlane.xlu0 %2589
      %v2591 = vsel %vm1227, %v2583, 0.0
      %2592 = vadd.xlane.f32.xlu0 %v2591
      %v2593 = vpop.xlane.xlu0 %2592
      %v2594 = vsel %vm1227, %v2584, 0.0
      %2595 = vadd.xlane.f32.xlu0 %v2594
      %v2596 = vpop.xlane.xlu0 %2595
      %v2597 = vmul.f32 %v2587, %v2572
      %v2598 = vmul.f32 %v2590, %v2572
      %v2599 = vmul.f32 %v2593, %v2572
      %v2600 = vmul.f32 %v2596, %v2572
      %v2601 = vadd.f32 %v2597, 1e-05
      %v2602 = vadd.f32 %v2598, 1e-05
      %v2603 = vadd.f32 %v2599, 1e-05
      %v2604 = vadd.f32 %v2600, 1e-05
      %v2605 = vrsqrt.pop %v2601
      %v2606 = vrsqrt.pop %v2602
      %v2607 = vrsqrt.pop %v2603
      %v2608 = vrsqrt.pop %v2604
      %v2609 = vmul.f32 %v2577, %v2605
      %v2610 = vmul.f32 %v2578, %v2606
      %v2611 = vmul.f32 %v2579, %v2607
      %v2612 = vmul.f32 %v2580, %v2608
      %v2614 = vlaneseq
      %v2615 = vshrl.u32 %v2614, 7
      %v2616 = vsub.s32 0, %v2615
      %v2617 = vrot.slane %v1027, %v2616
      %v2619 = vmul.f32 %v2609, %v2617
      %v2620 = vmul.f32 %v2610, %v2617
      %v2621 = vmul.f32 %v2611, %v2617
      %v2622 = vmul.f32 %v2612, %v2617
      %v2624 = vlaneseq
      %v2625 = vshrl.u32 %v2624, 7
      %v2626 = vsub.s32 0, %v2625
      %v2627 = vrot.slane %v1029, %v2626
      %v2629 = vadd.f32 %v2619, %v2627
      %v2630 = vadd.f32 %v2620, %v2627
      %v2631 = vadd.f32 %v2621, %v2627
      %v2632 = vadd.f32 %v2622, %v2627
      %v2633 = vpack.c.bf16 %v2630, %v2629
      %v2634 = vpack.c.bf16 %v2632, %v2631
      %v2636 = vlaneseq
      %v2637 = vshrl.u32 %v2636, 7
      %v2638 = vsub.s32 0, %v2637
      %v2639 = vrot.slane %v991, %v2638
      %v2645 = vunpack.c.l.b16 %v983
      %v2646 = vunpack.c.l.b16 %v984
      %v2647 = vunpack.c.l.b16 %v985
      %v2648 = vunpack.c.l.b16 %v986
      %v2649 = vpack.c.b16 %v2646, %v2645
      %v2650 = vpack.c.b16 %v2648, %v2647
      %v2654 = vsel %vm1227, %v2633, 0
      %v2657 = vsel %vm1227, %v2634, 0
      %2659 = vmatprep.subr.bf16.mxu0 0
      %2660 = vmatpush1.bf16.msra.mxu0 %v2649
      %2661 = vmatprep.subr.bf16.mxu0 0
      %2662 = vmatpush1.bf16.msra.mxu0 %v2650
      %2663 = vmatprep.subr.bf16.mxu0 0
      %2664 = vmatpush1.bf16.msra.mxu0 0
      %2665 = vmatprep.subr.bf16.mxu0 0
      %2666 = vmatpush1.bf16.msra.mxu0 0
      %2667 = vmatprep.subr.bf16.mxu0 0
      %2668 = vmatpush1.bf16.msra.mxu0 0
      %2669 = vmatprep.subr.bf16.mxu0 0
      %2670 = vmatpush1.bf16.msra.mxu0 0
      %2671 = vmatprep.subr.bf16.mxu0 0
      %2672 = vmatpush1.bf16.msra.mxu0 0
      %2673 = vmatprep.subr.bf16.mxu0 0
      %2674 = vmatpush1.bf16.msra.mxu0 0
      %2675 = vmatprep.subr.bf16.mxu0 0
      %2676 = vmatpush1.bf16.msra.mxu0 0
      %2677 = vmatprep.subr.bf16.mxu0 0
      %2678 = vmatpush1.bf16.msra.mxu0 0
      %2679 = vmatprep.subr.bf16.mxu0 0
      %2680 = vmatpush1.bf16.msra.mxu0 0
      %2681 = vmatprep.subr.bf16.mxu0 0
      %2682 = vmatpush1.bf16.msra.mxu0 0
      %2683 = vmatprep.subr.bf16.mxu0 0
      %2684 = vmatpush1.bf16.msra.mxu0 0
      %2685 = vmatprep.subr.bf16.mxu0 0
      %2686 = vmatpush1.bf16.msra.mxu0 0
      %2687 = vmatprep.subr.bf16.mxu0 0
      %2688 = vmatpush1.bf16.msra.mxu0 0
      %2689 = vmatprep.subr.bf16.mxu0 0
      %2690 = vmatpush1.bf16.msra.mxu0 0
      %2691 = vmatprep.mubr.bf16.mxu0 0
      %2692 = vmatmul.mubr.bf16.gmra.mrb[0].mxu0 %v2654
      %v2693 = vpop.f32.mrb[0].mxu0
      %v2694 = vadd.f32 %v2639, %v2693
      %v2695 = vpop.f32.mrb[0].mxu0
      %v2696 = vpop.f32.mrb[0].mxu0
      %v2697 = vadd.f32 %v2639, %v2696
      %v2698 = vpop.f32.mrb[0].mxu0
      %2699 = vmatprep.mubr.bf16.mxu0 0
      %2700 = vmatmul.mubr.bf16.gmra.mrb[0].mxu0 %v2657
      %v2701 = vpop.f32.mrb[0].mxu0
      %v2702 = vadd.f32 %v2639, %v2701
      %v2703 = vpop.f32.mrb[0].mxu0
      %v2704 = vpop.f32.mrb[0].mxu0
      %v2705 = vadd.f32 %v2639, %v2704
      %v2706 = vpop.f32.mrb[0].mxu0
      %2707 = vdwg.mxu0
      %v2708 = vmax.f32 %v2694, 0.0
      %v2709 = vmax.f32 %v2697, 0.0
      %v2710 = vmax.f32 %v2702, 0.0
      %v2711 = vmax.f32 %v2705, 0.0
      %v2712 = vpack.c.bf16 %v2709, %v2708
      %v2713 = vpack.c.bf16 %v2711, %v2710
      %v2715 = vlaneseq
      %v2716 = vshrl.u32 %v2715, 7
      %v2717 = vsub.s32 0, %v2716
      %v2718 = vrot.slane %v1025, %v2717
      %v2736 = vunpack.c.l.b16 %v993
      %v2737 = vunpack.c.l.b16 %v994
      %v2738 = vunpack.c.l.b16 %v995
      %v2739 = vunpack.c.l.b16 %v996
      %v2740 = vunpack.c.l.b16 %v997
      %v2741 = vunpack.c.l.b16 %v998
      %v2742 = vunpack.c.l.b16 %v999
      %v2743 = vunpack.c.l.b16 %v1000
      %v2744 = vunpack.c.l.b16 %v1001
      %v2745 = vunpack.c.l.b16 %v1002
      %v2746 = vunpack.c.l.b16 %v1003
      %v2747 = vunpack.c.l.b16 %v1004
      %v2748 = vunpack.c.l.b16 %v1005
      %v2749 = vunpack.c.l.b16 %v1006
      %v2750 = vunpack.c.l.b16 %v1007
      %v2751 = vunpack.c.l.b16 %v1008
      %v2752 = vpack.c.b16 %v2737, %v2736
      %v2753 = vpack.c.b16 %v2739, %v2738
      %v2754 = vpack.c.b16 %v2741, %v2740
      %v2755 = vpack.c.b16 %v2743, %v2742
      %v2756 = vpack.c.b16 %v2745, %v2744
      %v2757 = vpack.c.b16 %v2747, %v2746
      %v2758 = vpack.c.b16 %v2749, %v2748
      %v2759 = vpack.c.b16 %v2751, %v2750
      %2768 = vmatprep.subr.bf16.mxu0 0
      %2769 = vmatpush1.bf16.msra.mxu0 %v2752
      %2770 = vmatprep.subr.bf16.mxu0 0
      %2771 = vmatpush1.bf16.msra.mxu0 %v2753
      %2772 = vmatprep.subr.bf16.mxu0 0
      %2773 = vmatpush1.bf16.msra.mxu0 %v2754
      %2774 = vmatprep.subr.bf16.mxu0 0
      %2775 = vmatpush1.bf16.msra.mxu0 %v2755
      %2776 = vmatprep.subr.bf16.mxu0 0
      %2777 = vmatpush1.bf16.msra.mxu0 %v2756
      %2778 = vmatprep.subr.bf16.mxu0 0
      %2779 = vmatpush1.bf16.msra.mxu0 %v2757
      %2780 = vmatprep.subr.bf16.mxu0 0
      %2781 = vmatpush1.bf16.msra.mxu0 %v2758
      %2782 = vmatprep.subr.bf16.mxu0 0
      %2783 = vmatpush1.bf16.msra.mxu0 %v2759
      %2784 = vmatprep.subr.bf16.mxu0 0
      %2785 = vmatpush1.bf16.msra.mxu0 0
      %2786 = vmatprep.subr.bf16.mxu0 0
      %2787 = vmatpush1.bf16.msra.mxu0 0
      %2788 = vmatprep.subr.bf16.mxu0 0
      %2789 = vmatpush1.bf16.msra.mxu0 0
      %2790 = vmatprep.subr.bf16.mxu0 0
      %2791 = vmatpush1.bf16.msra.mxu0 0
      %2792 = vmatprep.subr.bf16.mxu0 0
      %2793 = vmatpush1.bf16.msra.mxu0 0
      %2794 = vmatprep.subr.bf16.mxu0 0
      %2795 = vmatpush1.bf16.msra.mxu0 0
      %2796 = vmatprep.subr.bf16.mxu0 0
      %2797 = vmatpush1.bf16.msra.mxu0 0
      %2798 = vmatprep.subr.bf16.mxu0 0
      %2799 = vmatpush1.bf16.msra.mxu0 0
      %2800 = vmatprep.mubr.bf16.mxu0 0
      %2801 = vmatmul.mubr.bf16.gmra.mrb[0].mxu0 %v2712
      %v2802 = vpop.f32.mrb[0].mxu0
      %v2803 = vadd.f32 %v2718, %v2802
      %v2804 = vpop.f32.mrb[0].mxu0
      %v2805 = vpop.f32.mrb[0].mxu0
      %v2806 = vadd.f32 %v2718, %v2805
      %v2807 = vpop.f32.mrb[0].mxu0
      %2808 = vmatprep.mubr.bf16.mxu0 0
      %2809 = vmatmul.mubr.bf16.gmra.mrb[0].mxu0 %v2713
      %v2810 = vpop.f32.mrb[0].mxu0
      %v2811 = vadd.f32 %v2718, %v2810
      %v2812 = vpop.f32.mrb[0].mxu0
      %v2813 = vpop.f32.mrb[0].mxu0
      %v2814 = vadd.f32 %v2718, %v2813
      %v2815 = vpop.f32.mrb[0].mxu0
      %2816 = vdwg.mxu0
      %v2817 = vadd.f32 %v2629, %v2803
      %v2818 = vadd.f32 %v2630, %v2806
      %v2819 = vadd.f32 %v2631, %v2811
      %v2820 = vadd.f32 %v2632, %v2814
      %v2821 = vsel %vm1227, %v2817, 0.0
      %2822 = vadd.xlane.f32.xlu0 %v2821
      %v2823 = vpop.xlane.xlu0 %2822
      %v2824 = vsel %vm1227, %v2818, 0.0
      %2825 = vadd.xlane.f32.xlu0 %v2824
      %v2826 = vpop.xlane.xlu0 %2825
      %v2827 = vsel %vm1227, %v2819, 0.0
      %2828 = vadd.xlane.f32.xlu0 %v2827
      %v2829 = vpop.xlane.xlu0 %2828
      %v2830 = vsel %vm1227, %v2820, 0.0
      %2831 = vadd.xlane.f32.xlu0 %v2830
      %v2832 = vpop.xlane.xlu0 %2831
      %v2833 = vmul.f32 %v2823, %v2572
      %v2834 = vmul.f32 %v2826, %v2572
      %v2835 = vmul.f32 %v2829, %v2572
      %v2836 = vmul.f32 %v2832, %v2572
      %v2837 = vsub.f32 %v2817, %v2833
      %v2838 = vsub.f32 %v2818, %v2834
      %v2839 = vsub.f32 %v2819, %v2835
      %v2840 = vsub.f32 %v2820, %v2836
      %v2841 = vmul.f32 %v2837, %v2837
      %v2842 = vmul.f32 %v2838, %v2838
      %v2843 = vmul.f32 %v2839, %v2839
      %v2844 = vmul.f32 %v2840, %v2840
      %v2845 = vsel %vm1227, %v2841, 0.0
      %2846 = vadd.xlane.f32.xlu0 %v2845
      %v2847 = vpop.xlane.xlu0 %2846
      %v2848 = vsel %vm1227, %v2842, 0.0
      %2849 = vadd.xlane.f32.xlu0 %v2848
      %v2850 = vpop.xlane.xlu0 %2849
      %v2851 = vsel %vm1227, %v2843, 0.0
      %2852 = vadd.xlane.f32.xlu0 %v2851
      %v2853 = vpop.xlane.xlu0 %2852
      %v2854 = vsel %vm1227, %v2844, 0.0
      %2855 = vadd.xlane.f32.xlu0 %v2854
      %v2856 = vpop.xlane.xlu0 %2855
      %v2857 = vmul.f32 %v2847, %v2572
      %v2858 = vmul.f32 %v2850, %v2572
      %v2859 = vmul.f32 %v2853, %v2572
      %v2860 = vmul.f32 %v2856, %v2572
      %v2861 = vadd.f32 %v2857, 1e-05
      %v2862 = vadd.f32 %v2858, 1e-05
      %v2863 = vadd.f32 %v2859, 1e-05
      %v2864 = vadd.f32 %v2860, 1e-05
      %v2865 = vrsqrt.pop %v2861
      %v2866 = vrsqrt.pop %v2862
      %v2867 = vrsqrt.pop %v2863
      %v2868 = vrsqrt.pop %v2864
      %v2869 = vmul.f32 %v2837, %v2865
      %v2870 = vmul.f32 %v2838, %v2866
      %v2871 = vmul.f32 %v2839, %v2867
      %v2872 = vmul.f32 %v2840, %v2868
      %v2874 = vlaneseq
      %v2875 = vshrl.u32 %v2874, 7
      %v2876 = vsub.s32 0, %v2875
      %v2877 = vrot.slane %v1031, %v2876
      %v2879 = vmul.f32 %v2869, %v2877
      %v2880 = vmul.f32 %v2870, %v2877
      %v2881 = vmul.f32 %v2871, %v2877
      %v2882 = vmul.f32 %v2872, %v2877
      %v2884 = vlaneseq
      %v2885 = vshrl.u32 %v2884, 7
      %v2886 = vsub.s32 0, %v2885
      %v2887 = vrot.slane %v1033, %v2886
      %v2889 = vadd.f32 %v2879, %v2887
      %v2890 = vadd.f32 %v2880, %v2887
      %v2891 = vadd.f32 %v2881, %v2887
      %v2892 = vadd.f32 %v2882, %v2887
      %v2893 = vpack.c.bf16 %v2890, %v2889
      %v2894 = vpack.c.bf16 %v2892, %v2891
      %v2896 = vlaneseq
      %v2897 = vshrl.u32 %v2896, 7
      %v2898 = vsub.s32 0, %v2897
      %v2899 = vrot.slane %v972, %v2898
      %v2905 = vunpack.c.l.b16 %v967
      %v2906 = vunpack.c.l.b16 %v968
      %v2907 = vunpack.c.l.b16 %v969
      %v2908 = vunpack.c.l.b16 %v970
      %v2909 = vpack.c.b16 %v2906, %v2905
      %v2910 = vpack.c.b16 %v2908, %v2907
      %v2914 = vsel %vm1227, %v2893, 0
      %v2917 = vsel %vm1227, %v2894, 0
      %2919 = vmatprep.subr.bf16.mxu0 0
      %2920 = vmatpush1.bf16.msra.mxu0 %v2909
      %2921 = vmatprep.subr.bf16.mxu0 0
      %2922 = vmatpush1.bf16.msra.mxu0 %v2910
      %2923 = vmatprep.subr.bf16.mxu0 0
      %2924 = vmatpush1.bf16.msra.mxu0 0
      %2925 = vmatprep.subr.bf16.mxu0 0
      %2926 = vmatpush1.bf16.msra.mxu0 0
      %2927 = vmatprep.subr.bf16.mxu0 0
      %2928 = vmatpush1.bf16.msra.mxu0 0
      %2929 = vmatprep.subr.bf16.mxu0 0
      %2930 = vmatpush1.bf16.msra.mxu0 0
      %2931 = vmatprep.subr.bf16.mxu0 0
      %2932 = vmatpush1.bf16.msra.mxu0 0
      %2933 = vmatprep.subr.bf16.mxu0 0
      %2934 = vmatpush1.bf16.msra.mxu0 0
      %2935 = vmatprep.subr.bf16.mxu0 0
      %2936 = vmatpush1.bf16.msra.mxu0 0
      %2937 = vmatprep.subr.bf16.mxu0 0
      %2938 = vmatpush1.bf16.msra.mxu0 0
      %2939 = vmatprep.subr.bf16.mxu0 0
      %2940 = vmatpush1.bf16.msra.mxu0 0
      %2941 = vmatprep.subr.bf16.mxu0 0
      %2942 = vmatpush1.bf16.msra.mxu0 0
      %2943 = vmatprep.subr.bf16.mxu0 0
      %2944 = vmatpush1.bf16.msra.mxu0 0
      %2945 = vmatprep.subr.bf16.mxu0 0
      %2946 = vmatpush1.bf16.msra.mxu0 0
      %2947 = vmatprep.subr.bf16.mxu0 0
      %2948 = vmatpush1.bf16.msra.mxu0 0
      %2949 = vmatprep.subr.bf16.mxu0 0
      %2950 = vmatpush1.bf16.msra.mxu0 0
      %2951 = vmatprep.mubr.bf16.mxu0 0
      %2952 = vmatmul.mubr.bf16.gmra.mrb[0].mxu0 %v2914
      %v2953 = vpop.f32.mrb[0].mxu0
      %v2954 = vadd.f32 %v2899, %v2953
      %v2955 = vpop.f32.mrb[0].mxu0
      %v2956 = vpop.f32.mrb[0].mxu0
      %v2957 = vadd.f32 %v2899, %v2956
      %v2958 = vpop.f32.mrb[0].mxu0
      %2959 = vmatprep.mubr.bf16.mxu0 0
      %2960 = vmatmul.mubr.bf16.gmra.mrb[0].mxu0 %v2917
      %v2961 = vpop.f32.mrb[0].mxu0
      %v2962 = vadd.f32 %v2899, %v2961
      %v2963 = vpop.f32.mrb[0].mxu0
      %v2964 = vpop.f32.mrb[0].mxu0
      %v2965 = vadd.f32 %v2899, %v2964
      %v2966 = vpop.f32.mrb[0].mxu0
      %2967 = vdwg.mxu0
      %2972 = vrot.lane.b32.xlu0 %v2954, 120
      %v2973 = vpop.permute.xlu0 %2972
      %2974 = vrot.lane.b32.xlu0 %v2957, 120
      %v2975 = vpop.permute.xlu0 %2974
      %2976 = vrot.lane.b32.xlu0 %v2962, 120
      %v2977 = vpop.permute.xlu0 %2976
      %2978 = vrot.lane.b32.xlu0 %v2965, 120
      %v2979 = vpop.permute.xlu0 %2978
      %2984 = vrot.lane.b32.xlu0 %v2954, 112
      %v2985 = vpop.permute.xlu0 %2984
      %2986 = vrot.lane.b32.xlu0 %v2957, 112
      %v2987 = vpop.permute.xlu0 %2986
      %2988 = vrot.lane.b32.xlu0 %v2962, 112
      %v2989 = vpop.permute.xlu0 %2988
      %2990 = vrot.lane.b32.xlu0 %v2965, 112
      %v2991 = vpop.permute.xlu0 %2990
      %2996 = vrot.lane.b32.xlu0 %v2954, 104
      %v2997 = vpop.permute.xlu0 %2996
      %2998 = vrot.lane.b32.xlu0 %v2957, 104
      %v2999 = vpop.permute.xlu0 %2998
      %3000 = vrot.lane.b32.xlu0 %v2962, 104
      %v3001 = vpop.permute.xlu0 %3000
      %3002 = vrot.lane.b32.xlu0 %v2965, 104
      %v3003 = vpop.permute.xlu0 %3002
      %v3008 = vpack.c.bf16 %v2957, %v2954
      %v3009 = vpack.c.bf16 %v2965, %v2962
      %v3010 = vpack.c.bf16 %v2975, %v2973
      %v3011 = vpack.c.bf16 %v2979, %v2977
      %v3012 = vpack.c.bf16 %v2987, %v2985
      %v3013 = vpack.c.bf16 %v2991, %v2989
      %v3014 = vpack.c.bf16 %v2999, %v2997
      %v3015 = vpack.c.bf16 %v3003, %v3001
      %3017 = vrot.lane.b32.xlu0 %v3008, 96
      %v3018 = vpop.permute.xlu0 %3017
      %v3020 = vsel %vm1334, %v3008, 0
      %v3023 = vsel %vm1334, %v3018, 0
      %3025 = vmatprep.subr.bf16.mxu0 0
      %3026 = vmatpush1.bf16.xpose.msra.mxu0 %v3023
      %3027 = vmatprep.subr.bf16.mxu0 0
      %3028 = vmatpush1.bf16.xpose.msra.mxu0 0
      %3029 = vmatprep.subr.bf16.mxu0 0
      %3030 = vmatpush1.bf16.xpose.msra.mxu0 0
      %3031 = vmatprep.subr.bf16.mxu0 0
      %3032 = vmatpush1.bf16.xpose.msra.mxu0 0
      %3033 = vmatprep.subr.bf16.mxu0 0
      %3034 = vmatpush1.bf16.xpose.msra.mxu0 0
      %3035 = vmatprep.subr.bf16.mxu0 0
      %3036 = vmatpush1.bf16.xpose.msra.mxu0 0
      %3037 = vmatprep.subr.bf16.mxu0 0
      %3038 = vmatpush1.bf16.xpose.msra.mxu0 0
      %3039 = vmatprep.subr.bf16.mxu0 0
      %3040 = vmatpush1.bf16.xpose.msra.mxu0 0
      %3041 = vmatprep.subr.bf16.mxu0 0
      %3042 = vmatpush1.bf16.xpose.msra.mxu0 0
      %3043 = vmatprep.subr.bf16.mxu0 0
      %3044 = vmatpush1.bf16.xpose.msra.mxu0 0
      %3045 = vmatprep.subr.bf16.mxu0 0
      %3046 = vmatpush1.bf16.xpose.msra.mxu0 0
      %3047 = vmatprep.subr.bf16.mxu0 0
      %3048 = vmatpush1.bf16.xpose.msra.mxu0 0
      %3049 = vmatprep.subr.bf16.mxu0 0
      %3050 = vmatpush1.bf16.xpose.msra.mxu0 0
      %3051 = vmatprep.subr.bf16.mxu0 0
      %3052 = vmatpush1.bf16.xpose.msra.mxu0 0
      %3053 = vmatprep.subr.bf16.mxu0 0
      %3054 = vmatpush1.bf16.xpose.msra.mxu0 0
      %3055 = vmatprep.subr.bf16.mxu0 0
      %3056 = vmatpush1.bf16.xpose.msra.mxu0 0
      %3057 = vmatprep.mubr.bf16.mxu0 0
      %3058 = vmatmul.mubr.bf16.gmra.mrb[0].mxu0 %v3020
      %v3059 = vpop.f32.mrb[0].mxu0
      %v3060 = vadd.f32 0.0, %v3059
      %v3061 = vpop.f32.mrb[0].mxu0
      %v3062 = vpop.f32.mrb[0].mxu0
      %v3063 = vadd.f32 0.0, %v3062
      %v3064 = vpop.f32.mrb[0].mxu0
      %3065 = vdwg.mxu0
      %3067 = vrot.lane.b32.xlu0 %v3009, 96
      %v3068 = vpop.permute.xlu0 %3067
      %v3070 = vsel %vm1334, %v3009, 0
      %v3073 = vsel %vm1334, %v3068, 0
      %3075 = vmatprep.subr.bf16.mxu0 0
      %3076 = vmatpush1.bf16.xpose.msra.mxu0 %v3073
      %3077 = vmatprep.subr.bf16.mxu0 0
      %3078 = vmatpush1.bf16.xpose.msra.mxu0 0
      %3079 = vmatprep.subr.bf16.mxu0 0
      %3080 = vmatpush1.bf16.xpose.msra.mxu0 0
      %3081 = vmatprep.subr.bf16.mxu0 0
      %3082 = vmatpush1.bf16.xpose.msra.mxu0 0
      %3083 = vmatprep.subr.bf16.mxu0 0
      %3084 = vmatpush1.bf16.xpose.msra.mxu0 0
      %3085 = vmatprep.subr.bf16.mxu0 0
      %3086 = vmatpush1.bf16.xpose.msra.mxu0 0
      %3087 = vmatprep.subr.bf16.mxu0 0
      %3088 = vmatpush1.bf16.xpose.msra.mxu0 0
      %3089 = vmatprep.subr.bf16.mxu0 0
      %3090 = vmatpush1.bf16.xpose.msra.mxu0 0
      %3091 = vmatprep.subr.bf16.mxu0 0
      %3092 = vmatpush1.bf16.xpose.msra.mxu0 0
      %3093 = vmatprep.subr.bf16.mxu0 0
      %3094 = vmatpush1.bf16.xpose.msra.mxu0 0
      %3095 = vmatprep.subr.bf16.mxu0 0
      %3096 = vmatpush1.bf16.xpose.msra.mxu0 0
      %3097 = vmatprep.subr.bf16.mxu0 0
      %3098 = vmatpush1.bf16.xpose.msra.mxu0 0
      %3099 = vmatprep.subr.bf16.mxu0 0
      %3100 = vmatpush1.bf16.xpose.msra.mxu0 0
      %3101 = vmatprep.subr.bf16.mxu0 0
      %3102 = vmatpush1.bf16.xpose.msra.mxu0 0
      %3103 = vmatprep.subr.bf16.mxu0 0
      %3104 = vmatpush1.bf16.xpose.msra.mxu0 0
      %3105 = vmatprep.subr.bf16.mxu0 0
      %3106 = vmatpush1.bf16.xpose.msra.mxu0 0
      %3107 = vmatprep.mubr.bf16.mxu0 0
      %3108 = vmatmul.mubr.bf16.gmra.mrb[0].mxu0 %v3070
      %v3109 = vpop.f32.mrb[0].mxu0
      %v3110 = vadd.f32 0.0, %v3109
      %v3111 = vpop.f32.mrb[0].mxu0
      %v3112 = vpop.f32.mrb[0].mxu0
      %v3113 = vadd.f32 0.0, %v3112
      %v3114 = vpop.f32.mrb[0].mxu0
      %3115 = vdwg.mxu0
      %3117 = vrot.lane.b32.xlu0 %v3010, 96
      %v3118 = vpop.permute.xlu0 %3117
      %v3120 = vsel %vm1334, %v3010, 0
      %v3123 = vsel %vm1334, %v3118, 0
      %3125 = vmatprep.subr.bf16.mxu0 0
      %3126 = vmatpush1.bf16.xpose.msra.mxu0 %v3123
      %3127 = vmatprep.subr.bf16.mxu0 0
      %3128 = vmatpush1.bf16.xpose.msra.mxu0 0
      %3129 = vmatprep.subr.bf16.mxu0 0
      %3130 = vmatpush1.bf16.xpose.msra.mxu0 0
      %3131 = vmatprep.subr.bf16.mxu0 0
      %3132 = vmatpush1.bf16.xpose.msra.mxu0 0
      %3133 = vmatprep.subr.bf16.mxu0 0
      %3134 = vmatpush1.bf16.xpose.msra.mxu0 0
      %3135 = vmatprep.subr.bf16.mxu0 0
      %3136 = vmatpush1.bf16.xpose.msra.mxu0 0
      %3137 = vmatprep.subr.bf16.mxu0 0
      %3138 = vmatpush1.bf16.xpose.msra.mxu0 0
      %3139 = vmatprep.subr.bf16.mxu0 0
      %3140 = vmatpush1.bf16.xpose.msra.mxu0 0
      %3141 = vmatprep.subr.bf16.mxu0 0
      %3142 = vmatpush1.bf16.xpose.msra.mxu0 0
      %3143 = vmatprep.subr.bf16.mxu0 0
      %3144 = vmatpush1.bf16.xpose.msra.mxu0 0
      %3145 = vmatprep.subr.bf16.mxu0 0
      %3146 = vmatpush1.bf16.xpose.msra.mxu0 0
      %3147 = vmatprep.subr.bf16.mxu0 0
      %3148 = vmatpush1.bf16.xpose.msra.mxu0 0
      %3149 = vmatprep.subr.bf16.mxu0 0
      %3150 = vmatpush1.bf16.xpose.msra.mxu0 0
      %3151 = vmatprep.subr.bf16.mxu0 0
      %3152 = vmatpush1.bf16.xpose.msra.mxu0 0
      %3153 = vmatprep.subr.bf16.mxu0 0
      %3154 = vmatpush1.bf16.xpose.msra.mxu0 0
      %3155 = vmatprep.subr.bf16.mxu0 0
      %3156 = vmatpush1.bf16.xpose.msra.mxu0 0
      %3157 = vmatprep.mubr.bf16.mxu0 0
      %3158 = vmatmul.mubr.bf16.gmra.mrb[0].mxu0 %v3120
      %v3159 = vpop.f32.mrb[0].mxu0
      %v3160 = vadd.f32 0.0, %v3159
      %v3161 = vpop.f32.mrb[0].mxu0
      %v3162 = vpop.f32.mrb[0].mxu0
      %v3163 = vadd.f32 0.0, %v3162
      %v3164 = vpop.f32.mrb[0].mxu0
      %3165 = vdwg.mxu0
      %3167 = vrot.lane.b32.xlu0 %v3011, 96
      %v3168 = vpop.permute.xlu0 %3167
      %v3170 = vsel %vm1334, %v3011, 0
      %v3173 = vsel %vm1334, %v3168, 0
      %3175 = vmatprep.subr.bf16.mxu0 0
      %3176 = vmatpush1.bf16.xpose.msra.mxu0 %v3173
      %3177 = vmatprep.subr.bf16.mxu0 0
      %3178 = vmatpush1.bf16.xpose.msra.mxu0 0
      %3179 = vmatprep.subr.bf16.mxu0 0
      %3180 = vmatpush1.bf16.xpose.msra.mxu0 0
      %3181 = vmatprep.subr.bf16.mxu0 0
      %3182 = vmatpush1.bf16.xpose.msra.mxu0 0
      %3183 = vmatprep.subr.bf16.mxu0 0
      %3184 = vmatpush1.bf16.xpose.msra.mxu0 0
      %3185 = vmatprep.subr.bf16.mxu0 0
      %3186 = vmatpush1.bf16.xpose.msra.mxu0 0
      %3187 = vmatprep.subr.bf16.mxu0 0
      %3188 = vmatpush1.bf16.xpose.msra.mxu0 0
      %3189 = vmatprep.subr.bf16.mxu0 0
      %3190 = vmatpush1.bf16.xpose.msra.mxu0 0
      %3191 = vmatprep.subr.bf16.mxu0 0
      %3192 = vmatpush1.bf16.xpose.msra.mxu0 0
      %3193 = vmatprep.subr.bf16.mxu0 0
      %3194 = vmatpush1.bf16.xpose.msra.mxu0 0
      %3195 = vmatprep.subr.bf16.mxu0 0
      %3196 = vmatpush1.bf16.xpose.msra.mxu0 0
      %3197 = vmatprep.subr.bf16.mxu0 0
      %3198 = vmatpush1.bf16.xpose.msra.mxu0 0
      %3199 = vmatprep.subr.bf16.mxu0 0
      %3200 = vmatpush1.bf16.xpose.msra.mxu0 0
      %3201 = vmatprep.subr.bf16.mxu0 0
      %3202 = vmatpush1.bf16.xpose.msra.mxu0 0
      %3203 = vmatprep.subr.bf16.mxu0 0
      %3204 = vmatpush1.bf16.xpose.msra.mxu0 0
      %3205 = vmatprep.subr.bf16.mxu0 0
      %3206 = vmatpush1.bf16.xpose.msra.mxu0 0
      %3207 = vmatprep.mubr.bf16.mxu0 0
      %3208 = vmatmul.mubr.bf16.gmra.mrb[0].mxu0 %v3170
      %v3209 = vpop.f32.mrb[0].mxu0
      %v3210 = vadd.f32 0.0, %v3209
      %v3211 = vpop.f32.mrb[0].mxu0
      %v3212 = vpop.f32.mrb[0].mxu0
      %v3213 = vadd.f32 0.0, %v3212
      %v3214 = vpop.f32.mrb[0].mxu0
      %3215 = vdwg.mxu0
      %3217 = vrot.lane.b32.xlu0 %v3012, 96
      %v3218 = vpop.permute.xlu0 %3217
      %v3220 = vsel %vm1334, %v3012, 0
      %v3223 = vsel %vm1334, %v3218, 0
      %3225 = vmatprep.subr.bf16.mxu0 0
      %3226 = vmatpush1.bf16.xpose.msra.mxu0 %v3223
      %3227 = vmatprep.subr.bf16.mxu0 0
      %3228 = vmatpush1.bf16.xpose.msra.mxu0 0
      %3229 = vmatprep.subr.bf16.mxu0 0
      %3230 = vmatpush1.bf16.xpose.msra.mxu0 0
      %3231 = vmatprep.subr.bf16.mxu0 0
      %3232 = vmatpush1.bf16.xpose.msra.mxu0 0
      %3233 = vmatprep.subr.bf16.mxu0 0
      %3234 = vmatpush1.bf16.xpose.msra.mxu0 0
      %3235 = vmatprep.subr.bf16.mxu0 0
      %3236 = vmatpush1.bf16.xpose.msra.mxu0 0
      %3237 = vmatprep.subr.bf16.mxu0 0
      %3238 = vmatpush1.bf16.xpose.msra.mxu0 0
      %3239 = vmatprep.subr.bf16.mxu0 0
      %3240 = vmatpush1.bf16.xpose.msra.mxu0 0
      %3241 = vmatprep.subr.bf16.mxu0 0
      %3242 = vmatpush1.bf16.xpose.msra.mxu0 0
      %3243 = vmatprep.subr.bf16.mxu0 0
      %3244 = vmatpush1.bf16.xpose.msra.mxu0 0
      %3245 = vmatprep.subr.bf16.mxu0 0
      %3246 = vmatpush1.bf16.xpose.msra.mxu0 0
      %3247 = vmatprep.subr.bf16.mxu0 0
      %3248 = vmatpush1.bf16.xpose.msra.mxu0 0
      %3249 = vmatprep.subr.bf16.mxu0 0
      %3250 = vmatpush1.bf16.xpose.msra.mxu0 0
      %3251 = vmatprep.subr.bf16.mxu0 0
      %3252 = vmatpush1.bf16.xpose.msra.mxu0 0
      %3253 = vmatprep.subr.bf16.mxu0 0
      %3254 = vmatpush1.bf16.xpose.msra.mxu0 0
      %3255 = vmatprep.subr.bf16.mxu0 0
      %3256 = vmatpush1.bf16.xpose.msra.mxu0 0
      %3257 = vmatprep.mubr.bf16.mxu0 0
      %3258 = vmatmul.mubr.bf16.gmra.mrb[0].mxu0 %v3220
      %v3259 = vpop.f32.mrb[0].mxu0
      %v3260 = vadd.f32 0.0, %v3259
      %v3261 = vpop.f32.mrb[0].mxu0
      %v3262 = vpop.f32.mrb[0].mxu0
      %v3263 = vadd.f32 0.0, %v3262
      %v3264 = vpop.f32.mrb[0].mxu0
      %3265 = vdwg.mxu0
      %3267 = vrot.lane.b32.xlu0 %v3013, 96
      %v3268 = vpop.permute.xlu0 %3267
      %v3270 = vsel %vm1334, %v3013, 0
      %v3273 = vsel %vm1334, %v3268, 0
      %3275 = vmatprep.subr.bf16.mxu0 0
      %3276 = vmatpush1.bf16.xpose.msra.mxu0 %v3273
      %3277 = vmatprep.subr.bf16.mxu0 0
      %3278 = vmatpush1.bf16.xpose.msra.mxu0 0
      %3279 = vmatprep.subr.bf16.mxu0 0
      %3280 = vmatpush1.bf16.xpose.msra.mxu0 0
      %3281 = vmatprep.subr.bf16.mxu0 0
      %3282 = vmatpush1.bf16.xpose.msra.mxu0 0
      %3283 = vmatprep.subr.bf16.mxu0 0
      %3284 = vmatpush1.bf16.xpose.msra.mxu0 0
      %3285 = vmatprep.subr.bf16.mxu0 0
      %3286 = vmatpush1.bf16.xpose.msra.mxu0 0
      %3287 = vmatprep.subr.bf16.mxu0 0
      %3288 = vmatpush1.bf16.xpose.msra.mxu0 0
      %3289 = vmatprep.subr.bf16.mxu0 0
      %3290 = vmatpush1.bf16.xpose.msra.mxu0 0
      %3291 = vmatprep.subr.bf16.mxu0 0
      %3292 = vmatpush1.bf16.xpose.msra.mxu0 0
      %3293 = vmatprep.subr.bf16.mxu0 0
      %3294 = vmatpush1.bf16.xpose.msra.mxu0 0
      %3295 = vmatprep.subr.bf16.mxu0 0
      %3296 = vmatpush1.bf16.xpose.msra.mxu0 0
      %3297 = vmatprep.subr.bf16.mxu0 0
      %3298 = vmatpush1.bf16.xpose.msra.mxu0 0
      %3299 = vmatprep.subr.bf16.mxu0 0
      %3300 = vmatpush1.bf16.xpose.msra.mxu0 0
      %3301 = vmatprep.subr.bf16.mxu0 0
      %3302 = vmatpush1.bf16.xpose.msra.mxu0 0
      %3303 = vmatprep.subr.bf16.mxu0 0
      %3304 = vmatpush1.bf16.xpose.msra.mxu0 0
      %3305 = vmatprep.subr.bf16.mxu0 0
      %3306 = vmatpush1.bf16.xpose.msra.mxu0 0
      %3307 = vmatprep.mubr.bf16.mxu0 0
      %3308 = vmatmul.mubr.bf16.gmra.mrb[0].mxu0 %v3270
      %v3309 = vpop.f32.mrb[0].mxu0
      %v3310 = vadd.f32 0.0, %v3309
      %v3311 = vpop.f32.mrb[0].mxu0
      %v3312 = vpop.f32.mrb[0].mxu0
      %v3313 = vadd.f32 0.0, %v3312
      %v3314 = vpop.f32.mrb[0].mxu0
      %3315 = vdwg.mxu0
      %3317 = vrot.lane.b32.xlu0 %v3014, 96
      %v3318 = vpop.permute.xlu0 %3317
      %v3320 = vsel %vm1334, %v3014, 0
      %v3323 = vsel %vm1334, %v3318, 0
      %3325 = vmatprep.subr.bf16.mxu0 0
      %3326 = vmatpush1.bf16.xpose.msra.mxu0 %v3323
      %3327 = vmatprep.subr.bf16.mxu0 0
      %3328 = vmatpush1.bf16.xpose.msra.mxu0 0
      %3329 = vmatprep.subr.bf16.mxu0 0
      %3330 = vmatpush1.bf16.xpose.msra.mxu0 0
      %3331 = vmatprep.subr.bf16.mxu0 0
      %3332 = vmatpush1.bf16.xpose.msra.mxu0 0
      %3333 = vmatprep.subr.bf16.mxu0 0
      %3334 = vmatpush1.bf16.xpose.msra.mxu0 0
      %3335 = vmatprep.subr.bf16.mxu0 0
      %3336 = vmatpush1.bf16.xpose.msra.mxu0 0
      %3337 = vmatprep.subr.bf16.mxu0 0
      %3338 = vmatpush1.bf16.xpose.msra.mxu0 0
      %3339 = vmatprep.subr.bf16.mxu0 0
      %3340 = vmatpush1.bf16.xpose.msra.mxu0 0
      %3341 = vmatprep.subr.bf16.mxu0 0
      %3342 = vmatpush1.bf16.xpose.msra.mxu0 0
      %3343 = vmatprep.subr.bf16.mxu0 0
      %3344 = vmatpush1.bf16.xpose.msra.mxu0 0
      %3345 = vmatprep.subr.bf16.mxu0 0
      %3346 = vmatpush1.bf16.xpose.msra.mxu0 0
      %3347 = vmatprep.subr.bf16.mxu0 0
      %3348 = vmatpush1.bf16.xpose.msra.mxu0 0
      %3349 = vmatprep.subr.bf16.mxu0 0
      %3350 = vmatpush1.bf16.xpose.msra.mxu0 0
      %3351 = vmatprep.subr.bf16.mxu0 0
      %3352 = vmatpush1.bf16.xpose.msra.mxu0 0
      %3353 = vmatprep.subr.bf16.mxu0 0
      %3354 = vmatpush1.bf16.xpose.msra.mxu0 0
      %3355 = vmatprep.subr.bf16.mxu0 0
      %3356 = vmatpush1.bf16.xpose.msra.mxu0 0
      %3357 = vmatprep.mubr.bf16.mxu0 0
      %3358 = vmatmul.mubr.bf16.gmra.mrb[0].mxu0 %v3320
      %v3359 = vpop.f32.mrb[0].mxu0
      %v3360 = vadd.f32 0.0, %v3359
      %v3361 = vpop.f32.mrb[0].mxu0
      %v3362 = vpop.f32.mrb[0].mxu0
      %v3363 = vadd.f32 0.0, %v3362
      %v3364 = vpop.f32.mrb[0].mxu0
      %3365 = vdwg.mxu0
      %3367 = vrot.lane.b32.xlu0 %v3015, 96
      %v3368 = vpop.permute.xlu0 %3367
      %v3370 = vsel %vm1334, %v3015, 0
      %v3373 = vsel %vm1334, %v3368, 0
      %3375 = vmatprep.subr.bf16.mxu0 0
      %3376 = vmatpush1.bf16.xpose.msra.mxu0 %v3373
      %3377 = vmatprep.subr.bf16.mxu0 0
      %3378 = vmatpush1.bf16.xpose.msra.mxu0 0
      %3379 = vmatprep.subr.bf16.mxu0 0
      %3380 = vmatpush1.bf16.xpose.msra.mxu0 0
      %3381 = vmatprep.subr.bf16.mxu0 0
      %3382 = vmatpush1.bf16.xpose.msra.mxu0 0
      %3383 = vmatprep.subr.bf16.mxu0 0
      %3384 = vmatpush1.bf16.xpose.msra.mxu0 0
      %3385 = vmatprep.subr.bf16.mxu0 0
      %3386 = vmatpush1.bf16.xpose.msra.mxu0 0
      %3387 = vmatprep.subr.bf16.mxu0 0
      %3388 = vmatpush1.bf16.xpose.msra.mxu0 0
      %3389 = vmatprep.subr.bf16.mxu0 0
      %3390 = vmatpush1.bf16.xpose.msra.mxu0 0
      %3391 = vmatprep.subr.bf16.mxu0 0
      %3392 = vmatpush1.bf16.xpose.msra.mxu0 0
      %3393 = vmatprep.subr.bf16.mxu0 0
      %3394 = vmatpush1.bf16.xpose.msra.mxu0 0
      %3395 = vmatprep.subr.bf16.mxu0 0
      %3396 = vmatpush1.bf16.xpose.msra.mxu0 0
      %3397 = vmatprep.subr.bf16.mxu0 0
      %3398 = vmatpush1.bf16.xpose.msra.mxu0 0
      %3399 = vmatprep.subr.bf16.mxu0 0
      %3400 = vmatpush1.bf16.xpose.msra.mxu0 0
      %3401 = vmatprep.subr.bf16.mxu0 0
      %3402 = vmatpush1.bf16.xpose.msra.mxu0 0
      %3403 = vmatprep.subr.bf16.mxu0 0
      %3404 = vmatpush1.bf16.xpose.msra.mxu0 0
      %3405 = vmatprep.subr.bf16.mxu0 0
      %3406 = vmatpush1.bf16.xpose.msra.mxu0 0
      %3407 = vmatprep.mubr.bf16.mxu0 0
      %3408 = vmatmul.mubr.bf16.gmra.mrb[0].mxu0 %v3370
      %v3409 = vpop.f32.mrb[0].mxu0
      %v3410 = vadd.f32 0.0, %v3409
      %v3411 = vpop.f32.mrb[0].mxu0
      %v3412 = vpop.f32.mrb[0].mxu0
      %v3413 = vadd.f32 0.0, %v3412
      %v3414 = vpop.f32.mrb[0].mxu0
      %3415 = vdwg.mxu0
      %v3416 = vsel %vm1732, %v3060, -inf
      %3417 = vmax.xlane.f32.xlu0 %v3416
      %v3418 = vpop.xlane.xlu0 %3417
      %v3419 = vsel %vm1732, %v3063, -inf
      %3420 = vmax.xlane.f32.xlu0 %v3419
      %v3421 = vpop.xlane.xlu0 %3420
      %v3422 = vsel %vm1732, %v3110, -inf
      %3423 = vmax.xlane.f32.xlu0 %v3422
      %v3424 = vpop.xlane.xlu0 %3423
      %v3425 = vsel %vm1732, %v3113, -inf
      %3426 = vmax.xlane.f32.xlu0 %v3425
      %v3427 = vpop.xlane.xlu0 %3426
      %v3428 = vsel %vm1732, %v3160, -inf
      %3429 = vmax.xlane.f32.xlu0 %v3428
      %v3430 = vpop.xlane.xlu0 %3429
      %v3431 = vsel %vm1732, %v3163, -inf
      %3432 = vmax.xlane.f32.xlu0 %v3431
      %v3433 = vpop.xlane.xlu0 %3432
      %v3434 = vsel %vm1732, %v3210, -inf
      %3435 = vmax.xlane.f32.xlu0 %v3434
      %v3436 = vpop.xlane.xlu0 %3435
      %v3437 = vsel %vm1732, %v3213, -inf
      %3438 = vmax.xlane.f32.xlu0 %v3437
      %v3439 = vpop.xlane.xlu0 %3438
      %v3440 = vsel %vm1732, %v3260, -inf
      %3441 = vmax.xlane.f32.xlu0 %v3440
      %v3442 = vpop.xlane.xlu0 %3441
      %v3443 = vsel %vm1732, %v3263, -inf
      %3444 = vmax.xlane.f32.xlu0 %v3443
      %v3445 = vpop.xlane.xlu0 %3444
      %v3446 = vsel %vm1732, %v3310, -inf
      %3447 = vmax.xlane.f32.xlu0 %v3446
      %v3448 = vpop.xlane.xlu0 %3447
      %v3449 = vsel %vm1732, %v3313, -inf
      %3450 = vmax.xlane.f32.xlu0 %v3449
      %v3451 = vpop.xlane.xlu0 %3450
      %v3452 = vsel %vm1732, %v3360, -inf
      %3453 = vmax.xlane.f32.xlu0 %v3452
      %v3454 = vpop.xlane.xlu0 %3453
      %v3455 = vsel %vm1732, %v3363, -inf
      %3456 = vmax.xlane.f32.xlu0 %v3455
      %v3457 = vpop.xlane.xlu0 %3456
      %v3458 = vsel %vm1732, %v3410, -inf
      %3459 = vmax.xlane.f32.xlu0 %v3458
      %v3460 = vpop.xlane.xlu0 %3459
      %v3461 = vsel %vm1732, %v3413, -inf
      %3462 = vmax.xlane.f32.xlu0 %v3461
      %v3463 = vpop.xlane.xlu0 %3462
      %v3464 = vsub.f32 %v3060, %v3418
      %v3465 = vsub.f32 %v3063, %v3421
      %v3466 = vsub.f32 %v3110, %v3424
      %v3467 = vsub.f32 %v3113, %v3427
      %v3468 = vsub.f32 %v3160, %v3430
      %v3469 = vsub.f32 %v3163, %v3433
      %v3470 = vsub.f32 %v3210, %v3436
      %v3471 = vsub.f32 %v3213, %v3439
      %v3472 = vsub.f32 %v3260, %v3442
      %v3473 = vsub.f32 %v3263, %v3445
      %v3474 = vsub.f32 %v3310, %v3448
      %v3475 = vsub.f32 %v3313, %v3451
      %v3476 = vsub.f32 %v3360, %v3454
      %v3477 = vsub.f32 %v3363, %v3457
      %v3478 = vsub.f32 %v3410, %v3460
      %v3479 = vsub.f32 %v3413, %v3463
      %v3480 = vmul.f32 %v3464, 1.442695
      %v3481 = vpow.pop %v3480
      %v3482 = vmul.f32 %v3465, 1.442695
      %v3483 = vpow.pop %v3482
      %v3484 = vmul.f32 %v3466, 1.442695
      %v3485 = vpow.pop %v3484
      %v3486 = vmul.f32 %v3467, 1.442695
      %v3487 = vpow.pop %v3486
      %v3488 = vmul.f32 %v3468, 1.442695
      %v3489 = vpow.pop %v3488
      %v3490 = vmul.f32 %v3469, 1.442695
      %v3491 = vpow.pop %v3490
      %v3492 = vmul.f32 %v3470, 1.442695
      %v3493 = vpow.pop %v3492
      %v3494 = vmul.f32 %v3471, 1.442695
      %v3495 = vpow.pop %v3494
      %v3496 = vmul.f32 %v3472, 1.442695
      %v3497 = vpow.pop %v3496
      %v3498 = vmul.f32 %v3473, 1.442695
      %v3499 = vpow.pop %v3498
      %v3500 = vmul.f32 %v3474, 1.442695
      %v3501 = vpow.pop %v3500
      %v3502 = vmul.f32 %v3475, 1.442695
      %v3503 = vpow.pop %v3502
      %v3504 = vmul.f32 %v3476, 1.442695
      %v3505 = vpow.pop %v3504
      %v3506 = vmul.f32 %v3477, 1.442695
      %v3507 = vpow.pop %v3506
      %v3508 = vmul.f32 %v3478, 1.442695
      %v3509 = vpow.pop %v3508
      %v3510 = vmul.f32 %v3479, 1.442695
      %v3511 = vpow.pop %v3510
      %v3512 = vsel %vm1732, %v3481, 0.0
      %3513 = vadd.xlane.f32.xlu0 %v3512
      %v3514 = vpop.xlane.xlu0 %3513
      %v3515 = vsel %vm1732, %v3483, 0.0
      %3516 = vadd.xlane.f32.xlu0 %v3515
      %v3517 = vpop.xlane.xlu0 %3516
      %v3518 = vsel %vm1732, %v3485, 0.0
      %3519 = vadd.xlane.f32.xlu0 %v3518
      %v3520 = vpop.xlane.xlu0 %3519
      %v3521 = vsel %vm1732, %v3487, 0.0
      %3522 = vadd.xlane.f32.xlu0 %v3521
      %v3523 = vpop.xlane.xlu0 %3522
      %v3524 = vsel %vm1732, %v3489, 0.0
      %3525 = vadd.xlane.f32.xlu0 %v3524
      %v3526 = vpop.xlane.xlu0 %3525
      %v3527 = vsel %vm1732, %v3491, 0.0
      %3528 = vadd.xlane.f32.xlu0 %v3527
      %v3529 = vpop.xlane.xlu0 %3528
      %v3530 = vsel %vm1732, %v3493, 0.0
      %3531 = vadd.xlane.f32.xlu0 %v3530
      %v3532 = vpop.xlane.xlu0 %3531
      %v3533 = vsel %vm1732, %v3495, 0.0
      %3534 = vadd.xlane.f32.xlu0 %v3533
      %v3535 = vpop.xlane.xlu0 %3534
      %v3536 = vsel %vm1732, %v3497, 0.0
      %3537 = vadd.xlane.f32.xlu0 %v3536
      %v3538 = vpop.xlane.xlu0 %3537
      %v3539 = vsel %vm1732, %v3499, 0.0
      %3540 = vadd.xlane.f32.xlu0 %v3539
      %v3541 = vpop.xlane.xlu0 %3540
      %v3542 = vsel %vm1732, %v3501, 0.0
      %3543 = vadd.xlane.f32.xlu0 %v3542
      %v3544 = vpop.xlane.xlu0 %3543
      %v3545 = vsel %vm1732, %v3503, 0.0
      %3546 = vadd.xlane.f32.xlu0 %v3545
      %v3547 = vpop.xlane.xlu0 %3546
      %v3548 = vsel %vm1732, %v3505, 0.0
      %3549 = vadd.xlane.f32.xlu0 %v3548
      %v3550 = vpop.xlane.xlu0 %3549
      %v3551 = vsel %vm1732, %v3507, 0.0
      %3552 = vadd.xlane.f32.xlu0 %v3551
      %v3553 = vpop.xlane.xlu0 %3552
      %v3554 = vsel %vm1732, %v3509, 0.0
      %3555 = vadd.xlane.f32.xlu0 %v3554
      %v3556 = vpop.xlane.xlu0 %3555
      %v3557 = vsel %vm1732, %v3511, 0.0
      %3558 = vadd.xlane.f32.xlu0 %v3557
      %v3559 = vpop.xlane.xlu0 %3558
      %v3560 = vrcp.pop %v3514
      %v3561 = vrcp.pop %v3517
      %v3562 = vrcp.pop %v3520
      %v3563 = vrcp.pop %v3523
      %v3564 = vrcp.pop %v3526
      %v3565 = vrcp.pop %v3529
      %v3566 = vrcp.pop %v3532
      %v3567 = vrcp.pop %v3535
      %v3568 = vrcp.pop %v3538
      %v3569 = vrcp.pop %v3541
      %v3570 = vrcp.pop %v3544
      %v3571 = vrcp.pop %v3547
      %v3572 = vrcp.pop %v3550
      %v3573 = vrcp.pop %v3553
      %v3574 = vrcp.pop %v3556
      %v3575 = vrcp.pop %v3559
      %v3576 = vmul.f32 %v3481, %v3560
      %v3577 = vmul.f32 %v3483, %v3561
      %v3578 = vmul.f32 %v3485, %v3562
      %v3579 = vmul.f32 %v3487, %v3563
      %v3580 = vmul.f32 %v3489, %v3564
      %v3581 = vmul.f32 %v3491, %v3565
      %v3582 = vmul.f32 %v3493, %v3566
      %v3583 = vmul.f32 %v3495, %v3567
      %v3584 = vmul.f32 %v3497, %v3568
      %v3585 = vmul.f32 %v3499, %v3569
      %v3586 = vmul.f32 %v3501, %v3570
      %v3587 = vmul.f32 %v3503, %v3571
      %v3588 = vmul.f32 %v3505, %v3572
      %v3589 = vmul.f32 %v3507, %v3573
      %v3590 = vmul.f32 %v3509, %v3574
      %v3591 = vmul.f32 %v3511, %v3575
      %v3592 = vpack.c.bf16 %v3577, %v3576
      %v3593 = vpack.c.bf16 %v3579, %v3578
      %v3594 = vpack.c.bf16 %v3581, %v3580
      %v3595 = vpack.c.bf16 %v3583, %v3582
      %v3596 = vpack.c.bf16 %v3585, %v3584
      %v3597 = vpack.c.bf16 %v3587, %v3586
      %v3598 = vpack.c.bf16 %v3589, %v3588
      %v3599 = vpack.c.bf16 %v3591, %v3590
      %3600 = vrot.lane.b32.xlu0 %v3008, 64
      %v3601 = vpop.permute.xlu0 %3600
      %v3604 = vsel %vm1732, %v3592, 0
      %3606 = vmatprep.subr.bf16.mxu0 0
      %3607 = vmatpush1.bf16.msra.mxu0 %v3601
      %3608 = vmatprep.subr.bf16.mxu0 0
      %3609 = vmatpush1.bf16.msra.mxu0 0
      %3610 = vmatprep.subr.bf16.mxu0 0
      %3611 = vmatpush1.bf16.msra.mxu0 0
      %3612 = vmatprep.subr.bf16.mxu0 0
      %3613 = vmatpush1.bf16.msra.mxu0 0
      %3614 = vmatprep.subr.bf16.mxu0 0
      %3615 = vmatpush1.bf16.msra.mxu0 0
      %3616 = vmatprep.subr.bf16.mxu0 0
      %3617 = vmatpush1.bf16.msra.mxu0 0
      %3618 = vmatprep.subr.bf16.mxu0 0
      %3619 = vmatpush1.bf16.msra.mxu0 0
      %3620 = vmatprep.subr.bf16.mxu0 0
      %3621 = vmatpush1.bf16.msra.mxu0 0
      %3622 = vmatprep.subr.bf16.mxu0 0
      %3623 = vmatpush1.bf16.msra.mxu0 0
      %3624 = vmatprep.subr.bf16.mxu0 0
      %3625 = vmatpush1.bf16.msra.mxu0 0
      %3626 = vmatprep.subr.bf16.mxu0 0
      %3627 = vmatpush1.bf16.msra.mxu0 0
      %3628 = vmatprep.subr.bf16.mxu0 0
      %3629 = vmatpush1.bf16.msra.mxu0 0
      %3630 = vmatprep.subr.bf16.mxu0 0
      %3631 = vmatpush1.bf16.msra.mxu0 0
      %3632 = vmatprep.subr.bf16.mxu0 0
      %3633 = vmatpush1.bf16.msra.mxu0 0
      %3634 = vmatprep.subr.bf16.mxu0 0
      %3635 = vmatpush1.bf16.msra.mxu0 0
      %3636 = vmatprep.subr.bf16.mxu0 0
      %3637 = vmatpush1.bf16.msra.mxu0 0
      %3638 = vmatprep.mubr.bf16.mxu0 0
      %3639 = vmatmul.mubr.bf16.gmra.mrb[0].mxu0 %v3604
      %v3640 = vpop.f32.mrb[0].mxu0
      %v3641 = vadd.f32 0.0, %v3640
      %v3642 = vpop.f32.mrb[0].mxu0
      %v3643 = vpop.f32.mrb[0].mxu0
      %v3644 = vadd.f32 0.0, %v3643
      %v3645 = vpop.f32.mrb[0].mxu0
      %3646 = vdwg.mxu0
      %3647 = vrot.lane.b32.xlu0 %v3009, 64
      %v3648 = vpop.permute.xlu0 %3647
      %v3651 = vsel %vm1732, %v3593, 0
      %3653 = vmatprep.subr.bf16.mxu0 0
      %3654 = vmatpush1.bf16.msra.mxu0 %v3648
      %3655 = vmatprep.subr.bf16.mxu0 0
      %3656 = vmatpush1.bf16.msra.mxu0 0
      %3657 = vmatprep.subr.bf16.mxu0 0
      %3658 = vmatpush1.bf16.msra.mxu0 0
      %3659 = vmatprep.subr.bf16.mxu0 0
      %3660 = vmatpush1.bf16.msra.mxu0 0
      %3661 = vmatprep.subr.bf16.mxu0 0
      %3662 = vmatpush1.bf16.msra.mxu0 0
      %3663 = vmatprep.subr.bf16.mxu0 0
      %3664 = vmatpush1.bf16.msra.mxu0 0
      %3665 = vmatprep.subr.bf16.mxu0 0
      %3666 = vmatpush1.bf16.msra.mxu0 0
      %3667 = vmatprep.subr.bf16.mxu0 0
      %3668 = vmatpush1.bf16.msra.mxu0 0
      %3669 = vmatprep.subr.bf16.mxu0 0
      %3670 = vmatpush1.bf16.msra.mxu0 0
      %3671 = vmatprep.subr.bf16.mxu0 0
      %3672 = vmatpush1.bf16.msra.mxu0 0
      %3673 = vmatprep.subr.bf16.mxu0 0
      %3674 = vmatpush1.bf16.msra.mxu0 0
      %3675 = vmatprep.subr.bf16.mxu0 0
      %3676 = vmatpush1.bf16.msra.mxu0 0
      %3677 = vmatprep.subr.bf16.mxu0 0
      %3678 = vmatpush1.bf16.msra.mxu0 0
      %3679 = vmatprep.subr.bf16.mxu0 0
      %3680 = vmatpush1.bf16.msra.mxu0 0
      %3681 = vmatprep.subr.bf16.mxu0 0
      %3682 = vmatpush1.bf16.msra.mxu0 0
      %3683 = vmatprep.subr.bf16.mxu0 0
      %3684 = vmatpush1.bf16.msra.mxu0 0
      %3685 = vmatprep.mubr.bf16.mxu0 0
      %3686 = vmatmul.mubr.bf16.gmra.mrb[0].mxu0 %v3651
      %v3687 = vpop.f32.mrb[0].mxu0
      %v3688 = vadd.f32 0.0, %v3687
      %v3689 = vpop.f32.mrb[0].mxu0
      %v3690 = vpop.f32.mrb[0].mxu0
      %v3691 = vadd.f32 0.0, %v3690
      %v3692 = vpop.f32.mrb[0].mxu0
      %3693 = vdwg.mxu0
      %3694 = vrot.lane.b32.xlu0 %v3010, 64
      %v3695 = vpop.permute.xlu0 %3694
      %v3698 = vsel %vm1732, %v3594, 0
      %3700 = vmatprep.subr.bf16.mxu0 0
      %3701 = vmatpush1.bf16.msra.mxu0 %v3695
      %3702 = vmatprep.subr.bf16.mxu0 0
      %3703 = vmatpush1.bf16.msra.mxu0 0
      %3704 = vmatprep.subr.bf16.mxu0 0
      %3705 = vmatpush1.bf16.msra.mxu0 0
      %3706 = vmatprep.subr.bf16.mxu0 0
      %3707 = vmatpush1.bf16.msra.mxu0 0
      %3708 = vmatprep.subr.bf16.mxu0 0
      %3709 = vmatpush1.bf16.msra.mxu0 0
      %3710 = vmatprep.subr.bf16.mxu0 0
      %3711 = vmatpush1.bf16.msra.mxu0 0
      %3712 = vmatprep.subr.bf16.mxu0 0
      %3713 = vmatpush1.bf16.msra.mxu0 0
      %3714 = vmatprep.subr.bf16.mxu0 0
      %3715 = vmatpush1.bf16.msra.mxu0 0
      %3716 = vmatprep.subr.bf16.mxu0 0
      %3717 = vmatpush1.bf16.msra.mxu0 0
      %3718 = vmatprep.subr.bf16.mxu0 0
      %3719 = vmatpush1.bf16.msra.mxu0 0
      %3720 = vmatprep.subr.bf16.mxu0 0
      %3721 = vmatpush1.bf16.msra.mxu0 0
      %3722 = vmatprep.subr.bf16.mxu0 0
      %3723 = vmatpush1.bf16.msra.mxu0 0
      %3724 = vmatprep.subr.bf16.mxu0 0
      %3725 = vmatpush1.bf16.msra.mxu0 0
      %3726 = vmatprep.subr.bf16.mxu0 0
      %3727 = vmatpush1.bf16.msra.mxu0 0
      %3728 = vmatprep.subr.bf16.mxu0 0
      %3729 = vmatpush1.bf16.msra.mxu0 0
      %3730 = vmatprep.subr.bf16.mxu0 0
      %3731 = vmatpush1.bf16.msra.mxu0 0
      %3732 = vmatprep.mubr.bf16.mxu0 0
      %3733 = vmatmul.mubr.bf16.gmra.mrb[0].mxu0 %v3698
      %v3734 = vpop.f32.mrb[0].mxu0
      %v3735 = vadd.f32 0.0, %v3734
      %v3736 = vpop.f32.mrb[0].mxu0
      %v3737 = vpop.f32.mrb[0].mxu0
      %v3738 = vadd.f32 0.0, %v3737
      %v3739 = vpop.f32.mrb[0].mxu0
      %3740 = vdwg.mxu0
      %3741 = vrot.lane.b32.xlu0 %v3011, 64
      %v3742 = vpop.permute.xlu0 %3741
      %v3745 = vsel %vm1732, %v3595, 0
      %3747 = vmatprep.subr.bf16.mxu0 0
      %3748 = vmatpush1.bf16.msra.mxu0 %v3742
      %3749 = vmatprep.subr.bf16.mxu0 0
      %3750 = vmatpush1.bf16.msra.mxu0 0
      %3751 = vmatprep.subr.bf16.mxu0 0
      %3752 = vmatpush1.bf16.msra.mxu0 0
      %3753 = vmatprep.subr.bf16.mxu0 0
      %3754 = vmatpush1.bf16.msra.mxu0 0
      %3755 = vmatprep.subr.bf16.mxu0 0
      %3756 = vmatpush1.bf16.msra.mxu0 0
      %3757 = vmatprep.subr.bf16.mxu0 0
      %3758 = vmatpush1.bf16.msra.mxu0 0
      %3759 = vmatprep.subr.bf16.mxu0 0
      %3760 = vmatpush1.bf16.msra.mxu0 0
      %3761 = vmatprep.subr.bf16.mxu0 0
      %3762 = vmatpush1.bf16.msra.mxu0 0
      %3763 = vmatprep.subr.bf16.mxu0 0
      %3764 = vmatpush1.bf16.msra.mxu0 0
      %3765 = vmatprep.subr.bf16.mxu0 0
      %3766 = vmatpush1.bf16.msra.mxu0 0
      %3767 = vmatprep.subr.bf16.mxu0 0
      %3768 = vmatpush1.bf16.msra.mxu0 0
      %3769 = vmatprep.subr.bf16.mxu0 0
      %3770 = vmatpush1.bf16.msra.mxu0 0
      %3771 = vmatprep.subr.bf16.mxu0 0
      %3772 = vmatpush1.bf16.msra.mxu0 0
      %3773 = vmatprep.subr.bf16.mxu0 0
      %3774 = vmatpush1.bf16.msra.mxu0 0
      %3775 = vmatprep.subr.bf16.mxu0 0
      %3776 = vmatpush1.bf16.msra.mxu0 0
      %3777 = vmatprep.subr.bf16.mxu0 0
      %3778 = vmatpush1.bf16.msra.mxu0 0
      %3779 = vmatprep.mubr.bf16.mxu0 0
      %3780 = vmatmul.mubr.bf16.gmra.mrb[0].mxu0 %v3745
      %v3781 = vpop.f32.mrb[0].mxu0
      %v3782 = vadd.f32 0.0, %v3781
      %v3783 = vpop.f32.mrb[0].mxu0
      %v3784 = vpop.f32.mrb[0].mxu0
      %v3785 = vadd.f32 0.0, %v3784
      %v3786 = vpop.f32.mrb[0].mxu0
      %3787 = vdwg.mxu0
      %3788 = vrot.lane.b32.xlu0 %v3012, 64
      %v3789 = vpop.permute.xlu0 %3788
      %v3792 = vsel %vm1732, %v3596, 0
      %3794 = vmatprep.subr.bf16.mxu0 0
      %3795 = vmatpush1.bf16.msra.mxu0 %v3789
      %3796 = vmatprep.subr.bf16.mxu0 0
      %3797 = vmatpush1.bf16.msra.mxu0 0
      %3798 = vmatprep.subr.bf16.mxu0 0
      %3799 = vmatpush1.bf16.msra.mxu0 0
      %3800 = vmatprep.subr.bf16.mxu0 0
      %3801 = vmatpush1.bf16.msra.mxu0 0
      %3802 = vmatprep.subr.bf16.mxu0 0
      %3803 = vmatpush1.bf16.msra.mxu0 0
      %3804 = vmatprep.subr.bf16.mxu0 0
      %3805 = vmatpush1.bf16.msra.mxu0 0
      %3806 = vmatprep.subr.bf16.mxu0 0
      %3807 = vmatpush1.bf16.msra.mxu0 0
      %3808 = vmatprep.subr.bf16.mxu0 0
      %3809 = vmatpush1.bf16.msra.mxu0 0
      %3810 = vmatprep.subr.bf16.mxu0 0
      %3811 = vmatpush1.bf16.msra.mxu0 0
      %3812 = vmatprep.subr.bf16.mxu0 0
      %3813 = vmatpush1.bf16.msra.mxu0 0
      %3814 = vmatprep.subr.bf16.mxu0 0
      %3815 = vmatpush1.bf16.msra.mxu0 0
      %3816 = vmatprep.subr.bf16.mxu0 0
      %3817 = vmatpush1.bf16.msra.mxu0 0
      %3818 = vmatprep.subr.bf16.mxu0 0
      %3819 = vmatpush1.bf16.msra.mxu0 0
      %3820 = vmatprep.subr.bf16.mxu0 0
      %3821 = vmatpush1.bf16.msra.mxu0 0
      %3822 = vmatprep.subr.bf16.mxu0 0
      %3823 = vmatpush1.bf16.msra.mxu0 0
      %3824 = vmatprep.subr.bf16.mxu0 0
      %3825 = vmatpush1.bf16.msra.mxu0 0
      %3826 = vmatprep.mubr.bf16.mxu0 0
      %3827 = vmatmul.mubr.bf16.gmra.mrb[0].mxu0 %v3792
      %v3828 = vpop.f32.mrb[0].mxu0
      %v3829 = vadd.f32 0.0, %v3828
      %v3830 = vpop.f32.mrb[0].mxu0
      %v3831 = vpop.f32.mrb[0].mxu0
      %v3832 = vadd.f32 0.0, %v3831
      %v3833 = vpop.f32.mrb[0].mxu0
      %3834 = vdwg.mxu0
      %3835 = vrot.lane.b32.xlu0 %v3013, 64
      %v3836 = vpop.permute.xlu0 %3835
      %v3839 = vsel %vm1732, %v3597, 0
      %3841 = vmatprep.subr.bf16.mxu0 0
      %3842 = vmatpush1.bf16.msra.mxu0 %v3836
      %3843 = vmatprep.subr.bf16.mxu0 0
      %3844 = vmatpush1.bf16.msra.mxu0 0
      %3845 = vmatprep.subr.bf16.mxu0 0
      %3846 = vmatpush1.bf16.msra.mxu0 0
      %3847 = vmatprep.subr.bf16.mxu0 0
      %3848 = vmatpush1.bf16.msra.mxu0 0
      %3849 = vmatprep.subr.bf16.mxu0 0
      %3850 = vmatpush1.bf16.msra.mxu0 0
      %3851 = vmatprep.subr.bf16.mxu0 0
      %3852 = vmatpush1.bf16.msra.mxu0 0
      %3853 = vmatprep.subr.bf16.mxu0 0
      %3854 = vmatpush1.bf16.msra.mxu0 0
      %3855 = vmatprep.subr.bf16.mxu0 0
      %3856 = vmatpush1.bf16.msra.mxu0 0
      %3857 = vmatprep.subr.bf16.mxu0 0
      %3858 = vmatpush1.bf16.msra.mxu0 0
      %3859 = vmatprep.subr.bf16.mxu0 0
      %3860 = vmatpush1.bf16.msra.mxu0 0
      %3861 = vmatprep.subr.bf16.mxu0 0
      %3862 = vmatpush1.bf16.msra.mxu0 0
      %3863 = vmatprep.subr.bf16.mxu0 0
      %3864 = vmatpush1.bf16.msra.mxu0 0
      %3865 = vmatprep.subr.bf16.mxu0 0
      %3866 = vmatpush1.bf16.msra.mxu0 0
      %3867 = vmatprep.subr.bf16.mxu0 0
      %3868 = vmatpush1.bf16.msra.mxu0 0
      %3869 = vmatprep.subr.bf16.mxu0 0
      %3870 = vmatpush1.bf16.msra.mxu0 0
      %3871 = vmatprep.subr.bf16.mxu0 0
      %3872 = vmatpush1.bf16.msra.mxu0 0
      %3873 = vmatprep.mubr.bf16.mxu0 0
      %3874 = vmatmul.mubr.bf16.gmra.mrb[0].mxu0 %v3839
      %v3875 = vpop.f32.mrb[0].mxu0
      %v3876 = vadd.f32 0.0, %v3875
      %v3877 = vpop.f32.mrb[0].mxu0
      %v3878 = vpop.f32.mrb[0].mxu0
      %v3879 = vadd.f32 0.0, %v3878
      %v3880 = vpop.f32.mrb[0].mxu0
      %3881 = vdwg.mxu0
      %3882 = vrot.lane.b32.xlu0 %v3014, 64
      %v3883 = vpop.permute.xlu0 %3882
      %v3886 = vsel %vm1732, %v3598, 0
      %3888 = vmatprep.subr.bf16.mxu0 0
      %3889 = vmatpush1.bf16.msra.mxu0 %v3883
      %3890 = vmatprep.subr.bf16.mxu0 0
      %3891 = vmatpush1.bf16.msra.mxu0 0
      %3892 = vmatprep.subr.bf16.mxu0 0
      %3893 = vmatpush1.bf16.msra.mxu0 0
      %3894 = vmatprep.subr.bf16.mxu0 0
      %3895 = vmatpush1.bf16.msra.mxu0 0
      %3896 = vmatprep.subr.bf16.mxu0 0
      %3897 = vmatpush1.bf16.msra.mxu0 0
      %3898 = vmatprep.subr.bf16.mxu0 0
      %3899 = vmatpush1.bf16.msra.mxu0 0
      %3900 = vmatprep.subr.bf16.mxu0 0
      %3901 = vmatpush1.bf16.msra.mxu0 0
      %3902 = vmatprep.subr.bf16.mxu0 0
      %3903 = vmatpush1.bf16.msra.mxu0 0
      %3904 = vmatprep.subr.bf16.mxu0 0
      %3905 = vmatpush1.bf16.msra.mxu0 0
      %3906 = vmatprep.subr.bf16.mxu0 0
      %3907 = vmatpush1.bf16.msra.mxu0 0
      %3908 = vmatprep.subr.bf16.mxu0 0
      %3909 = vmatpush1.bf16.msra.mxu0 0
      %3910 = vmatprep.subr.bf16.mxu0 0
      %3911 = vmatpush1.bf16.msra.mxu0 0
      %3912 = vmatprep.subr.bf16.mxu0 0
      %3913 = vmatpush1.bf16.msra.mxu0 0
      %3914 = vmatprep.subr.bf16.mxu0 0
      %3915 = vmatpush1.bf16.msra.mxu0 0
      %3916 = vmatprep.subr.bf16.mxu0 0
      %3917 = vmatpush1.bf16.msra.mxu0 0
      %3918 = vmatprep.subr.bf16.mxu0 0
      %3919 = vmatpush1.bf16.msra.mxu0 0
      %3920 = vmatprep.mubr.bf16.mxu0 0
      %3921 = vmatmul.mubr.bf16.gmra.mrb[0].mxu0 %v3886
      %v3922 = vpop.f32.mrb[0].mxu0
      %v3923 = vadd.f32 0.0, %v3922
      %v3924 = vpop.f32.mrb[0].mxu0
      %v3925 = vpop.f32.mrb[0].mxu0
      %v3926 = vadd.f32 0.0, %v3925
      %v3927 = vpop.f32.mrb[0].mxu0
      %3928 = vdwg.mxu0
      %3929 = vrot.lane.b32.xlu0 %v3015, 64
      %v3930 = vpop.permute.xlu0 %3929
      %v3933 = vsel %vm1732, %v3599, 0
      %3935 = vmatprep.subr.bf16.mxu0 0
      %3936 = vmatpush1.bf16.msra.mxu0 %v3930
      %3937 = vmatprep.subr.bf16.mxu0 0
      %3938 = vmatpush1.bf16.msra.mxu0 0
      %3939 = vmatprep.subr.bf16.mxu0 0
      %3940 = vmatpush1.bf16.msra.mxu0 0
      %3941 = vmatprep.subr.bf16.mxu0 0
      %3942 = vmatpush1.bf16.msra.mxu0 0
      %3943 = vmatprep.subr.bf16.mxu0 0
      %3944 = vmatpush1.bf16.msra.mxu0 0
      %3945 = vmatprep.subr.bf16.mxu0 0
      %3946 = vmatpush1.bf16.msra.mxu0 0
      %3947 = vmatprep.subr.bf16.mxu0 0
      %3948 = vmatpush1.bf16.msra.mxu0 0
      %3949 = vmatprep.subr.bf16.mxu0 0
      %3950 = vmatpush1.bf16.msra.mxu0 0
      %3951 = vmatprep.subr.bf16.mxu0 0
      %3952 = vmatpush1.bf16.msra.mxu0 0
      %3953 = vmatprep.subr.bf16.mxu0 0
      %3954 = vmatpush1.bf16.msra.mxu0 0
      %3955 = vmatprep.subr.bf16.mxu0 0
      %3956 = vmatpush1.bf16.msra.mxu0 0
      %3957 = vmatprep.subr.bf16.mxu0 0
      %3958 = vmatpush1.bf16.msra.mxu0 0
      %3959 = vmatprep.subr.bf16.mxu0 0
      %3960 = vmatpush1.bf16.msra.mxu0 0
      %3961 = vmatprep.subr.bf16.mxu0 0
      %3962 = vmatpush1.bf16.msra.mxu0 0
      %3963 = vmatprep.subr.bf16.mxu0 0
      %3964 = vmatpush1.bf16.msra.mxu0 0
      %3965 = vmatprep.subr.bf16.mxu0 0
      %3966 = vmatpush1.bf16.msra.mxu0 0
      %3967 = vmatprep.mubr.bf16.mxu0 0
      %3968 = vmatmul.mubr.bf16.gmra.mrb[0].mxu0 %v3933
      %v3969 = vpop.f32.mrb[0].mxu0
      %v3970 = vadd.f32 0.0, %v3969
      %v3971 = vpop.f32.mrb[0].mxu0
      %v3972 = vpop.f32.mrb[0].mxu0
      %v3973 = vadd.f32 0.0, %v3972
      %v3974 = vpop.f32.mrb[0].mxu0
      %3975 = vdwg.mxu0
      %v3976 = vpack.c.bf16 %v3644, %v3641
      %v3977 = vpack.c.bf16 %v3691, %v3688
      %v3979 = vsel %vm1334, %v3976, 0
      %v3982 = vsel %vm1334, %v3977, 0
      %v3985 = vsel %vm2301, %v977, 0
      %3987 = vmatprep.subr.bf16.mxu0 0
      %3988 = vmatpush1.bf16.msra.mxu0 %v3985
      %3989 = vmatprep.subr.bf16.mxu0 0
      %3990 = vmatpush1.bf16.msra.mxu0 0
      %3991 = vmatprep.subr.bf16.mxu0 0
      %3992 = vmatpush1.bf16.msra.mxu0 0
      %3993 = vmatprep.subr.bf16.mxu0 0
      %3994 = vmatpush1.bf16.msra.mxu0 0
      %3995 = vmatprep.subr.bf16.mxu0 0
      %3996 = vmatpush1.bf16.msra.mxu0 0
      %3997 = vmatprep.subr.bf16.mxu0 0
      %3998 = vmatpush1.bf16.msra.mxu0 0
      %3999 = vmatprep.subr.bf16.mxu0 0
      %4000 = vmatpush1.bf16.msra.mxu0 0
      %4001 = vmatprep.subr.bf16.mxu0 0
      %4002 = vmatpush1.bf16.msra.mxu0 0
      %4003 = vmatprep.subr.bf16.mxu0 0
      %4004 = vmatpush1.bf16.msra.mxu0 0
      %4005 = vmatprep.subr.bf16.mxu0 0
      %4006 = vmatpush1.bf16.msra.mxu0 0
      %4007 = vmatprep.subr.bf16.mxu0 0
      %4008 = vmatpush1.bf16.msra.mxu0 0
      %4009 = vmatprep.subr.bf16.mxu0 0
      %4010 = vmatpush1.bf16.msra.mxu0 0
      %4011 = vmatprep.subr.bf16.mxu0 0
      %4012 = vmatpush1.bf16.msra.mxu0 0
      %4013 = vmatprep.subr.bf16.mxu0 0
      %4014 = vmatpush1.bf16.msra.mxu0 0
      %4015 = vmatprep.subr.bf16.mxu0 0
      %4016 = vmatpush1.bf16.msra.mxu0 0
      %4017 = vmatprep.subr.bf16.mxu0 0
      %4018 = vmatpush1.bf16.msra.mxu0 0
      %4019 = vmatprep.mubr.bf16.mxu0 0
      %4020 = vmatmul.mubr.bf16.gmra.mrb[0].mxu0 %v3979
      %v4021 = vpop.f32.mrb[0].mxu0
      %v4022 = vadd.f32 0.0, %v4021
      %v4023 = vpop.f32.mrb[0].mxu0
      %v4024 = vpop.f32.mrb[0].mxu0
      %v4025 = vadd.f32 0.0, %v4024
      %v4026 = vpop.f32.mrb[0].mxu0
      %4027 = vmatprep.mubr.bf16.mxu0 0
      %4028 = vmatmul.mubr.bf16.gmra.mrb[0].mxu0 %v3982
      %v4029 = vpop.f32.mrb[0].mxu0
      %v4030 = vadd.f32 0.0, %v4029
      %v4031 = vpop.f32.mrb[0].mxu0
      %v4032 = vpop.f32.mrb[0].mxu0
      %v4033 = vadd.f32 0.0, %v4032
      %v4034 = vpop.f32.mrb[0].mxu0
      %4035 = vdwg.mxu0
      %v4037 = vlaneseq
      %v4038 = vshrl.u32 %v4037, 7
      %v4039 = vsub.s32 0, %v4038
      %v4040 = vrot.slane %v982, %v4039
      %v4042 = vadd.f32 %v4040, %v4022
      %v4043 = vadd.f32 %v4040, %v4025
      %v4044 = vadd.f32 %v4040, %v4030
      %v4045 = vadd.f32 %v4040, %v4033
      %v4046 = vpack.c.bf16 %v3738, %v3735
      %v4047 = vpack.c.bf16 %v3785, %v3782
      %v4049 = vsel %vm1334, %v4046, 0
      %v4052 = vsel %vm1334, %v4047, 0
      %v4055 = vsel %vm2301, %v978, 0
      %4057 = vmatprep.subr.bf16.mxu0 0
      %4058 = vmatpush1.bf16.msra.mxu0 %v4055
      %4059 = vmatprep.subr.bf16.mxu0 0
      %4060 = vmatpush1.bf16.msra.mxu0 0
      %4061 = vmatprep.subr.bf16.mxu0 0
      %4062 = vmatpush1.bf16.msra.mxu0 0
      %4063 = vmatprep.subr.bf16.mxu0 0
      %4064 = vmatpush1.bf16.msra.mxu0 0
      %4065 = vmatprep.subr.bf16.mxu0 0
      %4066 = vmatpush1.bf16.msra.mxu0 0
      %4067 = vmatprep.subr.bf16.mxu0 0
      %4068 = vmatpush1.bf16.msra.mxu0 0
      %4069 = vmatprep.subr.bf16.mxu0 0
      %4070 = vmatpush1.bf16.msra.mxu0 0
      %4071 = vmatprep.subr.bf16.mxu0 0
      %4072 = vmatpush1.bf16.msra.mxu0 0
      %4073 = vmatprep.subr.bf16.mxu0 0
      %4074 = vmatpush1.bf16.msra.mxu0 0
      %4075 = vmatprep.subr.bf16.mxu0 0
      %4076 = vmatpush1.bf16.msra.mxu0 0
      %4077 = vmatprep.subr.bf16.mxu0 0
      %4078 = vmatpush1.bf16.msra.mxu0 0
      %4079 = vmatprep.subr.bf16.mxu0 0
      %4080 = vmatpush1.bf16.msra.mxu0 0
      %4081 = vmatprep.subr.bf16.mxu0 0
      %4082 = vmatpush1.bf16.msra.mxu0 0
      %4083 = vmatprep.subr.bf16.mxu0 0
      %4084 = vmatpush1.bf16.msra.mxu0 0
      %4085 = vmatprep.subr.bf16.mxu0 0
      %4086 = vmatpush1.bf16.msra.mxu0 0
      %4087 = vmatprep.subr.bf16.mxu0 0
      %4088 = vmatpush1.bf16.msra.mxu0 0
      %4089 = vmatprep.mubr.bf16.mxu0 0
      %4090 = vmatmul.mubr.bf16.gmra.mrb[0].mxu0 %v4049
      %v4091 = vpop.f32.mrb[0].mxu0
      %v4092 = vadd.f32 0.0, %v4091
      %v4093 = vpop.f32.mrb[0].mxu0
      %v4094 = vpop.f32.mrb[0].mxu0
      %v4095 = vadd.f32 0.0, %v4094
      %v4096 = vpop.f32.mrb[0].mxu0
      %4097 = vmatprep.mubr.bf16.mxu0 0
      %4098 = vmatmul.mubr.bf16.gmra.mrb[0].mxu0 %v4052
      %v4099 = vpop.f32.mrb[0].mxu0
      %v4100 = vadd.f32 0.0, %v4099
      %v4101 = vpop.f32.mrb[0].mxu0
      %v4102 = vpop.f32.mrb[0].mxu0
      %v4103 = vadd.f32 0.0, %v4102
      %v4104 = vpop.f32.mrb[0].mxu0
      %4105 = vdwg.mxu0
      %v4106 = vadd.f32 %v4042, %v4092
      %v4107 = vadd.f32 %v4043, %v4095
      %v4108 = vadd.f32 %v4044, %v4100
      %v4109 = vadd.f32 %v4045, %v4103
      %v4110 = vpack.c.bf16 %v3832, %v3829
      %v4111 = vpack.c.bf16 %v3879, %v3876
      %v4113 = vsel %vm1334, %v4110, 0
      %v4116 = vsel %vm1334, %v4111, 0
      %v4119 = vsel %vm2301, %v979, 0
      %4121 = vmatprep.subr.bf16.mxu0 0
      %4122 = vmatpush1.bf16.msra.mxu0 %v4119
      %4123 = vmatprep.subr.bf16.mxu0 0
      %4124 = vmatpush1.bf16.msra.mxu0 0
      %4125 = vmatprep.subr.bf16.mxu0 0
      %4126 = vmatpush1.bf16.msra.mxu0 0
      %4127 = vmatprep.subr.bf16.mxu0 0
      %4128 = vmatpush1.bf16.msra.mxu0 0
      %4129 = vmatprep.subr.bf16.mxu0 0
      %4130 = vmatpush1.bf16.msra.mxu0 0
      %4131 = vmatprep.subr.bf16.mxu0 0
      %4132 = vmatpush1.bf16.msra.mxu0 0
      %4133 = vmatprep.subr.bf16.mxu0 0
      %4134 = vmatpush1.bf16.msra.mxu0 0
      %4135 = vmatprep.subr.bf16.mxu0 0
      %4136 = vmatpush1.bf16.msra.mxu0 0
      %4137 = vmatprep.subr.bf16.mxu0 0
      %4138 = vmatpush1.bf16.msra.mxu0 0
      %4139 = vmatprep.subr.bf16.mxu0 0
      %4140 = vmatpush1.bf16.msra.mxu0 0
      %4141 = vmatprep.subr.bf16.mxu0 0
      %4142 = vmatpush1.bf16.msra.mxu0 0
      %4143 = vmatprep.subr.bf16.mxu0 0
      %4144 = vmatpush1.bf16.msra.mxu0 0
      %4145 = vmatprep.subr.bf16.mxu0 0
      %4146 = vmatpush1.bf16.msra.mxu0 0
      %4147 = vmatprep.subr.bf16.mxu0 0
      %4148 = vmatpush1.bf16.msra.mxu0 0
      %4149 = vmatprep.subr.bf16.mxu0 0
      %4150 = vmatpush1.bf16.msra.mxu0 0
      %4151 = vmatprep.subr.bf16.mxu0 0
      %4152 = vmatpush1.bf16.msra.mxu0 0
      %4153 = vmatprep.mubr.bf16.mxu0 0
      %4154 = vmatmul.mubr.bf16.gmra.mrb[0].mxu0 %v4113
      %v4155 = vpop.f32.mrb[0].mxu0
      %v4156 = vadd.f32 0.0, %v4155
      %v4157 = vpop.f32.mrb[0].mxu0
      %v4158 = vpop.f32.mrb[0].mxu0
      %v4159 = vadd.f32 0.0, %v4158
      %v4160 = vpop.f32.mrb[0].mxu0
      %4161 = vmatprep.mubr.bf16.mxu0 0
      %4162 = vmatmul.mubr.bf16.gmra.mrb[0].mxu0 %v4116
      %v4163 = vpop.f32.mrb[0].mxu0
      %v4164 = vadd.f32 0.0, %v4163
      %v4165 = vpop.f32.mrb[0].mxu0
      %v4166 = vpop.f32.mrb[0].mxu0
      %v4167 = vadd.f32 0.0, %v4166
      %v4168 = vpop.f32.mrb[0].mxu0
      %4169 = vdwg.mxu0
      %v4170 = vadd.f32 %v4106, %v4156
      %v4171 = vadd.f32 %v4107, %v4159
      %v4172 = vadd.f32 %v4108, %v4164
      %v4173 = vadd.f32 %v4109, %v4167
      %v4174 = vpack.c.bf16 %v3926, %v3923
      %v4175 = vpack.c.bf16 %v3973, %v3970
      %v4177 = vsel %vm1334, %v4174, 0
      %v4180 = vsel %vm1334, %v4175, 0
      %v4183 = vsel %vm2301, %v980, 0
      %4185 = vmatprep.subr.bf16.mxu0 0
      %4186 = vmatpush1.bf16.msra.mxu0 %v4183
      %4187 = vmatprep.subr.bf16.mxu0 0
      %4188 = vmatpush1.bf16.msra.mxu0 0
      %4189 = vmatprep.subr.bf16.mxu0 0
      %4190 = vmatpush1.bf16.msra.mxu0 0
      %4191 = vmatprep.subr.bf16.mxu0 0
      %4192 = vmatpush1.bf16.msra.mxu0 0
      %4193 = vmatprep.subr.bf16.mxu0 0
      %4194 = vmatpush1.bf16.msra.mxu0 0
      %4195 = vmatprep.subr.bf16.mxu0 0
      %4196 = vmatpush1.bf16.msra.mxu0 0
      %4197 = vmatprep.subr.bf16.mxu0 0
      %4198 = vmatpush1.bf16.msra.mxu0 0
      %4199 = vmatprep.subr.bf16.mxu0 0
      %4200 = vmatpush1.bf16.msra.mxu0 0
      %4201 = vmatprep.subr.bf16.mxu0 0
      %4202 = vmatpush1.bf16.msra.mxu0 0
      %4203 = vmatprep.subr.bf16.mxu0 0
      %4204 = vmatpush1.bf16.msra.mxu0 0
      %4205 = vmatprep.subr.bf16.mxu0 0
      %4206 = vmatpush1.bf16.msra.mxu0 0
      %4207 = vmatprep.subr.bf16.mxu0 0
      %4208 = vmatpush1.bf16.msra.mxu0 0
      %4209 = vmatprep.subr.bf16.mxu0 0
      %4210 = vmatpush1.bf16.msra.mxu0 0
      %4211 = vmatprep.subr.bf16.mxu0 0
      %4212 = vmatpush1.bf16.msra.mxu0 0
      %4213 = vmatprep.subr.bf16.mxu0 0
      %4214 = vmatpush1.bf16.msra.mxu0 0
      %4215 = vmatprep.subr.bf16.mxu0 0
      %4216 = vmatpush1.bf16.msra.mxu0 0
      %4217 = vmatprep.mubr.bf16.mxu0 0
      %4218 = vmatmul.mubr.bf16.gmra.mrb[0].mxu0 %v4177
      %v4219 = vpop.f32.mrb[0].mxu0
      %v4220 = vadd.f32 0.0, %v4219
      %v4221 = vpop.f32.mrb[0].mxu0
      %v4222 = vpop.f32.mrb[0].mxu0
      %v4223 = vadd.f32 0.0, %v4222
      %v4224 = vpop.f32.mrb[0].mxu0
      %4225 = vmatprep.mubr.bf16.mxu0 0
      %4226 = vmatmul.mubr.bf16.gmra.mrb[0].mxu0 %v4180
      %v4227 = vpop.f32.mrb[0].mxu0
      %v4228 = vadd.f32 0.0, %v4227
      %v4229 = vpop.f32.mrb[0].mxu0
      %v4230 = vpop.f32.mrb[0].mxu0
      %v4231 = vadd.f32 0.0, %v4230
      %v4232 = vpop.f32.mrb[0].mxu0
      %4233 = vdwg.mxu0
      %v4234 = vadd.f32 %v4170, %v4220
      %v4235 = vadd.f32 %v4171, %v4223
      %v4236 = vadd.f32 %v4172, %v4228
      %v4237 = vadd.f32 %v4173, %v4231
      %v4238 = vadd.f32 %v2889, %v4234
      %v4239 = vadd.f32 %v2890, %v4235
      %v4240 = vadd.f32 %v2891, %v4236
      %v4241 = vadd.f32 %v2892, %v4237
      %v4242 = vsel %vm1227, %v4238, 0.0
      %4243 = vadd.xlane.f32.xlu0 %v4242
      %v4244 = vpop.xlane.xlu0 %4243
      %v4245 = vsel %vm1227, %v4239, 0.0
      %4246 = vadd.xlane.f32.xlu0 %v4245
      %v4247 = vpop.xlane.xlu0 %4246
      %v4248 = vsel %vm1227, %v4240, 0.0
      %4249 = vadd.xlane.f32.xlu0 %v4248
      %v4250 = vpop.xlane.xlu0 %4249
      %v4251 = vsel %vm1227, %v4241, 0.0
      %4252 = vadd.xlane.f32.xlu0 %v4251
      %v4253 = vpop.xlane.xlu0 %4252
      %v4254 = vmul.f32 %v4244, %v2572
      %v4255 = vmul.f32 %v4247, %v2572
      %v4256 = vmul.f32 %v4250, %v2572
      %v4257 = vmul.f32 %v4253, %v2572
      %v4258 = vsub.f32 %v4238, %v4254
      %v4259 = vsub.f32 %v4239, %v4255
      %v4260 = vsub.f32 %v4240, %v4256
      %v4261 = vsub.f32 %v4241, %v4257
      %v4262 = vmul.f32 %v4258, %v4258
      %v4263 = vmul.f32 %v4259, %v4259
      %v4264 = vmul.f32 %v4260, %v4260
      %v4265 = vmul.f32 %v4261, %v4261
      %v4266 = vsel %vm1227, %v4262, 0.0
      %4267 = vadd.xlane.f32.xlu0 %v4266
      %v4268 = vpop.xlane.xlu0 %4267
      %v4269 = vsel %vm1227, %v4263, 0.0
      %4270 = vadd.xlane.f32.xlu0 %v4269
      %v4271 = vpop.xlane.xlu0 %4270
      %v4272 = vsel %vm1227, %v4264, 0.0
      %4273 = vadd.xlane.f32.xlu0 %v4272
      %v4274 = vpop.xlane.xlu0 %4273
      %v4275 = vsel %vm1227, %v4265, 0.0
      %4276 = vadd.xlane.f32.xlu0 %v4275
      %v4277 = vpop.xlane.xlu0 %4276
      %v4278 = vmul.f32 %v4268, %v2572
      %v4279 = vmul.f32 %v4271, %v2572
      %v4280 = vmul.f32 %v4274, %v2572
      %v4281 = vmul.f32 %v4277, %v2572
      %v4282 = vadd.f32 %v4278, 1e-05
      %v4283 = vadd.f32 %v4279, 1e-05
      %v4284 = vadd.f32 %v4280, 1e-05
      %v4285 = vadd.f32 %v4281, 1e-05
      %v4286 = vrsqrt.pop %v4282
      %v4287 = vrsqrt.pop %v4283
      %v4288 = vrsqrt.pop %v4284
      %v4289 = vrsqrt.pop %v4285
      %v4290 = vmul.f32 %v4258, %v4286
      %v4291 = vmul.f32 %v4259, %v4287
      %v4292 = vmul.f32 %v4260, %v4288
      %v4293 = vmul.f32 %v4261, %v4289
      %v4295 = vlaneseq
      %v4296 = vshrl.u32 %v4295, 7
      %v4297 = vsub.s32 0, %v4296
      %v4298 = vrot.slane %v1028, %v4297
      %v4300 = vmul.f32 %v4290, %v4298
      %v4301 = vmul.f32 %v4291, %v4298
      %v4302 = vmul.f32 %v4292, %v4298
      %v4303 = vmul.f32 %v4293, %v4298
      %v4305 = vlaneseq
      %v4306 = vshrl.u32 %v4305, 7
      %v4307 = vsub.s32 0, %v4306
      %v4308 = vrot.slane %v1030, %v4307
      %v4310 = vadd.f32 %v4300, %v4308
      %v4311 = vadd.f32 %v4301, %v4308
      %v4312 = vadd.f32 %v4302, %v4308
      %v4313 = vadd.f32 %v4303, %v4308
      %v4314 = vpack.c.bf16 %v4311, %v4310
      %v4315 = vpack.c.bf16 %v4313, %v4312
      %v4317 = vlaneseq
      %v4318 = vshrl.u32 %v4317, 7
      %v4319 = vsub.s32 0, %v4318
      %v4320 = vrot.slane %v992, %v4319
      %v4326 = vunpack.c.l.b16 %v987
      %v4327 = vunpack.c.l.b16 %v988
      %v4328 = vunpack.c.l.b16 %v989
      %v4329 = vunpack.c.l.b16 %v990
      %v4330 = vpack.c.b16 %v4327, %v4326
      %v4331 = vpack.c.b16 %v4329, %v4328
      %v4335 = vsel %vm1227, %v4314, 0
      %v4338 = vsel %vm1227, %v4315, 0
      %4340 = vmatprep.subr.bf16.mxu0 0
      %4341 = vmatpush1.bf16.msra.mxu0 %v4330
      %4342 = vmatprep.subr.bf16.mxu0 0
      %4343 = vmatpush1.bf16.msra.mxu0 %v4331
      %4344 = vmatprep.subr.bf16.mxu0 0
      %4345 = vmatpush1.bf16.msra.mxu0 0
      %4346 = vmatprep.subr.bf16.mxu0 0
      %4347 = vmatpush1.bf16.msra.mxu0 0
      %4348 = vmatprep.subr.bf16.mxu0 0
      %4349 = vmatpush1.bf16.msra.mxu0 0
      %4350 = vmatprep.subr.bf16.mxu0 0
      %4351 = vmatpush1.bf16.msra.mxu0 0
      %4352 = vmatprep.subr.bf16.mxu0 0
      %4353 = vmatpush1.bf16.msra.mxu0 0
      %4354 = vmatprep.subr.bf16.mxu0 0
      %4355 = vmatpush1.bf16.msra.mxu0 0
      %4356 = vmatprep.subr.bf16.mxu0 0
      %4357 = vmatpush1.bf16.msra.mxu0 0
      %4358 = vmatprep.subr.bf16.mxu0 0
      %4359 = vmatpush1.bf16.msra.mxu0 0
      %4360 = vmatprep.subr.bf16.mxu0 0
      %4361 = vmatpush1.bf16.msra.mxu0 0
      %4362 = vmatprep.subr.bf16.mxu0 0
      %4363 = vmatpush1.bf16.msra.mxu0 0
      %4364 = vmatprep.subr.bf16.mxu0 0
      %4365 = vmatpush1.bf16.msra.mxu0 0
      %4366 = vmatprep.subr.bf16.mxu0 0
      %4367 = vmatpush1.bf16.msra.mxu0 0
      %4368 = vmatprep.subr.bf16.mxu0 0
      %4369 = vmatpush1.bf16.msra.mxu0 0
      %4370 = vmatprep.subr.bf16.mxu0 0
      %4371 = vmatpush1.bf16.msra.mxu0 0
      %4372 = vmatprep.mubr.bf16.mxu0 0
      %4373 = vmatmul.mubr.bf16.gmra.mrb[0].mxu0 %v4335
      %v4374 = vpop.f32.mrb[0].mxu0
      %v4375 = vadd.f32 %v4320, %v4374
      %v4376 = vpop.f32.mrb[0].mxu0
      %v4377 = vpop.f32.mrb[0].mxu0
      %v4378 = vadd.f32 %v4320, %v4377
      %v4379 = vpop.f32.mrb[0].mxu0
      %4380 = vmatprep.mubr.bf16.mxu0 0
      %4381 = vmatmul.mubr.bf16.gmra.mrb[0].mxu0 %v4338
      %v4382 = vpop.f32.mrb[0].mxu0
      %v4383 = vadd.f32 %v4320, %v4382
      %v4384 = vpop.f32.mrb[0].mxu0
      %v4385 = vpop.f32.mrb[0].mxu0
      %v4386 = vadd.f32 %v4320, %v4385
      %v4387 = vpop.f32.mrb[0].mxu0
      %4388 = vdwg.mxu0
      %v4389 = vmax.f32 %v4375, 0.0
      %v4390 = vmax.f32 %v4378, 0.0
      %v4391 = vmax.f32 %v4383, 0.0
      %v4392 = vmax.f32 %v4386, 0.0
      %v4393 = vpack.c.bf16 %v4390, %v4389
      %v4394 = vpack.c.bf16 %v4392, %v4391
      %v4396 = vlaneseq
      %v4397 = vshrl.u32 %v4396, 7
      %v4398 = vsub.s32 0, %v4397
      %v4399 = vrot.slane %v1026, %v4398
      %v4417 = vunpack.c.l.b16 %v1009
      %v4418 = vunpack.c.l.b16 %v1010
      %v4419 = vunpack.c.l.b16 %v1011
      %v4420 = vunpack.c.l.b16 %v1012
      %v4421 = vunpack.c.l.b16 %v1013
      %v4422 = vunpack.c.l.b16 %v1014
      %v4423 = vunpack.c.l.b16 %v1015
      %v4424 = vunpack.c.l.b16 %v1016
      %v4425 = vunpack.c.l.b16 %v1017
      %v4426 = vunpack.c.l.b16 %v1018
      %v4427 = vunpack.c.l.b16 %v1019
      %v4428 = vunpack.c.l.b16 %v1020
      %v4429 = vunpack.c.l.b16 %v1021
      %v4430 = vunpack.c.l.b16 %v1022
      %v4431 = vunpack.c.l.b16 %v1023
      %v4432 = vunpack.c.l.b16 %v1024
      %v4433 = vpack.c.b16 %v4418, %v4417
      %v4434 = vpack.c.b16 %v4420, %v4419
      %v4435 = vpack.c.b16 %v4422, %v4421
      %v4436 = vpack.c.b16 %v4424, %v4423
      %v4437 = vpack.c.b16 %v4426, %v4425
      %v4438 = vpack.c.b16 %v4428, %v4427
      %v4439 = vpack.c.b16 %v4430, %v4429
      %v4440 = vpack.c.b16 %v4432, %v4431
      %4449 = vmatprep.subr.bf16.mxu0 0
      %4450 = vmatpush1.bf16.msra.mxu0 %v4433
      %4451 = vmatprep.subr.bf16.mxu0 0
      %4452 = vmatpush1.bf16.msra.mxu0 %v4434
      %4453 = vmatprep.subr.bf16.mxu0 0
      %4454 = vmatpush1.bf16.msra.mxu0 %v4435
      %4455 = vmatprep.subr.bf16.mxu0 0
      %4456 = vmatpush1.bf16.msra.mxu0 %v4436
      %4457 = vmatprep.subr.bf16.mxu0 0
      %4458 = vmatpush1.bf16.msra.mxu0 %v4437
      %4459 = vmatprep.subr.bf16.mxu0 0
      %4460 = vmatpush1.bf16.msra.mxu0 %v4438
      %4461 = vmatprep.subr.bf16.mxu0 0
      %4462 = vmatpush1.bf16.msra.mxu0 %v4439
      %4463 = vmatprep.subr.bf16.mxu0 0
      %4464 = vmatpush1.bf16.msra.mxu0 %v4440
      %4465 = vmatprep.subr.bf16.mxu0 0
      %4466 = vmatpush1.bf16.msra.mxu0 0
      %4467 = vmatprep.subr.bf16.mxu0 0
      %4468 = vmatpush1.bf16.msra.mxu0 0
      %4469 = vmatprep.subr.bf16.mxu0 0
      %4470 = vmatpush1.bf16.msra.mxu0 0
      %4471 = vmatprep.subr.bf16.mxu0 0
      %4472 = vmatpush1.bf16.msra.mxu0 0
      %4473 = vmatprep.subr.bf16.mxu0 0
      %4474 = vmatpush1.bf16.msra.mxu0 0
      %4475 = vmatprep.subr.bf16.mxu0 0
      %4476 = vmatpush1.bf16.msra.mxu0 0
      %4477 = vmatprep.subr.bf16.mxu0 0
      %4478 = vmatpush1.bf16.msra.mxu0 0
      %4479 = vmatprep.subr.bf16.mxu0 0
      %4480 = vmatpush1.bf16.msra.mxu0 0
      %4481 = vmatprep.mubr.bf16.mxu0 0
      %4482 = vmatmul.mubr.bf16.gmra.mrb[0].mxu0 %v4393
      %v4483 = vpop.f32.mrb[0].mxu0
      %v4484 = vadd.f32 %v4399, %v4483
      %v4485 = vpop.f32.mrb[0].mxu0
      %v4486 = vpop.f32.mrb[0].mxu0
      %v4487 = vadd.f32 %v4399, %v4486
      %v4488 = vpop.f32.mrb[0].mxu0
      %4489 = vmatprep.mubr.bf16.mxu0 0
      %4490 = vmatmul.mubr.bf16.gmra.mrb[0].mxu0 %v4394
      %v4491 = vpop.f32.mrb[0].mxu0
      %v4492 = vadd.f32 %v4399, %v4491
      %v4493 = vpop.f32.mrb[0].mxu0
      %v4494 = vpop.f32.mrb[0].mxu0
      %v4495 = vadd.f32 %v4399, %v4494
      %v4496 = vpop.f32.mrb[0].mxu0
      %4497 = vdwg.mxu0
      %v4498 = vadd.f32 %v4310, %v4484
      %v4499 = vadd.f32 %v4311, %v4487
      %v4500 = vadd.f32 %v4312, %v4492
      %v4501 = vadd.f32 %v4313, %v4495
      %v4502 = vsel %vm1227, %v4498, 0.0
      %4503 = vadd.xlane.f32.xlu0 %v4502
      %v4504 = vpop.xlane.xlu0 %4503
      %v4505 = vsel %vm1227, %v4499, 0.0
      %4506 = vadd.xlane.f32.xlu0 %v4505
      %v4507 = vpop.xlane.xlu0 %4506
      %v4508 = vsel %vm1227, %v4500, 0.0
      %4509 = vadd.xlane.f32.xlu0 %v4508
      %v4510 = vpop.xlane.xlu0 %4509
      %v4511 = vsel %vm1227, %v4501, 0.0
      %4512 = vadd.xlane.f32.xlu0 %v4511
      %v4513 = vpop.xlane.xlu0 %4512
      %v4514 = vmul.f32 %v4504, %v2572
      %v4515 = vmul.f32 %v4507, %v2572
      %v4516 = vmul.f32 %v4510, %v2572
      %v4517 = vmul.f32 %v4513, %v2572
      %v4518 = vsub.f32 %v4498, %v4514
      %v4519 = vsub.f32 %v4499, %v4515
      %v4520 = vsub.f32 %v4500, %v4516
      %v4521 = vsub.f32 %v4501, %v4517
      %v4522 = vmul.f32 %v4518, %v4518
      %v4523 = vmul.f32 %v4519, %v4519
      %v4524 = vmul.f32 %v4520, %v4520
      %v4525 = vmul.f32 %v4521, %v4521
      %v4526 = vsel %vm1227, %v4522, 0.0
      %4527 = vadd.xlane.f32.xlu0 %v4526
      %v4528 = vpop.xlane.xlu0 %4527
      %v4529 = vsel %vm1227, %v4523, 0.0
      %4530 = vadd.xlane.f32.xlu0 %v4529
      %v4531 = vpop.xlane.xlu0 %4530
      %v4532 = vsel %vm1227, %v4524, 0.0
      %4533 = vadd.xlane.f32.xlu0 %v4532
      %v4534 = vpop.xlane.xlu0 %4533
      %v4535 = vsel %vm1227, %v4525, 0.0
      %4536 = vadd.xlane.f32.xlu0 %v4535
      %v4537 = vpop.xlane.xlu0 %4536
      %v4538 = vmul.f32 %v4528, %v2572
      %v4539 = vmul.f32 %v4531, %v2572
      %v4540 = vmul.f32 %v4534, %v2572
      %v4541 = vmul.f32 %v4537, %v2572
      %v4542 = vadd.f32 %v4538, 1e-05
      %v4543 = vadd.f32 %v4539, 1e-05
      %v4544 = vadd.f32 %v4540, 1e-05
      %v4545 = vadd.f32 %v4541, 1e-05
      %v4546 = vrsqrt.pop %v4542
      %v4547 = vrsqrt.pop %v4543
      %v4548 = vrsqrt.pop %v4544
      %v4549 = vrsqrt.pop %v4545
      %v4550 = vmul.f32 %v4518, %v4546
      %v4551 = vmul.f32 %v4519, %v4547
      %v4552 = vmul.f32 %v4520, %v4548
      %v4553 = vmul.f32 %v4521, %v4549
      %v4555 = vlaneseq
      %v4556 = vshrl.u32 %v4555, 7
      %v4557 = vsub.s32 0, %v4556
      %v4558 = vrot.slane %v1032, %v4557
      %v4560 = vmul.f32 %v4550, %v4558
      %v4561 = vmul.f32 %v4551, %v4558
      %v4562 = vmul.f32 %v4552, %v4558
      %v4563 = vmul.f32 %v4553, %v4558
      %v4565 = vlaneseq
      %v4566 = vshrl.u32 %v4565, 7
      %v4567 = vsub.s32 0, %v4566
      %v4568 = vrot.slane %v1034, %v4567
      %v4570 = vadd.f32 %v4560, %v4568
      %v4571 = vadd.f32 %v4561, %v4568
      %v4572 = vadd.f32 %v4562, %v4568
      %v4573 = vadd.f32 %v4563, %v4568
      %v4574 = vpack.c.bf16 %v4571, %v4570
      %v4575 = vpack.c.bf16 %v4573, %v4572
      %v4577 = vlaneseq
      %v4578 = vshrl.u32 %v4577, 7
      %v4579 = vsub.s32 0, %v4578
      %v4580 = vrot.slane %v1039, %v4579
      %v4581 = vlaneseq
      %v4582 = vshrl.u32 %v4581, 7
      %v4583 = vsub.s32 1, %v4582
      %v4584 = vrot.slane %v1039, %v4583
      %v4591 = vunpack.c.l.b16 %v1035
      %v4592 = vunpack.c.h.b16 %v1035
      %v4593 = vunpack.c.l.b16 %v1036
      %v4594 = vunpack.c.h.b16 %v1036
      %v4595 = vunpack.c.l.b16 %v1037
      %v4596 = vunpack.c.h.b16 %v1037
      %v4597 = vunpack.c.l.b16 %v1038
      %v4598 = vunpack.c.h.b16 %v1038
      %v4599 = vpack.c.b16 %v4593, %v4591
      %v4600 = vpack.c.b16 %v4594, %v4592
      %v4601 = vpack.c.b16 %v4597, %v4595
      %v4602 = vpack.c.b16 %v4598, %v4596
      %v4608 = vsel %vm1227, %v4574, 0
      %v4611 = vsel %vm1227, %v4575, 0
      %4613 = vmatprep.subr.bf16.mxu0 %v4600
      %4614 = vmatpush1.bf16.msra.mxu0 %v4599
      %4615 = vmatprep.subr.bf16.mxu0 %v4602
      %4616 = vmatpush1.bf16.msra.mxu0 %v4601
      %4617 = vmatprep.subr.bf16.mxu0 0
      %4618 = vmatpush1.bf16.msra.mxu0 0
      %4619 = vmatprep.subr.bf16.mxu0 0
      %4620 = vmatpush1.bf16.msra.mxu0 0
      %4621 = vmatprep.subr.bf16.mxu0 0
      %4622 = vmatpush1.bf16.msra.mxu0 0
      %4623 = vmatprep.subr.bf16.mxu0 0
      %4624 = vmatpush1.bf16.msra.mxu0 0
      %4625 = vmatprep.subr.bf16.mxu0 0
      %4626 = vmatpush1.bf16.msra.mxu0 0
      %4627 = vmatprep.subr.bf16.mxu0 0
      %4628 = vmatpush1.bf16.msra.mxu0 0
      %4629 = vmatprep.subr.bf16.mxu0 0
      %4630 = vmatpush1.bf16.msra.mxu0 0
      %4631 = vmatprep.subr.bf16.mxu0 0
      %4632 = vmatpush1.bf16.msra.mxu0 0
      %4633 = vmatprep.subr.bf16.mxu0 0
      %4634 = vmatpush1.bf16.msra.mxu0 0
      %4635 = vmatprep.subr.bf16.mxu0 0
      %4636 = vmatpush1.bf16.msra.mxu0 0
      %4637 = vmatprep.subr.bf16.mxu0 0
      %4638 = vmatpush1.bf16.msra.mxu0 0
      %4639 = vmatprep.subr.bf16.mxu0 0
      %4640 = vmatpush1.bf16.msra.mxu0 0
      %4641 = vmatprep.subr.bf16.mxu0 0
      %4642 = vmatpush1.bf16.msra.mxu0 0
      %4643 = vmatprep.subr.bf16.mxu0 0
      %4644 = vmatpush1.bf16.msra.mxu0 0
      %4645 = vmatprep.mubr.bf16.mxu0 0
      %4646 = vmatmul.mubr.bf16.gmra.mrb[0].mxu0 %v4608
      %v4647 = vpop.f32.mrb[0].mxu0
      %v4648 = vadd.f32 %v4580, %v4647
      %v4649 = vpop.f32.mrb[0].mxu0
      %v4650 = vadd.f32 %v4584, %v4649
      %v4651 = vpop.f32.mrb[0].mxu0
      %v4652 = vadd.f32 %v4580, %v4651
      %v4653 = vpop.f32.mrb[0].mxu0
      %v4654 = vadd.f32 %v4584, %v4653
      %4655 = vmatprep.mubr.bf16.mxu0 0
      %4656 = vmatmul.mubr.bf16.gmra.mrb[0].mxu0 %v4611
      %v4657 = vpop.f32.mrb[0].mxu0
      %v4658 = vadd.f32 %v4580, %v4657
      %v4659 = vpop.f32.mrb[0].mxu0
      %v4660 = vadd.f32 %v4584, %v4659
      %v4661 = vpop.f32.mrb[0].mxu0
      %v4662 = vadd.f32 %v4580, %v4661
      %v4663 = vpop.f32.mrb[0].mxu0
      %v4664 = vadd.f32 %v4584, %v4663
      %4665 = vdwg.mxu0
      %v4666 = vadd.f32 %v1040, %v4648
      %v4667 = vadd.f32 %v1041, %v4650
      %v4668 = vadd.f32 %v1042, %v4652
      %v4669 = vadd.f32 %v1043, %v4654
      %v4670 = vadd.f32 %v1044, %v4658
      %v4671 = vadd.f32 %v1045, %v4660
      %v4672 = vadd.f32 %v1046, %v4662
      %v4673 = vadd.f32 %v1047, %v4664
      %v4674 = vmax.f32 %v4666, 0.0
      %v4675 = vmax.f32 %v4667, 0.0
      %v4676 = vmax.f32 %v4668, 0.0
      %v4677 = vmax.f32 %v4669, 0.0
      %v4678 = vmax.f32 %v4670, 0.0
      %v4679 = vmax.f32 %v4671, 0.0
      %v4680 = vmax.f32 %v4672, 0.0
      %v4681 = vmax.f32 %v4673, 0.0
      %v4682 = vmin.f32 %v4674, 1.0
      %v4683 = vmin.f32 %v4675, 1.0
      %v4684 = vmin.f32 %v4676, 1.0
      %v4685 = vmin.f32 %v4677, 1.0
      %v4686 = vmin.f32 %v4678, 1.0
      %v4687 = vmin.f32 %v4679, 1.0
      %v4688 = vmin.f32 %v4680, 1.0
      %v4689 = vmin.f32 %v4681, 1.0
      %4690 = vst [vmem:[%s925] sm:$0xff] %v4682
      %4691 = vst [vmem:[%s925 + $0x8] sm:$0xff] %v4683
      %4692 = vst [vmem:[%s925 + $0x10] sm:$0xff] %v4684
      %4693 = vst [vmem:[%s925 + $0x18] sm:$0xff] %v4685
      %4694 = vst [vmem:[%s925 + $0x20] sm:$0xff] %v4686
      %4695 = vst [vmem:[%s925 + $0x28] sm:$0xff] %v4687
      %4696 = vst [vmem:[%s925 + $0x30] sm:$0xff] %v4688
      %4697 = vst [vmem:[%s925 + $0x38] sm:$0xff] %v4689
      %s4698 = smul.u32 2, %s34
      %p4699 = scmp.lt.s32.totalorder %s33, 4
      %s4700 = scalar_select %p4699, %s33, 4
      %p4701 = scmp.lt.s32.totalorder %s4698, 1
      %s4702 = scalar_select %p4701, %s4698, 1
      %s4703 = smul.addr %s4702, 4
      %s4704 = smul.addr %s4700, 8
      %s4705 = sadd.s32 %s4703, %s4704
      %s4706 = smul.addr %s4705, 8
      %s4707 = scalar_lea.vmem %s18, %s4706
      // Predicated region
      $region93: #{_lambda_.1} parent=91 // pred_check
        %p4708 = pneg %p531
      $region94: #{_lambda_.1} parent=91 // pred_check_branch
        %4710 = sbr.rel (%p4708) target = $region96
      $region95: #{_lambda_.1} parent=91 // pred_region
        %s4711 = smul.u32 2, %s34
      $region96: #{_lambda_.1} parent=91 // pred_fallthru
        _
    $region92: #{_lambda_.1} parent=5 // pred_fallthru
      _
    %p4712 = scmp.le.s32.totalorder 2, %s24
    // Predicated region
    $region97: #{_lambda_.1} parent=5 // pred_check
      %p4713 = pneg %p4712
    $region98: #{_lambda_.1} parent=5 // pred_check_branch
      %4715 = sbr.rel (%p4713) target = $region100
    $region99: #{_lambda_.1} parent=5 // pred_region
      %s4716 = ssub.s32 %s24, 2
      // Predicated region
      $region101: #{_lambda_.1} parent=99 // pred_check
        %p4717 = pneg %p537
      $region102: #{_lambda_.1} parent=99 // pred_check_branch
        %4719 = sbr.rel (%p4717) target = $region104
      $region103: #{_lambda_.1} parent=99 // pred_region
        %s4720 = smul.u32 2, %s36
        %p4721 = scmp.lt.s32.totalorder %s35, 4
        %s4722 = scalar_select %p4721, %s35, 4
        %p4723 = scmp.lt.s32.totalorder %s4720, 1
        %s4724 = scalar_select %p4723, %s4720, 1
        %s4725 = smul.addr %s4724, 4
        %s4726 = smul.addr %s4722, 8
        %s4727 = sadd.s32 %s4725, %s4726
        %s4728 = smul.addr %s4727, 8
        %s4729 = scalar_lea.vmem %s18, %s4728
      $region104: #{_lambda_.1} parent=99 // pred_fallthru
        _
    $region100: #{_lambda_.1} parent=5 // pred_fallthru
      _
  $region6: #{_lambda_.1} parent=0 // loop_footer
    %s28 = sadd.s32 1, %s24
  $region7: #{_lambda_.1} parent=0 // loop_footer_branch
    %23 = sbr.rel target = $region3
  $region8: #{_lambda_.1} parent=0 // loop_exit
    _

</llo_original>
